<compile_context>
chip_gen: v7x
topology: tpu7x:2x2x1
jax: 0.10.0
libtpu: 0.0.40
codegen_flags: <defaults>
</compile_context>

<pallas_src>
import numpy as np

import jax
import jax.numpy as jnp
from jax.experimental import pallas as pl
from jax.experimental.pallas import tpu as pltpu

CP = 128  # padded channel width: one full 128-lane vreg (lane-dense)

SAVE_LIST = [1]
RETURN_LAYERS = {"2": "0", "4": "1"}
OUT_CHANNELS = [16, 32]

# (cin, cout, k, stride, pad) for the four Conv nodes (node 3 is the concat).
CONV_DEFS = [
    (4, 8, 3, 2, 1),    # node 0
    (8, 16, 3, 2, 1),   # node 1 (saved)
    (16, 16, 3, 1, 1),  # node 2 -> return "0"
    (32, 32, 1, 1, 0),  # node 4 (after concat) -> return "1"
]


def _conv_hw(hw, k, s, p):
    return tuple((d + 2 * p - k) // s + 1 for d in hw)


# ----------------------------------------------------------------------------
# Parameter / constant packing (all done once, outside the traced forward)
# ----------------------------------------------------------------------------
def _tap_gather(h, w, k, s, p):
    """Constant 0/1 tap-selection matrices G[t], shape (k*k, Ho*Wo, H*W), bf16.

    (G[t] @ X)[oh*Wo + ow, :] == X[(s*oh + kh - p)*W + (s*ow + kw - p), :]
    (or 0 when the tap lands in the zero padding), i.e. they encode the stride
    and 'same' padding so each conv becomes k*k accumulated MXU matmuls inside
    the kernel — no im2col patches, no strided VMEM slicing.
    """
    ho, wo = _conv_hw((h, w), k, s, p)
    g = np.zeros((k * k, ho * wo, h * w), np.float32)
    for kh in range(k):
        for kw in range(k):
            t = kh * k + kw
            for oh in range(ho):
                ih = s * oh + kh - p
                if not 0 <= ih < h:
                    continue
                for ow in range(wo):
                    iw = s * ow + kw - p
                    if 0 <= iw < w:
                        g[t, oh * wo + ow, ih * w + iw] = 1.0
    return jnp.asarray(g, jnp.bfloat16)


def _pack_conv_weight(w_oihw):
    """(Cout,Cin,k,k) -> bf16 (k*k, CP, CP), tap-major (kh,kw), zero-padded."""
    cout, cin, k, _ = w_oihw.shape
    wt = jnp.transpose(w_oihw, (2, 3, 1, 0)).reshape(k * k, cin, cout)
    return jnp.pad(wt, ((0, 0), (0, CP - cin), (0, CP - cout))).astype(jnp.bfloat16)


def _pack_bias(b):
    return jnp.pad(b, (0, CP - b.shape[0])).reshape(1, CP).astype(jnp.float32)


def make_params(key, in_h=16, in_w=16):
    """Deterministic synthetic weights + pre-packed kernel operands."""
    raw = []
    for cin, cout, k, s, p in CONV_DEFS:
        key, k_w, k_b = jax.random.split(key, 3)
        fan_in = cin * k * k
        w = jax.random.normal(k_w, (cout, cin, k, k), jnp.float32) / float(np.sqrt(fan_in))
        b = jax.random.normal(k_b, (cout,), jnp.float32) * 0.01
        raw.append((w, b))

    hw0 = (in_h, in_w)
    hw1 = _conv_hw(hw0, 3, 2, 1)
    hw2 = _conv_hw(hw1, 3, 2, 1)

    # Node 3 + 4: concat([x, saved]) followed by 1x1 conv is a block matmul,
    # so split the 1x1 weight rows at build time:  x @ Wa + saved @ Wb.
    w4, b4 = raw[3]
    w4_mat = w4[:, :, 0, 0].T                      # (cin=32, cout=32)
    c_x = CONV_DEFS[2][1]                          # 16 channels come from node 2
    w4a = jnp.pad(w4_mat[:c_x], ((0, CP - c_x), (0, CP - w4_mat.shape[1])))
    w4b = jnp.pad(w4_mat[c_x:], ((0, CP - c_x), (0, CP - w4_mat.shape[1])))

    params = dict(
        g0=_tap_gather(*hw0, 3, 2, 1),
        w0=_pack_conv_weight(raw[0][0]), b0=_pack_bias(raw[0][1]),
        g1=_tap_gather(*hw1, 3, 2, 1),
        w1=_pack_conv_weight(raw[1][0]), b1=_pack_bias(raw[1][1]),
        g2=_tap_gather(*hw2, 3, 1, 1),
        w2=_pack_conv_weight(raw[2][0]), b2=_pack_bias(raw[2][1]),
        w4a=w4a.astype(jnp.bfloat16), w4b=w4b.astype(jnp.bfloat16),
        b4=_pack_bias(b4),
    )
    return params, raw


# ----------------------------------------------------------------------------
# The fused Pallas kernel: one grid step == one image through the whole backbone
# ----------------------------------------------------------------------------
def _backbone_kernel(x_ref,
                     g0_ref, w0_ref, b0_ref,
                     g1_ref, w1_ref, b1_ref,
                     g2_ref, w2_ref, b2_ref,
                     w4a_ref, w4b_ref, b4_ref,
                     out0_ref, out1_ref):
    """Mirrors IntermediateLayerGetter.forward for the synthetic yolo_body.

    Everything is VMEM-resident; bf16 operands feed the MXU, accumulation and
    bias/SiLU are in f32; only the two returned features are written back.
    """
    f32, bf16 = jnp.float32, jnp.bfloat16

    def conv_silu(x_bf, g_ref, w_ref, b_ref):
        taps, m_out = g_ref.shape[0], g_ref.shape[1]
        acc = jnp.zeros((m_out, CP), f32)            # f32 accumulator
        for t in range(taps):                        # static unroll over k*k taps
            tap = jnp.dot(g_ref[t], x_bf, preferred_element_type=f32)
            acc = acc + jnp.dot(tap.astype(bf16), w_ref[t],
                                preferred_element_type=f32)
        acc = acc + b_ref[...]                       # conv bias (BN shift folded)
        return acc * jax.nn.sigmoid(acc)             # SiLU (EUP/VPU), f32

    x0 = x_ref[0]                                                # (H*W, 128) bf16
    a1 = conv_silu(x0, g0_ref, w0_ref, b0_ref)                   # node 0
    a2 = conv_silu(a1.astype(bf16), g1_ref, w1_ref, b1_ref)      # node 1 (saved)
    a3 = conv_silu(a2.astype(bf16), g2_ref, w2_ref, b2_ref)      # node 2 -> "0"

    # nodes 3 + 4: concat with the saved feature + 1x1 conv, as a block matmul
    acc = jnp.dot(a3.astype(bf16), w4a_ref[...], preferred_element_type=f32)
    acc = acc + jnp.dot(a2.astype(bf16), w4b_ref[...], preferred_element_type=f32)
    acc = acc + b4_ref[...]
    a4 = acc * jax.nn.sigmoid(acc)                               # node 4 -> "1"

    out0_ref[0] = a3                                             # lane-dense stores
    out1_ref[0] = a4


# ----------------------------------------------------------------------------
# Wrapper (layout plumbing only — no compute outside the kernel)
# ----------------------------------------------------------------------------
def yolo_backbone_forward(x_nchw, params):
    n, c, h, w = x_nchw.shape
    hw1 = _conv_hw((h, w), 3, 2, 1)
    hw2 = _conv_hw(hw1, 3, 2, 1)
    hw3 = _conv_hw(hw2, 3, 1, 1)
    m_in, m_out = h * w, hw3[0] * hw3[1]
    assert params["g0"].shape[2] == m_in and params["g2"].shape[1] == m_out

    # NCHW -> (N, H*W, 128): channels-last rows, lane-padded, bf16 for the MXU.
    x_rows = jnp.transpose(x_nchw, (0, 2, 3, 1)).reshape(n, m_in, c)
    x_p = jnp.pad(x_rows, ((0, 0), (0, 0), (0, CP - c))).astype(jnp.bfloat16)

    def full(a):                       # whole array resident, same block each step
        shp = a.shape
        return pl.BlockSpec(shp, lambda i: (0,) * len(shp))

    def per_image(rows):               # one image per grid step
        return pl.BlockSpec((1, rows, CP), lambda i: (i, 0, 0))

    out0, out1 = pl.pallas_call(
        _backbone_kernel,
        grid=(n,),                     # batch axis; "parallel" -> megacore on v7x
        in_specs=[
            per_image(m_in),
            full(params["g0"]), full(params["w0"]), full(params["b0"]),
            full(params["g1"]), full(params["w1"]), full(params["b1"]),
            full(params["g2"]), full(params["w2"]), full(params["b2"]),
            full(params["w4a"]), full(params["w4b"]), full(params["b4"]),
        ],
        out_specs=[per_image(m_out), per_image(m_out)],
        out_shape=[
            jax.ShapeDtypeStruct((n, m_out, CP), jnp.float32),
            jax.ShapeDtypeStruct((n, m_out, CP), jnp.float32),
        ],
        compiler_params=pltpu.CompilerParams(dimension_semantics=("parallel",)),
    )(x_p, params["g0"], params["w0"], params["b0"],
      params["g1"], params["w1"], params["b1"],
      params["g2"], params["w2"], params["b2"],
      params["w4a"], params["w4b"], params["b4"])

    # strip the lane padding and return NCHW to match the PyTorch convention
    c0, c1 = OUT_CHANNELS
    f0 = out0[:, :, :c0].reshape(n, hw3[0], hw3[1], c0).transpose(0, 3, 1, 2)
    f1 = out1[:, :, :c1].reshape(n, hw3[0], hw3[1], c1).transpose(0, 3, 1, 2)
    return [f0, f1]


# ----------------------------------------------------------------------------
# Pure-JAX reference (mirrors IntermediateLayerGetter / YoloBackbone.forward)
# ----------------------------------------------------------------------------
def _reference_forward(x_nchw, raw):
    def conv_silu(x, w, b, s, p):
        y = jax.lax.conv_general_dilated(
            x, w, window_strides=(s, s), padding=[(p, p), (p, p)],
            dimension_numbers=("NCHW", "OIHW", "NCHW"))
        y = y + b[None, :, None, None]
        return y * jax.nn.sigmoid(y)

    outs, saved = [], []
    x = conv_silu(x_nchw, *raw[0], 2, 1)        # node 0
    x = conv_silu(x, *raw[1], 2, 1)             # node 1
    saved.append(x)                             # save_list = [1]
    x = conv_silu(x, *raw[2], 1, 1)             # node 2
    outs.append(x)                              # return "0"
    x = jnp.concatenate([x, saved[0]], axis=1)  # node 3 (f = 1)
    x = conv_silu(x, *raw[3], 1, 0)             # node 4
    outs.append(x)                              # return "1"
    return outs


if __name__ == "__main__":
    key = jax.random.PRNGKey(0)
    kx, kp = jax.random.split(key)
    x = jax.random.normal(kx, (2, 4, 16, 16), jnp.float32)   # NCHW input
    params, raw = make_params(kp, in_h=16, in_w=16)

    fwd = jax.jit(yolo_backbone_forward)
    feats = fwd(x, params)
    feats = [jax.block_until_ready(f) for f in feats]

    # shape / channel sanity (return-layer order "0" then "1", as in the module)
    assert feats[0].shape == (2, 16, 4, 4), feats[0].shape
    assert feats[1].shape == (2, 32, 4, 4), feats[1].shape
    assert [f.shape[1] for f in feats] == OUT_CHANNELS
    assert all(bool(jnp.all(jnp.isfinite(f))) for f in feats)

    # numerical check vs the pure-JAX f32 reference (kernel uses bf16 MXU
    # operands with f32 accumulation, so tolerance is loose but meaningful)
    refs = _reference_forward(x, raw)
    for got, ref in zip(feats, refs):
        err = float(jnp.max(jnp.abs(got - ref)))
        scale = max(1.0, float(jnp.max(jnp.abs(ref))))
        assert err <= 0.08 * scale, (err, scale)

    print("KERNEL_OK")
</pallas_src>

<mosaic_0001>
module attributes {stable_mosaic.version = 11 : i64} {
  func.func @_backbone_kernel(%arg0: i32, %arg1: memref<1x256x128xbf16, #tpu.memory_space<vmem>>, %arg2: memref<9x64x256xbf16, #tpu.memory_space<vmem>>, %arg3: memref<9x128x128xbf16, #tpu.memory_space<vmem>>, %arg4: memref<1x128xf32, #tpu.memory_space<vmem>>, %arg5: memref<9x16x64xbf16, #tpu.memory_space<vmem>>, %arg6: memref<9x128x128xbf16, #tpu.memory_space<vmem>>, %arg7: memref<1x128xf32, #tpu.memory_space<vmem>>, %arg8: memref<9x16x16xbf16, #tpu.memory_space<vmem>>, %arg9: memref<9x128x128xbf16, #tpu.memory_space<vmem>>, %arg10: memref<1x128xf32, #tpu.memory_space<vmem>>, %arg11: memref<128x128xbf16, #tpu.memory_space<vmem>>, %arg12: memref<128x128xbf16, #tpu.memory_space<vmem>>, %arg13: memref<1x128xf32, #tpu.memory_space<vmem>>, %arg14: memref<1x16x128xf32, #tpu.memory_space<vmem>>, %arg15: memref<1x16x128xf32, #tpu.memory_space<vmem>>) attributes {dimension_semantics = [#tpu.dimension_semantics<parallel>], iteration_bounds = array<i64: 2>, scalar_prefetch = 0 : i64, scratch_operands = 0 : i64, tpu.core_type = #tpu.core_type<tc>, window_params = [{transform_indices = @transform_0, window_bounds = array<i64: 1, 256, 128>}, {pipeline_mode = #tpu.pipeline_mode<synchronous>, transform_indices = @transform_1, window_bounds = array<i64: 9, 64, 256>}, {pipeline_mode = #tpu.pipeline_mode<synchronous>, transform_indices = @transform_2, window_bounds = array<i64: 9, 128, 128>}, {pipeline_mode = #tpu.pipeline_mode<synchronous>, transform_indices = @transform_3, window_bounds = array<i64: 1, 128>}, {pipeline_mode = #tpu.pipeline_mode<synchronous>, transform_indices = @transform_4, window_bounds = array<i64: 9, 16, 64>}, {pipeline_mode = #tpu.pipeline_mode<synchronous>, transform_indices = @transform_5, window_bounds = array<i64: 9, 128, 128>}, {pipeline_mode = #tpu.pipeline_mode<synchronous>, transform_indices = @transform_6, window_bounds = array<i64: 1, 128>}, {pipeline_mode = #tpu.pipeline_mode<synchronous>, transform_indices = @transform_7, window_bounds = array<i64: 9, 16, 16>}, {pipeline_mode = #tpu.pipeline_mode<synchronous>, transform_indices = @transform_8, window_bounds = array<i64: 9, 128, 128>}, {pipeline_mode = #tpu.pipeline_mode<synchronous>, transform_indices = @transform_9, window_bounds = array<i64: 1, 128>}, {pipeline_mode = #tpu.pipeline_mode<synchronous>, transform_indices = @transform_10, window_bounds = array<i64: 128, 128>}, {pipeline_mode = #tpu.pipeline_mode<synchronous>, transform_indices = @transform_11, window_bounds = array<i64: 128, 128>}, {pipeline_mode = #tpu.pipeline_mode<synchronous>, transform_indices = @transform_12, window_bounds = array<i64: 1, 128>}, {transform_indices = @transform_13, window_bounds = array<i64: 1, 16, 128>}, {transform_indices = @transform_14, window_bounds = array<i64: 1, 16, 128>}]} {
    %c0 = arith.constant 0 : index
    %c0_0 = arith.constant 0 : index
    %c0_1 = arith.constant 0 : index
    %0 = vector.load %arg1[%c0, %c0_0, %c0_1] : memref<1x256x128xbf16, #tpu.memory_space<vmem>>, vector<1x256x128xbf16>
    %1 = vector.shape_cast %0 : vector<1x256x128xbf16> to vector<256x128xbf16>
    %cst = arith.constant 0.000000e+00 : f32
    %2 = vector.broadcast %cst : f32 to vector<64x128xf32>
    %c0_2 = arith.constant 0 : index
    %c0_3 = arith.constant 0 : index
    %c0_4 = arith.constant 0 : index
    %3 = vector.load %arg2[%c0_2, %c0_3, %c0_4] : memref<9x64x256xbf16, #tpu.memory_space<vmem>>, vector<1x64x256xbf16>
    %4 = vector.shape_cast %3 : vector<1x64x256xbf16> to vector<64x256xbf16>
    %cst_5 = arith.constant dense<0.000000e+00> : vector<64x128xf32>
    %5 = tpu.matmul %4, %1, %cst_5 {dimension_numbers = #tpu.dot_dimension_numbers<[1], [0], [0], [1], [0, 0, 1, 1], [], []>} : vector<64x256xbf16>, vector<256x128xbf16>, vector<64x128xf32> -> vector<64x128xf32>
    %6 = arith.truncf %5 : vector<64x128xf32> to vector<64x128xbf16>
    %c0_6 = arith.constant 0 : index
    %c0_7 = arith.constant 0 : index
    %c0_8 = arith.constant 0 : index
    %7 = vector.load %arg3[%c0_6, %c0_7, %c0_8] : memref<9x128x128xbf16, #tpu.memory_space<vmem>>, vector<1x128x128xbf16>
    %8 = vector.shape_cast %7 : vector<1x128x128xbf16> to vector<128x128xbf16>
    %cst_9 = arith.constant dense<0.000000e+00> : vector<64x128xf32>
    %9 = tpu.matmul %6, %8, %cst_9 {dimension_numbers = #tpu.dot_dimension_numbers<[1], [0], [0], [1], [0, 0, 1, 1], [], []>} : vector<64x128xbf16>, vector<128x128xbf16>, vector<64x128xf32> -> vector<64x128xf32>
    %10 = arith.addf %2, %9 : vector<64x128xf32>
    %c1 = arith.constant 1 : index
    %c0_10 = arith.constant 0 : index
    %c0_11 = arith.constant 0 : index
    %11 = vector.load %arg2[%c1, %c0_10, %c0_11] : memref<9x64x256xbf16, #tpu.memory_space<vmem>>, vector<1x64x256xbf16>
    %12 = vector.shape_cast %11 : vector<1x64x256xbf16> to vector<64x256xbf16>
    %cst_12 = arith.constant dense<0.000000e+00> : vector<64x128xf32>
    %13 = tpu.matmul %12, %1, %cst_12 {dimension_numbers = #tpu.dot_dimension_numbers<[1], [0], [0], [1], [0, 0, 1, 1], [], []>} : vector<64x256xbf16>, vector<256x128xbf16>, vector<64x128xf32> -> vector<64x128xf32>
    %14 = arith.truncf %13 : vector<64x128xf32> to vector<64x128xbf16>
    %c1_13 = arith.constant 1 : index
    %c0_14 = arith.constant 0 : index
    %c0_15 = arith.constant 0 : index
    %15 = vector.load %arg3[%c1_13, %c0_14, %c0_15] : memref<9x128x128xbf16, #tpu.memory_space<vmem>>, vector<1x128x128xbf16>
    %16 = vector.shape_cast %15 : vector<1x128x128xbf16> to vector<128x128xbf16>
    %cst_16 = arith.constant dense<0.000000e+00> : vector<64x128xf32>
    %17 = tpu.matmul %14, %16, %cst_16 {dimension_numbers = #tpu.dot_dimension_numbers<[1], [0], [0], [1], [0, 0, 1, 1], [], []>} : vector<64x128xbf16>, vector<128x128xbf16>, vector<64x128xf32> -> vector<64x128xf32>
    %18 = arith.addf %10, %17 : vector<64x128xf32>
    %c2 = arith.constant 2 : index
    %c0_17 = arith.constant 0 : index
    %c0_18 = arith.constant 0 : index
    %19 = vector.load %arg2[%c2, %c0_17, %c0_18] : memref<9x64x256xbf16, #tpu.memory_space<vmem>>, vector<1x64x256xbf16>
    %20 = vector.shape_cast %19 : vector<1x64x256xbf16> to vector<64x256xbf16>
    %cst_19 = arith.constant dense<0.000000e+00> : vector<64x128xf32>
    %21 = tpu.matmul %20, %1, %cst_19 {dimension_numbers = #tpu.dot_dimension_numbers<[1], [0], [0], [1], [0, 0, 1, 1], [], []>} : vector<64x256xbf16>, vector<256x128xbf16>, vector<64x128xf32> -> vector<64x128xf32>
    %22 = arith.truncf %21 : vector<64x128xf32> to vector<64x128xbf16>
    %c2_20 = arith.constant 2 : index
    %c0_21 = arith.constant 0 : index
    %c0_22 = arith.constant 0 : index
    %23 = vector.load %arg3[%c2_20, %c0_21, %c0_22] : memref<9x128x128xbf16, #tpu.memory_space<vmem>>, vector<1x128x128xbf16>
    %24 = vector.shape_cast %23 : vector<1x128x128xbf16> to vector<128x128xbf16>
    %cst_23 = arith.constant dense<0.000000e+00> : vector<64x128xf32>
    %25 = tpu.matmul %22, %24, %cst_23 {dimension_numbers = #tpu.dot_dimension_numbers<[1], [0], [0], [1], [0, 0, 1, 1], [], []>} : vector<64x128xbf16>, vector<128x128xbf16>, vector<64x128xf32> -> vector<64x128xf32>
    %26 = arith.addf %18, %25 : vector<64x128xf32>
    %c3 = arith.constant 3 : index
    %c0_24 = arith.constant 0 : index
    %c0_25 = arith.constant 0 : index
    %27 = vector.load %arg2[%c3, %c0_24, %c0_25] : memref<9x64x256xbf16, #tpu.memory_space<vmem>>, vector<1x64x256xbf16>
    %28 = vector.shape_cast %27 : vector<1x64x256xbf16> to vector<64x256xbf16>
    %cst_26 = arith.constant dense<0.000000e+00> : vector<64x128xf32>
    %29 = tpu.matmul %28, %1, %cst_26 {dimension_numbers = #tpu.dot_dimension_numbers<[1], [0], [0], [1], [0, 0, 1, 1], [], []>} : vector<64x256xbf16>, vector<256x128xbf16>, vector<64x128xf32> -> vector<64x128xf32>
    %30 = arith.truncf %29 : vector<64x128xf32> to vector<64x128xbf16>
    %c3_27 = arith.constant 3 : index
    %c0_28 = arith.constant 0 : index
    %c0_29 = arith.constant 0 : index
    %31 = vector.load %arg3[%c3_27, %c0_28, %c0_29] : memref<9x128x128xbf16, #tpu.memory_space<vmem>>, vector<1x128x128xbf16>
    %32 = vector.shape_cast %31 : vector<1x128x128xbf16> to vector<128x128xbf16>
    %cst_30 = arith.constant dense<0.000000e+00> : vector<64x128xf32>
    %33 = tpu.matmul %30, %32, %cst_30 {dimension_numbers = #tpu.dot_dimension_numbers<[1], [0], [0], [1], [0, 0, 1, 1], [], []>} : vector<64x128xbf16>, vector<128x128xbf16>, vector<64x128xf32> -> vector<64x128xf32>
    %34 = arith.addf %26, %33 : vector<64x128xf32>
    %c4 = arith.constant 4 : index
    %c0_31 = arith.constant 0 : index
    %c0_32 = arith.constant 0 : index
    %35 = vector.load %arg2[%c4, %c0_31, %c0_32] : memref<9x64x256xbf16, #tpu.memory_space<vmem>>, vector<1x64x256xbf16>
    %36 = vector.shape_cast %35 : vector<1x64x256xbf16> to vector<64x256xbf16>
    %cst_33 = arith.constant dense<0.000000e+00> : vector<64x128xf32>
    %37 = tpu.matmul %36, %1, %cst_33 {dimension_numbers = #tpu.dot_dimension_numbers<[1], [0], [0], [1], [0, 0, 1, 1], [], []>} : vector<64x256xbf16>, vector<256x128xbf16>, vector<64x128xf32> -> vector<64x128xf32>
    %38 = arith.truncf %37 : vector<64x128xf32> to vector<64x128xbf16>
    %c4_34 = arith.constant 4 : index
    %c0_35 = arith.constant 0 : index
    %c0_36 = arith.constant 0 : index
    %39 = vector.load %arg3[%c4_34, %c0_35, %c0_36] : memref<9x128x128xbf16, #tpu.memory_space<vmem>>, vector<1x128x128xbf16>
    %40 = vector.shape_cast %39 : vector<1x128x128xbf16> to vector<128x128xbf16>
    %cst_37 = arith.constant dense<0.000000e+00> : vector<64x128xf32>
    %41 = tpu.matmul %38, %40, %cst_37 {dimension_numbers = #tpu.dot_dimension_numbers<[1], [0], [0], [1], [0, 0, 1, 1], [], []>} : vector<64x128xbf16>, vector<128x128xbf16>, vector<64x128xf32> -> vector<64x128xf32>
    %42 = arith.addf %34, %41 : vector<64x128xf32>
    %c5 = arith.constant 5 : index
    %c0_38 = arith.constant 0 : index
    %c0_39 = arith.constant 0 : index
    %43 = vector.load %arg2[%c5, %c0_38, %c0_39] : memref<9x64x256xbf16, #tpu.memory_space<vmem>>, vector<1x64x256xbf16>
    %44 = vector.shape_cast %43 : vector<1x64x256xbf16> to vector<64x256xbf16>
    %cst_40 = arith.constant dense<0.000000e+00> : vector<64x128xf32>
    %45 = tpu.matmul %44, %1, %cst_40 {dimension_numbers = #tpu.dot_dimension_numbers<[1], [0], [0], [1], [0, 0, 1, 1], [], []>} : vector<64x256xbf16>, vector<256x128xbf16>, vector<64x128xf32> -> vector<64x128xf32>
    %46 = arith.truncf %45 : vector<64x128xf32> to vector<64x128xbf16>
    %c5_41 = arith.constant 5 : index
    %c0_42 = arith.constant 0 : index
    %c0_43 = arith.constant 0 : index
    %47 = vector.load %arg3[%c5_41, %c0_42, %c0_43] : memref<9x128x128xbf16, #tpu.memory_space<vmem>>, vector<1x128x128xbf16>
    %48 = vector.shape_cast %47 : vector<1x128x128xbf16> to vector<128x128xbf16>
    %cst_44 = arith.constant dense<0.000000e+00> : vector<64x128xf32>
    %49 = tpu.matmul %46, %48, %cst_44 {dimension_numbers = #tpu.dot_dimension_numbers<[1], [0], [0], [1], [0, 0, 1, 1], [], []>} : vector<64x128xbf16>, vector<128x128xbf16>, vector<64x128xf32> -> vector<64x128xf32>
    %50 = arith.addf %42, %49 : vector<64x128xf32>
    %c6 = arith.constant 6 : index
    %c0_45 = arith.constant 0 : index
    %c0_46 = arith.constant 0 : index
    %51 = vector.load %arg2[%c6, %c0_45, %c0_46] : memref<9x64x256xbf16, #tpu.memory_space<vmem>>, vector<1x64x256xbf16>
    %52 = vector.shape_cast %51 : vector<1x64x256xbf16> to vector<64x256xbf16>
    %cst_47 = arith.constant dense<0.000000e+00> : vector<64x128xf32>
    %53 = tpu.matmul %52, %1, %cst_47 {dimension_numbers = #tpu.dot_dimension_numbers<[1], [0], [0], [1], [0, 0, 1, 1], [], []>} : vector<64x256xbf16>, vector<256x128xbf16>, vector<64x128xf32> -> vector<64x128xf32>
    %54 = arith.truncf %53 : vector<64x128xf32> to vector<64x128xbf16>
    %c6_48 = arith.constant 6 : index
    %c0_49 = arith.constant 0 : index
    %c0_50 = arith.constant 0 : index
    %55 = vector.load %arg3[%c6_48, %c0_49, %c0_50] : memref<9x128x128xbf16, #tpu.memory_space<vmem>>, vector<1x128x128xbf16>
    %56 = vector.shape_cast %55 : vector<1x128x128xbf16> to vector<128x128xbf16>
    %cst_51 = arith.constant dense<0.000000e+00> : vector<64x128xf32>
    %57 = tpu.matmul %54, %56, %cst_51 {dimension_numbers = #tpu.dot_dimension_numbers<[1], [0], [0], [1], [0, 0, 1, 1], [], []>} : vector<64x128xbf16>, vector<128x128xbf16>, vector<64x128xf32> -> vector<64x128xf32>
    %58 = arith.addf %50, %57 : vector<64x128xf32>
    %c7 = arith.constant 7 : index
    %c0_52 = arith.constant 0 : index
    %c0_53 = arith.constant 0 : index
    %59 = vector.load %arg2[%c7, %c0_52, %c0_53] : memref<9x64x256xbf16, #tpu.memory_space<vmem>>, vector<1x64x256xbf16>
    %60 = vector.shape_cast %59 : vector<1x64x256xbf16> to vector<64x256xbf16>
    %cst_54 = arith.constant dense<0.000000e+00> : vector<64x128xf32>
    %61 = tpu.matmul %60, %1, %cst_54 {dimension_numbers = #tpu.dot_dimension_numbers<[1], [0], [0], [1], [0, 0, 1, 1], [], []>} : vector<64x256xbf16>, vector<256x128xbf16>, vector<64x128xf32> -> vector<64x128xf32>
    %62 = arith.truncf %61 : vector<64x128xf32> to vector<64x128xbf16>
    %c7_55 = arith.constant 7 : index
    %c0_56 = arith.constant 0 : index
    %c0_57 = arith.constant 0 : index
    %63 = vector.load %arg3[%c7_55, %c0_56, %c0_57] : memref<9x128x128xbf16, #tpu.memory_space<vmem>>, vector<1x128x128xbf16>
    %64 = vector.shape_cast %63 : vector<1x128x128xbf16> to vector<128x128xbf16>
    %cst_58 = arith.constant dense<0.000000e+00> : vector<64x128xf32>
    %65 = tpu.matmul %62, %64, %cst_58 {dimension_numbers = #tpu.dot_dimension_numbers<[1], [0], [0], [1], [0, 0, 1, 1], [], []>} : vector<64x128xbf16>, vector<128x128xbf16>, vector<64x128xf32> -> vector<64x128xf32>
    %66 = arith.addf %58, %65 : vector<64x128xf32>
    %c8 = arith.constant 8 : index
    %c0_59 = arith.constant 0 : index
    %c0_60 = arith.constant 0 : index
    %67 = vector.load %arg2[%c8, %c0_59, %c0_60] : memref<9x64x256xbf16, #tpu.memory_space<vmem>>, vector<1x64x256xbf16>
    %68 = vector.shape_cast %67 : vector<1x64x256xbf16> to vector<64x256xbf16>
    %cst_61 = arith.constant dense<0.000000e+00> : vector<64x128xf32>
    %69 = tpu.matmul %68, %1, %cst_61 {dimension_numbers = #tpu.dot_dimension_numbers<[1], [0], [0], [1], [0, 0, 1, 1], [], []>} : vector<64x256xbf16>, vector<256x128xbf16>, vector<64x128xf32> -> vector<64x128xf32>
    %70 = arith.truncf %69 : vector<64x128xf32> to vector<64x128xbf16>
    %c8_62 = arith.constant 8 : index
    %c0_63 = arith.constant 0 : index
    %c0_64 = arith.constant 0 : index
    %71 = vector.load %arg3[%c8_62, %c0_63, %c0_64] : memref<9x128x128xbf16, #tpu.memory_space<vmem>>, vector<1x128x128xbf16>
    %72 = vector.shape_cast %71 : vector<1x128x128xbf16> to vector<128x128xbf16>
    %cst_65 = arith.constant dense<0.000000e+00> : vector<64x128xf32>
    %73 = tpu.matmul %70, %72, %cst_65 {dimension_numbers = #tpu.dot_dimension_numbers<[1], [0], [0], [1], [0, 0, 1, 1], [], []>} : vector<64x128xbf16>, vector<128x128xbf16>, vector<64x128xf32> -> vector<64x128xf32>
    %74 = arith.addf %66, %73 : vector<64x128xf32>
    %c0_66 = arith.constant 0 : index
    %c0_67 = arith.constant 0 : index
    %75 = vector.load %arg4[%c0_66, %c0_67] : memref<1x128xf32, #tpu.memory_space<vmem>>, vector<1x128xf32>
    %76 = vector.broadcast %75 : vector<1x128xf32> to vector<64x128xf32>
    %77 = arith.addf %74, %76 : vector<64x128xf32>
    %78 = arith.negf %77 : vector<64x128xf32>
    %79 = math.exp %78 : vector<64x128xf32>
    %cst_68 = arith.constant 1.000000e+00 : f32
    %80 = vector.broadcast %cst_68 : f32 to vector<64x128xf32>
    %81 = arith.addf %80, %79 : vector<64x128xf32>
    %82 = arith.divf %80, %81 : vector<64x128xf32>
    %83 = arith.mulf %77, %82 : vector<64x128xf32>
    %84 = arith.truncf %83 : vector<64x128xf32> to vector<64x128xbf16>
    %cst_69 = arith.constant 0.000000e+00 : f32
    %85 = vector.broadcast %cst_69 : f32 to vector<16x128xf32>
    %c0_70 = arith.constant 0 : index
    %c0_71 = arith.constant 0 : index
    %c0_72 = arith.constant 0 : index
    %86 = vector.load %arg5[%c0_70, %c0_71, %c0_72] : memref<9x16x64xbf16, #tpu.memory_space<vmem>>, vector<1x16x64xbf16>
    %87 = vector.shape_cast %86 : vector<1x16x64xbf16> to vector<16x64xbf16>
    %cst_73 = arith.constant dense<0.000000e+00> : vector<16x128xf32>
    %88 = tpu.matmul %87, %84, %cst_73 {dimension_numbers = #tpu.dot_dimension_numbers<[1], [0], [0], [1], [0, 0, 1, 1], [], []>} : vector<16x64xbf16>, vector<64x128xbf16>, vector<16x128xf32> -> vector<16x128xf32>
    %89 = arith.truncf %88 : vector<16x128xf32> to vector<16x128xbf16>
    %c0_74 = arith.constant 0 : index
    %c0_75 = arith.constant 0 : index
    %c0_76 = arith.constant 0 : index
    %90 = vector.load %arg6[%c0_74, %c0_75, %c0_76] : memref<9x128x128xbf16, #tpu.memory_space<vmem>>, vector<1x128x128xbf16>
    %91 = vector.shape_cast %90 : vector<1x128x128xbf16> to vector<128x128xbf16>
    %cst_77 = arith.constant dense<0.000000e+00> : vector<16x128xf32>
    %92 = tpu.matmul %89, %91, %cst_77 {dimension_numbers = #tpu.dot_dimension_numbers<[1], [0], [0], [1], [0, 0, 1, 1], [], []>} : vector<16x128xbf16>, vector<128x128xbf16>, vector<16x128xf32> -> vector<16x128xf32>
    %93 = arith.addf %85, %92 : vector<16x128xf32>
    %c1_78 = arith.constant 1 : index
    %c0_79 = arith.constant 0 : index
    %c0_80 = arith.constant 0 : index
    %94 = vector.load %arg5[%c1_78, %c0_79, %c0_80] : memref<9x16x64xbf16, #tpu.memory_space<vmem>>, vector<1x16x64xbf16>
    %95 = vector.shape_cast %94 : vector<1x16x64xbf16> to vector<16x64xbf16>
    %cst_81 = arith.constant dense<0.000000e+00> : vector<16x128xf32>
    %96 = tpu.matmul %95, %84, %cst_81 {dimension_numbers = #tpu.dot_dimension_numbers<[1], [0], [0], [1], [0, 0, 1, 1], [], []>} : vector<16x64xbf16>, vector<64x128xbf16>, vector<16x128xf32> -> vector<16x128xf32>
    %97 = arith.truncf %96 : vector<16x128xf32> to vector<16x128xbf16>
    %c1_82 = arith.constant 1 : index
    %c0_83 = arith.constant 0 : index
    %c0_84 = arith.constant 0 : index
    %98 = vector.load %arg6[%c1_82, %c0_83, %c0_84] : memref<9x128x128xbf16, #tpu.memory_space<vmem>>, vector<1x128x128xbf16>
    %99 = vector.shape_cast %98 : vector<1x128x128xbf16> to vector<128x128xbf16>
    %cst_85 = arith.constant dense<0.000000e+00> : vector<16x128xf32>
    %100 = tpu.matmul %97, %99, %cst_85 {dimension_numbers = #tpu.dot_dimension_numbers<[1], [0], [0], [1], [0, 0, 1, 1], [], []>} : vector<16x128xbf16>, vector<128x128xbf16>, vector<16x128xf32> -> vector<16x128xf32>
    %101 = arith.addf %93, %100 : vector<16x128xf32>
    %c2_86 = arith.constant 2 : index
    %c0_87 = arith.constant 0 : index
    %c0_88 = arith.constant 0 : index
    %102 = vector.load %arg5[%c2_86, %c0_87, %c0_88] : memref<9x16x64xbf16, #tpu.memory_space<vmem>>, vector<1x16x64xbf16>
    %103 = vector.shape_cast %102 : vector<1x16x64xbf16> to vector<16x64xbf16>
    %cst_89 = arith.constant dense<0.000000e+00> : vector<16x128xf32>
    %104 = tpu.matmul %103, %84, %cst_89 {dimension_numbers = #tpu.dot_dimension_numbers<[1], [0], [0], [1], [0, 0, 1, 1], [], []>} : vector<16x64xbf16>, vector<64x128xbf16>, vector<16x128xf32> -> vector<16x128xf32>
    %105 = arith.truncf %104 : vector<16x128xf32> to vector<16x128xbf16>
    %c2_90 = arith.constant 2 : index
    %c0_91 = arith.constant 0 : index
    %c0_92 = arith.constant 0 : index
    %106 = vector.load %arg6[%c2_90, %c0_91, %c0_92] : memref<9x128x128xbf16, #tpu.memory_space<vmem>>, vector<1x128x128xbf16>
    %107 = vector.shape_cast %106 : vector<1x128x128xbf16> to vector<128x128xbf16>
    %cst_93 = arith.constant dense<0.000000e+00> : vector<16x128xf32>
    %108 = tpu.matmul %105, %107, %cst_93 {dimension_numbers = #tpu.dot_dimension_numbers<[1], [0], [0], [1], [0, 0, 1, 1], [], []>} : vector<16x128xbf16>, vector<128x128xbf16>, vector<16x128xf32> -> vector<16x128xf32>
    %109 = arith.addf %101, %108 : vector<16x128xf32>
    %c3_94 = arith.constant 3 : index
    %c0_95 = arith.constant 0 : index
    %c0_96 = arith.constant 0 : index
    %110 = vector.load %arg5[%c3_94, %c0_95, %c0_96] : memref<9x16x64xbf16, #tpu.memory_space<vmem>>, vector<1x16x64xbf16>
    %111 = vector.shape_cast %110 : vector<1x16x64xbf16> to vector<16x64xbf16>
    %cst_97 = arith.constant dense<0.000000e+00> : vector<16x128xf32>
    %112 = tpu.matmul %111, %84, %cst_97 {dimension_numbers = #tpu.dot_dimension_numbers<[1], [0], [0], [1], [0, 0, 1, 1], [], []>} : vector<16x64xbf16>, vector<64x128xbf16>, vector<16x128xf32> -> vector<16x128xf32>
    %113 = arith.truncf %112 : vector<16x128xf32> to vector<16x128xbf16>
    %c3_98 = arith.constant 3 : index
    %c0_99 = arith.constant 0 : index
    %c0_100 = arith.constant 0 : index
    %114 = vector.load %arg6[%c3_98, %c0_99, %c0_100] : memref<9x128x128xbf16, #tpu.memory_space<vmem>>, vector<1x128x128xbf16>
    %115 = vector.shape_cast %114 : vector<1x128x128xbf16> to vector<128x128xbf16>
    %cst_101 = arith.constant dense<0.000000e+00> : vector<16x128xf32>
    %116 = tpu.matmul %113, %115, %cst_101 {dimension_numbers = #tpu.dot_dimension_numbers<[1], [0], [0], [1], [0, 0, 1, 1], [], []>} : vector<16x128xbf16>, vector<128x128xbf16>, vector<16x128xf32> -> vector<16x128xf32>
    %117 = arith.addf %109, %116 : vector<16x128xf32>
    %c4_102 = arith.constant 4 : index
    %c0_103 = arith.constant 0 : index
    %c0_104 = arith.constant 0 : index
    %118 = vector.load %arg5[%c4_102, %c0_103, %c0_104] : memref<9x16x64xbf16, #tpu.memory_space<vmem>>, vector<1x16x64xbf16>
    %119 = vector.shape_cast %118 : vector<1x16x64xbf16> to vector<16x64xbf16>
    %cst_105 = arith.constant dense<0.000000e+00> : vector<16x128xf32>
    %120 = tpu.matmul %119, %84, %cst_105 {dimension_numbers = #tpu.dot_dimension_numbers<[1], [0], [0], [1], [0, 0, 1, 1], [], []>} : vector<16x64xbf16>, vector<64x128xbf16>, vector<16x128xf32> -> vector<16x128xf32>
    %121 = arith.truncf %120 : vector<16x128xf32> to vector<16x128xbf16>
    %c4_106 = arith.constant 4 : index
    %c0_107 = arith.constant 0 : index
    %c0_108 = arith.constant 0 : index
    %122 = vector.load %arg6[%c4_106, %c0_107, %c0_108] : memref<9x128x128xbf16, #tpu.memory_space<vmem>>, vector<1x128x128xbf16>
    %123 = vector.shape_cast %122 : vector<1x128x128xbf16> to vector<128x128xbf16>
    %cst_109 = arith.constant dense<0.000000e+00> : vector<16x128xf32>
    %124 = tpu.matmul %121, %123, %cst_109 {dimension_numbers = #tpu.dot_dimension_numbers<[1], [0], [0], [1], [0, 0, 1, 1], [], []>} : vector<16x128xbf16>, vector<128x128xbf16>, vector<16x128xf32> -> vector<16x128xf32>
    %125 = arith.addf %117, %124 : vector<16x128xf32>
    %c5_110 = arith.constant 5 : index
    %c0_111 = arith.constant 0 : index
    %c0_112 = arith.constant 0 : index
    %126 = vector.load %arg5[%c5_110, %c0_111, %c0_112] : memref<9x16x64xbf16, #tpu.memory_space<vmem>>, vector<1x16x64xbf16>
    %127 = vector.shape_cast %126 : vector<1x16x64xbf16> to vector<16x64xbf16>
    %cst_113 = arith.constant dense<0.000000e+00> : vector<16x128xf32>
    %128 = tpu.matmul %127, %84, %cst_113 {dimension_numbers = #tpu.dot_dimension_numbers<[1], [0], [0], [1], [0, 0, 1, 1], [], []>} : vector<16x64xbf16>, vector<64x128xbf16>, vector<16x128xf32> -> vector<16x128xf32>
    %129 = arith.truncf %128 : vector<16x128xf32> to vector<16x128xbf16>
    %c5_114 = arith.constant 5 : index
    %c0_115 = arith.constant 0 : index
    %c0_116 = arith.constant 0 : index
    %130 = vector.load %arg6[%c5_114, %c0_115, %c0_116] : memref<9x128x128xbf16, #tpu.memory_space<vmem>>, vector<1x128x128xbf16>
    %131 = vector.shape_cast %130 : vector<1x128x128xbf16> to vector<128x128xbf16>
    %cst_117 = arith.constant dense<0.000000e+00> : vector<16x128xf32>
    %132 = tpu.matmul %129, %131, %cst_117 {dimension_numbers = #tpu.dot_dimension_numbers<[1], [0], [0], [1], [0, 0, 1, 1], [], []>} : vector<16x128xbf16>, vector<128x128xbf16>, vector<16x128xf32> -> vector<16x128xf32>
    %133 = arith.addf %125, %132 : vector<16x128xf32>
    %c6_118 = arith.constant 6 : index
    %c0_119 = arith.constant 0 : index
    %c0_120 = arith.constant 0 : index
    %134 = vector.load %arg5[%c6_118, %c0_119, %c0_120] : memref<9x16x64xbf16, #tpu.memory_space<vmem>>, vector<1x16x64xbf16>
    %135 = vector.shape_cast %134 : vector<1x16x64xbf16> to vector<16x64xbf16>
    %cst_121 = arith.constant dense<0.000000e+00> : vector<16x128xf32>
    %136 = tpu.matmul %135, %84, %cst_121 {dimension_numbers = #tpu.dot_dimension_numbers<[1], [0], [0], [1], [0, 0, 1, 1], [], []>} : vector<16x64xbf16>, vector<64x128xbf16>, vector<16x128xf32> -> vector<16x128xf32>
    %137 = arith.truncf %136 : vector<16x128xf32> to vector<16x128xbf16>
    %c6_122 = arith.constant 6 : index
    %c0_123 = arith.constant 0 : index
    %c0_124 = arith.constant 0 : index
    %138 = vector.load %arg6[%c6_122, %c0_123, %c0_124] : memref<9x128x128xbf16, #tpu.memory_space<vmem>>, vector<1x128x128xbf16>
    %139 = vector.shape_cast %138 : vector<1x128x128xbf16> to vector<128x128xbf16>
    %cst_125 = arith.constant dense<0.000000e+00> : vector<16x128xf32>
    %140 = tpu.matmul %137, %139, %cst_125 {dimension_numbers = #tpu.dot_dimension_numbers<[1], [0], [0], [1], [0, 0, 1, 1], [], []>} : vector<16x128xbf16>, vector<128x128xbf16>, vector<16x128xf32> -> vector<16x128xf32>
    %141 = arith.addf %133, %140 : vector<16x128xf32>
    %c7_126 = arith.constant 7 : index
    %c0_127 = arith.constant 0 : index
    %c0_128 = arith.constant 0 : index
    %142 = vector.load %arg5[%c7_126, %c0_127, %c0_128] : memref<9x16x64xbf16, #tpu.memory_space<vmem>>, vector<1x16x64xbf16>
    %143 = vector.shape_cast %142 : vector<1x16x64xbf16> to vector<16x64xbf16>
    %cst_129 = arith.constant dense<0.000000e+00> : vector<16x128xf32>
    %144 = tpu.matmul %143, %84, %cst_129 {dimension_numbers = #tpu.dot_dimension_numbers<[1], [0], [0], [1], [0, 0, 1, 1], [], []>} : vector<16x64xbf16>, vector<64x128xbf16>, vector<16x128xf32> -> vector<16x128xf32>
    %145 = arith.truncf %144 : vector<16x128xf32> to vector<16x128xbf16>
    %c7_130 = arith.constant 7 : index
    %c0_131 = arith.constant 0 : index
    %c0_132 = arith.constant 0 : index
    %146 = vector.load %arg6[%c7_130, %c0_131, %c0_132] : memref<9x128x128xbf16, #tpu.memory_space<vmem>>, vector<1x128x128xbf16>
    %147 = vector.shape_cast %146 : vector<1x128x128xbf16> to vector<128x128xbf16>
    %cst_133 = arith.constant dense<0.000000e+00> : vector<16x128xf32>
    %148 = tpu.matmul %145, %147, %cst_133 {dimension_numbers = #tpu.dot_dimension_numbers<[1], [0], [0], [1], [0, 0, 1, 1], [], []>} : vector<16x128xbf16>, vector<128x128xbf16>, vector<16x128xf32> -> vector<16x128xf32>
    %149 = arith.addf %141, %148 : vector<16x128xf32>
    %c8_134 = arith.constant 8 : index
    %c0_135 = arith.constant 0 : index
    %c0_136 = arith.constant 0 : index
    %150 = vector.load %arg5[%c8_134, %c0_135, %c0_136] : memref<9x16x64xbf16, #tpu.memory_space<vmem>>, vector<1x16x64xbf16>
    %151 = vector.shape_cast %150 : vector<1x16x64xbf16> to vector<16x64xbf16>
    %cst_137 = arith.constant dense<0.000000e+00> : vector<16x128xf32>
    %152 = tpu.matmul %151, %84, %cst_137 {dimension_numbers = #tpu.dot_dimension_numbers<[1], [0], [0], [1], [0, 0, 1, 1], [], []>} : vector<16x64xbf16>, vector<64x128xbf16>, vector<16x128xf32> -> vector<16x128xf32>
    %153 = arith.truncf %152 : vector<16x128xf32> to vector<16x128xbf16>
    %c8_138 = arith.constant 8 : index
    %c0_139 = arith.constant 0 : index
    %c0_140 = arith.constant 0 : index
    %154 = vector.load %arg6[%c8_138, %c0_139, %c0_140] : memref<9x128x128xbf16, #tpu.memory_space<vmem>>, vector<1x128x128xbf16>
    %155 = vector.shape_cast %154 : vector<1x128x128xbf16> to vector<128x128xbf16>
    %cst_141 = arith.constant dense<0.000000e+00> : vector<16x128xf32>
    %156 = tpu.matmul %153, %155, %cst_141 {dimension_numbers = #tpu.dot_dimension_numbers<[1], [0], [0], [1], [0, 0, 1, 1], [], []>} : vector<16x128xbf16>, vector<128x128xbf16>, vector<16x128xf32> -> vector<16x128xf32>
    %157 = arith.addf %149, %156 : vector<16x128xf32>
    %c0_142 = arith.constant 0 : index
    %c0_143 = arith.constant 0 : index
    %158 = vector.load %arg7[%c0_142, %c0_143] : memref<1x128xf32, #tpu.memory_space<vmem>>, vector<1x128xf32>
    %159 = vector.broadcast %158 : vector<1x128xf32> to vector<16x128xf32>
    %160 = arith.addf %157, %159 : vector<16x128xf32>
    %161 = arith.negf %160 : vector<16x128xf32>
    %162 = math.exp %161 : vector<16x128xf32>
    %cst_144 = arith.constant 1.000000e+00 : f32
    %163 = vector.broadcast %cst_144 : f32 to vector<16x128xf32>
    %164 = arith.addf %163, %162 : vector<16x128xf32>
    %165 = arith.divf %163, %164 : vector<16x128xf32>
    %166 = arith.mulf %160, %165 : vector<16x128xf32>
    %167 = arith.truncf %166 : vector<16x128xf32> to vector<16x128xbf16>
    %cst_145 = arith.constant 0.000000e+00 : f32
    %168 = vector.broadcast %cst_145 : f32 to vector<16x128xf32>
    %c0_146 = arith.constant 0 : index
    %c0_147 = arith.constant 0 : index
    %c0_148 = arith.constant 0 : index
    %169 = vector.load %arg8[%c0_146, %c0_147, %c0_148] : memref<9x16x16xbf16, #tpu.memory_space<vmem>>, vector<1x16x16xbf16>
    %170 = vector.shape_cast %169 : vector<1x16x16xbf16> to vector<16x16xbf16>
    %cst_149 = arith.constant dense<0.000000e+00> : vector<16x128xf32>
    %171 = tpu.matmul %170, %167, %cst_149 {dimension_numbers = #tpu.dot_dimension_numbers<[1], [0], [0], [1], [0, 0, 1, 1], [], []>} : vector<16x16xbf16>, vector<16x128xbf16>, vector<16x128xf32> -> vector<16x128xf32>
    %172 = arith.truncf %171 : vector<16x128xf32> to vector<16x128xbf16>
    %c0_150 = arith.constant 0 : index
    %c0_151 = arith.constant 0 : index
    %c0_152 = arith.constant 0 : index
    %173 = vector.load %arg9[%c0_150, %c0_151, %c0_152] : memref<9x128x128xbf16, #tpu.memory_space<vmem>>, vector<1x128x128xbf16>
    %174 = vector.shape_cast %173 : vector<1x128x128xbf16> to vector<128x128xbf16>
    %cst_153 = arith.constant dense<0.000000e+00> : vector<16x128xf32>
    %175 = tpu.matmul %172, %174, %cst_153 {dimension_numbers = #tpu.dot_dimension_numbers<[1], [0], [0], [1], [0, 0, 1, 1], [], []>} : vector<16x128xbf16>, vector<128x128xbf16>, vector<16x128xf32> -> vector<16x128xf32>
    %176 = arith.addf %168, %175 : vector<16x128xf32>
    %c1_154 = arith.constant 1 : index
    %c0_155 = arith.constant 0 : index
    %c0_156 = arith.constant 0 : index
    %177 = vector.load %arg8[%c1_154, %c0_155, %c0_156] : memref<9x16x16xbf16, #tpu.memory_space<vmem>>, vector<1x16x16xbf16>
    %178 = vector.shape_cast %177 : vector<1x16x16xbf16> to vector<16x16xbf16>
    %cst_157 = arith.constant dense<0.000000e+00> : vector<16x128xf32>
    %179 = tpu.matmul %178, %167, %cst_157 {dimension_numbers = #tpu.dot_dimension_numbers<[1], [0], [0], [1], [0, 0, 1, 1], [], []>} : vector<16x16xbf16>, vector<16x128xbf16>, vector<16x128xf32> -> vector<16x128xf32>
    %180 = arith.truncf %179 : vector<16x128xf32> to vector<16x128xbf16>
    %c1_158 = arith.constant 1 : index
    %c0_159 = arith.constant 0 : index
    %c0_160 = arith.constant 0 : index
    %181 = vector.load %arg9[%c1_158, %c0_159, %c0_160] : memref<9x128x128xbf16, #tpu.memory_space<vmem>>, vector<1x128x128xbf16>
    %182 = vector.shape_cast %181 : vector<1x128x128xbf16> to vector<128x128xbf16>
    %cst_161 = arith.constant dense<0.000000e+00> : vector<16x128xf32>
    %183 = tpu.matmul %180, %182, %cst_161 {dimension_numbers = #tpu.dot_dimension_numbers<[1], [0], [0], [1], [0, 0, 1, 1], [], []>} : vector<16x128xbf16>, vector<128x128xbf16>, vector<16x128xf32> -> vector<16x128xf32>
    %184 = arith.addf %176, %183 : vector<16x128xf32>
    %c2_162 = arith.constant 2 : index
    %c0_163 = arith.constant 0 : index
    %c0_164 = arith.constant 0 : index
    %185 = vector.load %arg8[%c2_162, %c0_163, %c0_164] : memref<9x16x16xbf16, #tpu.memory_space<vmem>>, vector<1x16x16xbf16>
    %186 = vector.shape_cast %185 : vector<1x16x16xbf16> to vector<16x16xbf16>
    %cst_165 = arith.constant dense<0.000000e+00> : vector<16x128xf32>
    %187 = tpu.matmul %186, %167, %cst_165 {dimension_numbers = #tpu.dot_dimension_numbers<[1], [0], [0], [1], [0, 0, 1, 1], [], []>} : vector<16x16xbf16>, vector<16x128xbf16>, vector<16x128xf32> -> vector<16x128xf32>
    %188 = arith.truncf %187 : vector<16x128xf32> to vector<16x128xbf16>
    %c2_166 = arith.constant 2 : index
    %c0_167 = arith.constant 0 : index
    %c0_168 = arith.constant 0 : index
    %189 = vector.load %arg9[%c2_166, %c0_167, %c0_168] : memref<9x128x128xbf16, #tpu.memory_space<vmem>>, vector<1x128x128xbf16>
    %190 = vector.shape_cast %189 : vector<1x128x128xbf16> to vector<128x128xbf16>
    %cst_169 = arith.constant dense<0.000000e+00> : vector<16x128xf32>
    %191 = tpu.matmul %188, %190, %cst_169 {dimension_numbers = #tpu.dot_dimension_numbers<[1], [0], [0], [1], [0, 0, 1, 1], [], []>} : vector<16x128xbf16>, vector<128x128xbf16>, vector<16x128xf32> -> vector<16x128xf32>
    %192 = arith.addf %184, %191 : vector<16x128xf32>
    %c3_170 = arith.constant 3 : index
    %c0_171 = arith.constant 0 : index
    %c0_172 = arith.constant 0 : index
    %193 = vector.load %arg8[%c3_170, %c0_171, %c0_172] : memref<9x16x16xbf16, #tpu.memory_space<vmem>>, vector<1x16x16xbf16>
    %194 = vector.shape_cast %193 : vector<1x16x16xbf16> to vector<16x16xbf16>
    %cst_173 = arith.constant dense<0.000000e+00> : vector<16x128xf32>
    %195 = tpu.matmul %194, %167, %cst_173 {dimension_numbers = #tpu.dot_dimension_numbers<[1], [0], [0], [1], [0, 0, 1, 1], [], []>} : vector<16x16xbf16>, vector<16x128xbf16>, vector<16x128xf32> -> vector<16x128xf32>
    %196 = arith.truncf %195 : vector<16x128xf32> to vector<16x128xbf16>
    %c3_174 = arith.constant 3 : index
    %c0_175 = arith.constant 0 : index
    %c0_176 = arith.constant 0 : index
    %197 = vector.load %arg9[%c3_174, %c0_175, %c0_176] : memref<9x128x128xbf16, #tpu.memory_space<vmem>>, vector<1x128x128xbf16>
    %198 = vector.shape_cast %197 : vector<1x128x128xbf16> to vector<128x128xbf16>
    %cst_177 = arith.constant dense<0.000000e+00> : vector<16x128xf32>
    %199 = tpu.matmul %196, %198, %cst_177 {dimension_numbers = #tpu.dot_dimension_numbers<[1], [0], [0], [1], [0, 0, 1, 1], [], []>} : vector<16x128xbf16>, vector<128x128xbf16>, vector<16x128xf32> -> vector<16x128xf32>
    %200 = arith.addf %192, %199 : vector<16x128xf32>
    %c4_178 = arith.constant 4 : index
    %c0_179 = arith.constant 0 : index
    %c0_180 = arith.constant 0 : index
    %201 = vector.load %arg8[%c4_178, %c0_179, %c0_180] : memref<9x16x16xbf16, #tpu.memory_space<vmem>>, vector<1x16x16xbf16>
    %202 = vector.shape_cast %201 : vector<1x16x16xbf16> to vector<16x16xbf16>
    %cst_181 = arith.constant dense<0.000000e+00> : vector<16x128xf32>
    %203 = tpu.matmul %202, %167, %cst_181 {dimension_numbers = #tpu.dot_dimension_numbers<[1], [0], [0], [1], [0, 0, 1, 1], [], []>} : vector<16x16xbf16>, vector<16x128xbf16>, vector<16x128xf32> -> vector<16x128xf32>
    %204 = arith.truncf %203 : vector<16x128xf32> to vector<16x128xbf16>
    %c4_182 = arith.constant 4 : index
    %c0_183 = arith.constant 0 : index
    %c0_184 = arith.constant 0 : index
    %205 = vector.load %arg9[%c4_182, %c0_183, %c0_184] : memref<9x128x128xbf16, #tpu.memory_space<vmem>>, vector<1x128x128xbf16>
    %206 = vector.shape_cast %205 : vector<1x128x128xbf16> to vector<128x128xbf16>
    %cst_185 = arith.constant dense<0.000000e+00> : vector<16x128xf32>
    %207 = tpu.matmul %204, %206, %cst_185 {dimension_numbers = #tpu.dot_dimension_numbers<[1], [0], [0], [1], [0, 0, 1, 1], [], []>} : vector<16x128xbf16>, vector<128x128xbf16>, vector<16x128xf32> -> vector<16x128xf32>
    %208 = arith.addf %200, %207 : vector<16x128xf32>
    %c5_186 = arith.constant 5 : index
    %c0_187 = arith.constant 0 : index
    %c0_188 = arith.constant 0 : index
    %209 = vector.load %arg8[%c5_186, %c0_187, %c0_188] : memref<9x16x16xbf16, #tpu.memory_space<vmem>>, vector<1x16x16xbf16>
    %210 = vector.shape_cast %209 : vector<1x16x16xbf16> to vector<16x16xbf16>
    %cst_189 = arith.constant dense<0.000000e+00> : vector<16x128xf32>
    %211 = tpu.matmul %210, %167, %cst_189 {dimension_numbers = #tpu.dot_dimension_numbers<[1], [0], [0], [1], [0, 0, 1, 1], [], []>} : vector<16x16xbf16>, vector<16x128xbf16>, vector<16x128xf32> -> vector<16x128xf32>
    %212 = arith.truncf %211 : vector<16x128xf32> to vector<16x128xbf16>
    %c5_190 = arith.constant 5 : index
    %c0_191 = arith.constant 0 : index
    %c0_192 = arith.constant 0 : index
    %213 = vector.load %arg9[%c5_190, %c0_191, %c0_192] : memref<9x128x128xbf16, #tpu.memory_space<vmem>>, vector<1x128x128xbf16>
    %214 = vector.shape_cast %213 : vector<1x128x128xbf16> to vector<128x128xbf16>
    %cst_193 = arith.constant dense<0.000000e+00> : vector<16x128xf32>
    %215 = tpu.matmul %212, %214, %cst_193 {dimension_numbers = #tpu.dot_dimension_numbers<[1], [0], [0], [1], [0, 0, 1, 1], [], []>} : vector<16x128xbf16>, vector<128x128xbf16>, vector<16x128xf32> -> vector<16x128xf32>
    %216 = arith.addf %208, %215 : vector<16x128xf32>
    %c6_194 = arith.constant 6 : index
    %c0_195 = arith.constant 0 : index
    %c0_196 = arith.constant 0 : index
    %217 = vector.load %arg8[%c6_194, %c0_195, %c0_196] : memref<9x16x16xbf16, #tpu.memory_space<vmem>>, vector<1x16x16xbf16>
    %218 = vector.shape_cast %217 : vector<1x16x16xbf16> to vector<16x16xbf16>
    %cst_197 = arith.constant dense<0.000000e+00> : vector<16x128xf32>
    %219 = tpu.matmul %218, %167, %cst_197 {dimension_numbers = #tpu.dot_dimension_numbers<[1], [0], [0], [1], [0, 0, 1, 1], [], []>} : vector<16x16xbf16>, vector<16x128xbf16>, vector<16x128xf32> -> vector<16x128xf32>
    %220 = arith.truncf %219 : vector<16x128xf32> to vector<16x128xbf16>
    %c6_198 = arith.constant 6 : index
    %c0_199 = arith.constant 0 : index
    %c0_200 = arith.constant 0 : index
    %221 = vector.load %arg9[%c6_198, %c0_199, %c0_200] : memref<9x128x128xbf16, #tpu.memory_space<vmem>>, vector<1x128x128xbf16>
    %222 = vector.shape_cast %221 : vector<1x128x128xbf16> to vector<128x128xbf16>
    %cst_201 = arith.constant dense<0.000000e+00> : vector<16x128xf32>
    %223 = tpu.matmul %220, %222, %cst_201 {dimension_numbers = #tpu.dot_dimension_numbers<[1], [0], [0], [1], [0, 0, 1, 1], [], []>} : vector<16x128xbf16>, vector<128x128xbf16>, vector<16x128xf32> -> vector<16x128xf32>
    %224 = arith.addf %216, %223 : vector<16x128xf32>
    %c7_202 = arith.constant 7 : index
    %c0_203 = arith.constant 0 : index
    %c0_204 = arith.constant 0 : index
    %225 = vector.load %arg8[%c7_202, %c0_203, %c0_204] : memref<9x16x16xbf16, #tpu.memory_space<vmem>>, vector<1x16x16xbf16>
    %226 = vector.shape_cast %225 : vector<1x16x16xbf16> to vector<16x16xbf16>
    %cst_205 = arith.constant dense<0.000000e+00> : vector<16x128xf32>
    %227 = tpu.matmul %226, %167, %cst_205 {dimension_numbers = #tpu.dot_dimension_numbers<[1], [0], [0], [1], [0, 0, 1, 1], [], []>} : vector<16x16xbf16>, vector<16x128xbf16>, vector<16x128xf32> -> vector<16x128xf32>
    %228 = arith.truncf %227 : vector<16x128xf32> to vector<16x128xbf16>
    %c7_206 = arith.constant 7 : index
    %c0_207 = arith.constant 0 : index
    %c0_208 = arith.constant 0 : index
    %229 = vector.load %arg9[%c7_206, %c0_207, %c0_208] : memref<9x128x128xbf16, #tpu.memory_space<vmem>>, vector<1x128x128xbf16>
    %230 = vector.shape_cast %229 : vector<1x128x128xbf16> to vector<128x128xbf16>
    %cst_209 = arith.constant dense<0.000000e+00> : vector<16x128xf32>
    %231 = tpu.matmul %228, %230, %cst_209 {dimension_numbers = #tpu.dot_dimension_numbers<[1], [0], [0], [1], [0, 0, 1, 1], [], []>} : vector<16x128xbf16>, vector<128x128xbf16>, vector<16x128xf32> -> vector<16x128xf32>
    %232 = arith.addf %224, %231 : vector<16x128xf32>
    %c8_210 = arith.constant 8 : index
    %c0_211 = arith.constant 0 : index
    %c0_212 = arith.constant 0 : index
    %233 = vector.load %arg8[%c8_210, %c0_211, %c0_212] : memref<9x16x16xbf16, #tpu.memory_space<vmem>>, vector<1x16x16xbf16>
    %234 = vector.shape_cast %233 : vector<1x16x16xbf16> to vector<16x16xbf16>
    %cst_213 = arith.constant dense<0.000000e+00> : vector<16x128xf32>
    %235 = tpu.matmul %234, %167, %cst_213 {dimension_numbers = #tpu.dot_dimension_numbers<[1], [0], [0], [1], [0, 0, 1, 1], [], []>} : vector<16x16xbf16>, vector<16x128xbf16>, vector<16x128xf32> -> vector<16x128xf32>
    %236 = arith.truncf %235 : vector<16x128xf32> to vector<16x128xbf16>
    %c8_214 = arith.constant 8 : index
    %c0_215 = arith.constant 0 : index
    %c0_216 = arith.constant 0 : index
    %237 = vector.load %arg9[%c8_214, %c0_215, %c0_216] : memref<9x128x128xbf16, #tpu.memory_space<vmem>>, vector<1x128x128xbf16>
    %238 = vector.shape_cast %237 : vector<1x128x128xbf16> to vector<128x128xbf16>
    %cst_217 = arith.constant dense<0.000000e+00> : vector<16x128xf32>
    %239 = tpu.matmul %236, %238, %cst_217 {dimension_numbers = #tpu.dot_dimension_numbers<[1], [0], [0], [1], [0, 0, 1, 1], [], []>} : vector<16x128xbf16>, vector<128x128xbf16>, vector<16x128xf32> -> vector<16x128xf32>
    %240 = arith.addf %232, %239 : vector<16x128xf32>
    %c0_218 = arith.constant 0 : index
    %c0_219 = arith.constant 0 : index
    %241 = vector.load %arg10[%c0_218, %c0_219] : memref<1x128xf32, #tpu.memory_space<vmem>>, vector<1x128xf32>
    %242 = vector.broadcast %241 : vector<1x128xf32> to vector<16x128xf32>
    %243 = arith.addf %240, %242 : vector<16x128xf32>
    %244 = arith.negf %243 : vector<16x128xf32>
    %245 = math.exp %244 : vector<16x128xf32>
    %cst_220 = arith.constant 1.000000e+00 : f32
    %246 = vector.broadcast %cst_220 : f32 to vector<16x128xf32>
    %247 = arith.addf %246, %245 : vector<16x128xf32>
    %248 = arith.divf %246, %247 : vector<16x128xf32>
    %249 = arith.mulf %243, %248 : vector<16x128xf32>
    %250 = arith.truncf %249 : vector<16x128xf32> to vector<16x128xbf16>
    %c0_221 = arith.constant 0 : index
    %c0_222 = arith.constant 0 : index
    %251 = vector.load %arg11[%c0_221, %c0_222] : memref<128x128xbf16, #tpu.memory_space<vmem>>, vector<128x128xbf16>
    %cst_223 = arith.constant dense<0.000000e+00> : vector<16x128xf32>
    %252 = tpu.matmul %250, %251, %cst_223 {dimension_numbers = #tpu.dot_dimension_numbers<[1], [0], [0], [1], [0, 0, 1, 1], [], []>} : vector<16x128xbf16>, vector<128x128xbf16>, vector<16x128xf32> -> vector<16x128xf32>
    %253 = arith.truncf %166 : vector<16x128xf32> to vector<16x128xbf16>
    %c0_224 = arith.constant 0 : index
    %c0_225 = arith.constant 0 : index
    %254 = vector.load %arg12[%c0_224, %c0_225] : memref<128x128xbf16, #tpu.memory_space<vmem>>, vector<128x128xbf16>
    %cst_226 = arith.constant dense<0.000000e+00> : vector<16x128xf32>
    %255 = tpu.matmul %253, %254, %cst_226 {dimension_numbers = #tpu.dot_dimension_numbers<[1], [0], [0], [1], [0, 0, 1, 1], [], []>} : vector<16x128xbf16>, vector<128x128xbf16>, vector<16x128xf32> -> vector<16x128xf32>
    %256 = arith.addf %252, %255 : vector<16x128xf32>
    %c0_227 = arith.constant 0 : index
    %c0_228 = arith.constant 0 : index
    %257 = vector.load %arg13[%c0_227, %c0_228] : memref<1x128xf32, #tpu.memory_space<vmem>>, vector<1x128xf32>
    %258 = vector.broadcast %257 : vector<1x128xf32> to vector<16x128xf32>
    %259 = arith.addf %256, %258 : vector<16x128xf32>
    %260 = arith.negf %259 : vector<16x128xf32>
    %261 = math.exp %260 : vector<16x128xf32>
    %cst_229 = arith.constant 1.000000e+00 : f32
    %262 = vector.broadcast %cst_229 : f32 to vector<16x128xf32>
    %263 = arith.addf %262, %261 : vector<16x128xf32>
    %264 = arith.divf %262, %263 : vector<16x128xf32>
    %265 = arith.mulf %259, %264 : vector<16x128xf32>
    %c0_230 = arith.constant 0 : index
    %c0_231 = arith.constant 0 : index
    %c0_232 = arith.constant 0 : index
    %266 = vector.load %arg14[%c0_230, %c0_231, %c0_232] : memref<1x16x128xf32, #tpu.memory_space<vmem>>, vector<1x16x128xf32>
    %267 = vector.shape_cast %266 : vector<1x16x128xf32> to vector<16x128xf32>
    %268 = vector.shape_cast %249 : vector<16x128xf32> to vector<1x16x128xf32>
    tpu.vector_store %arg14[%c0_230, %c0_231, %c0_232], %268 {strides = array<i32>} : memref<1x16x128xf32, #tpu.memory_space<vmem>>, vector<1x16x128xf32>,
    %c0_233 = arith.constant 0 : index
    %c0_234 = arith.constant 0 : index
    %c0_235 = arith.constant 0 : index
    %269 = vector.load %arg15[%c0_233, %c0_234, %c0_235] : memref<1x16x128xf32, #tpu.memory_space<vmem>>, vector<1x16x128xf32>
    %270 = vector.shape_cast %269 : vector<1x16x128xf32> to vector<16x128xf32>
    %271 = vector.shape_cast %265 : vector<16x128xf32> to vector<1x16x128xf32>
    tpu.vector_store %arg15[%c0_233, %c0_234, %c0_235], %271 {strides = array<i32>} : memref<1x16x128xf32, #tpu.memory_space<vmem>>, vector<1x16x128xf32>,
    return
  }
  func.func @transform_0(%arg0: i32) -> (i32, i32, i32) {
    %c0_i32 = arith.constant 0 : i32
    %c0_i32_0 = arith.constant 0 : i32
    %c0_i32_1 = arith.constant 0 : i32
    return %arg0, %c0_i32, %c0_i32_0 : i32, i32, i32
  }
  func.func @transform_1(%arg0: i32) -> (i32, i32, i32) {
    %c0_i32 = arith.constant 0 : i32
    %c0_i32_0 = arith.constant 0 : i32
    %c0_i32_1 = arith.constant 0 : i32
    %c0_i32_2 = arith.constant 0 : i32
    return %c0_i32, %c0_i32_0, %c0_i32_1 : i32, i32, i32
  }
  func.func @transform_2(%arg0: i32) -> (i32, i32, i32) {
    %c0_i32 = arith.constant 0 : i32
    %c0_i32_0 = arith.constant 0 : i32
    %c0_i32_1 = arith.constant 0 : i32
    %c0_i32_2 = arith.constant 0 : i32
    return %c0_i32, %c0_i32_0, %c0_i32_1 : i32, i32, i32
  }
  func.func @transform_3(%arg0: i32) -> (i32, i32) {
    %c0_i32 = arith.constant 0 : i32
    %c0_i32_0 = arith.constant 0 : i32
    %c0_i32_1 = arith.constant 0 : i32
    return %c0_i32, %c0_i32_0 : i32, i32
  }
  func.func @transform_4(%arg0: i32) -> (i32, i32, i32) {
    %c0_i32 = arith.constant 0 : i32
    %c0_i32_0 = arith.constant 0 : i32
    %c0_i32_1 = arith.constant 0 : i32
    %c0_i32_2 = arith.constant 0 : i32
    return %c0_i32, %c0_i32_0, %c0_i32_1 : i32, i32, i32
  }
  func.func @transform_5(%arg0: i32) -> (i32, i32, i32) {
    %c0_i32 = arith.constant 0 : i32
    %c0_i32_0 = arith.constant 0 : i32
    %c0_i32_1 = arith.constant 0 : i32
    %c0_i32_2 = arith.constant 0 : i32
    return %c0_i32, %c0_i32_0, %c0_i32_1 : i32, i32, i32
  }
  func.func @transform_6(%arg0: i32) -> (i32, i32) {
    %c0_i32 = arith.constant 0 : i32
    %c0_i32_0 = arith.constant 0 : i32
    %c0_i32_1 = arith.constant 0 : i32
    return %c0_i32, %c0_i32_0 : i32, i32
  }
  func.func @transform_7(%arg0: i32) -> (i32, i32, i32) {
    %c0_i32 = arith.constant 0 : i32
    %c0_i32_0 = arith.constant 0 : i32
    %c0_i32_1 = arith.constant 0 : i32
    %c0_i32_2 = arith.constant 0 : i32
    return %c0_i32, %c0_i32_0, %c0_i32_1 : i32, i32, i32
  }
  func.func @transform_8(%arg0: i32) -> (i32, i32, i32) {
    %c0_i32 = arith.constant 0 : i32
    %c0_i32_0 = arith.constant 0 : i32
    %c0_i32_1 = arith.constant 0 : i32
    %c0_i32_2 = arith.constant 0 : i32
    return %c0_i32, %c0_i32_0, %c0_i32_1 : i32, i32, i32
  }
  func.func @transform_9(%arg0: i32) -> (i32, i32) {
    %c0_i32 = arith.constant 0 : i32
    %c0_i32_0 = arith.constant 0 : i32
    %c0_i32_1 = arith.constant 0 : i32
    return %c0_i32, %c0_i32_0 : i32, i32
  }
  func.func @transform_10(%arg0: i32) -> (i32, i32) {
    %c0_i32 = arith.constant 0 : i32
    %c0_i32_0 = arith.constant 0 : i32
    %c0_i32_1 = arith.constant 0 : i32
    return %c0_i32, %c0_i32_0 : i32, i32
  }
  func.func @transform_11(%arg0: i32) -> (i32, i32) {
    %c0_i32 = arith.constant 0 : i32
    %c0_i32_0 = arith.constant 0 : i32
    %c0_i32_1 = arith.constant 0 : i32
    return %c0_i32, %c0_i32_0 : i32, i32
  }
  func.func @transform_12(%arg0: i32) -> (i32, i32) {
    %c0_i32 = arith.constant 0 : i32
    %c0_i32_0 = arith.constant 0 : i32
    %c0_i32_1 = arith.constant 0 : i32
    return %c0_i32, %c0_i32_0 : i32, i32
  }
  func.func @transform_13(%arg0: i32) -> (i32, i32, i32) {
    %c0_i32 = arith.constant 0 : i32
    %c0_i32_0 = arith.constant 0 : i32
    %c0_i32_1 = arith.constant 0 : i32
    return %arg0, %c0_i32, %c0_i32_0 : i32, i32, i32
  }
  func.func @transform_14(%arg0: i32) -> (i32, i32, i32) {
    %c0_i32 = arith.constant 0 : i32
    %c0_i32_0 = arith.constant 0 : i32
    %c0_i32_1 = arith.constant 0 : i32
    return %arg0, %c0_i32, %c0_i32_0 : i32, i32, i32
  }
}

</mosaic_0001>

<llo_original>
// kernel: yolo_backbone_forward.1
$region0: #{yolo_backbone_forward.1}
  #allocation0 [shape = 'u32[]', space=smem, size = 0x4, offset = 0x4, fixed_abs, tag = 'smem constant byte address 0x4 - core index']
  #allocation1 [shape = 'u32[144,128]{1,0:T(1,128)}', space=vmem, size = 0x12000, scoped, tag = 'internal scratch']
  %s0 = inlined_call_operand.vmem [shape: bf16[2,256,128], index: 0, kind: input, shape index: {}]
  %s1 = inlined_call_operand.vmem [shape: bf16[9,64,256], index: 1, kind: input, shape index: {}]
  %s2 = inlined_call_operand.hbm [shape: bf16[9,128,128], index: 2, kind: input, shape index: {}]
  %s3 = inlined_call_operand.vmem [shape: f32[1,128], index: 3, kind: input, shape index: {}]
  %s4 = inlined_call_operand.vmem [shape: bf16[9,16,64], index: 4, kind: input, shape index: {}]
  %s5 = inlined_call_operand.hbm [shape: bf16[9,128,128], index: 5, kind: input, shape index: {}]
  %s6 = inlined_call_operand.vmem [shape: f32[1,128], index: 6, kind: input, shape index: {}]
  %s7 = inlined_call_operand.vmem [shape: bf16[9,16,16], index: 7, kind: input, shape index: {}]
  %s8 = inlined_call_operand.hbm [shape: bf16[9,128,128], index: 8, kind: input, shape index: {}]
  %s9 = inlined_call_operand.vmem [shape: f32[1,128], index: 9, kind: input, shape index: {}]
  %s10 = inlined_call_operand.vmem [shape: bf16[128,128], index: 10, kind: input, shape index: {}]
  %s11 = inlined_call_operand.vmem [shape: bf16[128,128], index: 11, kind: input, shape index: {}]
  %s12 = inlined_call_operand.vmem [shape: f32[1,128], index: 12, kind: input, shape index: {}]
  %s13 = inlined_call_operand.hbm [shape: f32[2,16,128], index: 13, kind: output, shape index: {0}]
  %s14 = inlined_call_operand.hbm [shape: f32[2,16,128], index: 14, kind: output, shape index: {1}]
  %15 = xla_tuple %s13, %s14
  %s16 = sld [smem:[#allocation0]]
  $region105: #{yolo_backbone_forward.1} parent=0
    _
  %s18 = ssub.s32 1, %s16
  %s19 = scalar_select 0, %s18, %s16
  $region1: #{yolo_backbone_forward.1} parent=0
    #allocation2 [shape = 'u8[294912]{0}', space=vmem, size = 0x48000, scoped, tag = 'input window, operand 2, single buffered']
    #allocation3 [shape = 's32[2]{0}', space=sflag, size = 0x8, scoped, tag = 'scoped memory for yolo_backbone_forward.1']
    #allocation4 [shape = 's32[2]{0}', space=sflag, size = 0x8, scoped, tag = 'scoped memory for yolo_backbone_forward.1']
    #allocation5 [shape = 'u8[294912]{0}', space=vmem, size = 0x48000, scoped, tag = 'input window, operand 5, single buffered']
    #allocation6 [shape = 's32[1]{0}', space=sflag, size = 0x4, scoped, tag = 'scoped memory for yolo_backbone_forward.1']
    #allocation7 [shape = 'u8[294912]{0}', space=vmem, size = 0x48000, scoped, tag = 'input window, operand 8, single buffered']
    #allocation8 [shape = 'u8[16384]{0}', space=vmem, size = 0x4000, scoped, tag = 'output window, operand 0']
    #allocation9 [shape = 'u8[16384]{0}', space=vmem, size = 0x4000, scoped, tag = 'output window, operand 1']
    #allocation10 [shape = 's32[2]{0}', space=sflag, size = 0x8, scoped, tag = 'scoped memory for yolo_backbone_forward.1']
    %20 = vsyncpa [#allocation3], 0
    %21 = vsyncpa [#allocation6], 0
    %22 = vsyncpa [#allocation4], 0
    %s23 = scalar_lea.sflag [#allocation4], 1
    %24 = vsyncpa %s23, 0
    %25 = vsyncpa [#allocation10], 0
    %s26 = scalar_lea.sflag [#allocation10], 1
    %27 = vsyncpa %s26, 0
    loop: start=0, step=1, limit=4
    $region2: #{yolo_backbone_forward.1} parent=1 // loop_pre_header
      _
    $region3: #{yolo_backbone_forward.1} parent=1 // loop_header
      %s29 = sphi 0, %s33
      %p30 = scmp.ge.s32.totalorder %s29, 4
      %s39 = sphi 0, %s41
      %s42 = sphi 0, %s39
      %s43 = sphi 0, %s42
      %s59 = sphi 0, %s43
      %s63 = sphi 0, %s63
      %s65 = sphi 0, %s63
      %s66 = sphi 0, %s65
      %s80 = sphi 0, %s66
      %s84 = sphi 0, %s84
      %s86 = sphi 0, %s84
      %s87 = sphi 0, %s86
      %s101 = sphi 0, %s87
      %s105 = sphi 0, %s105
      %s107 = sphi 0, %s105
      %s108 = sphi 0, %s107
      %s122 = sphi 0, %s108
      %s126 = sphi 0, %s126
      %s128 = sphi 0, %s126
      %s129 = sphi 0, %s128
      %s143 = sphi 0, %s129
      %s147 = sphi 0, %s147
      %s149 = sphi 0, %s147
      %s150 = sphi 0, %s149
      %s164 = sphi 0, %s150
      %s168 = sphi 0, %s168
      %s170 = sphi 0, %s168
      %s171 = sphi 0, %s170
      %s185 = sphi 0, %s171
      %s189 = sphi 0, %s189
      %s191 = sphi 0, %s189
      %s192 = sphi 0, %s191
      %s206 = sphi 0, %s192
      %s210 = sphi 0, %s210
      %s212 = sphi 0, %s210
      %s213 = sphi 0, %s212
      %s227 = sphi 0, %s213
      %s231 = sphi 0, %s231
      %s233 = sphi 0, %s231
      %s234 = sphi 0, %s233
      %s248 = sphi 0, %s234
      %s252 = sphi 0, %s252
      %s254 = sphi 0, %s252
      %s255 = sphi 0, %s254
      %s269 = sphi 0, %s255
      %s273 = sphi 0, %s273
      %s275 = sphi 0, %s273
      %s276 = sphi 0, %s275
      %s290 = sphi 0, %s276
      %s294 = sphi 0, %s294
      %s296 = sphi 0, %s294
      %s297 = sphi 0, %s296
      %s311 = sphi 0, %s297
      %s317 = sphi 0, %s319
      %s320 = sphi 0, %s317
      %s321 = sphi 0, %s320
      %s337 = sphi 0, %s321
      %s343 = sphi 0, %s345
      %s346 = sphi 0, %s343
      %s347 = sphi 0, %s346
      %s363 = sphi 0, %s347
    $region4: #{yolo_backbone_forward.1} parent=1 // loop_header_branch
      %32 = sbr.rel (%p30) target = $region8
    $region5: #{yolo_backbone_forward.1} parent=1 // loop_body
      %s34 = ssub.s32 %s29, 1
      %s35 = ssub.s32 %s29, 2
      %s36 = sadd.s32 %s29, 1
      %s37 = ssub.s32 %s29, %s36
      %p38 = scmp.eq.s32.totalorder %s37, 0
      %s40 = sadd.s32 %s39, 1
      %s41 = scalar_select %p38, %s39, %s40
      %p44 = pneg %p38
      %p45 = scmp.eq.s32.totalorder %s29, 1
      %p46 = por %p44, %p45
      %p47 = scmp.ne.s32.totalorder %s39, %s42
      %p48 = scmp.eq.s32.totalorder %s29, 0
      %p49 = por %p47, %p48
      %p50 = scmp.ne.s32.totalorder %s39, %s42
      %p51 = scmp.eq.s32.totalorder %s34, 1
      %p52 = por %p50, %p51
      %p53 = scmp.ne.s32.totalorder %s42, %s43
      %p54 = scmp.eq.s32.totalorder %s34, 0
      %p55 = por %p53, %p54
      %p56 = scmp.ne.s32.totalorder %s42, %s43
      %p57 = scmp.eq.s32.totalorder %s35, 1
      %p58 = por %p56, %p57
      %p60 = scmp.ne.s32.totalorder %s43, %s59
      %p61 = scmp.eq.s32.totalorder %s35, 0
      %p62 = por %p60, %p61
      %s64 = sadd.s32 %s63, 1
      %p67 = scmp.eq.s32.totalorder %s29, 1
      %p68 = scmp.ne.s32.totalorder %s63, %s65
      %p69 = scmp.eq.s32.totalorder %s29, 0
      %p70 = por %p68, %p69
      %p71 = scmp.ne.s32.totalorder %s63, %s65
      %p72 = scmp.eq.s32.totalorder %s34, 1
      %p73 = por %p71, %p72
      %p74 = scmp.ne.s32.totalorder %s65, %s66
      %p75 = scmp.eq.s32.totalorder %s34, 0
      %p76 = por %p74, %p75
      %p77 = scmp.ne.s32.totalorder %s65, %s66
      %p78 = scmp.eq.s32.totalorder %s35, 1
      %p79 = por %p77, %p78
      %p81 = scmp.ne.s32.totalorder %s66, %s80
      %p82 = scmp.eq.s32.totalorder %s35, 0
      %p83 = por %p81, %p82
      %s85 = sadd.s32 %s84, 1
      %p88 = scmp.eq.s32.totalorder %s29, 1
      %p89 = scmp.ne.s32.totalorder %s84, %s86
      %p90 = scmp.eq.s32.totalorder %s29, 0
      %p91 = por %p89, %p90
      %p92 = scmp.ne.s32.totalorder %s84, %s86
      %p93 = scmp.eq.s32.totalorder %s34, 1
      %p94 = por %p92, %p93
      %p95 = scmp.ne.s32.totalorder %s86, %s87
      %p96 = scmp.eq.s32.totalorder %s34, 0
      %p97 = por %p95, %p96
      %p98 = scmp.ne.s32.totalorder %s86, %s87
      %p99 = scmp.eq.s32.totalorder %s35, 1
      %p100 = por %p98, %p99
      %p102 = scmp.ne.s32.totalorder %s87, %s101
      %p103 = scmp.eq.s32.totalorder %s35, 0
      %p104 = por %p102, %p103
      %s106 = sadd.s32 %s105, 1
      %p109 = scmp.eq.s32.totalorder %s29, 1
      %p110 = scmp.ne.s32.totalorder %s105, %s107
      %p111 = scmp.eq.s32.totalorder %s29, 0
      %p112 = por %p110, %p111
      %p113 = scmp.ne.s32.totalorder %s105, %s107
      %p114 = scmp.eq.s32.totalorder %s34, 1
      %p115 = por %p113, %p114
      %p116 = scmp.ne.s32.totalorder %s107, %s108
      %p117 = scmp.eq.s32.totalorder %s34, 0
      %p118 = por %p116, %p117
      %p119 = scmp.ne.s32.totalorder %s107, %s108
      %p120 = scmp.eq.s32.totalorder %s35, 1
      %p121 = por %p119, %p120
      %p123 = scmp.ne.s32.totalorder %s108, %s122
      %p124 = scmp.eq.s32.totalorder %s35, 0
      %p125 = por %p123, %p124
      %s127 = sadd.s32 %s126, 1
      %p130 = scmp.eq.s32.totalorder %s29, 1
      %p131 = scmp.ne.s32.totalorder %s126, %s128
      %p132 = scmp.eq.s32.totalorder %s29, 0
      %p133 = por %p131, %p132
      %p134 = scmp.ne.s32.totalorder %s126, %s128
      %p135 = scmp.eq.s32.totalorder %s34, 1
      %p136 = por %p134, %p135
      %p137 = scmp.ne.s32.totalorder %s128, %s129
      %p138 = scmp.eq.s32.totalorder %s34, 0
      %p139 = por %p137, %p138
      %p140 = scmp.ne.s32.totalorder %s128, %s129
      %p141 = scmp.eq.s32.totalorder %s35, 1
      %p142 = por %p140, %p141
      %p144 = scmp.ne.s32.totalorder %s129, %s143
      %p145 = scmp.eq.s32.totalorder %s35, 0
      %p146 = por %p144, %p145
      %s148 = sadd.s32 %s147, 1
      %p151 = scmp.eq.s32.totalorder %s29, 1
      %p152 = scmp.ne.s32.totalorder %s147, %s149
      %p153 = scmp.eq.s32.totalorder %s29, 0
      %p154 = por %p152, %p153
      %p155 = scmp.ne.s32.totalorder %s147, %s149
      %p156 = scmp.eq.s32.totalorder %s34, 1
      %p157 = por %p155, %p156
      %p158 = scmp.ne.s32.totalorder %s149, %s150
      %p159 = scmp.eq.s32.totalorder %s34, 0
      %p160 = por %p158, %p159
      %p161 = scmp.ne.s32.totalorder %s149, %s150
      %p162 = scmp.eq.s32.totalorder %s35, 1
      %p163 = por %p161, %p162
      %p165 = scmp.ne.s32.totalorder %s150, %s164
      %p166 = scmp.eq.s32.totalorder %s35, 0
      %p167 = por %p165, %p166
      %s169 = sadd.s32 %s168, 1
      %p172 = scmp.eq.s32.totalorder %s29, 1
      %p173 = scmp.ne.s32.totalorder %s168, %s170
      %p174 = scmp.eq.s32.totalorder %s29, 0
      %p175 = por %p173, %p174
      %p176 = scmp.ne.s32.totalorder %s168, %s170
      %p177 = scmp.eq.s32.totalorder %s34, 1
      %p178 = por %p176, %p177
      %p179 = scmp.ne.s32.totalorder %s170, %s171
      %p180 = scmp.eq.s32.totalorder %s34, 0
      %p181 = por %p179, %p180
      %p182 = scmp.ne.s32.totalorder %s170, %s171
      %p183 = scmp.eq.s32.totalorder %s35, 1
      %p184 = por %p182, %p183
      %p186 = scmp.ne.s32.totalorder %s171, %s185
      %p187 = scmp.eq.s32.totalorder %s35, 0
      %p188 = por %p186, %p187
      %s190 = sadd.s32 %s189, 1
      %p193 = scmp.eq.s32.totalorder %s29, 1
      %p194 = scmp.ne.s32.totalorder %s189, %s191
      %p195 = scmp.eq.s32.totalorder %s29, 0
      %p196 = por %p194, %p195
      %p197 = scmp.ne.s32.totalorder %s189, %s191
      %p198 = scmp.eq.s32.totalorder %s34, 1
      %p199 = por %p197, %p198
      %p200 = scmp.ne.s32.totalorder %s191, %s192
      %p201 = scmp.eq.s32.totalorder %s34, 0
      %p202 = por %p200, %p201
      %p203 = scmp.ne.s32.totalorder %s191, %s192
      %p204 = scmp.eq.s32.totalorder %s35, 1
      %p205 = por %p203, %p204
      %p207 = scmp.ne.s32.totalorder %s192, %s206
      %p208 = scmp.eq.s32.totalorder %s35, 0
      %p209 = por %p207, %p208
      %s211 = sadd.s32 %s210, 1
      %p214 = scmp.eq.s32.totalorder %s29, 1
      %p215 = scmp.ne.s32.totalorder %s210, %s212
      %p216 = scmp.eq.s32.totalorder %s29, 0
      %p217 = por %p215, %p216
      %p218 = scmp.ne.s32.totalorder %s210, %s212
      %p219 = scmp.eq.s32.totalorder %s34, 1
      %p220 = por %p218, %p219
      %p221 = scmp.ne.s32.totalorder %s212, %s213
      %p222 = scmp.eq.s32.totalorder %s34, 0
      %p223 = por %p221, %p222
      %p224 = scmp.ne.s32.totalorder %s212, %s213
      %p225 = scmp.eq.s32.totalorder %s35, 1
      %p226 = por %p224, %p225
      %p228 = scmp.ne.s32.totalorder %s213, %s227
      %p229 = scmp.eq.s32.totalorder %s35, 0
      %p230 = por %p228, %p229
      %s232 = sadd.s32 %s231, 1
      %p235 = scmp.eq.s32.totalorder %s29, 1
      %p236 = scmp.ne.s32.totalorder %s231, %s233
      %p237 = scmp.eq.s32.totalorder %s29, 0
      %p238 = por %p236, %p237
      %p239 = scmp.ne.s32.totalorder %s231, %s233
      %p240 = scmp.eq.s32.totalorder %s34, 1
      %p241 = por %p239, %p240
      %p242 = scmp.ne.s32.totalorder %s233, %s234
      %p243 = scmp.eq.s32.totalorder %s34, 0
      %p244 = por %p242, %p243
      %p245 = scmp.ne.s32.totalorder %s233, %s234
      %p246 = scmp.eq.s32.totalorder %s35, 1
      %p247 = por %p245, %p246
      %p249 = scmp.ne.s32.totalorder %s234, %s248
      %p250 = scmp.eq.s32.totalorder %s35, 0
      %p251 = por %p249, %p250
      %s253 = sadd.s32 %s252, 1
      %p256 = scmp.eq.s32.totalorder %s29, 1
      %p257 = scmp.ne.s32.totalorder %s252, %s254
      %p258 = scmp.eq.s32.totalorder %s29, 0
      %p259 = por %p257, %p258
      %p260 = scmp.ne.s32.totalorder %s252, %s254
      %p261 = scmp.eq.s32.totalorder %s34, 1
      %p262 = por %p260, %p261
      %p263 = scmp.ne.s32.totalorder %s254, %s255
      %p264 = scmp.eq.s32.totalorder %s34, 0
      %p265 = por %p263, %p264
      %p266 = scmp.ne.s32.totalorder %s254, %s255
      %p267 = scmp.eq.s32.totalorder %s35, 1
      %p268 = por %p266, %p267
      %p270 = scmp.ne.s32.totalorder %s255, %s269
      %p271 = scmp.eq.s32.totalorder %s35, 0
      %p272 = por %p270, %p271
      %s274 = sadd.s32 %s273, 1
      %p277 = scmp.eq.s32.totalorder %s29, 1
      %p278 = scmp.ne.s32.totalorder %s273, %s275
      %p279 = scmp.eq.s32.totalorder %s29, 0
      %p280 = por %p278, %p279
      %p281 = scmp.ne.s32.totalorder %s273, %s275
      %p282 = scmp.eq.s32.totalorder %s34, 1
      %p283 = por %p281, %p282
      %p284 = scmp.ne.s32.totalorder %s275, %s276
      %p285 = scmp.eq.s32.totalorder %s34, 0
      %p286 = por %p284, %p285
      %p287 = scmp.ne.s32.totalorder %s275, %s276
      %p288 = scmp.eq.s32.totalorder %s35, 1
      %p289 = por %p287, %p288
      %p291 = scmp.ne.s32.totalorder %s276, %s290
      %p292 = scmp.eq.s32.totalorder %s35, 0
      %p293 = por %p291, %p292
      %s295 = sadd.s32 %s294, 1
      %p298 = scmp.eq.s32.totalorder %s29, 1
      %p299 = scmp.ne.s32.totalorder %s294, %s296
      %p300 = scmp.eq.s32.totalorder %s29, 0
      %p301 = por %p299, %p300
      %p302 = scmp.ne.s32.totalorder %s294, %s296
      %p303 = scmp.eq.s32.totalorder %s34, 1
      %p304 = por %p302, %p303
      %p305 = scmp.ne.s32.totalorder %s296, %s297
      %p306 = scmp.eq.s32.totalorder %s34, 0
      %p307 = por %p305, %p306
      %p308 = scmp.ne.s32.totalorder %s296, %s297
      %p309 = scmp.eq.s32.totalorder %s35, 1
      %p310 = por %p308, %p309
      %p312 = scmp.ne.s32.totalorder %s297, %s311
      %p313 = scmp.eq.s32.totalorder %s35, 0
      %p314 = por %p312, %p313
      %s315 = ssub.s32 %s29, %s36
      %p316 = scmp.eq.s32.totalorder %s315, 0
      %s318 = sadd.s32 %s317, 1
      %s319 = scalar_select %p316, %s317, %s318
      %p322 = pneg %p316
      %p323 = scmp.eq.s32.totalorder %s29, 1
      %p324 = por %p322, %p323
      %p325 = scmp.ne.s32.totalorder %s317, %s320
      %p326 = scmp.eq.s32.totalorder %s29, 0
      %p327 = por %p325, %p326
      %p328 = scmp.ne.s32.totalorder %s317, %s320
      %p329 = scmp.eq.s32.totalorder %s34, 1
      %p330 = por %p328, %p329
      %p331 = scmp.ne.s32.totalorder %s320, %s321
      %p332 = scmp.eq.s32.totalorder %s34, 0
      %p333 = por %p331, %p332
      %p334 = scmp.ne.s32.totalorder %s320, %s321
      %p335 = scmp.eq.s32.totalorder %s35, 1
      %p336 = por %p334, %p335
      %p338 = scmp.ne.s32.totalorder %s321, %s337
      %p339 = scmp.eq.s32.totalorder %s35, 0
      %p340 = por %p338, %p339
      %s341 = ssub.s32 %s29, %s36
      %p342 = scmp.eq.s32.totalorder %s341, 0
      %s344 = sadd.s32 %s343, 1
      %s345 = scalar_select %p342, %s343, %s344
      %p348 = pneg %p342
      %p349 = scmp.eq.s32.totalorder %s29, 1
      %p350 = por %p348, %p349
      %p351 = scmp.ne.s32.totalorder %s343, %s346
      %p352 = scmp.eq.s32.totalorder %s29, 0
      %p353 = por %p351, %p352
      %p354 = scmp.ne.s32.totalorder %s343, %s346
      %p355 = scmp.eq.s32.totalorder %s34, 1
      %p356 = por %p354, %p355
      %p357 = scmp.ne.s32.totalorder %s346, %s347
      %p358 = scmp.eq.s32.totalorder %s34, 0
      %p359 = por %p357, %p358
      %p360 = scmp.ne.s32.totalorder %s346, %s347
      %p361 = scmp.eq.s32.totalorder %s35, 1
      %p362 = por %p360, %p361
      %p364 = scmp.ne.s32.totalorder %s347, %s363
      %p365 = scmp.eq.s32.totalorder %s35, 0
      %p366 = por %p364, %p365
      %p367 = scmp.le.s32.totalorder 1, %s29
      %p368 = scmp.lt.s32.totalorder %s29, 3
      %p369 = pnand %p367, %p368
      %p370 = pneg %p369
      // Predicated region
      $region9: #{yolo_backbone_forward.1} parent=5 // pred_check
        _
      $region10: #{yolo_backbone_forward.1} parent=5 // pred_check_branch
        %372 = sbr.rel (%p369) target = $region12
      $region11: #{yolo_backbone_forward.1} parent=5 // pred_region
        %s373 = ssub.s32 %s29, 1
        // Predicated region
        $region13: #{yolo_backbone_forward.1} parent=11 // pred_check
          %p374 = pneg %p76
        $region14: #{yolo_backbone_forward.1} parent=11 // pred_check_branch
          %376 = sbr.rel (%p374) target = $region16
        $region15: #{yolo_backbone_forward.1} parent=11 // pred_region
          _
        $region16: #{yolo_backbone_forward.1} parent=11 // pred_fallthru
          _
        // Predicated region
        $region17: #{yolo_backbone_forward.1} parent=11 // pred_check
          %p377 = pneg %p97
        $region18: #{yolo_backbone_forward.1} parent=11 // pred_check_branch
          %379 = sbr.rel (%p377) target = $region20
        $region19: #{yolo_backbone_forward.1} parent=11 // pred_region
          %s381 = ssub.s32 9216, 9216
          %382 = vsyncadd [#allocation3], %s381
          %s383 = sshll.u32 [#allocation2], 4
          %s384 = int_to_ptr.vmem [resolvable:$true] %s383
          %389 = dma.hbm_to_vmem [thread:$0]  %s2, 9216, %s384, [#allocation3], 64, 64, 4
        $region20: #{yolo_backbone_forward.1} parent=11 // pred_fallthru
          _
        // Predicated region
        $region21: #{yolo_backbone_forward.1} parent=11 // pred_check
          %p390 = pneg %p118
        $region22: #{yolo_backbone_forward.1} parent=11 // pred_check_branch
          %392 = sbr.rel (%p390) target = $region24
        $region23: #{yolo_backbone_forward.1} parent=11 // pred_region
          _
        $region24: #{yolo_backbone_forward.1} parent=11 // pred_fallthru
          _
        // Predicated region
        $region25: #{yolo_backbone_forward.1} parent=11 // pred_check
          %p393 = pneg %p139
        $region26: #{yolo_backbone_forward.1} parent=11 // pred_check_branch
          %395 = sbr.rel (%p393) target = $region28
        $region27: #{yolo_backbone_forward.1} parent=11 // pred_region
          _
        $region28: #{yolo_backbone_forward.1} parent=11 // pred_fallthru
          _
        // Predicated region
        $region29: #{yolo_backbone_forward.1} parent=11 // pred_check
          %p396 = pneg %p160
        $region30: #{yolo_backbone_forward.1} parent=11 // pred_check_branch
          %398 = sbr.rel (%p396) target = $region32
        $region31: #{yolo_backbone_forward.1} parent=11 // pred_region
          %s400 = ssub.s32 9216, 9216
          %401 = vsyncadd [#allocation6], %s400
          %s402 = sshll.u32 [#allocation5], 4
          %s403 = int_to_ptr.vmem [resolvable:$true] %s402
          %408 = dma.hbm_to_vmem [thread:$0]  %s5, 9216, %s403, [#allocation6], 64, 64, 4
        $region32: #{yolo_backbone_forward.1} parent=11 // pred_fallthru
          _
        // Predicated region
        $region33: #{yolo_backbone_forward.1} parent=11 // pred_check
          %p409 = pneg %p181
        $region34: #{yolo_backbone_forward.1} parent=11 // pred_check_branch
          %411 = sbr.rel (%p409) target = $region36
        $region35: #{yolo_backbone_forward.1} parent=11 // pred_region
          _
        $region36: #{yolo_backbone_forward.1} parent=11 // pred_fallthru
          _
        // Predicated region
        $region37: #{yolo_backbone_forward.1} parent=11 // pred_check
          %p412 = pneg %p202
        $region38: #{yolo_backbone_forward.1} parent=11 // pred_check_branch
          %414 = sbr.rel (%p412) target = $region40
        $region39: #{yolo_backbone_forward.1} parent=11 // pred_region
          _
        $region40: #{yolo_backbone_forward.1} parent=11 // pred_fallthru
          _
        // Predicated region
        $region41: #{yolo_backbone_forward.1} parent=11 // pred_check
          %p415 = pneg %p223
        $region42: #{yolo_backbone_forward.1} parent=11 // pred_check_branch
          %417 = sbr.rel (%p415) target = $region44
        $region43: #{yolo_backbone_forward.1} parent=11 // pred_region
          %s419 = ssub.s32 9216, 9216
          %420 = vsyncadd [#allocation6], %s419
          %s421 = sshll.u32 [#allocation7], 4
          %s422 = int_to_ptr.vmem [resolvable:$true] %s421
          %427 = dma.hbm_to_vmem [thread:$0]  %s8, 9216, %s422, [#allocation6], 64, 64, 4
        $region44: #{yolo_backbone_forward.1} parent=11 // pred_fallthru
          _
        // Predicated region
        $region45: #{yolo_backbone_forward.1} parent=11 // pred_check
          %p428 = pneg %p244
        $region46: #{yolo_backbone_forward.1} parent=11 // pred_check_branch
          %430 = sbr.rel (%p428) target = $region48
        $region47: #{yolo_backbone_forward.1} parent=11 // pred_region
          _
        $region48: #{yolo_backbone_forward.1} parent=11 // pred_fallthru
          _
        // Predicated region
        $region49: #{yolo_backbone_forward.1} parent=11 // pred_check
          %p431 = pneg %p265
        $region50: #{yolo_backbone_forward.1} parent=11 // pred_check_branch
          %433 = sbr.rel (%p431) target = $region52
        $region51: #{yolo_backbone_forward.1} parent=11 // pred_region
          _
        $region52: #{yolo_backbone_forward.1} parent=11 // pred_fallthru
          _
        // Predicated region
        $region53: #{yolo_backbone_forward.1} parent=11 // pred_check
          %p434 = pneg %p286
        $region54: #{yolo_backbone_forward.1} parent=11 // pred_check_branch
          %436 = sbr.rel (%p434) target = $region56
        $region55: #{yolo_backbone_forward.1} parent=11 // pred_region
          _
        $region56: #{yolo_backbone_forward.1} parent=11 // pred_fallthru
          _
        // Predicated region
        $region57: #{yolo_backbone_forward.1} parent=11 // pred_check
          %p437 = pneg %p307
        $region58: #{yolo_backbone_forward.1} parent=11 // pred_check_branch
          %439 = sbr.rel (%p437) target = $region60
        $region59: #{yolo_backbone_forward.1} parent=11 // pred_region
          _
        $region60: #{yolo_backbone_forward.1} parent=11 // pred_fallthru
          _
      $region12: #{yolo_backbone_forward.1} parent=5 // pred_fallthru
        _
      %p440 = scmp.lt.s32.totalorder %s29, 2
      // Predicated region
      $region61: #{yolo_backbone_forward.1} parent=5 // pred_check
        %p441 = pneg %p440
      $region62: #{yolo_backbone_forward.1} parent=5 // pred_check_branch
        %443 = sbr.rel (%p441) target = $region64
      $region63: #{yolo_backbone_forward.1} parent=5 // pred_region
        // Predicated region
        $region65: #{yolo_backbone_forward.1} parent=63 // pred_check
          %p444 = pneg %p49
        $region66: #{yolo_backbone_forward.1} parent=63 // pred_check_branch
          %446 = sbr.rel (%p444) target = $region68
        $region67: #{yolo_backbone_forward.1} parent=63 // pred_region
          %p447 = scmp.lt.s32.totalorder %s29, 1
          %s448 = scalar_select %p447, %s29, 1
          %s449 = smul.addr %s448, 32
          %s450 = smul.addr %s449, 4
          %s451 = scalar_lea.vmem %s0, %s450
        $region68: #{yolo_backbone_forward.1} parent=63 // pred_fallthru
          _
      $region64: #{yolo_backbone_forward.1} parent=5 // pred_fallthru
        _
      %p452 = scmp.le.s32.totalorder 1, %s29
      %p453 = scmp.lt.s32.totalorder %s29, 3
      %p454 = pnand %p452, %p453
      %p455 = pneg %p454
      // Predicated region
      $region69: #{yolo_backbone_forward.1} parent=5 // pred_check
        _
      $region70: #{yolo_backbone_forward.1} parent=5 // pred_check_branch
        %457 = sbr.rel (%p454) target = $region72
      $region71: #{yolo_backbone_forward.1} parent=5 // pred_region
        %s458 = ssub.s32 %s29, 1
        // Predicated region
        $region73: #{yolo_backbone_forward.1} parent=71 // pred_check
          %p459 = pneg %p97
        $region74: #{yolo_backbone_forward.1} parent=71 // pred_check_branch
          %461 = sbr.rel (%p459) target = $region76
        $region75: #{yolo_backbone_forward.1} parent=71 // pred_region
          %462 = dma.done [#allocation3], 9216
        $region76: #{yolo_backbone_forward.1} parent=71 // pred_fallthru
          _
        // Predicated region
        $region77: #{yolo_backbone_forward.1} parent=71 // pred_check
          %p463 = pneg %p160
        $region78: #{yolo_backbone_forward.1} parent=71 // pred_check_branch
          %465 = sbr.rel (%p463) target = $region80
        $region79: #{yolo_backbone_forward.1} parent=71 // pred_region
          %466 = dma.done [#allocation6], 9216
        $region80: #{yolo_backbone_forward.1} parent=71 // pred_fallthru
          _
        // Predicated region
        $region81: #{yolo_backbone_forward.1} parent=71 // pred_check
          %p467 = pneg %p223
        $region82: #{yolo_backbone_forward.1} parent=71 // pred_check_branch
          %469 = sbr.rel (%p467) target = $region84
        $region83: #{yolo_backbone_forward.1} parent=71 // pred_region
          %470 = dma.done [#allocation6], 9216
        $region84: #{yolo_backbone_forward.1} parent=71 // pred_fallthru
          _
        %p471 = scmp.lt.s32.totalorder %s34, 1
        %s472 = scalar_select %p471, %s34, 1
        %s473 = smul.addr %s472, 32
        %s474 = smul.addr %s473, 4
        %s475 = scalar_lea.vmem %s0, %s474
        %p476 = pneg %p55
        %p477 = pneg %p52
        %p478 = pneg %p76
        %p479 = pneg %p73
        %p480 = pneg %p97
        %p481 = pneg %p94
        %p482 = pneg %p118
        %p483 = pneg %p115
        %p484 = pneg %p139
        %p485 = pneg %p136
        %p486 = pneg %p160
        %p487 = pneg %p157
        %p488 = pneg %p181
        %p489 = pneg %p178
        %p490 = pneg %p202
        %p491 = pneg %p199
        %p492 = pneg %p223
        %p493 = pneg %p220
        %p494 = pneg %p244
        %p495 = pneg %p241
        %p496 = pneg %p265
        %p497 = pneg %p262
        %p498 = pneg %p286
        %p499 = pneg %p283
        %p500 = pneg %p307
        %p501 = pneg %p304
        %p502 = pneg %p333
        %p503 = pneg %p330
        %s504 = sand.u32 %s320, 1
        %s505 = scalar_lea.sflag [#allocation4], %s504
        %s506 = sand.u32 %s320, 1
        %s507 = smul.addr %s506, 16
        %s508 = scalar_lea.vmem [#allocation8], %s507
        %p509 = pneg %p359
        %p510 = pneg %p356
        %s511 = sand.u32 %s346, 1
        %s512 = scalar_lea.sflag [#allocation10], %s511
        %s513 = sand.u32 %s346, 1
        %s514 = smul.addr %s513, 16
        %s515 = scalar_lea.vmem [#allocation9], %s514
        %p516 = scmp.lt.s32.totalorder %s34, 1
        %s517 = scalar_select %p516, %s34, 1
        %s518 = smul.addr %s517, 32
        %s519 = smul.addr %s518, 4
        %s520 = scalar_lea.vmem %s0, %s519
        %v522 = vld [vmem:[%s520] sm:$0xf]
        %v523 = vld [vmem:[%s520 + $0x4] sm:$0xf]
        %v524 = vld [vmem:[%s520 + $0x8] sm:$0xf]
        %v525 = vld [vmem:[%s520 + $0xc] sm:$0xf]
        %v526 = vld [vmem:[%s520 + $0x10] sm:$0xf]
        %v527 = vld [vmem:[%s520 + $0x14] sm:$0xf]
        %v528 = vld [vmem:[%s520 + $0x18] sm:$0xf]
        %v529 = vld [vmem:[%s520 + $0x1c] sm:$0xf]
        %v530 = vld [vmem:[%s520 + $0x20] sm:$0xf]
        %v531 = vld [vmem:[%s520 + $0x24] sm:$0xf]
        %v532 = vld [vmem:[%s520 + $0x28] sm:$0xf]
        %v533 = vld [vmem:[%s520 + $0x2c] sm:$0xf]
        %v534 = vld [vmem:[%s520 + $0x30] sm:$0xf]
        %v535 = vld [vmem:[%s520 + $0x34] sm:$0xf]
        %v536 = vld [vmem:[%s520 + $0x38] sm:$0xf]
        %v537 = vld [vmem:[%s520 + $0x3c] sm:$0xf]
        %v538 = vld [vmem:[%s520 + $0x40] sm:$0xf]
        %v539 = vld [vmem:[%s520 + $0x44] sm:$0xf]
        %v540 = vld [vmem:[%s520 + $0x48] sm:$0xf]
        %v541 = vld [vmem:[%s520 + $0x4c] sm:$0xf]
        %v542 = vld [vmem:[%s520 + $0x50] sm:$0xf]
        %v543 = vld [vmem:[%s520 + $0x54] sm:$0xf]
        %v544 = vld [vmem:[%s520 + $0x58] sm:$0xf]
        %v545 = vld [vmem:[%s520 + $0x5c] sm:$0xf]
        %v546 = vld [vmem:[%s520 + $0x60] sm:$0xf]
        %v547 = vld [vmem:[%s520 + $0x64] sm:$0xf]
        %v548 = vld [vmem:[%s520 + $0x68] sm:$0xf]
        %v549 = vld [vmem:[%s520 + $0x6c] sm:$0xf]
        %v550 = vld [vmem:[%s520 + $0x70] sm:$0xf]
        %v551 = vld [vmem:[%s520 + $0x74] sm:$0xf]
        %v552 = vld [vmem:[%s520 + $0x78] sm:$0xf]
        %v553 = vld [vmem:[%s520 + $0x7c] sm:$0xf]
        %v554 = vld [vmem:[%s1] sm:$0xff]
        %v555 = vld [vmem:[%s1 + $0x8] sm:$0xff]
        %v556 = vld [vmem:[%s1 + $0x10] sm:$0xff]
        %v557 = vld [vmem:[%s1 + $0x18] sm:$0xff]
        %v558 = vld [vmem:[%s1 + $0x20] sm:$0xff]
        %v559 = vld [vmem:[%s1 + $0x28] sm:$0xff]
        %v560 = vld [vmem:[%s1 + $0x30] sm:$0xff]
        %v561 = vld [vmem:[%s1 + $0x38] sm:$0xff]
        %v570 = vunpack.c.l.b16 %v554
        %v571 = vunpack.c.h.b16 %v554
        %v572 = vunpack.c.l.b16 %v555
        %v573 = vunpack.c.h.b16 %v555
        %v574 = vunpack.c.l.b16 %v556
        %v575 = vunpack.c.h.b16 %v556
        %v576 = vunpack.c.l.b16 %v557
        %v577 = vunpack.c.h.b16 %v557
        %v578 = vunpack.c.l.b16 %v558
        %v579 = vunpack.c.h.b16 %v558
        %v580 = vunpack.c.l.b16 %v559
        %v581 = vunpack.c.h.b16 %v559
        %v582 = vunpack.c.l.b16 %v560
        %v583 = vunpack.c.h.b16 %v560
        %v584 = vunpack.c.l.b16 %v561
        %v585 = vunpack.c.h.b16 %v561
        %v586 = vpack.c.b16 %v572, %v570
        %v587 = vpack.c.b16 %v573, %v571
        %v588 = vpack.c.b16 %v576, %v574
        %v589 = vpack.c.b16 %v577, %v575
        %v590 = vpack.c.b16 %v580, %v578
        %v591 = vpack.c.b16 %v581, %v579
        %v592 = vpack.c.b16 %v584, %v582
        %v593 = vpack.c.b16 %v585, %v583
        %v634 = vunpack.c.l.b16 %v522
        %v635 = vunpack.c.l.b16 %v523
        %v636 = vunpack.c.l.b16 %v524
        %v637 = vunpack.c.l.b16 %v525
        %v638 = vunpack.c.l.b16 %v526
        %v639 = vunpack.c.l.b16 %v527
        %v640 = vunpack.c.l.b16 %v528
        %v641 = vunpack.c.l.b16 %v529
        %v642 = vunpack.c.l.b16 %v530
        %v643 = vunpack.c.l.b16 %v531
        %v644 = vunpack.c.l.b16 %v532
        %v645 = vunpack.c.l.b16 %v533
        %v646 = vunpack.c.l.b16 %v534
        %v647 = vunpack.c.l.b16 %v535
        %v648 = vunpack.c.l.b16 %v536
        %v649 = vunpack.c.l.b16 %v537
        %v650 = vunpack.c.l.b16 %v538
        %v651 = vunpack.c.l.b16 %v539
        %v652 = vunpack.c.l.b16 %v540
        %v653 = vunpack.c.l.b16 %v541
        %v654 = vunpack.c.l.b16 %v542
        %v655 = vunpack.c.l.b16 %v543
        %v656 = vunpack.c.l.b16 %v544
        %v657 = vunpack.c.l.b16 %v545
        %v658 = vunpack.c.l.b16 %v546
        %v659 = vunpack.c.l.b16 %v547
        %v660 = vunpack.c.l.b16 %v548
        %v661 = vunpack.c.l.b16 %v549
        %v662 = vunpack.c.l.b16 %v550
        %v663 = vunpack.c.l.b16 %v551
        %v664 = vunpack.c.l.b16 %v552
        %v665 = vunpack.c.l.b16 %v553
        %v666 = vpack.c.b16 %v635, %v634
        %v667 = vpack.c.b16 %v637, %v636
        %v668 = vpack.c.b16 %v639, %v638
        %v669 = vpack.c.b16 %v641, %v640
        %v670 = vpack.c.b16 %v643, %v642
        %v671 = vpack.c.b16 %v645, %v644
        %v672 = vpack.c.b16 %v647, %v646
        %v673 = vpack.c.b16 %v649, %v648
        %v674 = vpack.c.b16 %v651, %v650
        %v675 = vpack.c.b16 %v653, %v652
        %v676 = vpack.c.b16 %v655, %v654
        %v677 = vpack.c.b16 %v657, %v656
        %v678 = vpack.c.b16 %v659, %v658
        %v679 = vpack.c.b16 %v661, %v660
        %v680 = vpack.c.b16 %v663, %v662
        %v681 = vpack.c.b16 %v665, %v664
        %698 = vmatprep.subr.bf16.mxu0 0
        %699 = vmatpush1.bf16.msra.mxu0 %v666
        %700 = vmatprep.subr.bf16.mxu0 0
        %701 = vmatpush1.bf16.msra.mxu0 %v667
        %702 = vmatprep.subr.bf16.mxu0 0
        %703 = vmatpush1.bf16.msra.mxu0 %v668
        %704 = vmatprep.subr.bf16.mxu0 0
        %705 = vmatpush1.bf16.msra.mxu0 %v669
        %706 = vmatprep.subr.bf16.mxu0 0
        %707 = vmatpush1.bf16.msra.mxu0 %v670
        %708 = vmatprep.subr.bf16.mxu0 0
        %709 = vmatpush1.bf16.msra.mxu0 %v671
        %710 = vmatprep.subr.bf16.mxu0 0
        %711 = vmatpush1.bf16.msra.mxu0 %v672
        %712 = vmatprep.subr.bf16.mxu0 0
        %713 = vmatpush1.bf16.msra.mxu0 %v673
        %714 = vmatprep.subr.bf16.mxu0 0
        %715 = vmatpush1.bf16.msra.mxu0 %v674
        %716 = vmatprep.subr.bf16.mxu0 0
        %717 = vmatpush1.bf16.msra.mxu0 %v675
        %718 = vmatprep.subr.bf16.mxu0 0
        %719 = vmatpush1.bf16.msra.mxu0 %v676
        %720 = vmatprep.subr.bf16.mxu0 0
        %721 = vmatpush1.bf16.msra.mxu0 %v677
        %722 = vmatprep.subr.bf16.mxu0 0
        %723 = vmatpush1.bf16.msra.mxu0 %v678
        %724 = vmatprep.subr.bf16.mxu0 0
        %725 = vmatpush1.bf16.msra.mxu0 %v679
        %726 = vmatprep.subr.bf16.mxu0 0
        %727 = vmatpush1.bf16.msra.mxu0 %v680
        %728 = vmatprep.subr.bf16.mxu0 0
        %729 = vmatpush1.bf16.msra.mxu0 %v681
        %730 = vmatprep.mubr.bf16.mxu0 %v587
        %731 = vmatmul.mubr.bf16.gmra.mrb[0].mxu0 %v586
        %v732 = vpop.f32.mrb[0].mxu0
        %v733 = vadd.f32 0.0, %v732
        %v734 = vpop.f32.mrb[0].mxu0
        %v735 = vpop.f32.mrb[0].mxu0
        %v736 = vadd.f32 0.0, %v735
        %v737 = vpop.f32.mrb[0].mxu0
        %738 = vmatprep.mubr.bf16.mxu0 %v589
        %739 = vmatmul.mubr.bf16.gmra.mrb[0].mxu0 %v588
        %v740 = vpop.f32.mrb[0].mxu0
        %v741 = vadd.f32 0.0, %v740
        %v742 = vpop.f32.mrb[0].mxu0
        %v743 = vpop.f32.mrb[0].mxu0
        %v744 = vadd.f32 0.0, %v743
        %v745 = vpop.f32.mrb[0].mxu0
        %746 = vmatprep.mubr.bf16.mxu0 %v591
        %747 = vmatmul.mubr.bf16.gmra.mrb[0].mxu0 %v590
        %v748 = vpop.f32.mrb[0].mxu0
        %v749 = vadd.f32 0.0, %v748
        %v750 = vpop.f32.mrb[0].mxu0
        %v751 = vpop.f32.mrb[0].mxu0
        %v752 = vadd.f32 0.0, %v751
        %v753 = vpop.f32.mrb[0].mxu0
        %754 = vmatprep.mubr.bf16.mxu0 %v593
        %755 = vmatmul.mubr.bf16.gmra.mrb[0].mxu0 %v592
        %v756 = vpop.f32.mrb[0].mxu0
        %v757 = vadd.f32 0.0, %v756
        %v758 = vpop.f32.mrb[0].mxu0
        %v759 = vpop.f32.mrb[0].mxu0
        %v760 = vadd.f32 0.0, %v759
        %v761 = vpop.f32.mrb[0].mxu0
        %762 = vdwg.mxu0
        %v763 = vpack.c.bf16 %v736, %v733
        %v764 = vpack.c.bf16 %v744, %v741
        %v765 = vpack.c.bf16 %v752, %v749
        %v766 = vpack.c.bf16 %v760, %v757
        %v767 = vld [vmem:[#allocation2] sm:$0xf]
        %v768 = vld [vmem:[#allocation2 + $0x4] sm:$0xf]
        %v769 = vld [vmem:[#allocation2 + $0x8] sm:$0xf]
        %v770 = vld [vmem:[#allocation2 + $0xc] sm:$0xf]
        %v771 = vld [vmem:[#allocation2 + $0x10] sm:$0xf]
        %v772 = vld [vmem:[#allocation2 + $0x14] sm:$0xf]
        %v773 = vld [vmem:[#allocation2 + $0x18] sm:$0xf]
        %v774 = vld [vmem:[#allocation2 + $0x1c] sm:$0xf]
        %v775 = vld [vmem:[#allocation2 + $0x20] sm:$0xf]
        %v776 = vld [vmem:[#allocation2 + $0x24] sm:$0xf]
        %v777 = vld [vmem:[#allocation2 + $0x28] sm:$0xf]
        %v778 = vld [vmem:[#allocation2 + $0x2c] sm:$0xf]
        %v779 = vld [vmem:[#allocation2 + $0x30] sm:$0xf]
        %v780 = vld [vmem:[#allocation2 + $0x34] sm:$0xf]
        %v781 = vld [vmem:[#allocation2 + $0x38] sm:$0xf]
        %v782 = vld [vmem:[#allocation2 + $0x3c] sm:$0xf]
        %s783 = scalar_lea.vmem %s1, 64
        %v784 = vld [vmem:[%s783] sm:$0xff]
        %v785 = vld [vmem:[%s783 + $0x8] sm:$0xff]
        %v786 = vld [vmem:[%s783 + $0x10] sm:$0xff]
        %v787 = vld [vmem:[%s783 + $0x18] sm:$0xff]
        %v788 = vld [vmem:[%s783 + $0x20] sm:$0xff]
        %v789 = vld [vmem:[%s783 + $0x28] sm:$0xff]
        %v790 = vld [vmem:[%s783 + $0x30] sm:$0xff]
        %v791 = vld [vmem:[%s783 + $0x38] sm:$0xff]
        %v800 = vunpack.c.l.b16 %v784
        %v801 = vunpack.c.h.b16 %v784
        %v802 = vunpack.c.l.b16 %v785
        %v803 = vunpack.c.h.b16 %v785
        %v804 = vunpack.c.l.b16 %v786
        %v805 = vunpack.c.h.b16 %v786
        %v806 = vunpack.c.l.b16 %v787
        %v807 = vunpack.c.h.b16 %v787
        %v808 = vunpack.c.l.b16 %v788
        %v809 = vunpack.c.h.b16 %v788
        %v810 = vunpack.c.l.b16 %v789
        %v811 = vunpack.c.h.b16 %v789
        %v812 = vunpack.c.l.b16 %v790
        %v813 = vunpack.c.h.b16 %v790
        %v814 = vunpack.c.l.b16 %v791
        %v815 = vunpack.c.h.b16 %v791
        %v816 = vpack.c.b16 %v802, %v800
        %v817 = vpack.c.b16 %v803, %v801
        %v818 = vpack.c.b16 %v806, %v804
        %v819 = vpack.c.b16 %v807, %v805
        %v820 = vpack.c.b16 %v810, %v808
        %v821 = vpack.c.b16 %v811, %v809
        %v822 = vpack.c.b16 %v814, %v812
        %v823 = vpack.c.b16 %v815, %v813
        %832 = vmatprep.subr.bf16.mxu0 0
        %833 = vmatpush1.bf16.msra.mxu0 %v666
        %834 = vmatprep.subr.bf16.mxu0 0
        %835 = vmatpush1.bf16.msra.mxu0 %v667
        %836 = vmatprep.subr.bf16.mxu0 0
        %837 = vmatpush1.bf16.msra.mxu0 %v668
        %838 = vmatprep.subr.bf16.mxu0 0
        %839 = vmatpush1.bf16.msra.mxu0 %v669
        %840 = vmatprep.subr.bf16.mxu0 0
        %841 = vmatpush1.bf16.msra.mxu0 %v670
        %842 = vmatprep.subr.bf16.mxu0 0
        %843 = vmatpush1.bf16.msra.mxu0 %v671
        %844 = vmatprep.subr.bf16.mxu0 0
        %845 = vmatpush1.bf16.msra.mxu0 %v672
        %846 = vmatprep.subr.bf16.mxu0 0
        %847 = vmatpush1.bf16.msra.mxu0 %v673
        %848 = vmatprep.subr.bf16.mxu0 0
        %849 = vmatpush1.bf16.msra.mxu0 %v674
        %850 = vmatprep.subr.bf16.mxu0 0
        %851 = vmatpush1.bf16.msra.mxu0 %v675
        %852 = vmatprep.subr.bf16.mxu0 0
        %853 = vmatpush1.bf16.msra.mxu0 %v676
        %854 = vmatprep.subr.bf16.mxu0 0
        %855 = vmatpush1.bf16.msra.mxu0 %v677
        %856 = vmatprep.subr.bf16.mxu0 0
        %857 = vmatpush1.bf16.msra.mxu0 %v678
        %858 = vmatprep.subr.bf16.mxu0 0
        %859 = vmatpush1.bf16.msra.mxu0 %v679
        %860 = vmatprep.subr.bf16.mxu0 0
        %861 = vmatpush1.bf16.msra.mxu0 %v680
        %862 = vmatprep.subr.bf16.mxu0 0
        %863 = vmatpush1.bf16.msra.mxu0 %v681
        %864 = vmatprep.mubr.bf16.mxu0 %v817
        %865 = vmatmul.mubr.bf16.gmra.mrb[0].mxu0 %v816
        %v866 = vpop.f32.mrb[0].mxu0
        %v867 = vadd.f32 0.0, %v866
        %v868 = vpop.f32.mrb[0].mxu0
        %v869 = vpop.f32.mrb[0].mxu0
        %v870 = vadd.f32 0.0, %v869
        %v871 = vpop.f32.mrb[0].mxu0
        %872 = vmatprep.mubr.bf16.mxu0 %v819
        %873 = vmatmul.mubr.bf16.gmra.mrb[0].mxu0 %v818
        %v874 = vpop.f32.mrb[0].mxu0
        %v875 = vadd.f32 0.0, %v874
        %v876 = vpop.f32.mrb[0].mxu0
        %v877 = vpop.f32.mrb[0].mxu0
        %v878 = vadd.f32 0.0, %v877
        %v879 = vpop.f32.mrb[0].mxu0
        %880 = vmatprep.mubr.bf16.mxu0 %v821
        %881 = vmatmul.mubr.bf16.gmra.mrb[0].mxu0 %v820
        %v882 = vpop.f32.mrb[0].mxu0
        %v883 = vadd.f32 0.0, %v882
        %v884 = vpop.f32.mrb[0].mxu0
        %v885 = vpop.f32.mrb[0].mxu0
        %v886 = vadd.f32 0.0, %v885
        %v887 = vpop.f32.mrb[0].mxu0
        %888 = vmatprep.mubr.bf16.mxu0 %v823
        %889 = vmatmul.mubr.bf16.gmra.mrb[0].mxu0 %v822
        %v890 = vpop.f32.mrb[0].mxu0
        %v891 = vadd.f32 0.0, %v890
        %v892 = vpop.f32.mrb[0].mxu0
        %v893 = vpop.f32.mrb[0].mxu0
        %v894 = vadd.f32 0.0, %v893
        %v895 = vpop.f32.mrb[0].mxu0
        %896 = vdwg.mxu0
        %v897 = vpack.c.bf16 %v870, %v867
        %v898 = vpack.c.bf16 %v878, %v875
        %v899 = vpack.c.bf16 %v886, %v883
        %v900 = vpack.c.bf16 %v894, %v891
        %s901 = scalar_lea.vmem [#allocation2], 64
        %v902 = vld [vmem:[%s901] sm:$0xf]
        %v903 = vld [vmem:[%s901 + $0x4] sm:$0xf]
        %v904 = vld [vmem:[%s901 + $0x8] sm:$0xf]
        %v905 = vld [vmem:[%s901 + $0xc] sm:$0xf]
        %v906 = vld [vmem:[%s901 + $0x10] sm:$0xf]
        %v907 = vld [vmem:[%s901 + $0x14] sm:$0xf]
        %v908 = vld [vmem:[%s901 + $0x18] sm:$0xf]
        %v909 = vld [vmem:[%s901 + $0x1c] sm:$0xf]
        %v910 = vld [vmem:[%s901 + $0x20] sm:$0xf]
        %v911 = vld [vmem:[%s901 + $0x24] sm:$0xf]
        %v912 = vld [vmem:[%s901 + $0x28] sm:$0xf]
        %v913 = vld [vmem:[%s901 + $0x2c] sm:$0xf]
        %v914 = vld [vmem:[%s901 + $0x30] sm:$0xf]
        %v915 = vld [vmem:[%s901 + $0x34] sm:$0xf]
        %v916 = vld [vmem:[%s901 + $0x38] sm:$0xf]
        %v917 = vld [vmem:[%s901 + $0x3c] sm:$0xf]
        %v934 = vunpack.c.l.b16 %v902
        %v935 = vunpack.c.l.b16 %v903
        %v936 = vunpack.c.l.b16 %v904
        %v937 = vunpack.c.l.b16 %v905
        %v938 = vunpack.c.l.b16 %v906
        %v939 = vunpack.c.l.b16 %v907
        %v940 = vunpack.c.l.b16 %v908
        %v941 = vunpack.c.l.b16 %v909
        %v942 = vunpack.c.l.b16 %v910
        %v943 = vunpack.c.l.b16 %v911
        %v944 = vunpack.c.l.b16 %v912
        %v945 = vunpack.c.l.b16 %v913
        %v946 = vunpack.c.l.b16 %v914
        %v947 = vunpack.c.l.b16 %v915
        %v948 = vunpack.c.l.b16 %v916
        %v949 = vunpack.c.l.b16 %v917
        %v950 = vpack.c.b16 %v935, %v934
        %v951 = vpack.c.b16 %v937, %v936
        %v952 = vpack.c.b16 %v939, %v938
        %v953 = vpack.c.b16 %v941, %v940
        %v954 = vpack.c.b16 %v943, %v942
        %v955 = vpack.c.b16 %v945, %v944
        %v956 = vpack.c.b16 %v947, %v946
        %v957 = vpack.c.b16 %v949, %v948
        %966 = vmatprep.subr.bf16.mxu0 0
        %967 = vmatpush1.bf16.msra.mxu0 %v950
        %968 = vmatprep.subr.bf16.mxu0 0
        %969 = vmatpush1.bf16.msra.mxu0 %v951
        %970 = vmatprep.subr.bf16.mxu0 0
        %971 = vmatpush1.bf16.msra.mxu0 %v952
        %972 = vmatprep.subr.bf16.mxu0 0
        %973 = vmatpush1.bf16.msra.mxu0 %v953
        %974 = vmatprep.subr.bf16.mxu0 0
        %975 = vmatpush1.bf16.msra.mxu0 %v954
        %976 = vmatprep.subr.bf16.mxu0 0
        %977 = vmatpush1.bf16.msra.mxu0 %v955
        %978 = vmatprep.subr.bf16.mxu0 0
        %979 = vmatpush1.bf16.msra.mxu0 %v956
        %980 = vmatprep.subr.bf16.mxu0 0
        %981 = vmatpush1.bf16.msra.mxu0 %v957
        %982 = vmatprep.subr.bf16.mxu0 0
        %983 = vmatpush1.bf16.msra.mxu0 0
        %984 = vmatprep.subr.bf16.mxu0 0
        %985 = vmatpush1.bf16.msra.mxu0 0
        %986 = vmatprep.subr.bf16.mxu0 0
        %987 = vmatpush1.bf16.msra.mxu0 0
        %988 = vmatprep.subr.bf16.mxu0 0
        %989 = vmatpush1.bf16.msra.mxu0 0
        %990 = vmatprep.subr.bf16.mxu0 0
        %991 = vmatpush1.bf16.msra.mxu0 0
        %992 = vmatprep.subr.bf16.mxu0 0
        %993 = vmatpush1.bf16.msra.mxu0 0
        %994 = vmatprep.subr.bf16.mxu0 0
        %995 = vmatpush1.bf16.msra.mxu0 0
        %996 = vmatprep.subr.bf16.mxu0 0
        %997 = vmatpush1.bf16.msra.mxu0 0
        %998 = vmatprep.mubr.bf16.mxu0 0
        %999 = vmatmul.mubr.bf16.gmra.mrb[0].mxu0 %v897
        %v1000 = vpop.f32.mrb[0].mxu0
        %v1001 = vadd.f32 0.0, %v1000
        %v1002 = vpop.f32.mrb[0].mxu0
        %v1003 = vpop.f32.mrb[0].mxu0
        %v1004 = vadd.f32 0.0, %v1003
        %v1005 = vpop.f32.mrb[0].mxu0
        %1006 = vmatprep.mubr.bf16.mxu0 0
        %1007 = vmatmul.mubr.bf16.gmra.mrb[0].mxu0 %v898
        %v1008 = vpop.f32.mrb[0].mxu0
        %v1009 = vadd.f32 0.0, %v1008
        %v1010 = vpop.f32.mrb[0].mxu0
        %v1011 = vpop.f32.mrb[0].mxu0
        %v1012 = vadd.f32 0.0, %v1011
        %v1013 = vpop.f32.mrb[0].mxu0
        %1014 = vmatprep.mubr.bf16.mxu0 0
        %1015 = vmatmul.mubr.bf16.gmra.mrb[0].mxu0 %v899
        %v1016 = vpop.f32.mrb[0].mxu0
        %v1017 = vadd.f32 0.0, %v1016
        %v1018 = vpop.f32.mrb[0].mxu0
        %v1019 = vpop.f32.mrb[0].mxu0
        %v1020 = vadd.f32 0.0, %v1019
        %v1021 = vpop.f32.mrb[0].mxu0
        %1022 = vmatprep.mubr.bf16.mxu0 0
        %1023 = vmatmul.mubr.bf16.gmra.mrb[0].mxu0 %v900
        %v1024 = vpop.f32.mrb[0].mxu0
        %v1025 = vadd.f32 0.0, %v1024
        %v1026 = vpop.f32.mrb[0].mxu0
        %v1027 = vpop.f32.mrb[0].mxu0
        %v1028 = vadd.f32 0.0, %v1027
        %v1029 = vpop.f32.mrb[0].mxu0
        %1030 = vdwg.mxu0
        %v1047 = vunpack.c.l.b16 %v767
        %v1048 = vunpack.c.l.b16 %v768
        %v1049 = vunpack.c.l.b16 %v769
        %v1050 = vunpack.c.l.b16 %v770
        %v1051 = vunpack.c.l.b16 %v771
        %v1052 = vunpack.c.l.b16 %v772
        %v1053 = vunpack.c.l.b16 %v773
        %v1054 = vunpack.c.l.b16 %v774
        %v1055 = vunpack.c.l.b16 %v775
        %v1056 = vunpack.c.l.b16 %v776
        %v1057 = vunpack.c.l.b16 %v777
        %v1058 = vunpack.c.l.b16 %v778
        %v1059 = vunpack.c.l.b16 %v779
        %v1060 = vunpack.c.l.b16 %v780
        %v1061 = vunpack.c.l.b16 %v781
        %v1062 = vunpack.c.l.b16 %v782
        %v1063 = vpack.c.b16 %v1048, %v1047
        %v1064 = vpack.c.b16 %v1050, %v1049
        %v1065 = vpack.c.b16 %v1052, %v1051
        %v1066 = vpack.c.b16 %v1054, %v1053
        %v1067 = vpack.c.b16 %v1056, %v1055
        %v1068 = vpack.c.b16 %v1058, %v1057
        %v1069 = vpack.c.b16 %v1060, %v1059
        %v1070 = vpack.c.b16 %v1062, %v1061
        %1079 = vmatprep.subr.bf16.mxu0 0
        %1080 = vmatpush1.bf16.msra.mxu0 %v1063
        %1081 = vmatprep.subr.bf16.mxu0 0
        %1082 = vmatpush1.bf16.msra.mxu0 %v1064
        %1083 = vmatprep.subr.bf16.mxu0 0
        %1084 = vmatpush1.bf16.msra.mxu0 %v1065
        %1085 = vmatprep.subr.bf16.mxu0 0
        %1086 = vmatpush1.bf16.msra.mxu0 %v1066
        %1087 = vmatprep.subr.bf16.mxu0 0
        %1088 = vmatpush1.bf16.msra.mxu0 %v1067
        %1089 = vmatprep.subr.bf16.mxu0 0
        %1090 = vmatpush1.bf16.msra.mxu0 %v1068
        %1091 = vmatprep.subr.bf16.mxu0 0
        %1092 = vmatpush1.bf16.msra.mxu0 %v1069
        %1093 = vmatprep.subr.bf16.mxu0 0
        %1094 = vmatpush1.bf16.msra.mxu0 %v1070
        %1095 = vmatprep.subr.bf16.mxu0 0
        %1096 = vmatpush1.bf16.msra.mxu0 0
        %1097 = vmatprep.subr.bf16.mxu0 0
        %1098 = vmatpush1.bf16.msra.mxu0 0
        %1099 = vmatprep.subr.bf16.mxu0 0
        %1100 = vmatpush1.bf16.msra.mxu0 0
        %1101 = vmatprep.subr.bf16.mxu0 0
        %1102 = vmatpush1.bf16.msra.mxu0 0
        %1103 = vmatprep.subr.bf16.mxu0 0
        %1104 = vmatpush1.bf16.msra.mxu0 0
        %1105 = vmatprep.subr.bf16.mxu0 0
        %1106 = vmatpush1.bf16.msra.mxu0 0
        %1107 = vmatprep.subr.bf16.mxu0 0
        %1108 = vmatpush1.bf16.msra.mxu0 0
        %1109 = vmatprep.subr.bf16.mxu0 0
        %1110 = vmatpush1.bf16.msra.mxu0 0
        %1111 = vmatprep.mubr.bf16.mxu0 0
        %1112 = vmatmul.mubr.bf16.gmra.mrb[0].mxu0 %v763
        %v1113 = vpop.f32.mrb[0].mxu0
        %v1114 = vadd.f32 %v1001, %v1113
        %v1115 = vpop.f32.mrb[0].mxu0
        %v1116 = vpop.f32.mrb[0].mxu0
        %v1117 = vadd.f32 %v1004, %v1116
        %v1118 = vpop.f32.mrb[0].mxu0
        %1119 = vmatprep.mubr.bf16.mxu0 0
        %1120 = vmatmul.mubr.bf16.gmra.mrb[0].mxu0 %v764
        %v1121 = vpop.f32.mrb[0].mxu0
        %v1122 = vadd.f32 %v1009, %v1121
        %v1123 = vpop.f32.mrb[0].mxu0
        %v1124 = vpop.f32.mrb[0].mxu0
        %v1125 = vadd.f32 %v1012, %v1124
        %v1126 = vpop.f32.mrb[0].mxu0
        %1127 = vmatprep.mubr.bf16.mxu0 0
        %1128 = vmatmul.mubr.bf16.gmra.mrb[0].mxu0 %v765
        %v1129 = vpop.f32.mrb[0].mxu0
        %v1130 = vadd.f32 %v1017, %v1129
        %v1131 = vpop.f32.mrb[0].mxu0
        %v1132 = vpop.f32.mrb[0].mxu0
        %v1133 = vadd.f32 %v1020, %v1132
        %v1134 = vpop.f32.mrb[0].mxu0
        %1135 = vmatprep.mubr.bf16.mxu0 0
        %1136 = vmatmul.mubr.bf16.gmra.mrb[0].mxu0 %v766
        %v1137 = vpop.f32.mrb[0].mxu0
        %v1138 = vadd.f32 %v1025, %v1137
        %v1139 = vpop.f32.mrb[0].mxu0
        %v1140 = vpop.f32.mrb[0].mxu0
        %v1141 = vadd.f32 %v1028, %v1140
        %v1142 = vpop.f32.mrb[0].mxu0
        %1143 = vdwg.mxu0
        %s1144 = scalar_lea.vmem %s1, 128
        %v1145 = vld [vmem:[%s1144] sm:$0xff]
        %v1146 = vld [vmem:[%s1144 + $0x8] sm:$0xff]
        %v1147 = vld [vmem:[%s1144 + $0x10] sm:$0xff]
        %v1148 = vld [vmem:[%s1144 + $0x18] sm:$0xff]
        %v1149 = vld [vmem:[%s1144 + $0x20] sm:$0xff]
        %v1150 = vld [vmem:[%s1144 + $0x28] sm:$0xff]
        %v1151 = vld [vmem:[%s1144 + $0x30] sm:$0xff]
        %v1152 = vld [vmem:[%s1144 + $0x38] sm:$0xff]
        %v1161 = vunpack.c.l.b16 %v1145
        %v1162 = vunpack.c.h.b16 %v1145
        %v1163 = vunpack.c.l.b16 %v1146
        %v1164 = vunpack.c.h.b16 %v1146
        %v1165 = vunpack.c.l.b16 %v1147
        %v1166 = vunpack.c.h.b16 %v1147
        %v1167 = vunpack.c.l.b16 %v1148
        %v1168 = vunpack.c.h.b16 %v1148
        %v1169 = vunpack.c.l.b16 %v1149
        %v1170 = vunpack.c.h.b16 %v1149
        %v1171 = vunpack.c.l.b16 %v1150
        %v1172 = vunpack.c.h.b16 %v1150
        %v1173 = vunpack.c.l.b16 %v1151
        %v1174 = vunpack.c.h.b16 %v1151
        %v1175 = vunpack.c.l.b16 %v1152
        %v1176 = vunpack.c.h.b16 %v1152
        %v1177 = vpack.c.b16 %v1163, %v1161
        %v1178 = vpack.c.b16 %v1164, %v1162
        %v1179 = vpack.c.b16 %v1167, %v1165
        %v1180 = vpack.c.b16 %v1168, %v1166
        %v1181 = vpack.c.b16 %v1171, %v1169
        %v1182 = vpack.c.b16 %v1172, %v1170
        %v1183 = vpack.c.b16 %v1175, %v1173
        %v1184 = vpack.c.b16 %v1176, %v1174
        %1193 = vmatprep.subr.bf16.mxu0 0
        %1194 = vmatpush1.bf16.msra.mxu0 %v666
        %1195 = vmatprep.subr.bf16.mxu0 0
        %1196 = vmatpush1.bf16.msra.mxu0 %v667
        %1197 = vmatprep.subr.bf16.mxu0 0
        %1198 = vmatpush1.bf16.msra.mxu0 %v668
        %1199 = vmatprep.subr.bf16.mxu0 0
        %1200 = vmatpush1.bf16.msra.mxu0 %v669
        %1201 = vmatprep.subr.bf16.mxu0 0
        %1202 = vmatpush1.bf16.msra.mxu0 %v670
        %1203 = vmatprep.subr.bf16.mxu0 0
        %1204 = vmatpush1.bf16.msra.mxu0 %v671
        %1205 = vmatprep.subr.bf16.mxu0 0
        %1206 = vmatpush1.bf16.msra.mxu0 %v672
        %1207 = vmatprep.subr.bf16.mxu0 0
        %1208 = vmatpush1.bf16.msra.mxu0 %v673
        %1209 = vmatprep.subr.bf16.mxu0 0
        %1210 = vmatpush1.bf16.msra.mxu0 %v674
        %1211 = vmatprep.subr.bf16.mxu0 0
        %1212 = vmatpush1.bf16.msra.mxu0 %v675
        %1213 = vmatprep.subr.bf16.mxu0 0
        %1214 = vmatpush1.bf16.msra.mxu0 %v676
        %1215 = vmatprep.subr.bf16.mxu0 0
        %1216 = vmatpush1.bf16.msra.mxu0 %v677
        %1217 = vmatprep.subr.bf16.mxu0 0
        %1218 = vmatpush1.bf16.msra.mxu0 %v678
        %1219 = vmatprep.subr.bf16.mxu0 0
        %1220 = vmatpush1.bf16.msra.mxu0 %v679
        %1221 = vmatprep.subr.bf16.mxu0 0
        %1222 = vmatpush1.bf16.msra.mxu0 %v680
        %1223 = vmatprep.subr.bf16.mxu0 0
        %1224 = vmatpush1.bf16.msra.mxu0 %v681
        %1225 = vmatprep.mubr.bf16.mxu0 %v1178
        %1226 = vmatmul.mubr.bf16.gmra.mrb[0].mxu0 %v1177
        %v1227 = vpop.f32.mrb[0].mxu0
        %v1228 = vadd.f32 0.0, %v1227
        %v1229 = vpop.f32.mrb[0].mxu0
        %v1230 = vpop.f32.mrb[0].mxu0
        %v1231 = vadd.f32 0.0, %v1230
        %v1232 = vpop.f32.mrb[0].mxu0
        %1233 = vmatprep.mubr.bf16.mxu0 %v1180
        %1234 = vmatmul.mubr.bf16.gmra.mrb[0].mxu0 %v1179
        %v1235 = vpop.f32.mrb[0].mxu0
        %v1236 = vadd.f32 0.0, %v1235
        %v1237 = vpop.f32.mrb[0].mxu0
        %v1238 = vpop.f32.mrb[0].mxu0
        %v1239 = vadd.f32 0.0, %v1238
        %v1240 = vpop.f32.mrb[0].mxu0
        %1241 = vmatprep.mubr.bf16.mxu0 %v1182
        %1242 = vmatmul.mubr.bf16.gmra.mrb[0].mxu0 %v1181
        %v1243 = vpop.f32.mrb[0].mxu0
        %v1244 = vadd.f32 0.0, %v1243
        %v1245 = vpop.f32.mrb[0].mxu0
        %v1246 = vpop.f32.mrb[0].mxu0
        %v1247 = vadd.f32 0.0, %v1246
        %v1248 = vpop.f32.mrb[0].mxu0
        %1249 = vmatprep.mubr.bf16.mxu0 %v1184
        %1250 = vmatmul.mubr.bf16.gmra.mrb[0].mxu0 %v1183
        %v1251 = vpop.f32.mrb[0].mxu0
        %v1252 = vadd.f32 0.0, %v1251
        %v1253 = vpop.f32.mrb[0].mxu0
        %v1254 = vpop.f32.mrb[0].mxu0
        %v1255 = vadd.f32 0.0, %v1254
        %v1256 = vpop.f32.mrb[0].mxu0
        %1257 = vdwg.mxu0
        %v1258 = vpack.c.bf16 %v1231, %v1228
        %v1259 = vpack.c.bf16 %v1239, %v1236
        %v1260 = vpack.c.bf16 %v1247, %v1244
        %v1261 = vpack.c.bf16 %v1255, %v1252
        %s1262 = scalar_lea.vmem [#allocation2], 128
        %v1263 = vld [vmem:[%s1262] sm:$0xf]
        %v1264 = vld [vmem:[%s1262 + $0x4] sm:$0xf]
        %v1265 = vld [vmem:[%s1262 + $0x8] sm:$0xf]
        %v1266 = vld [vmem:[%s1262 + $0xc] sm:$0xf]
        %v1267 = vld [vmem:[%s1262 + $0x10] sm:$0xf]
        %v1268 = vld [vmem:[%s1262 + $0x14] sm:$0xf]
        %v1269 = vld [vmem:[%s1262 + $0x18] sm:$0xf]
        %v1270 = vld [vmem:[%s1262 + $0x1c] sm:$0xf]
        %v1271 = vld [vmem:[%s1262 + $0x20] sm:$0xf]
        %v1272 = vld [vmem:[%s1262 + $0x24] sm:$0xf]
        %v1273 = vld [vmem:[%s1262 + $0x28] sm:$0xf]
        %v1274 = vld [vmem:[%s1262 + $0x2c] sm:$0xf]
        %v1275 = vld [vmem:[%s1262 + $0x30] sm:$0xf]
        %v1276 = vld [vmem:[%s1262 + $0x34] sm:$0xf]
        %v1277 = vld [vmem:[%s1262 + $0x38] sm:$0xf]
        %v1278 = vld [vmem:[%s1262 + $0x3c] sm:$0xf]
        %v1295 = vunpack.c.l.b16 %v1263
        %v1296 = vunpack.c.l.b16 %v1264
        %v1297 = vunpack.c.l.b16 %v1265
        %v1298 = vunpack.c.l.b16 %v1266
        %v1299 = vunpack.c.l.b16 %v1267
        %v1300 = vunpack.c.l.b16 %v1268
        %v1301 = vunpack.c.l.b16 %v1269
        %v1302 = vunpack.c.l.b16 %v1270
        %v1303 = vunpack.c.l.b16 %v1271
        %v1304 = vunpack.c.l.b16 %v1272
        %v1305 = vunpack.c.l.b16 %v1273
        %v1306 = vunpack.c.l.b16 %v1274
        %v1307 = vunpack.c.l.b16 %v1275
        %v1308 = vunpack.c.l.b16 %v1276
        %v1309 = vunpack.c.l.b16 %v1277
        %v1310 = vunpack.c.l.b16 %v1278
        %v1311 = vpack.c.b16 %v1296, %v1295
        %v1312 = vpack.c.b16 %v1298, %v1297
        %v1313 = vpack.c.b16 %v1300, %v1299
        %v1314 = vpack.c.b16 %v1302, %v1301
        %v1315 = vpack.c.b16 %v1304, %v1303
        %v1316 = vpack.c.b16 %v1306, %v1305
        %v1317 = vpack.c.b16 %v1308, %v1307
        %v1318 = vpack.c.b16 %v1310, %v1309
        %1327 = vmatprep.subr.bf16.mxu0 0
        %1328 = vmatpush1.bf16.msra.mxu0 %v1311
        %1329 = vmatprep.subr.bf16.mxu0 0
        %1330 = vmatpush1.bf16.msra.mxu0 %v1312
        %1331 = vmatprep.subr.bf16.mxu0 0
        %1332 = vmatpush1.bf16.msra.mxu0 %v1313
        %1333 = vmatprep.subr.bf16.mxu0 0
        %1334 = vmatpush1.bf16.msra.mxu0 %v1314
        %1335 = vmatprep.subr.bf16.mxu0 0
        %1336 = vmatpush1.bf16.msra.mxu0 %v1315
        %1337 = vmatprep.subr.bf16.mxu0 0
        %1338 = vmatpush1.bf16.msra.mxu0 %v1316
        %1339 = vmatprep.subr.bf16.mxu0 0
        %1340 = vmatpush1.bf16.msra.mxu0 %v1317
        %1341 = vmatprep.subr.bf16.mxu0 0
        %1342 = vmatpush1.bf16.msra.mxu0 %v1318
        %1343 = vmatprep.subr.bf16.mxu0 0
        %1344 = vmatpush1.bf16.msra.mxu0 0
        %1345 = vmatprep.subr.bf16.mxu0 0
        %1346 = vmatpush1.bf16.msra.mxu0 0
        %1347 = vmatprep.subr.bf16.mxu0 0
        %1348 = vmatpush1.bf16.msra.mxu0 0
        %1349 = vmatprep.subr.bf16.mxu0 0
        %1350 = vmatpush1.bf16.msra.mxu0 0
        %1351 = vmatprep.subr.bf16.mxu0 0
        %1352 = vmatpush1.bf16.msra.mxu0 0
        %1353 = vmatprep.subr.bf16.mxu0 0
        %1354 = vmatpush1.bf16.msra.mxu0 0
        %1355 = vmatprep.subr.bf16.mxu0 0
        %1356 = vmatpush1.bf16.msra.mxu0 0
        %1357 = vmatprep.subr.bf16.mxu0 0
        %1358 = vmatpush1.bf16.msra.mxu0 0
        %1359 = vmatprep.mubr.bf16.mxu0 0
        %1360 = vmatmul.mubr.bf16.gmra.mrb[0].mxu0 %v1258
        %v1361 = vpop.f32.mrb[0].mxu0
        %v1362 = vadd.f32 0.0, %v1361
        %v1363 = vpop.f32.mrb[0].mxu0
        %v1364 = vpop.f32.mrb[0].mxu0
        %v1365 = vadd.f32 0.0, %v1364
        %v1366 = vpop.f32.mrb[0].mxu0
        %1367 = vmatprep.mubr.bf16.mxu0 0
        %1368 = vmatmul.mubr.bf16.gmra.mrb[0].mxu0 %v1259
        %v1369 = vpop.f32.mrb[0].mxu0
        %v1370 = vadd.f32 0.0, %v1369
        %v1371 = vpop.f32.mrb[0].mxu0
        %v1372 = vpop.f32.mrb[0].mxu0
        %v1373 = vadd.f32 0.0, %v1372
        %v1374 = vpop.f32.mrb[0].mxu0
        %1375 = vmatprep.mubr.bf16.mxu0 0
        %1376 = vmatmul.mubr.bf16.gmra.mrb[0].mxu0 %v1260
        %v1377 = vpop.f32.mrb[0].mxu0
        %v1378 = vadd.f32 0.0, %v1377
        %v1379 = vpop.f32.mrb[0].mxu0
        %v1380 = vpop.f32.mrb[0].mxu0
        %v1381 = vadd.f32 0.0, %v1380
        %v1382 = vpop.f32.mrb[0].mxu0
        %1383 = vmatprep.mubr.bf16.mxu0 0
        %1384 = vmatmul.mubr.bf16.gmra.mrb[0].mxu0 %v1261
        %v1385 = vpop.f32.mrb[0].mxu0
        %v1386 = vadd.f32 0.0, %v1385
        %v1387 = vpop.f32.mrb[0].mxu0
        %v1388 = vpop.f32.mrb[0].mxu0
        %v1389 = vadd.f32 0.0, %v1388
        %v1390 = vpop.f32.mrb[0].mxu0
        %1391 = vdwg.mxu0
        %v1392 = vadd.f32 %v1114, %v1362
        %v1393 = vadd.f32 %v1117, %v1365
        %v1394 = vadd.f32 %v1122, %v1370
        %v1395 = vadd.f32 %v1125, %v1373
        %v1396 = vadd.f32 %v1130, %v1378
        %v1397 = vadd.f32 %v1133, %v1381
        %v1398 = vadd.f32 %v1138, %v1386
        %v1399 = vadd.f32 %v1141, %v1389
        %s1400 = scalar_lea.vmem %s1, 192
        %v1401 = vld [vmem:[%s1400] sm:$0xff]
        %v1402 = vld [vmem:[%s1400 + $0x8] sm:$0xff]
        %v1403 = vld [vmem:[%s1400 + $0x10] sm:$0xff]
        %v1404 = vld [vmem:[%s1400 + $0x18] sm:$0xff]
        %v1405 = vld [vmem:[%s1400 + $0x20] sm:$0xff]
        %v1406 = vld [vmem:[%s1400 + $0x28] sm:$0xff]
        %v1407 = vld [vmem:[%s1400 + $0x30] sm:$0xff]
        %v1408 = vld [vmem:[%s1400 + $0x38] sm:$0xff]
        %v1417 = vunpack.c.l.b16 %v1401
        %v1418 = vunpack.c.h.b16 %v1401
        %v1419 = vunpack.c.l.b16 %v1402
        %v1420 = vunpack.c.h.b16 %v1402
        %v1421 = vunpack.c.l.b16 %v1403
        %v1422 = vunpack.c.h.b16 %v1403
        %v1423 = vunpack.c.l.b16 %v1404
        %v1424 = vunpack.c.h.b16 %v1404
        %v1425 = vunpack.c.l.b16 %v1405
        %v1426 = vunpack.c.h.b16 %v1405
        %v1427 = vunpack.c.l.b16 %v1406
        %v1428 = vunpack.c.h.b16 %v1406
        %v1429 = vunpack.c.l.b16 %v1407
        %v1430 = vunpack.c.h.b16 %v1407
        %v1431 = vunpack.c.l.b16 %v1408
        %v1432 = vunpack.c.h.b16 %v1408
        %v1433 = vpack.c.b16 %v1419, %v1417
        %v1434 = vpack.c.b16 %v1420, %v1418
        %v1435 = vpack.c.b16 %v1423, %v1421
        %v1436 = vpack.c.b16 %v1424, %v1422
        %v1437 = vpack.c.b16 %v1427, %v1425
        %v1438 = vpack.c.b16 %v1428, %v1426
        %v1439 = vpack.c.b16 %v1431, %v1429
        %v1440 = vpack.c.b16 %v1432, %v1430
        %1449 = vmatprep.subr.bf16.mxu0 0
        %1450 = vmatpush1.bf16.msra.mxu0 %v666
        %1451 = vmatprep.subr.bf16.mxu0 0
        %1452 = vmatpush1.bf16.msra.mxu0 %v667
        %1453 = vmatprep.subr.bf16.mxu0 0
        %1454 = vmatpush1.bf16.msra.mxu0 %v668
        %1455 = vmatprep.subr.bf16.mxu0 0
        %1456 = vmatpush1.bf16.msra.mxu0 %v669
        %1457 = vmatprep.subr.bf16.mxu0 0
        %1458 = vmatpush1.bf16.msra.mxu0 %v670
        %1459 = vmatprep.subr.bf16.mxu0 0
        %1460 = vmatpush1.bf16.msra.mxu0 %v671
        %1461 = vmatprep.subr.bf16.mxu0 0
        %1462 = vmatpush1.bf16.msra.mxu0 %v672
        %1463 = vmatprep.subr.bf16.mxu0 0
        %1464 = vmatpush1.bf16.msra.mxu0 %v673
        %1465 = vmatprep.subr.bf16.mxu0 0
        %1466 = vmatpush1.bf16.msra.mxu0 %v674
        %1467 = vmatprep.subr.bf16.mxu0 0
        %1468 = vmatpush1.bf16.msra.mxu0 %v675
        %1469 = vmatprep.subr.bf16.mxu0 0
        %1470 = vmatpush1.bf16.msra.mxu0 %v676
        %1471 = vmatprep.subr.bf16.mxu0 0
        %1472 = vmatpush1.bf16.msra.mxu0 %v677
        %1473 = vmatprep.subr.bf16.mxu0 0
        %1474 = vmatpush1.bf16.msra.mxu0 %v678
        %1475 = vmatprep.subr.bf16.mxu0 0
        %1476 = vmatpush1.bf16.msra.mxu0 %v679
        %1477 = vmatprep.subr.bf16.mxu0 0
        %1478 = vmatpush1.bf16.msra.mxu0 %v680
        %1479 = vmatprep.subr.bf16.mxu0 0
        %1480 = vmatpush1.bf16.msra.mxu0 %v681
        %1481 = vmatprep.mubr.bf16.mxu0 %v1434
        %1482 = vmatmul.mubr.bf16.gmra.mrb[0].mxu0 %v1433
        %v1483 = vpop.f32.mrb[0].mxu0
        %v1484 = vadd.f32 0.0, %v1483
        %v1485 = vpop.f32.mrb[0].mxu0
        %v1486 = vpop.f32.mrb[0].mxu0
        %v1487 = vadd.f32 0.0, %v1486
        %v1488 = vpop.f32.mrb[0].mxu0
        %1489 = vmatprep.mubr.bf16.mxu0 %v1436
        %1490 = vmatmul.mubr.bf16.gmra.mrb[0].mxu0 %v1435
        %v1491 = vpop.f32.mrb[0].mxu0
        %v1492 = vadd.f32 0.0, %v1491
        %v1493 = vpop.f32.mrb[0].mxu0
        %v1494 = vpop.f32.mrb[0].mxu0
        %v1495 = vadd.f32 0.0, %v1494
        %v1496 = vpop.f32.mrb[0].mxu0
        %1497 = vmatprep.mubr.bf16.mxu0 %v1438
        %1498 = vmatmul.mubr.bf16.gmra.mrb[0].mxu0 %v1437
        %v1499 = vpop.f32.mrb[0].mxu0
        %v1500 = vadd.f32 0.0, %v1499
        %v1501 = vpop.f32.mrb[0].mxu0
        %v1502 = vpop.f32.mrb[0].mxu0
        %v1503 = vadd.f32 0.0, %v1502
        %v1504 = vpop.f32.mrb[0].mxu0
        %1505 = vmatprep.mubr.bf16.mxu0 %v1440
        %1506 = vmatmul.mubr.bf16.gmra.mrb[0].mxu0 %v1439
        %v1507 = vpop.f32.mrb[0].mxu0
        %v1508 = vadd.f32 0.0, %v1507
        %v1509 = vpop.f32.mrb[0].mxu0
        %v1510 = vpop.f32.mrb[0].mxu0
        %v1511 = vadd.f32 0.0, %v1510
        %v1512 = vpop.f32.mrb[0].mxu0
        %1513 = vdwg.mxu0
        %v1514 = vpack.c.bf16 %v1487, %v1484
        %v1515 = vpack.c.bf16 %v1495, %v1492
        %v1516 = vpack.c.bf16 %v1503, %v1500
        %v1517 = vpack.c.bf16 %v1511, %v1508
        %s1518 = scalar_lea.vmem [#allocation2], 192
        %v1519 = vld [vmem:[%s1518] sm:$0xf]
        %v1520 = vld [vmem:[%s1518 + $0x4] sm:$0xf]
        %v1521 = vld [vmem:[%s1518 + $0x8] sm:$0xf]
        %v1522 = vld [vmem:[%s1518 + $0xc] sm:$0xf]
        %v1523 = vld [vmem:[%s1518 + $0x10] sm:$0xf]
        %v1524 = vld [vmem:[%s1518 + $0x14] sm:$0xf]
        %v1525 = vld [vmem:[%s1518 + $0x18] sm:$0xf]
        %v1526 = vld [vmem:[%s1518 + $0x1c] sm:$0xf]
        %v1527 = vld [vmem:[%s1518 + $0x20] sm:$0xf]
        %v1528 = vld [vmem:[%s1518 + $0x24] sm:$0xf]
        %v1529 = vld [vmem:[%s1518 + $0x28] sm:$0xf]
        %v1530 = vld [vmem:[%s1518 + $0x2c] sm:$0xf]
        %v1531 = vld [vmem:[%s1518 + $0x30] sm:$0xf]
        %v1532 = vld [vmem:[%s1518 + $0x34] sm:$0xf]
        %v1533 = vld [vmem:[%s1518 + $0x38] sm:$0xf]
        %v1534 = vld [vmem:[%s1518 + $0x3c] sm:$0xf]
        %v1551 = vunpack.c.l.b16 %v1519
        %v1552 = vunpack.c.l.b16 %v1520
        %v1553 = vunpack.c.l.b16 %v1521
        %v1554 = vunpack.c.l.b16 %v1522
        %v1555 = vunpack.c.l.b16 %v1523
        %v1556 = vunpack.c.l.b16 %v1524
        %v1557 = vunpack.c.l.b16 %v1525
        %v1558 = vunpack.c.l.b16 %v1526
        %v1559 = vunpack.c.l.b16 %v1527
        %v1560 = vunpack.c.l.b16 %v1528
        %v1561 = vunpack.c.l.b16 %v1529
        %v1562 = vunpack.c.l.b16 %v1530
        %v1563 = vunpack.c.l.b16 %v1531
        %v1564 = vunpack.c.l.b16 %v1532
        %v1565 = vunpack.c.l.b16 %v1533
        %v1566 = vunpack.c.l.b16 %v1534
        %v1567 = vpack.c.b16 %v1552, %v1551
        %v1568 = vpack.c.b16 %v1554, %v1553
        %v1569 = vpack.c.b16 %v1556, %v1555
        %v1570 = vpack.c.b16 %v1558, %v1557
        %v1571 = vpack.c.b16 %v1560, %v1559
        %v1572 = vpack.c.b16 %v1562, %v1561
        %v1573 = vpack.c.b16 %v1564, %v1563
        %v1574 = vpack.c.b16 %v1566, %v1565
        %1583 = vmatprep.subr.bf16.mxu0 0
        %1584 = vmatpush1.bf16.msra.mxu0 %v1567
        %1585 = vmatprep.subr.bf16.mxu0 0
        %1586 = vmatpush1.bf16.msra.mxu0 %v1568
        %1587 = vmatprep.subr.bf16.mxu0 0
        %1588 = vmatpush1.bf16.msra.mxu0 %v1569
        %1589 = vmatprep.subr.bf16.mxu0 0
        %1590 = vmatpush1.bf16.msra.mxu0 %v1570
        %1591 = vmatprep.subr.bf16.mxu0 0
        %1592 = vmatpush1.bf16.msra.mxu0 %v1571
        %1593 = vmatprep.subr.bf16.mxu0 0
        %1594 = vmatpush1.bf16.msra.mxu0 %v1572
        %1595 = vmatprep.subr.bf16.mxu0 0
        %1596 = vmatpush1.bf16.msra.mxu0 %v1573
        %1597 = vmatprep.subr.bf16.mxu0 0
        %1598 = vmatpush1.bf16.msra.mxu0 %v1574
        %1599 = vmatprep.subr.bf16.mxu0 0
        %1600 = vmatpush1.bf16.msra.mxu0 0
        %1601 = vmatprep.subr.bf16.mxu0 0
        %1602 = vmatpush1.bf16.msra.mxu0 0
        %1603 = vmatprep.subr.bf16.mxu0 0
        %1604 = vmatpush1.bf16.msra.mxu0 0
        %1605 = vmatprep.subr.bf16.mxu0 0
        %1606 = vmatpush1.bf16.msra.mxu0 0
        %1607 = vmatprep.subr.bf16.mxu0 0
        %1608 = vmatpush1.bf16.msra.mxu0 0
        %1609 = vmatprep.subr.bf16.mxu0 0
        %1610 = vmatpush1.bf16.msra.mxu0 0
        %1611 = vmatprep.subr.bf16.mxu0 0
        %1612 = vmatpush1.bf16.msra.mxu0 0
        %1613 = vmatprep.subr.bf16.mxu0 0
        %1614 = vmatpush1.bf16.msra.mxu0 0
        %1615 = vmatprep.mubr.bf16.mxu0 0
        %1616 = vmatmul.mubr.bf16.gmra.mrb[0].mxu0 %v1514
        %v1617 = vpop.f32.mrb[0].mxu0
        %v1618 = vadd.f32 0.0, %v1617
        %v1619 = vpop.f32.mrb[0].mxu0
        %v1620 = vpop.f32.mrb[0].mxu0
        %v1621 = vadd.f32 0.0, %v1620
        %v1622 = vpop.f32.mrb[0].mxu0
        %1623 = vmatprep.mubr.bf16.mxu0 0
        %1624 = vmatmul.mubr.bf16.gmra.mrb[0].mxu0 %v1515
        %v1625 = vpop.f32.mrb[0].mxu0
        %v1626 = vadd.f32 0.0, %v1625
        %v1627 = vpop.f32.mrb[0].mxu0
        %v1628 = vpop.f32.mrb[0].mxu0
        %v1629 = vadd.f32 0.0, %v1628
        %v1630 = vpop.f32.mrb[0].mxu0
        %1631 = vmatprep.mubr.bf16.mxu0 0
        %1632 = vmatmul.mubr.bf16.gmra.mrb[0].mxu0 %v1516
        %v1633 = vpop.f32.mrb[0].mxu0
        %v1634 = vadd.f32 0.0, %v1633
        %v1635 = vpop.f32.mrb[0].mxu0
        %v1636 = vpop.f32.mrb[0].mxu0
        %v1637 = vadd.f32 0.0, %v1636
        %v1638 = vpop.f32.mrb[0].mxu0
        %1639 = vmatprep.mubr.bf16.mxu0 0
        %1640 = vmatmul.mubr.bf16.gmra.mrb[0].mxu0 %v1517
        %v1641 = vpop.f32.mrb[0].mxu0
        %v1642 = vadd.f32 0.0, %v1641
        %v1643 = vpop.f32.mrb[0].mxu0
        %v1644 = vpop.f32.mrb[0].mxu0
        %v1645 = vadd.f32 0.0, %v1644
        %v1646 = vpop.f32.mrb[0].mxu0
        %1647 = vdwg.mxu0
        %v1648 = vadd.f32 %v1392, %v1618
        %v1649 = vadd.f32 %v1393, %v1621
        %v1650 = vadd.f32 %v1394, %v1626
        %v1651 = vadd.f32 %v1395, %v1629
        %v1652 = vadd.f32 %v1396, %v1634
        %v1653 = vadd.f32 %v1397, %v1637
        %v1654 = vadd.f32 %v1398, %v1642
        %v1655 = vadd.f32 %v1399, %v1645
        %s1656 = scalar_lea.vmem %s1, 256
        %v1657 = vld [vmem:[%s1656] sm:$0xff]
        %v1658 = vld [vmem:[%s1656 + $0x8] sm:$0xff]
        %v1659 = vld [vmem:[%s1656 + $0x10] sm:$0xff]
        %v1660 = vld [vmem:[%s1656 + $0x18] sm:$0xff]
        %v1661 = vld [vmem:[%s1656 + $0x20] sm:$0xff]
        %v1662 = vld [vmem:[%s1656 + $0x28] sm:$0xff]
        %v1663 = vld [vmem:[%s1656 + $0x30] sm:$0xff]
        %v1664 = vld [vmem:[%s1656 + $0x38] sm:$0xff]
        %v1673 = vunpack.c.l.b16 %v1657
        %v1674 = vunpack.c.h.b16 %v1657
        %v1675 = vunpack.c.l.b16 %v1658
        %v1676 = vunpack.c.h.b16 %v1658
        %v1677 = vunpack.c.l.b16 %v1659
        %v1678 = vunpack.c.h.b16 %v1659
        %v1679 = vunpack.c.l.b16 %v1660
        %v1680 = vunpack.c.h.b16 %v1660
        %v1681 = vunpack.c.l.b16 %v1661
        %v1682 = vunpack.c.h.b16 %v1661
        %v1683 = vunpack.c.l.b16 %v1662
        %v1684 = vunpack.c.h.b16 %v1662
        %v1685 = vunpack.c.l.b16 %v1663
        %v1686 = vunpack.c.h.b16 %v1663
        %v1687 = vunpack.c.l.b16 %v1664
        %v1688 = vunpack.c.h.b16 %v1664
        %v1689 = vpack.c.b16 %v1675, %v1673
        %v1690 = vpack.c.b16 %v1676, %v1674
        %v1691 = vpack.c.b16 %v1679, %v1677
        %v1692 = vpack.c.b16 %v1680, %v1678
        %v1693 = vpack.c.b16 %v1683, %v1681
        %v1694 = vpack.c.b16 %v1684, %v1682
        %v1695 = vpack.c.b16 %v1687, %v1685
        %v1696 = vpack.c.b16 %v1688, %v1686
        %1705 = vmatprep.subr.bf16.mxu0 0
        %1706 = vmatpush1.bf16.msra.mxu0 %v666
        %1707 = vmatprep.subr.bf16.mxu0 0
        %1708 = vmatpush1.bf16.msra.mxu0 %v667
        %1709 = vmatprep.subr.bf16.mxu0 0
        %1710 = vmatpush1.bf16.msra.mxu0 %v668
        %1711 = vmatprep.subr.bf16.mxu0 0
        %1712 = vmatpush1.bf16.msra.mxu0 %v669
        %1713 = vmatprep.subr.bf16.mxu0 0
        %1714 = vmatpush1.bf16.msra.mxu0 %v670
        %1715 = vmatprep.subr.bf16.mxu0 0
        %1716 = vmatpush1.bf16.msra.mxu0 %v671
        %1717 = vmatprep.subr.bf16.mxu0 0
        %1718 = vmatpush1.bf16.msra.mxu0 %v672
        %1719 = vmatprep.subr.bf16.mxu0 0
        %1720 = vmatpush1.bf16.msra.mxu0 %v673
        %1721 = vmatprep.subr.bf16.mxu0 0
        %1722 = vmatpush1.bf16.msra.mxu0 %v674
        %1723 = vmatprep.subr.bf16.mxu0 0
        %1724 = vmatpush1.bf16.msra.mxu0 %v675
        %1725 = vmatprep.subr.bf16.mxu0 0
        %1726 = vmatpush1.bf16.msra.mxu0 %v676
        %1727 = vmatprep.subr.bf16.mxu0 0
        %1728 = vmatpush1.bf16.msra.mxu0 %v677
        %1729 = vmatprep.subr.bf16.mxu0 0
        %1730 = vmatpush1.bf16.msra.mxu0 %v678
        %1731 = vmatprep.subr.bf16.mxu0 0
        %1732 = vmatpush1.bf16.msra.mxu0 %v679
        %1733 = vmatprep.subr.bf16.mxu0 0
        %1734 = vmatpush1.bf16.msra.mxu0 %v680
        %1735 = vmatprep.subr.bf16.mxu0 0
        %1736 = vmatpush1.bf16.msra.mxu0 %v681
        %1737 = vmatprep.mubr.bf16.mxu0 %v1690
        %1738 = vmatmul.mubr.bf16.gmra.mrb[0].mxu0 %v1689
        %v1739 = vpop.f32.mrb[0].mxu0
        %v1740 = vadd.f32 0.0, %v1739
        %v1741 = vpop.f32.mrb[0].mxu0
        %v1742 = vpop.f32.mrb[0].mxu0
        %v1743 = vadd.f32 0.0, %v1742
        %v1744 = vpop.f32.mrb[0].mxu0
        %1745 = vmatprep.mubr.bf16.mxu0 %v1692
        %1746 = vmatmul.mubr.bf16.gmra.mrb[0].mxu0 %v1691
        %v1747 = vpop.f32.mrb[0].mxu0
        %v1748 = vadd.f32 0.0, %v1747
        %v1749 = vpop.f32.mrb[0].mxu0
        %v1750 = vpop.f32.mrb[0].mxu0
        %v1751 = vadd.f32 0.0, %v1750
        %v1752 = vpop.f32.mrb[0].mxu0
        %1753 = vmatprep.mubr.bf16.mxu0 %v1694
        %1754 = vmatmul.mubr.bf16.gmra.mrb[0].mxu0 %v1693
        %v1755 = vpop.f32.mrb[0].mxu0
        %v1756 = vadd.f32 0.0, %v1755
        %v1757 = vpop.f32.mrb[0].mxu0
        %v1758 = vpop.f32.mrb[0].mxu0
        %v1759 = vadd.f32 0.0, %v1758
        %v1760 = vpop.f32.mrb[0].mxu0
        %1761 = vmatprep.mubr.bf16.mxu0 %v1696
        %1762 = vmatmul.mubr.bf16.gmra.mrb[0].mxu0 %v1695
        %v1763 = vpop.f32.mrb[0].mxu0
        %v1764 = vadd.f32 0.0, %v1763
        %v1765 = vpop.f32.mrb[0].mxu0
        %v1766 = vpop.f32.mrb[0].mxu0
        %v1767 = vadd.f32 0.0, %v1766
        %v1768 = vpop.f32.mrb[0].mxu0
        %1769 = vdwg.mxu0
        %v1770 = vpack.c.bf16 %v1743, %v1740
        %v1771 = vpack.c.bf16 %v1751, %v1748
        %v1772 = vpack.c.bf16 %v1759, %v1756
        %v1773 = vpack.c.bf16 %v1767, %v1764
        %s1774 = scalar_lea.vmem [#allocation2], 256
        %v1775 = vld [vmem:[%s1774] sm:$0xf]
        %v1776 = vld [vmem:[%s1774 + $0x4] sm:$0xf]
        %v1777 = vld [vmem:[%s1774 + $0x8] sm:$0xf]
        %v1778 = vld [vmem:[%s1774 + $0xc] sm:$0xf]
        %v1779 = vld [vmem:[%s1774 + $0x10] sm:$0xf]
        %v1780 = vld [vmem:[%s1774 + $0x14] sm:$0xf]
        %v1781 = vld [vmem:[%s1774 + $0x18] sm:$0xf]
        %v1782 = vld [vmem:[%s1774 + $0x1c] sm:$0xf]
        %v1783 = vld [vmem:[%s1774 + $0x20] sm:$0xf]
        %v1784 = vld [vmem:[%s1774 + $0x24] sm:$0xf]
        %v1785 = vld [vmem:[%s1774 + $0x28] sm:$0xf]
        %v1786 = vld [vmem:[%s1774 + $0x2c] sm:$0xf]
        %v1787 = vld [vmem:[%s1774 + $0x30] sm:$0xf]
        %v1788 = vld [vmem:[%s1774 + $0x34] sm:$0xf]
        %v1789 = vld [vmem:[%s1774 + $0x38] sm:$0xf]
        %v1790 = vld [vmem:[%s1774 + $0x3c] sm:$0xf]
        %v1807 = vunpack.c.l.b16 %v1775
        %v1808 = vunpack.c.l.b16 %v1776
        %v1809 = vunpack.c.l.b16 %v1777
        %v1810 = vunpack.c.l.b16 %v1778
        %v1811 = vunpack.c.l.b16 %v1779
        %v1812 = vunpack.c.l.b16 %v1780
        %v1813 = vunpack.c.l.b16 %v1781
        %v1814 = vunpack.c.l.b16 %v1782
        %v1815 = vunpack.c.l.b16 %v1783
        %v1816 = vunpack.c.l.b16 %v1784
        %v1817 = vunpack.c.l.b16 %v1785
        %v1818 = vunpack.c.l.b16 %v1786
        %v1819 = vunpack.c.l.b16 %v1787
        %v1820 = vunpack.c.l.b16 %v1788
        %v1821 = vunpack.c.l.b16 %v1789
        %v1822 = vunpack.c.l.b16 %v1790
        %v1823 = vpack.c.b16 %v1808, %v1807
        %v1824 = vpack.c.b16 %v1810, %v1809
        %v1825 = vpack.c.b16 %v1812, %v1811
        %v1826 = vpack.c.b16 %v1814, %v1813
        %v1827 = vpack.c.b16 %v1816, %v1815
        %v1828 = vpack.c.b16 %v1818, %v1817
        %v1829 = vpack.c.b16 %v1820, %v1819
        %v1830 = vpack.c.b16 %v1822, %v1821
        %1839 = vmatprep.subr.bf16.mxu0 0
        %1840 = vmatpush1.bf16.msra.mxu0 %v1823
        %1841 = vmatprep.subr.bf16.mxu0 0
        %1842 = vmatpush1.bf16.msra.mxu0 %v1824
        %1843 = vmatprep.subr.bf16.mxu0 0
        %1844 = vmatpush1.bf16.msra.mxu0 %v1825
        %1845 = vmatprep.subr.bf16.mxu0 0
        %1846 = vmatpush1.bf16.msra.mxu0 %v1826
        %1847 = vmatprep.subr.bf16.mxu0 0
        %1848 = vmatpush1.bf16.msra.mxu0 %v1827
        %1849 = vmatprep.subr.bf16.mxu0 0
        %1850 = vmatpush1.bf16.msra.mxu0 %v1828
        %1851 = vmatprep.subr.bf16.mxu0 0
        %1852 = vmatpush1.bf16.msra.mxu0 %v1829
        %1853 = vmatprep.subr.bf16.mxu0 0
        %1854 = vmatpush1.bf16.msra.mxu0 %v1830
        %1855 = vmatprep.subr.bf16.mxu0 0
        %1856 = vmatpush1.bf16.msra.mxu0 0
        %1857 = vmatprep.subr.bf16.mxu0 0
        %1858 = vmatpush1.bf16.msra.mxu0 0
        %1859 = vmatprep.subr.bf16.mxu0 0
        %1860 = vmatpush1.bf16.msra.mxu0 0
        %1861 = vmatprep.subr.bf16.mxu0 0
        %1862 = vmatpush1.bf16.msra.mxu0 0
        %1863 = vmatprep.subr.bf16.mxu0 0
        %1864 = vmatpush1.bf16.msra.mxu0 0
        %1865 = vmatprep.subr.bf16.mxu0 0
        %1866 = vmatpush1.bf16.msra.mxu0 0
        %1867 = vmatprep.subr.bf16.mxu0 0
        %1868 = vmatpush1.bf16.msra.mxu0 0
        %1869 = vmatprep.subr.bf16.mxu0 0
        %1870 = vmatpush1.bf16.msra.mxu0 0
        %1871 = vmatprep.mubr.bf16.mxu0 0
        %1872 = vmatmul.mubr.bf16.gmra.mrb[0].mxu0 %v1770
        %v1873 = vpop.f32.mrb[0].mxu0
        %v1874 = vadd.f32 0.0, %v1873
        %v1875 = vpop.f32.mrb[0].mxu0
        %v1876 = vpop.f32.mrb[0].mxu0
        %v1877 = vadd.f32 0.0, %v1876
        %v1878 = vpop.f32.mrb[0].mxu0
        %1879 = vmatprep.mubr.bf16.mxu0 0
        %1880 = vmatmul.mubr.bf16.gmra.mrb[0].mxu0 %v1771
        %v1881 = vpop.f32.mrb[0].mxu0
        %v1882 = vadd.f32 0.0, %v1881
        %v1883 = vpop.f32.mrb[0].mxu0
        %v1884 = vpop.f32.mrb[0].mxu0
        %v1885 = vadd.f32 0.0, %v1884
        %v1886 = vpop.f32.mrb[0].mxu0
        %1887 = vmatprep.mubr.bf16.mxu0 0
        %1888 = vmatmul.mubr.bf16.gmra.mrb[0].mxu0 %v1772
        %v1889 = vpop.f32.mrb[0].mxu0
        %v1890 = vadd.f32 0.0, %v1889
        %v1891 = vpop.f32.mrb[0].mxu0
        %v1892 = vpop.f32.mrb[0].mxu0
        %v1893 = vadd.f32 0.0, %v1892
        %v1894 = vpop.f32.mrb[0].mxu0
        %1895 = vmatprep.mubr.bf16.mxu0 0
        %1896 = vmatmul.mubr.bf16.gmra.mrb[0].mxu0 %v1773
        %v1897 = vpop.f32.mrb[0].mxu0
        %v1898 = vadd.f32 0.0, %v1897
        %v1899 = vpop.f32.mrb[0].mxu0
        %v1900 = vpop.f32.mrb[0].mxu0
        %v1901 = vadd.f32 0.0, %v1900
        %v1902 = vpop.f32.mrb[0].mxu0
        %1903 = vdwg.mxu0
        %v1904 = vadd.f32 %v1648, %v1874
        %v1905 = vadd.f32 %v1649, %v1877
        %v1906 = vadd.f32 %v1650, %v1882
        %v1907 = vadd.f32 %v1651, %v1885
        %v1908 = vadd.f32 %v1652, %v1890
        %v1909 = vadd.f32 %v1653, %v1893
        %v1910 = vadd.f32 %v1654, %v1898
        %v1911 = vadd.f32 %v1655, %v1901
        %s1912 = scalar_lea.vmem %s1, 320
        %v1913 = vld [vmem:[%s1912] sm:$0xff]
        %v1914 = vld [vmem:[%s1912 + $0x8] sm:$0xff]
        %v1915 = vld [vmem:[%s1912 + $0x10] sm:$0xff]
        %v1916 = vld [vmem:[%s1912 + $0x18] sm:$0xff]
        %v1917 = vld [vmem:[%s1912 + $0x20] sm:$0xff]
        %v1918 = vld [vmem:[%s1912 + $0x28] sm:$0xff]
        %v1919 = vld [vmem:[%s1912 + $0x30] sm:$0xff]
        %v1920 = vld [vmem:[%s1912 + $0x38] sm:$0xff]
        %v1929 = vunpack.c.l.b16 %v1913
        %v1930 = vunpack.c.h.b16 %v1913
        %v1931 = vunpack.c.l.b16 %v1914
        %v1932 = vunpack.c.h.b16 %v1914
        %v1933 = vunpack.c.l.b16 %v1915
        %v1934 = vunpack.c.h.b16 %v1915
        %v1935 = vunpack.c.l.b16 %v1916
        %v1936 = vunpack.c.h.b16 %v1916
        %v1937 = vunpack.c.l.b16 %v1917
        %v1938 = vunpack.c.h.b16 %v1917
        %v1939 = vunpack.c.l.b16 %v1918
        %v1940 = vunpack.c.h.b16 %v1918
        %v1941 = vunpack.c.l.b16 %v1919
        %v1942 = vunpack.c.h.b16 %v1919
        %v1943 = vunpack.c.l.b16 %v1920
        %v1944 = vunpack.c.h.b16 %v1920
        %v1945 = vpack.c.b16 %v1931, %v1929
        %v1946 = vpack.c.b16 %v1932, %v1930
        %v1947 = vpack.c.b16 %v1935, %v1933
        %v1948 = vpack.c.b16 %v1936, %v1934
        %v1949 = vpack.c.b16 %v1939, %v1937
        %v1950 = vpack.c.b16 %v1940, %v1938
        %v1951 = vpack.c.b16 %v1943, %v1941
        %v1952 = vpack.c.b16 %v1944, %v1942
        %1961 = vmatprep.subr.bf16.mxu0 0
        %1962 = vmatpush1.bf16.msra.mxu0 %v666
        %1963 = vmatprep.subr.bf16.mxu0 0
        %1964 = vmatpush1.bf16.msra.mxu0 %v667
        %1965 = vmatprep.subr.bf16.mxu0 0
        %1966 = vmatpush1.bf16.msra.mxu0 %v668
        %1967 = vmatprep.subr.bf16.mxu0 0
        %1968 = vmatpush1.bf16.msra.mxu0 %v669
        %1969 = vmatprep.subr.bf16.mxu0 0
        %1970 = vmatpush1.bf16.msra.mxu0 %v670
        %1971 = vmatprep.subr.bf16.mxu0 0
        %1972 = vmatpush1.bf16.msra.mxu0 %v671
        %1973 = vmatprep.subr.bf16.mxu0 0
        %1974 = vmatpush1.bf16.msra.mxu0 %v672
        %1975 = vmatprep.subr.bf16.mxu0 0
        %1976 = vmatpush1.bf16.msra.mxu0 %v673
        %1977 = vmatprep.subr.bf16.mxu0 0
        %1978 = vmatpush1.bf16.msra.mxu0 %v674
        %1979 = vmatprep.subr.bf16.mxu0 0
        %1980 = vmatpush1.bf16.msra.mxu0 %v675
        %1981 = vmatprep.subr.bf16.mxu0 0
        %1982 = vmatpush1.bf16.msra.mxu0 %v676
        %1983 = vmatprep.subr.bf16.mxu0 0
        %1984 = vmatpush1.bf16.msra.mxu0 %v677
        %1985 = vmatprep.subr.bf16.mxu0 0
        %1986 = vmatpush1.bf16.msra.mxu0 %v678
        %1987 = vmatprep.subr.bf16.mxu0 0
        %1988 = vmatpush1.bf16.msra.mxu0 %v679
        %1989 = vmatprep.subr.bf16.mxu0 0
        %1990 = vmatpush1.bf16.msra.mxu0 %v680
        %1991 = vmatprep.subr.bf16.mxu0 0
        %1992 = vmatpush1.bf16.msra.mxu0 %v681
        %1993 = vmatprep.mubr.bf16.mxu0 %v1946
        %1994 = vmatmul.mubr.bf16.gmra.mrb[0].mxu0 %v1945
        %v1995 = vpop.f32.mrb[0].mxu0
        %v1996 = vadd.f32 0.0, %v1995
        %v1997 = vpop.f32.mrb[0].mxu0
        %v1998 = vpop.f32.mrb[0].mxu0
        %v1999 = vadd.f32 0.0, %v1998
        %v2000 = vpop.f32.mrb[0].mxu0
        %2001 = vmatprep.mubr.bf16.mxu0 %v1948
        %2002 = vmatmul.mubr.bf16.gmra.mrb[0].mxu0 %v1947
        %v2003 = vpop.f32.mrb[0].mxu0
        %v2004 = vadd.f32 0.0, %v2003
        %v2005 = vpop.f32.mrb[0].mxu0
        %v2006 = vpop.f32.mrb[0].mxu0
        %v2007 = vadd.f32 0.0, %v2006
        %v2008 = vpop.f32.mrb[0].mxu0
        %2009 = vmatprep.mubr.bf16.mxu0 %v1950
        %2010 = vmatmul.mubr.bf16.gmra.mrb[0].mxu0 %v1949
        %v2011 = vpop.f32.mrb[0].mxu0
        %v2012 = vadd.f32 0.0, %v2011
        %v2013 = vpop.f32.mrb[0].mxu0
        %v2014 = vpop.f32.mrb[0].mxu0
        %v2015 = vadd.f32 0.0, %v2014
        %v2016 = vpop.f32.mrb[0].mxu0
        %2017 = vmatprep.mubr.bf16.mxu0 %v1952
        %2018 = vmatmul.mubr.bf16.gmra.mrb[0].mxu0 %v1951
        %v2019 = vpop.f32.mrb[0].mxu0
        %v2020 = vadd.f32 0.0, %v2019
        %v2021 = vpop.f32.mrb[0].mxu0
        %v2022 = vpop.f32.mrb[0].mxu0
        %v2023 = vadd.f32 0.0, %v2022
        %v2024 = vpop.f32.mrb[0].mxu0
        %2025 = vdwg.mxu0
        %v2026 = vpack.c.bf16 %v1999, %v1996
        %v2027 = vpack.c.bf16 %v2007, %v2004
        %v2028 = vpack.c.bf16 %v2015, %v2012
        %v2029 = vpack.c.bf16 %v2023, %v2020
        %s2030 = scalar_lea.vmem [#allocation2], 320
        %v2031 = vld [vmem:[%s2030] sm:$0xf]
        %v2032 = vld [vmem:[%s2030 + $0x4] sm:$0xf]
        %v2033 = vld [vmem:[%s2030 + $0x8] sm:$0xf]
        %v2034 = vld [vmem:[%s2030 + $0xc] sm:$0xf]
        %v2035 = vld [vmem:[%s2030 + $0x10] sm:$0xf]
        %v2036 = vld [vmem:[%s2030 + $0x14] sm:$0xf]
        %v2037 = vld [vmem:[%s2030 + $0x18] sm:$0xf]
        %v2038 = vld [vmem:[%s2030 + $0x1c] sm:$0xf]
        %v2039 = vld [vmem:[%s2030 + $0x20] sm:$0xf]
        %v2040 = vld [vmem:[%s2030 + $0x24] sm:$0xf]
        %v2041 = vld [vmem:[%s2030 + $0x28] sm:$0xf]
        %v2042 = vld [vmem:[%s2030 + $0x2c] sm:$0xf]
        %v2043 = vld [vmem:[%s2030 + $0x30] sm:$0xf]
        %v2044 = vld [vmem:[%s2030 + $0x34] sm:$0xf]
        %v2045 = vld [vmem:[%s2030 + $0x38] sm:$0xf]
        %v2046 = vld [vmem:[%s2030 + $0x3c] sm:$0xf]
        %v2063 = vunpack.c.l.b16 %v2031
        %v2064 = vunpack.c.l.b16 %v2032
        %v2065 = vunpack.c.l.b16 %v2033
        %v2066 = vunpack.c.l.b16 %v2034
        %v2067 = vunpack.c.l.b16 %v2035
        %v2068 = vunpack.c.l.b16 %v2036
        %v2069 = vunpack.c.l.b16 %v2037
        %v2070 = vunpack.c.l.b16 %v2038
        %v2071 = vunpack.c.l.b16 %v2039
        %v2072 = vunpack.c.l.b16 %v2040
        %v2073 = vunpack.c.l.b16 %v2041
        %v2074 = vunpack.c.l.b16 %v2042
        %v2075 = vunpack.c.l.b16 %v2043
        %v2076 = vunpack.c.l.b16 %v2044
        %v2077 = vunpack.c.l.b16 %v2045
        %v2078 = vunpack.c.l.b16 %v2046
        %v2079 = vpack.c.b16 %v2064, %v2063
        %v2080 = vpack.c.b16 %v2066, %v2065
        %v2081 = vpack.c.b16 %v2068, %v2067
        %v2082 = vpack.c.b16 %v2070, %v2069
        %v2083 = vpack.c.b16 %v2072, %v2071
        %v2084 = vpack.c.b16 %v2074, %v2073
        %v2085 = vpack.c.b16 %v2076, %v2075
        %v2086 = vpack.c.b16 %v2078, %v2077
        %2095 = vmatprep.subr.bf16.mxu0 0
        %2096 = vmatpush1.bf16.msra.mxu0 %v2079
        %2097 = vmatprep.subr.bf16.mxu0 0
        %2098 = vmatpush1.bf16.msra.mxu0 %v2080
        %2099 = vmatprep.subr.bf16.mxu0 0
        %2100 = vmatpush1.bf16.msra.mxu0 %v2081
        %2101 = vmatprep.subr.bf16.mxu0 0
        %2102 = vmatpush1.bf16.msra.mxu0 %v2082
        %2103 = vmatprep.subr.bf16.mxu0 0
        %2104 = vmatpush1.bf16.msra.mxu0 %v2083
        %2105 = vmatprep.subr.bf16.mxu0 0
        %2106 = vmatpush1.bf16.msra.mxu0 %v2084
        %2107 = vmatprep.subr.bf16.mxu0 0
        %2108 = vmatpush1.bf16.msra.mxu0 %v2085
        %2109 = vmatprep.subr.bf16.mxu0 0
        %2110 = vmatpush1.bf16.msra.mxu0 %v2086
        %2111 = vmatprep.subr.bf16.mxu0 0
        %2112 = vmatpush1.bf16.msra.mxu0 0
        %2113 = vmatprep.subr.bf16.mxu0 0
        %2114 = vmatpush1.bf16.msra.mxu0 0
        %2115 = vmatprep.subr.bf16.mxu0 0
        %2116 = vmatpush1.bf16.msra.mxu0 0
        %2117 = vmatprep.subr.bf16.mxu0 0
        %2118 = vmatpush1.bf16.msra.mxu0 0
        %2119 = vmatprep.subr.bf16.mxu0 0
        %2120 = vmatpush1.bf16.msra.mxu0 0
        %2121 = vmatprep.subr.bf16.mxu0 0
        %2122 = vmatpush1.bf16.msra.mxu0 0
        %2123 = vmatprep.subr.bf16.mxu0 0
        %2124 = vmatpush1.bf16.msra.mxu0 0
        %2125 = vmatprep.subr.bf16.mxu0 0
        %2126 = vmatpush1.bf16.msra.mxu0 0
        %2127 = vmatprep.mubr.bf16.mxu0 0
        %2128 = vmatmul.mubr.bf16.gmra.mrb[0].mxu0 %v2026
        %v2129 = vpop.f32.mrb[0].mxu0
        %v2130 = vadd.f32 0.0, %v2129
        %v2131 = vpop.f32.mrb[0].mxu0
        %v2132 = vpop.f32.mrb[0].mxu0
        %v2133 = vadd.f32 0.0, %v2132
        %v2134 = vpop.f32.mrb[0].mxu0
        %2135 = vmatprep.mubr.bf16.mxu0 0
        %2136 = vmatmul.mubr.bf16.gmra.mrb[0].mxu0 %v2027
        %v2137 = vpop.f32.mrb[0].mxu0
        %v2138 = vadd.f32 0.0, %v2137
        %v2139 = vpop.f32.mrb[0].mxu0
        %v2140 = vpop.f32.mrb[0].mxu0
        %v2141 = vadd.f32 0.0, %v2140
        %v2142 = vpop.f32.mrb[0].mxu0
        %2143 = vmatprep.mubr.bf16.mxu0 0
        %2144 = vmatmul.mubr.bf16.gmra.mrb[0].mxu0 %v2028
        %v2145 = vpop.f32.mrb[0].mxu0
        %v2146 = vadd.f32 0.0, %v2145
        %v2147 = vpop.f32.mrb[0].mxu0
        %v2148 = vpop.f32.mrb[0].mxu0
        %v2149 = vadd.f32 0.0, %v2148
        %v2150 = vpop.f32.mrb[0].mxu0
        %2151 = vmatprep.mubr.bf16.mxu0 0
        %2152 = vmatmul.mubr.bf16.gmra.mrb[0].mxu0 %v2029
        %v2153 = vpop.f32.mrb[0].mxu0
        %v2154 = vadd.f32 0.0, %v2153
        %v2155 = vpop.f32.mrb[0].mxu0
        %v2156 = vpop.f32.mrb[0].mxu0
        %v2157 = vadd.f32 0.0, %v2156
        %v2158 = vpop.f32.mrb[0].mxu0
        %2159 = vdwg.mxu0
        %v2160 = vadd.f32 %v1904, %v2130
        %v2161 = vadd.f32 %v1905, %v2133
        %v2162 = vadd.f32 %v1906, %v2138
        %v2163 = vadd.f32 %v1907, %v2141
        %v2164 = vadd.f32 %v1908, %v2146
        %v2165 = vadd.f32 %v1909, %v2149
        %v2166 = vadd.f32 %v1910, %v2154
        %v2167 = vadd.f32 %v1911, %v2157
        %s2168 = scalar_lea.vmem %s1, 384
        %v2169 = vld [vmem:[%s2168] sm:$0xff]
        %v2170 = vld [vmem:[%s2168 + $0x8] sm:$0xff]
        %v2171 = vld [vmem:[%s2168 + $0x10] sm:$0xff]
        %v2172 = vld [vmem:[%s2168 + $0x18] sm:$0xff]
        %v2173 = vld [vmem:[%s2168 + $0x20] sm:$0xff]
        %v2174 = vld [vmem:[%s2168 + $0x28] sm:$0xff]
        %v2175 = vld [vmem:[%s2168 + $0x30] sm:$0xff]
        %v2176 = vld [vmem:[%s2168 + $0x38] sm:$0xff]
        %v2185 = vunpack.c.l.b16 %v2169
        %v2186 = vunpack.c.h.b16 %v2169
        %v2187 = vunpack.c.l.b16 %v2170
        %v2188 = vunpack.c.h.b16 %v2170
        %v2189 = vunpack.c.l.b16 %v2171
        %v2190 = vunpack.c.h.b16 %v2171
        %v2191 = vunpack.c.l.b16 %v2172
        %v2192 = vunpack.c.h.b16 %v2172
        %v2193 = vunpack.c.l.b16 %v2173
        %v2194 = vunpack.c.h.b16 %v2173
        %v2195 = vunpack.c.l.b16 %v2174
        %v2196 = vunpack.c.h.b16 %v2174
        %v2197 = vunpack.c.l.b16 %v2175
        %v2198 = vunpack.c.h.b16 %v2175
        %v2199 = vunpack.c.l.b16 %v2176
        %v2200 = vunpack.c.h.b16 %v2176
        %v2201 = vpack.c.b16 %v2187, %v2185
        %v2202 = vpack.c.b16 %v2188, %v2186
        %v2203 = vpack.c.b16 %v2191, %v2189
        %v2204 = vpack.c.b16 %v2192, %v2190
        %v2205 = vpack.c.b16 %v2195, %v2193
        %v2206 = vpack.c.b16 %v2196, %v2194
        %v2207 = vpack.c.b16 %v2199, %v2197
        %v2208 = vpack.c.b16 %v2200, %v2198
        %2217 = vmatprep.subr.bf16.mxu0 0
        %2218 = vmatpush1.bf16.msra.mxu0 %v666
        %2219 = vmatprep.subr.bf16.mxu0 0
        %2220 = vmatpush1.bf16.msra.mxu0 %v667
        %2221 = vmatprep.subr.bf16.mxu0 0
        %2222 = vmatpush1.bf16.msra.mxu0 %v668
        %2223 = vmatprep.subr.bf16.mxu0 0
        %2224 = vmatpush1.bf16.msra.mxu0 %v669
        %2225 = vmatprep.subr.bf16.mxu0 0
        %2226 = vmatpush1.bf16.msra.mxu0 %v670
        %2227 = vmatprep.subr.bf16.mxu0 0
        %2228 = vmatpush1.bf16.msra.mxu0 %v671
        %2229 = vmatprep.subr.bf16.mxu0 0
        %2230 = vmatpush1.bf16.msra.mxu0 %v672
        %2231 = vmatprep.subr.bf16.mxu0 0
        %2232 = vmatpush1.bf16.msra.mxu0 %v673
        %2233 = vmatprep.subr.bf16.mxu0 0
        %2234 = vmatpush1.bf16.msra.mxu0 %v674
        %2235 = vmatprep.subr.bf16.mxu0 0
        %2236 = vmatpush1.bf16.msra.mxu0 %v675
        %2237 = vmatprep.subr.bf16.mxu0 0
        %2238 = vmatpush1.bf16.msra.mxu0 %v676
        %2239 = vmatprep.subr.bf16.mxu0 0
        %2240 = vmatpush1.bf16.msra.mxu0 %v677
        %2241 = vmatprep.subr.bf16.mxu0 0
        %2242 = vmatpush1.bf16.msra.mxu0 %v678
        %2243 = vmatprep.subr.bf16.mxu0 0
        %2244 = vmatpush1.bf16.msra.mxu0 %v679
        %2245 = vmatprep.subr.bf16.mxu0 0
        %2246 = vmatpush1.bf16.msra.mxu0 %v680
        %2247 = vmatprep.subr.bf16.mxu0 0
        %2248 = vmatpush1.bf16.msra.mxu0 %v681
        %2249 = vmatprep.mubr.bf16.mxu0 %v2202
        %2250 = vmatmul.mubr.bf16.gmra.mrb[0].mxu0 %v2201
        %v2251 = vpop.f32.mrb[0].mxu0
        %v2252 = vadd.f32 0.0, %v2251
        %v2253 = vpop.f32.mrb[0].mxu0
        %v2254 = vpop.f32.mrb[0].mxu0
        %v2255 = vadd.f32 0.0, %v2254
        %v2256 = vpop.f32.mrb[0].mxu0
        %2257 = vmatprep.mubr.bf16.mxu0 %v2204
        %2258 = vmatmul.mubr.bf16.gmra.mrb[0].mxu0 %v2203
        %v2259 = vpop.f32.mrb[0].mxu0
        %v2260 = vadd.f32 0.0, %v2259
        %v2261 = vpop.f32.mrb[0].mxu0
        %v2262 = vpop.f32.mrb[0].mxu0
        %v2263 = vadd.f32 0.0, %v2262
        %v2264 = vpop.f32.mrb[0].mxu0
        %2265 = vmatprep.mubr.bf16.mxu0 %v2206
        %2266 = vmatmul.mubr.bf16.gmra.mrb[0].mxu0 %v2205
        %v2267 = vpop.f32.mrb[0].mxu0
        %v2268 = vadd.f32 0.0, %v2267
        %v2269 = vpop.f32.mrb[0].mxu0
        %v2270 = vpop.f32.mrb[0].mxu0
        %v2271 = vadd.f32 0.0, %v2270
        %v2272 = vpop.f32.mrb[0].mxu0
        %2273 = vmatprep.mubr.bf16.mxu0 %v2208
        %2274 = vmatmul.mubr.bf16.gmra.mrb[0].mxu0 %v2207
        %v2275 = vpop.f32.mrb[0].mxu0
        %v2276 = vadd.f32 0.0, %v2275
        %v2277 = vpop.f32.mrb[0].mxu0
        %v2278 = vpop.f32.mrb[0].mxu0
        %v2279 = vadd.f32 0.0, %v2278
        %v2280 = vpop.f32.mrb[0].mxu0
        %2281 = vdwg.mxu0
        %v2282 = vpack.c.bf16 %v2255, %v2252
        %v2283 = vpack.c.bf16 %v2263, %v2260
        %v2284 = vpack.c.bf16 %v2271, %v2268
        %v2285 = vpack.c.bf16 %v2279, %v2276
        %s2286 = scalar_lea.vmem [#allocation2], 384
        %v2287 = vld [vmem:[%s2286] sm:$0xf]
        %v2288 = vld [vmem:[%s2286 + $0x4] sm:$0xf]
        %v2289 = vld [vmem:[%s2286 + $0x8] sm:$0xf]
        %v2290 = vld [vmem:[%s2286 + $0xc] sm:$0xf]
        %v2291 = vld [vmem:[%s2286 + $0x10] sm:$0xf]
        %v2292 = vld [vmem:[%s2286 + $0x14] sm:$0xf]
        %v2293 = vld [vmem:[%s2286 + $0x18] sm:$0xf]
        %v2294 = vld [vmem:[%s2286 + $0x1c] sm:$0xf]
        %v2295 = vld [vmem:[%s2286 + $0x20] sm:$0xf]
        %v2296 = vld [vmem:[%s2286 + $0x24] sm:$0xf]
        %v2297 = vld [vmem:[%s2286 + $0x28] sm:$0xf]
        %v2298 = vld [vmem:[%s2286 + $0x2c] sm:$0xf]
        %v2299 = vld [vmem:[%s2286 + $0x30] sm:$0xf]
        %v2300 = vld [vmem:[%s2286 + $0x34] sm:$0xf]
        %v2301 = vld [vmem:[%s2286 + $0x38] sm:$0xf]
        %v2302 = vld [vmem:[%s2286 + $0x3c] sm:$0xf]
        %v2319 = vunpack.c.l.b16 %v2287
        %v2320 = vunpack.c.l.b16 %v2288
        %v2321 = vunpack.c.l.b16 %v2289
        %v2322 = vunpack.c.l.b16 %v2290
        %v2323 = vunpack.c.l.b16 %v2291
        %v2324 = vunpack.c.l.b16 %v2292
        %v2325 = vunpack.c.l.b16 %v2293
        %v2326 = vunpack.c.l.b16 %v2294
        %v2327 = vunpack.c.l.b16 %v2295
        %v2328 = vunpack.c.l.b16 %v2296
        %v2329 = vunpack.c.l.b16 %v2297
        %v2330 = vunpack.c.l.b16 %v2298
        %v2331 = vunpack.c.l.b16 %v2299
        %v2332 = vunpack.c.l.b16 %v2300
        %v2333 = vunpack.c.l.b16 %v2301
        %v2334 = vunpack.c.l.b16 %v2302
        %v2335 = vpack.c.b16 %v2320, %v2319
        %v2336 = vpack.c.b16 %v2322, %v2321
        %v2337 = vpack.c.b16 %v2324, %v2323
        %v2338 = vpack.c.b16 %v2326, %v2325
        %v2339 = vpack.c.b16 %v2328, %v2327
        %v2340 = vpack.c.b16 %v2330, %v2329
        %v2341 = vpack.c.b16 %v2332, %v2331
        %v2342 = vpack.c.b16 %v2334, %v2333
        %2351 = vmatprep.subr.bf16.mxu0 0
        %2352 = vmatpush1.bf16.msra.mxu0 %v2335
        %2353 = vmatprep.subr.bf16.mxu0 0
        %2354 = vmatpush1.bf16.msra.mxu0 %v2336
        %2355 = vmatprep.subr.bf16.mxu0 0
        %2356 = vmatpush1.bf16.msra.mxu0 %v2337
        %2357 = vmatprep.subr.bf16.mxu0 0
        %2358 = vmatpush1.bf16.msra.mxu0 %v2338
        %2359 = vmatprep.subr.bf16.mxu0 0
        %2360 = vmatpush1.bf16.msra.mxu0 %v2339
        %2361 = vmatprep.subr.bf16.mxu0 0
        %2362 = vmatpush1.bf16.msra.mxu0 %v2340
        %2363 = vmatprep.subr.bf16.mxu0 0
        %2364 = vmatpush1.bf16.msra.mxu0 %v2341
        %2365 = vmatprep.subr.bf16.mxu0 0
        %2366 = vmatpush1.bf16.msra.mxu0 %v2342
        %2367 = vmatprep.subr.bf16.mxu0 0
        %2368 = vmatpush1.bf16.msra.mxu0 0
        %2369 = vmatprep.subr.bf16.mxu0 0
        %2370 = vmatpush1.bf16.msra.mxu0 0
        %2371 = vmatprep.subr.bf16.mxu0 0
        %2372 = vmatpush1.bf16.msra.mxu0 0
        %2373 = vmatprep.subr.bf16.mxu0 0
        %2374 = vmatpush1.bf16.msra.mxu0 0
        %2375 = vmatprep.subr.bf16.mxu0 0
        %2376 = vmatpush1.bf16.msra.mxu0 0
        %2377 = vmatprep.subr.bf16.mxu0 0
        %2378 = vmatpush1.bf16.msra.mxu0 0
        %2379 = vmatprep.subr.bf16.mxu0 0
        %2380 = vmatpush1.bf16.msra.mxu0 0
        %2381 = vmatprep.subr.bf16.mxu0 0
        %2382 = vmatpush1.bf16.msra.mxu0 0
        %2383 = vmatprep.mubr.bf16.mxu0 0
        %2384 = vmatmul.mubr.bf16.gmra.mrb[0].mxu0 %v2282
        %v2385 = vpop.f32.mrb[0].mxu0
        %v2386 = vadd.f32 0.0, %v2385
        %v2387 = vpop.f32.mrb[0].mxu0
        %v2388 = vpop.f32.mrb[0].mxu0
        %v2389 = vadd.f32 0.0, %v2388
        %v2390 = vpop.f32.mrb[0].mxu0
        %2391 = vmatprep.mubr.bf16.mxu0 0
        %2392 = vmatmul.mubr.bf16.gmra.mrb[0].mxu0 %v2283
        %v2393 = vpop.f32.mrb[0].mxu0
        %v2394 = vadd.f32 0.0, %v2393
        %v2395 = vpop.f32.mrb[0].mxu0
        %v2396 = vpop.f32.mrb[0].mxu0
        %v2397 = vadd.f32 0.0, %v2396
        %v2398 = vpop.f32.mrb[0].mxu0
        %2399 = vmatprep.mubr.bf16.mxu0 0
        %2400 = vmatmul.mubr.bf16.gmra.mrb[0].mxu0 %v2284
        %v2401 = vpop.f32.mrb[0].mxu0
        %v2402 = vadd.f32 0.0, %v2401
        %v2403 = vpop.f32.mrb[0].mxu0
        %v2404 = vpop.f32.mrb[0].mxu0
        %v2405 = vadd.f32 0.0, %v2404
        %v2406 = vpop.f32.mrb[0].mxu0
        %2407 = vmatprep.mubr.bf16.mxu0 0
        %2408 = vmatmul.mubr.bf16.gmra.mrb[0].mxu0 %v2285
        %v2409 = vpop.f32.mrb[0].mxu0
        %v2410 = vadd.f32 0.0, %v2409
        %v2411 = vpop.f32.mrb[0].mxu0
        %v2412 = vpop.f32.mrb[0].mxu0
        %v2413 = vadd.f32 0.0, %v2412
        %v2414 = vpop.f32.mrb[0].mxu0
        %2415 = vdwg.mxu0
        %v2416 = vadd.f32 %v2160, %v2386
        %v2417 = vadd.f32 %v2161, %v2389
        %v2418 = vadd.f32 %v2162, %v2394
        %v2419 = vadd.f32 %v2163, %v2397
        %v2420 = vadd.f32 %v2164, %v2402
        %v2421 = vadd.f32 %v2165, %v2405
        %v2422 = vadd.f32 %v2166, %v2410
        %v2423 = vadd.f32 %v2167, %v2413
        %s2424 = scalar_lea.vmem %s1, 448
        %v2425 = vld [vmem:[%s2424] sm:$0xff]
        %v2426 = vld [vmem:[%s2424 + $0x8] sm:$0xff]
        %v2427 = vld [vmem:[%s2424 + $0x10] sm:$0xff]
        %v2428 = vld [vmem:[%s2424 + $0x18] sm:$0xff]
        %v2429 = vld [vmem:[%s2424 + $0x20] sm:$0xff]
        %v2430 = vld [vmem:[%s2424 + $0x28] sm:$0xff]
        %v2431 = vld [vmem:[%s2424 + $0x30] sm:$0xff]
        %v2432 = vld [vmem:[%s2424 + $0x38] sm:$0xff]
        %v2441 = vunpack.c.l.b16 %v2425
        %v2442 = vunpack.c.h.b16 %v2425
        %v2443 = vunpack.c.l.b16 %v2426
        %v2444 = vunpack.c.h.b16 %v2426
        %v2445 = vunpack.c.l.b16 %v2427
        %v2446 = vunpack.c.h.b16 %v2427
        %v2447 = vunpack.c.l.b16 %v2428
        %v2448 = vunpack.c.h.b16 %v2428
        %v2449 = vunpack.c.l.b16 %v2429
        %v2450 = vunpack.c.h.b16 %v2429
        %v2451 = vunpack.c.l.b16 %v2430
        %v2452 = vunpack.c.h.b16 %v2430
        %v2453 = vunpack.c.l.b16 %v2431
        %v2454 = vunpack.c.h.b16 %v2431
        %v2455 = vunpack.c.l.b16 %v2432
        %v2456 = vunpack.c.h.b16 %v2432
        %v2457 = vpack.c.b16 %v2443, %v2441
        %v2458 = vpack.c.b16 %v2444, %v2442
        %v2459 = vpack.c.b16 %v2447, %v2445
        %v2460 = vpack.c.b16 %v2448, %v2446
        %v2461 = vpack.c.b16 %v2451, %v2449
        %v2462 = vpack.c.b16 %v2452, %v2450
        %v2463 = vpack.c.b16 %v2455, %v2453
        %v2464 = vpack.c.b16 %v2456, %v2454
        %2473 = vmatprep.subr.bf16.mxu0 0
        %2474 = vmatpush1.bf16.msra.mxu0 %v666
        %2475 = vmatprep.subr.bf16.mxu0 0
        %2476 = vmatpush1.bf16.msra.mxu0 %v667
        %2477 = vmatprep.subr.bf16.mxu0 0
        %2478 = vmatpush1.bf16.msra.mxu0 %v668
        %2479 = vmatprep.subr.bf16.mxu0 0
        %2480 = vmatpush1.bf16.msra.mxu0 %v669
        %2481 = vmatprep.subr.bf16.mxu0 0
        %2482 = vmatpush1.bf16.msra.mxu0 %v670
        %2483 = vmatprep.subr.bf16.mxu0 0
        %2484 = vmatpush1.bf16.msra.mxu0 %v671
        %2485 = vmatprep.subr.bf16.mxu0 0
        %2486 = vmatpush1.bf16.msra.mxu0 %v672
        %2487 = vmatprep.subr.bf16.mxu0 0
        %2488 = vmatpush1.bf16.msra.mxu0 %v673
        %2489 = vmatprep.subr.bf16.mxu0 0
        %2490 = vmatpush1.bf16.msra.mxu0 %v674
        %2491 = vmatprep.subr.bf16.mxu0 0
        %2492 = vmatpush1.bf16.msra.mxu0 %v675
        %2493 = vmatprep.subr.bf16.mxu0 0
        %2494 = vmatpush1.bf16.msra.mxu0 %v676
        %2495 = vmatprep.subr.bf16.mxu0 0
        %2496 = vmatpush1.bf16.msra.mxu0 %v677
        %2497 = vmatprep.subr.bf16.mxu0 0
        %2498 = vmatpush1.bf16.msra.mxu0 %v678
        %2499 = vmatprep.subr.bf16.mxu0 0
        %2500 = vmatpush1.bf16.msra.mxu0 %v679
        %2501 = vmatprep.subr.bf16.mxu0 0
        %2502 = vmatpush1.bf16.msra.mxu0 %v680
        %2503 = vmatprep.subr.bf16.mxu0 0
        %2504 = vmatpush1.bf16.msra.mxu0 %v681
        %2505 = vmatprep.mubr.bf16.mxu0 %v2458
        %2506 = vmatmul.mubr.bf16.gmra.mrb[0].mxu0 %v2457
        %v2507 = vpop.f32.mrb[0].mxu0
        %v2508 = vadd.f32 0.0, %v2507
        %v2509 = vpop.f32.mrb[0].mxu0
        %v2510 = vpop.f32.mrb[0].mxu0
        %v2511 = vadd.f32 0.0, %v2510
        %v2512 = vpop.f32.mrb[0].mxu0
        %2513 = vmatprep.mubr.bf16.mxu0 %v2460
        %2514 = vmatmul.mubr.bf16.gmra.mrb[0].mxu0 %v2459
        %v2515 = vpop.f32.mrb[0].mxu0
        %v2516 = vadd.f32 0.0, %v2515
        %v2517 = vpop.f32.mrb[0].mxu0
        %v2518 = vpop.f32.mrb[0].mxu0
        %v2519 = vadd.f32 0.0, %v2518
        %v2520 = vpop.f32.mrb[0].mxu0
        %2521 = vmatprep.mubr.bf16.mxu0 %v2462
        %2522 = vmatmul.mubr.bf16.gmra.mrb[0].mxu0 %v2461
        %v2523 = vpop.f32.mrb[0].mxu0
        %v2524 = vadd.f32 0.0, %v2523
        %v2525 = vpop.f32.mrb[0].mxu0
        %v2526 = vpop.f32.mrb[0].mxu0
        %v2527 = vadd.f32 0.0, %v2526
        %v2528 = vpop.f32.mrb[0].mxu0
        %2529 = vmatprep.mubr.bf16.mxu0 %v2464
        %2530 = vmatmul.mubr.bf16.gmra.mrb[0].mxu0 %v2463
        %v2531 = vpop.f32.mrb[0].mxu0
        %v2532 = vadd.f32 0.0, %v2531
        %v2533 = vpop.f32.mrb[0].mxu0
        %v2534 = vpop.f32.mrb[0].mxu0
        %v2535 = vadd.f32 0.0, %v2534
        %v2536 = vpop.f32.mrb[0].mxu0
        %2537 = vdwg.mxu0
        %v2538 = vpack.c.bf16 %v2511, %v2508
        %v2539 = vpack.c.bf16 %v2519, %v2516
        %v2540 = vpack.c.bf16 %v2527, %v2524
        %v2541 = vpack.c.bf16 %v2535, %v2532
        %s2542 = scalar_lea.vmem [#allocation2], 448
        %v2543 = vld [vmem:[%s2542] sm:$0xf]
        %v2544 = vld [vmem:[%s2542 + $0x4] sm:$0xf]
        %v2545 = vld [vmem:[%s2542 + $0x8] sm:$0xf]
        %v2546 = vld [vmem:[%s2542 + $0xc] sm:$0xf]
        %v2547 = vld [vmem:[%s2542 + $0x10] sm:$0xf]
        %v2548 = vld [vmem:[%s2542 + $0x14] sm:$0xf]
        %v2549 = vld [vmem:[%s2542 + $0x18] sm:$0xf]
        %v2550 = vld [vmem:[%s2542 + $0x1c] sm:$0xf]
        %v2551 = vld [vmem:[%s2542 + $0x20] sm:$0xf]
        %v2552 = vld [vmem:[%s2542 + $0x24] sm:$0xf]
        %v2553 = vld [vmem:[%s2542 + $0x28] sm:$0xf]
        %v2554 = vld [vmem:[%s2542 + $0x2c] sm:$0xf]
        %v2555 = vld [vmem:[%s2542 + $0x30] sm:$0xf]
        %v2556 = vld [vmem:[%s2542 + $0x34] sm:$0xf]
        %v2557 = vld [vmem:[%s2542 + $0x38] sm:$0xf]
        %v2558 = vld [vmem:[%s2542 + $0x3c] sm:$0xf]
        %v2575 = vunpack.c.l.b16 %v2543
        %v2576 = vunpack.c.l.b16 %v2544
        %v2577 = vunpack.c.l.b16 %v2545
        %v2578 = vunpack.c.l.b16 %v2546
        %v2579 = vunpack.c.l.b16 %v2547
        %v2580 = vunpack.c.l.b16 %v2548
        %v2581 = vunpack.c.l.b16 %v2549
        %v2582 = vunpack.c.l.b16 %v2550
        %v2583 = vunpack.c.l.b16 %v2551
        %v2584 = vunpack.c.l.b16 %v2552
        %v2585 = vunpack.c.l.b16 %v2553
        %v2586 = vunpack.c.l.b16 %v2554
        %v2587 = vunpack.c.l.b16 %v2555
        %v2588 = vunpack.c.l.b16 %v2556
        %v2589 = vunpack.c.l.b16 %v2557
        %v2590 = vunpack.c.l.b16 %v2558
        %v2591 = vpack.c.b16 %v2576, %v2575
        %v2592 = vpack.c.b16 %v2578, %v2577
        %v2593 = vpack.c.b16 %v2580, %v2579
        %v2594 = vpack.c.b16 %v2582, %v2581
        %v2595 = vpack.c.b16 %v2584, %v2583
        %v2596 = vpack.c.b16 %v2586, %v2585
        %v2597 = vpack.c.b16 %v2588, %v2587
        %v2598 = vpack.c.b16 %v2590, %v2589
        %2607 = vmatprep.subr.bf16.mxu0 0
        %2608 = vmatpush1.bf16.msra.mxu0 %v2591
        %2609 = vmatprep.subr.bf16.mxu0 0
        %2610 = vmatpush1.bf16.msra.mxu0 %v2592
        %2611 = vmatprep.subr.bf16.mxu0 0
        %2612 = vmatpush1.bf16.msra.mxu0 %v2593
        %2613 = vmatprep.subr.bf16.mxu0 0
        %2614 = vmatpush1.bf16.msra.mxu0 %v2594
        %2615 = vmatprep.subr.bf16.mxu0 0
        %2616 = vmatpush1.bf16.msra.mxu0 %v2595
        %2617 = vmatprep.subr.bf16.mxu0 0
        %2618 = vmatpush1.bf16.msra.mxu0 %v2596
        %2619 = vmatprep.subr.bf16.mxu0 0
        %2620 = vmatpush1.bf16.msra.mxu0 %v2597
        %2621 = vmatprep.subr.bf16.mxu0 0
        %2622 = vmatpush1.bf16.msra.mxu0 %v2598
        %2623 = vmatprep.subr.bf16.mxu0 0
        %2624 = vmatpush1.bf16.msra.mxu0 0
        %2625 = vmatprep.subr.bf16.mxu0 0
        %2626 = vmatpush1.bf16.msra.mxu0 0
        %2627 = vmatprep.subr.bf16.mxu0 0
        %2628 = vmatpush1.bf16.msra.mxu0 0
        %2629 = vmatprep.subr.bf16.mxu0 0
        %2630 = vmatpush1.bf16.msra.mxu0 0
        %2631 = vmatprep.subr.bf16.mxu0 0
        %2632 = vmatpush1.bf16.msra.mxu0 0
        %2633 = vmatprep.subr.bf16.mxu0 0
        %2634 = vmatpush1.bf16.msra.mxu0 0
        %2635 = vmatprep.subr.bf16.mxu0 0
        %2636 = vmatpush1.bf16.msra.mxu0 0
        %2637 = vmatprep.subr.bf16.mxu0 0
        %2638 = vmatpush1.bf16.msra.mxu0 0
        %2639 = vmatprep.mubr.bf16.mxu0 0
        %2640 = vmatmul.mubr.bf16.gmra.mrb[0].mxu0 %v2538
        %v2641 = vpop.f32.mrb[0].mxu0
        %v2642 = vadd.f32 0.0, %v2641
        %v2643 = vpop.f32.mrb[0].mxu0
        %v2644 = vpop.f32.mrb[0].mxu0
        %v2645 = vadd.f32 0.0, %v2644
        %v2646 = vpop.f32.mrb[0].mxu0
        %2647 = vmatprep.mubr.bf16.mxu0 0
        %2648 = vmatmul.mubr.bf16.gmra.mrb[0].mxu0 %v2539
        %v2649 = vpop.f32.mrb[0].mxu0
        %v2650 = vadd.f32 0.0, %v2649
        %v2651 = vpop.f32.mrb[0].mxu0
        %v2652 = vpop.f32.mrb[0].mxu0
        %v2653 = vadd.f32 0.0, %v2652
        %v2654 = vpop.f32.mrb[0].mxu0
        %2655 = vmatprep.mubr.bf16.mxu0 0
        %2656 = vmatmul.mubr.bf16.gmra.mrb[0].mxu0 %v2540
        %v2657 = vpop.f32.mrb[0].mxu0
        %v2658 = vadd.f32 0.0, %v2657
        %v2659 = vpop.f32.mrb[0].mxu0
        %v2660 = vpop.f32.mrb[0].mxu0
        %v2661 = vadd.f32 0.0, %v2660
        %v2662 = vpop.f32.mrb[0].mxu0
        %2663 = vmatprep.mubr.bf16.mxu0 0
        %2664 = vmatmul.mubr.bf16.gmra.mrb[0].mxu0 %v2541
        %v2665 = vpop.f32.mrb[0].mxu0
        %v2666 = vadd.f32 0.0, %v2665
        %v2667 = vpop.f32.mrb[0].mxu0
        %v2668 = vpop.f32.mrb[0].mxu0
        %v2669 = vadd.f32 0.0, %v2668
        %v2670 = vpop.f32.mrb[0].mxu0
        %2671 = vdwg.mxu0
        %v2672 = vadd.f32 %v2416, %v2642
        %v2673 = vadd.f32 %v2417, %v2645
        %v2674 = vadd.f32 %v2418, %v2650
        %v2675 = vadd.f32 %v2419, %v2653
        %v2676 = vadd.f32 %v2420, %v2658
        %v2677 = vadd.f32 %v2421, %v2661
        %v2678 = vadd.f32 %v2422, %v2666
        %v2679 = vadd.f32 %v2423, %v2669
        %s2680 = scalar_lea.vmem %s1, 512
        %v2681 = vld [vmem:[%s2680] sm:$0xff]
        %v2682 = vld [vmem:[%s2680 + $0x8] sm:$0xff]
        %v2683 = vld [vmem:[%s2680 + $0x10] sm:$0xff]
        %v2684 = vld [vmem:[%s2680 + $0x18] sm:$0xff]
        %v2685 = vld [vmem:[%s2680 + $0x20] sm:$0xff]
        %v2686 = vld [vmem:[%s2680 + $0x28] sm:$0xff]
        %v2687 = vld [vmem:[%s2680 + $0x30] sm:$0xff]
        %v2688 = vld [vmem:[%s2680 + $0x38] sm:$0xff]
        %v2697 = vunpack.c.l.b16 %v2681
        %v2698 = vunpack.c.h.b16 %v2681
        %v2699 = vunpack.c.l.b16 %v2682
        %v2700 = vunpack.c.h.b16 %v2682
        %v2701 = vunpack.c.l.b16 %v2683
        %v2702 = vunpack.c.h.b16 %v2683
        %v2703 = vunpack.c.l.b16 %v2684
        %v2704 = vunpack.c.h.b16 %v2684
        %v2705 = vunpack.c.l.b16 %v2685
        %v2706 = vunpack.c.h.b16 %v2685
        %v2707 = vunpack.c.l.b16 %v2686
        %v2708 = vunpack.c.h.b16 %v2686
        %v2709 = vunpack.c.l.b16 %v2687
        %v2710 = vunpack.c.h.b16 %v2687
        %v2711 = vunpack.c.l.b16 %v2688
        %v2712 = vunpack.c.h.b16 %v2688
        %v2713 = vpack.c.b16 %v2699, %v2697
        %v2714 = vpack.c.b16 %v2700, %v2698
        %v2715 = vpack.c.b16 %v2703, %v2701
        %v2716 = vpack.c.b16 %v2704, %v2702
        %v2717 = vpack.c.b16 %v2707, %v2705
        %v2718 = vpack.c.b16 %v2708, %v2706
        %v2719 = vpack.c.b16 %v2711, %v2709
        %v2720 = vpack.c.b16 %v2712, %v2710
        %2729 = vmatprep.subr.bf16.mxu0 0
        %2730 = vmatpush1.bf16.msra.mxu0 %v666
        %2731 = vmatprep.subr.bf16.mxu0 0
        %2732 = vmatpush1.bf16.msra.mxu0 %v667
        %2733 = vmatprep.subr.bf16.mxu0 0
        %2734 = vmatpush1.bf16.msra.mxu0 %v668
        %2735 = vmatprep.subr.bf16.mxu0 0
        %2736 = vmatpush1.bf16.msra.mxu0 %v669
        %2737 = vmatprep.subr.bf16.mxu0 0
        %2738 = vmatpush1.bf16.msra.mxu0 %v670
        %2739 = vmatprep.subr.bf16.mxu0 0
        %2740 = vmatpush1.bf16.msra.mxu0 %v671
        %2741 = vmatprep.subr.bf16.mxu0 0
        %2742 = vmatpush1.bf16.msra.mxu0 %v672
        %2743 = vmatprep.subr.bf16.mxu0 0
        %2744 = vmatpush1.bf16.msra.mxu0 %v673
        %2745 = vmatprep.subr.bf16.mxu0 0
        %2746 = vmatpush1.bf16.msra.mxu0 %v674
        %2747 = vmatprep.subr.bf16.mxu0 0
        %2748 = vmatpush1.bf16.msra.mxu0 %v675
        %2749 = vmatprep.subr.bf16.mxu0 0
        %2750 = vmatpush1.bf16.msra.mxu0 %v676
        %2751 = vmatprep.subr.bf16.mxu0 0
        %2752 = vmatpush1.bf16.msra.mxu0 %v677
        %2753 = vmatprep.subr.bf16.mxu0 0
        %2754 = vmatpush1.bf16.msra.mxu0 %v678
        %2755 = vmatprep.subr.bf16.mxu0 0
        %2756 = vmatpush1.bf16.msra.mxu0 %v679
        %2757 = vmatprep.subr.bf16.mxu0 0
        %2758 = vmatpush1.bf16.msra.mxu0 %v680
        %2759 = vmatprep.subr.bf16.mxu0 0
        %2760 = vmatpush1.bf16.msra.mxu0 %v681
        %2761 = vmatprep.mubr.bf16.mxu0 %v2714
        %2762 = vmatmul.mubr.bf16.gmra.mrb[0].mxu0 %v2713
        %v2763 = vpop.f32.mrb[0].mxu0
        %v2764 = vadd.f32 0.0, %v2763
        %v2765 = vpop.f32.mrb[0].mxu0
        %v2766 = vpop.f32.mrb[0].mxu0
        %v2767 = vadd.f32 0.0, %v2766
        %v2768 = vpop.f32.mrb[0].mxu0
        %2769 = vmatprep.mubr.bf16.mxu0 %v2716
        %2770 = vmatmul.mubr.bf16.gmra.mrb[0].mxu0 %v2715
        %v2771 = vpop.f32.mrb[0].mxu0
        %v2772 = vadd.f32 0.0, %v2771
        %v2773 = vpop.f32.mrb[0].mxu0
        %v2774 = vpop.f32.mrb[0].mxu0
        %v2775 = vadd.f32 0.0, %v2774
        %v2776 = vpop.f32.mrb[0].mxu0
        %2777 = vmatprep.mubr.bf16.mxu0 %v2718
        %2778 = vmatmul.mubr.bf16.gmra.mrb[0].mxu0 %v2717
        %v2779 = vpop.f32.mrb[0].mxu0
        %v2780 = vadd.f32 0.0, %v2779
        %v2781 = vpop.f32.mrb[0].mxu0
        %v2782 = vpop.f32.mrb[0].mxu0
        %v2783 = vadd.f32 0.0, %v2782
        %v2784 = vpop.f32.mrb[0].mxu0
        %2785 = vmatprep.mubr.bf16.mxu0 %v2720
        %2786 = vmatmul.mubr.bf16.gmra.mrb[0].mxu0 %v2719
        %v2787 = vpop.f32.mrb[0].mxu0
        %v2788 = vadd.f32 0.0, %v2787
        %v2789 = vpop.f32.mrb[0].mxu0
        %v2790 = vpop.f32.mrb[0].mxu0
        %v2791 = vadd.f32 0.0, %v2790
        %v2792 = vpop.f32.mrb[0].mxu0
        %2793 = vdwg.mxu0
        %v2794 = vpack.c.bf16 %v2767, %v2764
        %v2795 = vpack.c.bf16 %v2775, %v2772
        %v2796 = vpack.c.bf16 %v2783, %v2780
        %v2797 = vpack.c.bf16 %v2791, %v2788
        %s2798 = scalar_lea.vmem [#allocation2], 512
        %v2799 = vld [vmem:[%s2798] sm:$0xf]
        %v2800 = vld [vmem:[%s2798 + $0x4] sm:$0xf]
        %v2801 = vld [vmem:[%s2798 + $0x8] sm:$0xf]
        %v2802 = vld [vmem:[%s2798 + $0xc] sm:$0xf]
        %v2803 = vld [vmem:[%s2798 + $0x10] sm:$0xf]
        %v2804 = vld [vmem:[%s2798 + $0x14] sm:$0xf]
        %v2805 = vld [vmem:[%s2798 + $0x18] sm:$0xf]
        %v2806 = vld [vmem:[%s2798 + $0x1c] sm:$0xf]
        %v2807 = vld [vmem:[%s2798 + $0x20] sm:$0xf]
        %v2808 = vld [vmem:[%s2798 + $0x24] sm:$0xf]
        %v2809 = vld [vmem:[%s2798 + $0x28] sm:$0xf]
        %v2810 = vld [vmem:[%s2798 + $0x2c] sm:$0xf]
        %v2811 = vld [vmem:[%s2798 + $0x30] sm:$0xf]
        %v2812 = vld [vmem:[%s2798 + $0x34] sm:$0xf]
        %v2813 = vld [vmem:[%s2798 + $0x38] sm:$0xf]
        %v2814 = vld [vmem:[%s2798 + $0x3c] sm:$0xf]
        %v2831 = vunpack.c.l.b16 %v2799
        %v2832 = vunpack.c.l.b16 %v2800
        %v2833 = vunpack.c.l.b16 %v2801
        %v2834 = vunpack.c.l.b16 %v2802
        %v2835 = vunpack.c.l.b16 %v2803
        %v2836 = vunpack.c.l.b16 %v2804
        %v2837 = vunpack.c.l.b16 %v2805
        %v2838 = vunpack.c.l.b16 %v2806
        %v2839 = vunpack.c.l.b16 %v2807
        %v2840 = vunpack.c.l.b16 %v2808
        %v2841 = vunpack.c.l.b16 %v2809
        %v2842 = vunpack.c.l.b16 %v2810
        %v2843 = vunpack.c.l.b16 %v2811
        %v2844 = vunpack.c.l.b16 %v2812
        %v2845 = vunpack.c.l.b16 %v2813
        %v2846 = vunpack.c.l.b16 %v2814
        %v2847 = vpack.c.b16 %v2832, %v2831
        %v2848 = vpack.c.b16 %v2834, %v2833
        %v2849 = vpack.c.b16 %v2836, %v2835
        %v2850 = vpack.c.b16 %v2838, %v2837
        %v2851 = vpack.c.b16 %v2840, %v2839
        %v2852 = vpack.c.b16 %v2842, %v2841
        %v2853 = vpack.c.b16 %v2844, %v2843
        %v2854 = vpack.c.b16 %v2846, %v2845
        %2863 = vmatprep.subr.bf16.mxu0 0
        %2864 = vmatpush1.bf16.msra.mxu0 %v2847
        %2865 = vmatprep.subr.bf16.mxu0 0
        %2866 = vmatpush1.bf16.msra.mxu0 %v2848
        %2867 = vmatprep.subr.bf16.mxu0 0
        %2868 = vmatpush1.bf16.msra.mxu0 %v2849
        %2869 = vmatprep.subr.bf16.mxu0 0
        %2870 = vmatpush1.bf16.msra.mxu0 %v2850
        %2871 = vmatprep.subr.bf16.mxu0 0
        %2872 = vmatpush1.bf16.msra.mxu0 %v2851
        %2873 = vmatprep.subr.bf16.mxu0 0
        %2874 = vmatpush1.bf16.msra.mxu0 %v2852
        %2875 = vmatprep.subr.bf16.mxu0 0
        %2876 = vmatpush1.bf16.msra.mxu0 %v2853
        %2877 = vmatprep.subr.bf16.mxu0 0
        %2878 = vmatpush1.bf16.msra.mxu0 %v2854
        %2879 = vmatprep.subr.bf16.mxu0 0
        %2880 = vmatpush1.bf16.msra.mxu0 0
        %2881 = vmatprep.subr.bf16.mxu0 0
        %2882 = vmatpush1.bf16.msra.mxu0 0
        %2883 = vmatprep.subr.bf16.mxu0 0
        %2884 = vmatpush1.bf16.msra.mxu0 0
        %2885 = vmatprep.subr.bf16.mxu0 0
        %2886 = vmatpush1.bf16.msra.mxu0 0
        %2887 = vmatprep.subr.bf16.mxu0 0
        %2888 = vmatpush1.bf16.msra.mxu0 0
        %2889 = vmatprep.subr.bf16.mxu0 0
        %2890 = vmatpush1.bf16.msra.mxu0 0
        %2891 = vmatprep.subr.bf16.mxu0 0
        %2892 = vmatpush1.bf16.msra.mxu0 0
        %2893 = vmatprep.subr.bf16.mxu0 0
        %2894 = vmatpush1.bf16.msra.mxu0 0
        %2895 = vmatprep.mubr.bf16.mxu0 0
        %2896 = vmatmul.mubr.bf16.gmra.mrb[0].mxu0 %v2794
        %v2897 = vpop.f32.mrb[0].mxu0
        %v2898 = vadd.f32 0.0, %v2897
        %v2899 = vpop.f32.mrb[0].mxu0
        %v2900 = vpop.f32.mrb[0].mxu0
        %v2901 = vadd.f32 0.0, %v2900
        %v2902 = vpop.f32.mrb[0].mxu0
        %2903 = vmatprep.mubr.bf16.mxu0 0
        %2904 = vmatmul.mubr.bf16.gmra.mrb[0].mxu0 %v2795
        %v2905 = vpop.f32.mrb[0].mxu0
        %v2906 = vadd.f32 0.0, %v2905
        %v2907 = vpop.f32.mrb[0].mxu0
        %v2908 = vpop.f32.mrb[0].mxu0
        %v2909 = vadd.f32 0.0, %v2908
        %v2910 = vpop.f32.mrb[0].mxu0
        %2911 = vmatprep.mubr.bf16.mxu0 0
        %2912 = vmatmul.mubr.bf16.gmra.mrb[0].mxu0 %v2796
        %v2913 = vpop.f32.mrb[0].mxu0
        %v2914 = vadd.f32 0.0, %v2913
        %v2915 = vpop.f32.mrb[0].mxu0
        %v2916 = vpop.f32.mrb[0].mxu0
        %v2917 = vadd.f32 0.0, %v2916
        %v2918 = vpop.f32.mrb[0].mxu0
        %2919 = vmatprep.mubr.bf16.mxu0 0
        %2920 = vmatmul.mubr.bf16.gmra.mrb[0].mxu0 %v2797
        %v2921 = vpop.f32.mrb[0].mxu0
        %v2922 = vadd.f32 0.0, %v2921
        %v2923 = vpop.f32.mrb[0].mxu0
        %v2924 = vpop.f32.mrb[0].mxu0
        %v2925 = vadd.f32 0.0, %v2924
        %v2926 = vpop.f32.mrb[0].mxu0
        %2927 = vdwg.mxu0
        %v2928 = vadd.f32 %v2672, %v2898
        %v2929 = vadd.f32 %v2673, %v2901
        %v2930 = vadd.f32 %v2674, %v2906
        %v2931 = vadd.f32 %v2675, %v2909
        %v2932 = vadd.f32 %v2676, %v2914
        %v2933 = vadd.f32 %v2677, %v2917
        %v2934 = vadd.f32 %v2678, %v2922
        %v2935 = vadd.f32 %v2679, %v2925
        %v2936 = vld [vmem:[%s3] sm:$0x1]
        %v2938 = vlaneseq
        %v2939 = vshrl.u32 %v2938, 7
        %v2940 = vsub.s32 0, %v2939
        %v2941 = vrot.slane %v2936, %v2940
        %v2943 = vadd.f32 %v2928, %v2941
        %v2944 = vadd.f32 %v2929, %v2941
        %v2945 = vadd.f32 %v2930, %v2941
        %v2946 = vadd.f32 %v2931, %v2941
        %v2947 = vadd.f32 %v2932, %v2941
        %v2948 = vadd.f32 %v2933, %v2941
        %v2949 = vadd.f32 %v2934, %v2941
        %v2950 = vadd.f32 %v2935, %v2941
        %v2951 = vxor.u32 %v2943, 2147483648
        %v2952 = vxor.u32 %v2944, 2147483648
        %v2953 = vxor.u32 %v2945, 2147483648
        %v2954 = vxor.u32 %v2946, 2147483648
        %v2955 = vxor.u32 %v2947, 2147483648
        %v2956 = vxor.u32 %v2948, 2147483648
        %v2957 = vxor.u32 %v2949, 2147483648
        %v2958 = vxor.u32 %v2950, 2147483648
        %v2959 = vmul.f32 %v2951, 1.442695
        %v2960 = vpow.pop %v2959
        %v2961 = vmul.f32 %v2952, 1.442695
        %v2962 = vpow.pop %v2961
        %v2963 = vmul.f32 %v2953, 1.442695
        %v2964 = vpow.pop %v2963
        %v2965 = vmul.f32 %v2954, 1.442695
        %v2966 = vpow.pop %v2965
        %v2967 = vmul.f32 %v2955, 1.442695
        %v2968 = vpow.pop %v2967
        %v2969 = vmul.f32 %v2956, 1.442695
        %v2970 = vpow.pop %v2969
        %v2971 = vmul.f32 %v2957, 1.442695
        %v2972 = vpow.pop %v2971
        %v2973 = vmul.f32 %v2958, 1.442695
        %v2974 = vpow.pop %v2973
        %v2975 = vadd.f32 %v2960, 1.0
        %v2976 = vadd.f32 %v2962, 1.0
        %v2977 = vadd.f32 %v2964, 1.0
        %v2978 = vadd.f32 %v2966, 1.0
        %v2979 = vadd.f32 %v2968, 1.0
        %v2980 = vadd.f32 %v2970, 1.0
        %v2981 = vadd.f32 %v2972, 1.0
        %v2982 = vadd.f32 %v2974, 1.0
        %v2983 = vrcp.pop %v2975
        %v2984 = vmul.f32 1.0, %v2983
        %v2985 = vrcp.pop %v2976
        %v2986 = vmul.f32 1.0, %v2985
        %v2987 = vrcp.pop %v2977
        %v2988 = vmul.f32 1.0, %v2987
        %v2989 = vrcp.pop %v2978
        %v2990 = vmul.f32 1.0, %v2989
        %v2991 = vrcp.pop %v2979
        %v2992 = vmul.f32 1.0, %v2991
        %v2993 = vrcp.pop %v2980
        %v2994 = vmul.f32 1.0, %v2993
        %v2995 = vrcp.pop %v2981
        %v2996 = vmul.f32 1.0, %v2995
        %v2997 = vrcp.pop %v2982
        %v2998 = vmul.f32 1.0, %v2997
        %v2999 = vmul.f32 %v2943, %v2984
        %v3000 = vmul.f32 %v2944, %v2986
        %v3001 = vmul.f32 %v2945, %v2988
        %v3002 = vmul.f32 %v2946, %v2990
        %v3003 = vmul.f32 %v2947, %v2992
        %v3004 = vmul.f32 %v2948, %v2994
        %v3005 = vmul.f32 %v2949, %v2996
        %v3006 = vmul.f32 %v2950, %v2998
        %v3007 = vpack.c.bf16 %v3000, %v2999
        %v3008 = vpack.c.bf16 %v3002, %v3001
        %v3009 = vpack.c.bf16 %v3004, %v3003
        %v3010 = vpack.c.bf16 %v3006, %v3005
        %v3011 = vld [vmem:[%s4] sm:$0xf]
        %v3012 = vld [vmem:[%s4 + $0x4] sm:$0xf]
        %v3015 = vunpack.c.l.b16 %v3011
        %v3016 = vunpack.c.l.b16 %v3012
        %v3017 = vpack.c.b16 %v3016, %v3015
        %vm3018 = vcmask 523264
        %v3020 = vsel %vm3018, %v3017, 0
        %3022 = vmatprep.subr.bf16.mxu0 0
        %3023 = vmatpush1.bf16.msra.mxu0 %v3007
        %3024 = vmatprep.subr.bf16.mxu0 0
        %3025 = vmatpush1.bf16.msra.mxu0 %v3008
        %3026 = vmatprep.subr.bf16.mxu0 0
        %3027 = vmatpush1.bf16.msra.mxu0 %v3009
        %3028 = vmatprep.subr.bf16.mxu0 0
        %3029 = vmatpush1.bf16.msra.mxu0 %v3010
        %3030 = vmatprep.subr.bf16.mxu0 0
        %3031 = vmatpush1.bf16.msra.mxu0 0
        %3032 = vmatprep.subr.bf16.mxu0 0
        %3033 = vmatpush1.bf16.msra.mxu0 0
        %3034 = vmatprep.subr.bf16.mxu0 0
        %3035 = vmatpush1.bf16.msra.mxu0 0
        %3036 = vmatprep.subr.bf16.mxu0 0
        %3037 = vmatpush1.bf16.msra.mxu0 0
        %3038 = vmatprep.subr.bf16.mxu0 0
        %3039 = vmatpush1.bf16.msra.mxu0 0
        %3040 = vmatprep.subr.bf16.mxu0 0
        %3041 = vmatpush1.bf16.msra.mxu0 0
        %3042 = vmatprep.subr.bf16.mxu0 0
        %3043 = vmatpush1.bf16.msra.mxu0 0
        %3044 = vmatprep.subr.bf16.mxu0 0
        %3045 = vmatpush1.bf16.msra.mxu0 0
        %3046 = vmatprep.subr.bf16.mxu0 0
        %3047 = vmatpush1.bf16.msra.mxu0 0
        %3048 = vmatprep.subr.bf16.mxu0 0
        %3049 = vmatpush1.bf16.msra.mxu0 0
        %3050 = vmatprep.subr.bf16.mxu0 0
        %3051 = vmatpush1.bf16.msra.mxu0 0
        %3052 = vmatprep.subr.bf16.mxu0 0
        %3053 = vmatpush1.bf16.msra.mxu0 0
        %3054 = vmatprep.mubr.bf16.mxu0 0
        %3055 = vmatmul.mubr.bf16.gmra.mrb[0].mxu0 %v3020
        %v3056 = vpop.f32.mrb[0].mxu0
        %v3057 = vadd.f32 0.0, %v3056
        %v3058 = vpop.f32.mrb[0].mxu0
        %v3059 = vpop.f32.mrb[0].mxu0
        %v3060 = vadd.f32 0.0, %v3059
        %v3061 = vpop.f32.mrb[0].mxu0
        %3062 = vdwg.mxu0
        %v3063 = vpack.c.bf16 %v3060, %v3057
        %v3064 = vld [vmem:[#allocation5] sm:$0xf]
        %v3065 = vld [vmem:[#allocation5 + $0x4] sm:$0xf]
        %v3066 = vld [vmem:[#allocation5 + $0x8] sm:$0xf]
        %v3067 = vld [vmem:[#allocation5 + $0xc] sm:$0xf]
        %v3068 = vld [vmem:[#allocation5 + $0x10] sm:$0xf]
        %v3069 = vld [vmem:[#allocation5 + $0x14] sm:$0xf]
        %v3070 = vld [vmem:[#allocation5 + $0x18] sm:$0xf]
        %v3071 = vld [vmem:[#allocation5 + $0x1c] sm:$0xf]
        %v3072 = vld [vmem:[#allocation5 + $0x20] sm:$0xf]
        %v3073 = vld [vmem:[#allocation5 + $0x24] sm:$0xf]
        %v3074 = vld [vmem:[#allocation5 + $0x28] sm:$0xf]
        %v3075 = vld [vmem:[#allocation5 + $0x2c] sm:$0xf]
        %v3076 = vld [vmem:[#allocation5 + $0x30] sm:$0xf]
        %v3077 = vld [vmem:[#allocation5 + $0x34] sm:$0xf]
        %v3078 = vld [vmem:[#allocation5 + $0x38] sm:$0xf]
        %v3079 = vld [vmem:[#allocation5 + $0x3c] sm:$0xf]
        %s3080 = scalar_lea.vmem %s4, 8
        %v3081 = vld [vmem:[%s3080] sm:$0xf]
        %v3082 = vld [vmem:[%s3080 + $0x4] sm:$0xf]
        %v3085 = vunpack.c.l.b16 %v3081
        %v3086 = vunpack.c.l.b16 %v3082
        %v3087 = vpack.c.b16 %v3086, %v3085
        %v3089 = vsel %vm3018, %v3087, 0
        %3091 = vmatprep.subr.bf16.mxu0 0
        %3092 = vmatpush1.bf16.msra.mxu0 %v3007
        %3093 = vmatprep.subr.bf16.mxu0 0
        %3094 = vmatpush1.bf16.msra.mxu0 %v3008
        %3095 = vmatprep.subr.bf16.mxu0 0
        %3096 = vmatpush1.bf16.msra.mxu0 %v3009
        %3097 = vmatprep.subr.bf16.mxu0 0
        %3098 = vmatpush1.bf16.msra.mxu0 %v3010
        %3099 = vmatprep.subr.bf16.mxu0 0
        %3100 = vmatpush1.bf16.msra.mxu0 0
        %3101 = vmatprep.subr.bf16.mxu0 0
        %3102 = vmatpush1.bf16.msra.mxu0 0
        %3103 = vmatprep.subr.bf16.mxu0 0
        %3104 = vmatpush1.bf16.msra.mxu0 0
        %3105 = vmatprep.subr.bf16.mxu0 0
        %3106 = vmatpush1.bf16.msra.mxu0 0
        %3107 = vmatprep.subr.bf16.mxu0 0
        %3108 = vmatpush1.bf16.msra.mxu0 0
        %3109 = vmatprep.subr.bf16.mxu0 0
        %3110 = vmatpush1.bf16.msra.mxu0 0
        %3111 = vmatprep.subr.bf16.mxu0 0
        %3112 = vmatpush1.bf16.msra.mxu0 0
        %3113 = vmatprep.subr.bf16.mxu0 0
        %3114 = vmatpush1.bf16.msra.mxu0 0
        %3115 = vmatprep.subr.bf16.mxu0 0
        %3116 = vmatpush1.bf16.msra.mxu0 0
        %3117 = vmatprep.subr.bf16.mxu0 0
        %3118 = vmatpush1.bf16.msra.mxu0 0
        %3119 = vmatprep.subr.bf16.mxu0 0
        %3120 = vmatpush1.bf16.msra.mxu0 0
        %3121 = vmatprep.subr.bf16.mxu0 0
        %3122 = vmatpush1.bf16.msra.mxu0 0
        %3123 = vmatprep.mubr.bf16.mxu0 0
        %3124 = vmatmul.mubr.bf16.gmra.mrb[0].mxu0 %v3089
        %v3125 = vpop.f32.mrb[0].mxu0
        %v3126 = vadd.f32 0.0, %v3125
        %v3127 = vpop.f32.mrb[0].mxu0
        %v3128 = vpop.f32.mrb[0].mxu0
        %v3129 = vadd.f32 0.0, %v3128
        %v3130 = vpop.f32.mrb[0].mxu0
        %3131 = vdwg.mxu0
        %v3132 = vpack.c.bf16 %v3129, %v3126
        %s3133 = scalar_lea.vmem [#allocation5], 64
        %v3134 = vld [vmem:[%s3133] sm:$0xf]
        %v3135 = vld [vmem:[%s3133 + $0x4] sm:$0xf]
        %v3136 = vld [vmem:[%s3133 + $0x8] sm:$0xf]
        %v3137 = vld [vmem:[%s3133 + $0xc] sm:$0xf]
        %v3138 = vld [vmem:[%s3133 + $0x10] sm:$0xf]
        %v3139 = vld [vmem:[%s3133 + $0x14] sm:$0xf]
        %v3140 = vld [vmem:[%s3133 + $0x18] sm:$0xf]
        %v3141 = vld [vmem:[%s3133 + $0x1c] sm:$0xf]
        %v3142 = vld [vmem:[%s3133 + $0x20] sm:$0xf]
        %v3143 = vld [vmem:[%s3133 + $0x24] sm:$0xf]
        %v3144 = vld [vmem:[%s3133 + $0x28] sm:$0xf]
        %v3145 = vld [vmem:[%s3133 + $0x2c] sm:$0xf]
        %v3146 = vld [vmem:[%s3133 + $0x30] sm:$0xf]
        %v3147 = vld [vmem:[%s3133 + $0x34] sm:$0xf]
        %v3148 = vld [vmem:[%s3133 + $0x38] sm:$0xf]
        %v3149 = vld [vmem:[%s3133 + $0x3c] sm:$0xf]
        %v3166 = vunpack.c.l.b16 %v3134
        %v3167 = vunpack.c.l.b16 %v3135
        %v3168 = vunpack.c.l.b16 %v3136
        %v3169 = vunpack.c.l.b16 %v3137
        %v3170 = vunpack.c.l.b16 %v3138
        %v3171 = vunpack.c.l.b16 %v3139
        %v3172 = vunpack.c.l.b16 %v3140
        %v3173 = vunpack.c.l.b16 %v3141
        %v3174 = vunpack.c.l.b16 %v3142
        %v3175 = vunpack.c.l.b16 %v3143
        %v3176 = vunpack.c.l.b16 %v3144
        %v3177 = vunpack.c.l.b16 %v3145
        %v3178 = vunpack.c.l.b16 %v3146
        %v3179 = vunpack.c.l.b16 %v3147
        %v3180 = vunpack.c.l.b16 %v3148
        %v3181 = vunpack.c.l.b16 %v3149
        %v3182 = vpack.c.b16 %v3167, %v3166
        %v3183 = vpack.c.b16 %v3169, %v3168
        %v3184 = vpack.c.b16 %v3171, %v3170
        %v3185 = vpack.c.b16 %v3173, %v3172
        %v3186 = vpack.c.b16 %v3175, %v3174
        %v3187 = vpack.c.b16 %v3177, %v3176
        %v3188 = vpack.c.b16 %v3179, %v3178
        %v3189 = vpack.c.b16 %v3181, %v3180
        %3198 = vmatprep.subr.bf16.mxu0 0
        %3199 = vmatpush1.bf16.msra.mxu0 %v3182
        %3200 = vmatprep.subr.bf16.mxu0 0
        %3201 = vmatpush1.bf16.msra.mxu0 %v3183
        %3202 = vmatprep.subr.bf16.mxu0 0
        %3203 = vmatpush1.bf16.msra.mxu0 %v3184
        %3204 = vmatprep.subr.bf16.mxu0 0
        %3205 = vmatpush1.bf16.msra.mxu0 %v3185
        %3206 = vmatprep.subr.bf16.mxu0 0
        %3207 = vmatpush1.bf16.msra.mxu0 %v3186
        %3208 = vmatprep.subr.bf16.mxu0 0
        %3209 = vmatpush1.bf16.msra.mxu0 %v3187
        %3210 = vmatprep.subr.bf16.mxu0 0
        %3211 = vmatpush1.bf16.msra.mxu0 %v3188
        %3212 = vmatprep.subr.bf16.mxu0 0
        %3213 = vmatpush1.bf16.msra.mxu0 %v3189
        %3214 = vmatprep.subr.bf16.mxu0 0
        %3215 = vmatpush1.bf16.msra.mxu0 0
        %3216 = vmatprep.subr.bf16.mxu0 0
        %3217 = vmatpush1.bf16.msra.mxu0 0
        %3218 = vmatprep.subr.bf16.mxu0 0
        %3219 = vmatpush1.bf16.msra.mxu0 0
        %3220 = vmatprep.subr.bf16.mxu0 0
        %3221 = vmatpush1.bf16.msra.mxu0 0
        %3222 = vmatprep.subr.bf16.mxu0 0
        %3223 = vmatpush1.bf16.msra.mxu0 0
        %3224 = vmatprep.subr.bf16.mxu0 0
        %3225 = vmatpush1.bf16.msra.mxu0 0
        %3226 = vmatprep.subr.bf16.mxu0 0
        %3227 = vmatpush1.bf16.msra.mxu0 0
        %3228 = vmatprep.subr.bf16.mxu0 0
        %3229 = vmatpush1.bf16.msra.mxu0 0
        %3230 = vmatprep.mubr.bf16.mxu0 0
        %3231 = vmatmul.mubr.bf16.gmra.mrb[0].mxu0 %v3132
        %v3232 = vpop.f32.mrb[0].mxu0
        %v3233 = vadd.f32 0.0, %v3232
        %v3234 = vpop.f32.mrb[0].mxu0
        %v3235 = vpop.f32.mrb[0].mxu0
        %v3236 = vadd.f32 0.0, %v3235
        %v3237 = vpop.f32.mrb[0].mxu0
        %3238 = vdwg.mxu0
        %v3255 = vunpack.c.l.b16 %v3064
        %v3256 = vunpack.c.l.b16 %v3065
        %v3257 = vunpack.c.l.b16 %v3066
        %v3258 = vunpack.c.l.b16 %v3067
        %v3259 = vunpack.c.l.b16 %v3068
        %v3260 = vunpack.c.l.b16 %v3069
        %v3261 = vunpack.c.l.b16 %v3070
        %v3262 = vunpack.c.l.b16 %v3071
        %v3263 = vunpack.c.l.b16 %v3072
        %v3264 = vunpack.c.l.b16 %v3073
        %v3265 = vunpack.c.l.b16 %v3074
        %v3266 = vunpack.c.l.b16 %v3075
        %v3267 = vunpack.c.l.b16 %v3076
        %v3268 = vunpack.c.l.b16 %v3077
        %v3269 = vunpack.c.l.b16 %v3078
        %v3270 = vunpack.c.l.b16 %v3079
        %v3271 = vpack.c.b16 %v3256, %v3255
        %v3272 = vpack.c.b16 %v3258, %v3257
        %v3273 = vpack.c.b16 %v3260, %v3259
        %v3274 = vpack.c.b16 %v3262, %v3261
        %v3275 = vpack.c.b16 %v3264, %v3263
        %v3276 = vpack.c.b16 %v3266, %v3265
        %v3277 = vpack.c.b16 %v3268, %v3267
        %v3278 = vpack.c.b16 %v3270, %v3269
        %3287 = vmatprep.subr.bf16.mxu0 0
        %3288 = vmatpush1.bf16.msra.mxu0 %v3271
        %3289 = vmatprep.subr.bf16.mxu0 0
        %3290 = vmatpush1.bf16.msra.mxu0 %v3272
        %3291 = vmatprep.subr.bf16.mxu0 0
        %3292 = vmatpush1.bf16.msra.mxu0 %v3273
        %3293 = vmatprep.subr.bf16.mxu0 0
        %3294 = vmatpush1.bf16.msra.mxu0 %v3274
        %3295 = vmatprep.subr.bf16.mxu0 0
        %3296 = vmatpush1.bf16.msra.mxu0 %v3275
        %3297 = vmatprep.subr.bf16.mxu0 0
        %3298 = vmatpush1.bf16.msra.mxu0 %v3276
        %3299 = vmatprep.subr.bf16.mxu0 0
        %3300 = vmatpush1.bf16.msra.mxu0 %v3277
        %3301 = vmatprep.subr.bf16.mxu0 0
        %3302 = vmatpush1.bf16.msra.mxu0 %v3278
        %3303 = vmatprep.subr.bf16.mxu0 0
        %3304 = vmatpush1.bf16.msra.mxu0 0
        %3305 = vmatprep.subr.bf16.mxu0 0
        %3306 = vmatpush1.bf16.msra.mxu0 0
        %3307 = vmatprep.subr.bf16.mxu0 0
        %3308 = vmatpush1.bf16.msra.mxu0 0
        %3309 = vmatprep.subr.bf16.mxu0 0
        %3310 = vmatpush1.bf16.msra.mxu0 0
        %3311 = vmatprep.subr.bf16.mxu0 0
        %3312 = vmatpush1.bf16.msra.mxu0 0
        %3313 = vmatprep.subr.bf16.mxu0 0
        %3314 = vmatpush1.bf16.msra.mxu0 0
        %3315 = vmatprep.subr.bf16.mxu0 0
        %3316 = vmatpush1.bf16.msra.mxu0 0
        %3317 = vmatprep.subr.bf16.mxu0 0
        %3318 = vmatpush1.bf16.msra.mxu0 0
        %3319 = vmatprep.mubr.bf16.mxu0 0
        %3320 = vmatmul.mubr.bf16.gmra.mrb[0].mxu0 %v3063
        %v3321 = vpop.f32.mrb[0].mxu0
        %v3322 = vadd.f32 %v3233, %v3321
        %v3323 = vpop.f32.mrb[0].mxu0
        %v3324 = vpop.f32.mrb[0].mxu0
        %v3325 = vadd.f32 %v3236, %v3324
        %v3326 = vpop.f32.mrb[0].mxu0
        %3327 = vdwg.mxu0
        %s3328 = scalar_lea.vmem %s4, 16
        %v3329 = vld [vmem:[%s3328] sm:$0xf]
        %v3330 = vld [vmem:[%s3328 + $0x4] sm:$0xf]
        %v3333 = vunpack.c.l.b16 %v3329
        %v3334 = vunpack.c.l.b16 %v3330
        %v3335 = vpack.c.b16 %v3334, %v3333
        %v3337 = vsel %vm3018, %v3335, 0
        %3339 = vmatprep.subr.bf16.mxu0 0
        %3340 = vmatpush1.bf16.msra.mxu0 %v3007
        %3341 = vmatprep.subr.bf16.mxu0 0
        %3342 = vmatpush1.bf16.msra.mxu0 %v3008
        %3343 = vmatprep.subr.bf16.mxu0 0
        %3344 = vmatpush1.bf16.msra.mxu0 %v3009
        %3345 = vmatprep.subr.bf16.mxu0 0
        %3346 = vmatpush1.bf16.msra.mxu0 %v3010
        %3347 = vmatprep.subr.bf16.mxu0 0
        %3348 = vmatpush1.bf16.msra.mxu0 0
        %3349 = vmatprep.subr.bf16.mxu0 0
        %3350 = vmatpush1.bf16.msra.mxu0 0
        %3351 = vmatprep.subr.bf16.mxu0 0
        %3352 = vmatpush1.bf16.msra.mxu0 0
        %3353 = vmatprep.subr.bf16.mxu0 0
        %3354 = vmatpush1.bf16.msra.mxu0 0
        %3355 = vmatprep.subr.bf16.mxu0 0
        %3356 = vmatpush1.bf16.msra.mxu0 0
        %3357 = vmatprep.subr.bf16.mxu0 0
        %3358 = vmatpush1.bf16.msra.mxu0 0
        %3359 = vmatprep.subr.bf16.mxu0 0
        %3360 = vmatpush1.bf16.msra.mxu0 0
        %3361 = vmatprep.subr.bf16.mxu0 0
        %3362 = vmatpush1.bf16.msra.mxu0 0
        %3363 = vmatprep.subr.bf16.mxu0 0
        %3364 = vmatpush1.bf16.msra.mxu0 0
        %3365 = vmatprep.subr.bf16.mxu0 0
        %3366 = vmatpush1.bf16.msra.mxu0 0
        %3367 = vmatprep.subr.bf16.mxu0 0
        %3368 = vmatpush1.bf16.msra.mxu0 0
        %3369 = vmatprep.subr.bf16.mxu0 0
        %3370 = vmatpush1.bf16.msra.mxu0 0
        %3371 = vmatprep.mubr.bf16.mxu0 0
        %3372 = vmatmul.mubr.bf16.gmra.mrb[0].mxu0 %v3337
        %v3373 = vpop.f32.mrb[0].mxu0
        %v3374 = vadd.f32 0.0, %v3373
        %v3375 = vpop.f32.mrb[0].mxu0
        %v3376 = vpop.f32.mrb[0].mxu0
        %v3377 = vadd.f32 0.0, %v3376
        %v3378 = vpop.f32.mrb[0].mxu0
        %3379 = vdwg.mxu0
        %v3380 = vpack.c.bf16 %v3377, %v3374
        %s3381 = scalar_lea.vmem [#allocation5], 128
        %v3382 = vld [vmem:[%s3381] sm:$0xf]
        %v3383 = vld [vmem:[%s3381 + $0x4] sm:$0xf]
        %v3384 = vld [vmem:[%s3381 + $0x8] sm:$0xf]
        %v3385 = vld [vmem:[%s3381 + $0xc] sm:$0xf]
        %v3386 = vld [vmem:[%s3381 + $0x10] sm:$0xf]
        %v3387 = vld [vmem:[%s3381 + $0x14] sm:$0xf]
        %v3388 = vld [vmem:[%s3381 + $0x18] sm:$0xf]
        %v3389 = vld [vmem:[%s3381 + $0x1c] sm:$0xf]
        %v3390 = vld [vmem:[%s3381 + $0x20] sm:$0xf]
        %v3391 = vld [vmem:[%s3381 + $0x24] sm:$0xf]
        %v3392 = vld [vmem:[%s3381 + $0x28] sm:$0xf]
        %v3393 = vld [vmem:[%s3381 + $0x2c] sm:$0xf]
        %v3394 = vld [vmem:[%s3381 + $0x30] sm:$0xf]
        %v3395 = vld [vmem:[%s3381 + $0x34] sm:$0xf]
        %v3396 = vld [vmem:[%s3381 + $0x38] sm:$0xf]
        %v3397 = vld [vmem:[%s3381 + $0x3c] sm:$0xf]
        %v3414 = vunpack.c.l.b16 %v3382
        %v3415 = vunpack.c.l.b16 %v3383
        %v3416 = vunpack.c.l.b16 %v3384
        %v3417 = vunpack.c.l.b16 %v3385
        %v3418 = vunpack.c.l.b16 %v3386
        %v3419 = vunpack.c.l.b16 %v3387
        %v3420 = vunpack.c.l.b16 %v3388
        %v3421 = vunpack.c.l.b16 %v3389
        %v3422 = vunpack.c.l.b16 %v3390
        %v3423 = vunpack.c.l.b16 %v3391
        %v3424 = vunpack.c.l.b16 %v3392
        %v3425 = vunpack.c.l.b16 %v3393
        %v3426 = vunpack.c.l.b16 %v3394
        %v3427 = vunpack.c.l.b16 %v3395
        %v3428 = vunpack.c.l.b16 %v3396
        %v3429 = vunpack.c.l.b16 %v3397
        %v3430 = vpack.c.b16 %v3415, %v3414
        %v3431 = vpack.c.b16 %v3417, %v3416
        %v3432 = vpack.c.b16 %v3419, %v3418
        %v3433 = vpack.c.b16 %v3421, %v3420
        %v3434 = vpack.c.b16 %v3423, %v3422
        %v3435 = vpack.c.b16 %v3425, %v3424
        %v3436 = vpack.c.b16 %v3427, %v3426
        %v3437 = vpack.c.b16 %v3429, %v3428
        %3446 = vmatprep.subr.bf16.mxu0 0
        %3447 = vmatpush1.bf16.msra.mxu0 %v3430
        %3448 = vmatprep.subr.bf16.mxu0 0
        %3449 = vmatpush1.bf16.msra.mxu0 %v3431
        %3450 = vmatprep.subr.bf16.mxu0 0
        %3451 = vmatpush1.bf16.msra.mxu0 %v3432
        %3452 = vmatprep.subr.bf16.mxu0 0
        %3453 = vmatpush1.bf16.msra.mxu0 %v3433
        %3454 = vmatprep.subr.bf16.mxu0 0
        %3455 = vmatpush1.bf16.msra.mxu0 %v3434
        %3456 = vmatprep.subr.bf16.mxu0 0
        %3457 = vmatpush1.bf16.msra.mxu0 %v3435
        %3458 = vmatprep.subr.bf16.mxu0 0
        %3459 = vmatpush1.bf16.msra.mxu0 %v3436
        %3460 = vmatprep.subr.bf16.mxu0 0
        %3461 = vmatpush1.bf16.msra.mxu0 %v3437
        %3462 = vmatprep.subr.bf16.mxu0 0
        %3463 = vmatpush1.bf16.msra.mxu0 0
        %3464 = vmatprep.subr.bf16.mxu0 0
        %3465 = vmatpush1.bf16.msra.mxu0 0
        %3466 = vmatprep.subr.bf16.mxu0 0
        %3467 = vmatpush1.bf16.msra.mxu0 0
        %3468 = vmatprep.subr.bf16.mxu0 0
        %3469 = vmatpush1.bf16.msra.mxu0 0
        %3470 = vmatprep.subr.bf16.mxu0 0
        %3471 = vmatpush1.bf16.msra.mxu0 0
        %3472 = vmatprep.subr.bf16.mxu0 0
        %3473 = vmatpush1.bf16.msra.mxu0 0
        %3474 = vmatprep.subr.bf16.mxu0 0
        %3475 = vmatpush1.bf16.msra.mxu0 0
        %3476 = vmatprep.subr.bf16.mxu0 0
        %3477 = vmatpush1.bf16.msra.mxu0 0
        %3478 = vmatprep.mubr.bf16.mxu0 0
        %3479 = vmatmul.mubr.bf16.gmra.mrb[0].mxu0 %v3380
        %v3480 = vpop.f32.mrb[0].mxu0
        %v3481 = vadd.f32 0.0, %v3480
        %v3482 = vpop.f32.mrb[0].mxu0
        %v3483 = vpop.f32.mrb[0].mxu0
        %v3484 = vadd.f32 0.0, %v3483
        %v3485 = vpop.f32.mrb[0].mxu0
        %3486 = vdwg.mxu0
        %v3487 = vadd.f32 %v3322, %v3481
        %v3488 = vadd.f32 %v3325, %v3484
        %s3489 = scalar_lea.vmem %s4, 24
        %v3490 = vld [vmem:[%s3489] sm:$0xf]
        %v3491 = vld [vmem:[%s3489 + $0x4] sm:$0xf]
        %v3494 = vunpack.c.l.b16 %v3490
        %v3495 = vunpack.c.l.b16 %v3491
        %v3496 = vpack.c.b16 %v3495, %v3494
        %v3498 = vsel %vm3018, %v3496, 0
        %3500 = vmatprep.subr.bf16.mxu0 0
        %3501 = vmatpush1.bf16.msra.mxu0 %v3007
        %3502 = vmatprep.subr.bf16.mxu0 0
        %3503 = vmatpush1.bf16.msra.mxu0 %v3008
        %3504 = vmatprep.subr.bf16.mxu0 0
        %3505 = vmatpush1.bf16.msra.mxu0 %v3009
        %3506 = vmatprep.subr.bf16.mxu0 0
        %3507 = vmatpush1.bf16.msra.mxu0 %v3010
        %3508 = vmatprep.subr.bf16.mxu0 0
        %3509 = vmatpush1.bf16.msra.mxu0 0
        %3510 = vmatprep.subr.bf16.mxu0 0
        %3511 = vmatpush1.bf16.msra.mxu0 0
        %3512 = vmatprep.subr.bf16.mxu0 0
        %3513 = vmatpush1.bf16.msra.mxu0 0
        %3514 = vmatprep.subr.bf16.mxu0 0
        %3515 = vmatpush1.bf16.msra.mxu0 0
        %3516 = vmatprep.subr.bf16.mxu0 0
        %3517 = vmatpush1.bf16.msra.mxu0 0
        %3518 = vmatprep.subr.bf16.mxu0 0
        %3519 = vmatpush1.bf16.msra.mxu0 0
        %3520 = vmatprep.subr.bf16.mxu0 0
        %3521 = vmatpush1.bf16.msra.mxu0 0
        %3522 = vmatprep.subr.bf16.mxu0 0
        %3523 = vmatpush1.bf16.msra.mxu0 0
        %3524 = vmatprep.subr.bf16.mxu0 0
        %3525 = vmatpush1.bf16.msra.mxu0 0
        %3526 = vmatprep.subr.bf16.mxu0 0
        %3527 = vmatpush1.bf16.msra.mxu0 0
        %3528 = vmatprep.subr.bf16.mxu0 0
        %3529 = vmatpush1.bf16.msra.mxu0 0
        %3530 = vmatprep.subr.bf16.mxu0 0
        %3531 = vmatpush1.bf16.msra.mxu0 0
        %3532 = vmatprep.mubr.bf16.mxu0 0
        %3533 = vmatmul.mubr.bf16.gmra.mrb[0].mxu0 %v3498
        %v3534 = vpop.f32.mrb[0].mxu0
        %v3535 = vadd.f32 0.0, %v3534
        %v3536 = vpop.f32.mrb[0].mxu0
        %v3537 = vpop.f32.mrb[0].mxu0
        %v3538 = vadd.f32 0.0, %v3537
        %v3539 = vpop.f32.mrb[0].mxu0
        %3540 = vdwg.mxu0
        %v3541 = vpack.c.bf16 %v3538, %v3535
        %s3542 = scalar_lea.vmem [#allocation5], 192
        %v3543 = vld [vmem:[%s3542] sm:$0xf]
        %v3544 = vld [vmem:[%s3542 + $0x4] sm:$0xf]
        %v3545 = vld [vmem:[%s3542 + $0x8] sm:$0xf]
        %v3546 = vld [vmem:[%s3542 + $0xc] sm:$0xf]
        %v3547 = vld [vmem:[%s3542 + $0x10] sm:$0xf]
        %v3548 = vld [vmem:[%s3542 + $0x14] sm:$0xf]
        %v3549 = vld [vmem:[%s3542 + $0x18] sm:$0xf]
        %v3550 = vld [vmem:[%s3542 + $0x1c] sm:$0xf]
        %v3551 = vld [vmem:[%s3542 + $0x20] sm:$0xf]
        %v3552 = vld [vmem:[%s3542 + $0x24] sm:$0xf]
        %v3553 = vld [vmem:[%s3542 + $0x28] sm:$0xf]
        %v3554 = vld [vmem:[%s3542 + $0x2c] sm:$0xf]
        %v3555 = vld [vmem:[%s3542 + $0x30] sm:$0xf]
        %v3556 = vld [vmem:[%s3542 + $0x34] sm:$0xf]
        %v3557 = vld [vmem:[%s3542 + $0x38] sm:$0xf]
        %v3558 = vld [vmem:[%s3542 + $0x3c] sm:$0xf]
        %v3575 = vunpack.c.l.b16 %v3543
        %v3576 = vunpack.c.l.b16 %v3544
        %v3577 = vunpack.c.l.b16 %v3545
        %v3578 = vunpack.c.l.b16 %v3546
        %v3579 = vunpack.c.l.b16 %v3547
        %v3580 = vunpack.c.l.b16 %v3548
        %v3581 = vunpack.c.l.b16 %v3549
        %v3582 = vunpack.c.l.b16 %v3550
        %v3583 = vunpack.c.l.b16 %v3551
        %v3584 = vunpack.c.l.b16 %v3552
        %v3585 = vunpack.c.l.b16 %v3553
        %v3586 = vunpack.c.l.b16 %v3554
        %v3587 = vunpack.c.l.b16 %v3555
        %v3588 = vunpack.c.l.b16 %v3556
        %v3589 = vunpack.c.l.b16 %v3557
        %v3590 = vunpack.c.l.b16 %v3558
        %v3591 = vpack.c.b16 %v3576, %v3575
        %v3592 = vpack.c.b16 %v3578, %v3577
        %v3593 = vpack.c.b16 %v3580, %v3579
        %v3594 = vpack.c.b16 %v3582, %v3581
        %v3595 = vpack.c.b16 %v3584, %v3583
        %v3596 = vpack.c.b16 %v3586, %v3585
        %v3597 = vpack.c.b16 %v3588, %v3587
        %v3598 = vpack.c.b16 %v3590, %v3589
        %3607 = vmatprep.subr.bf16.mxu0 0
        %3608 = vmatpush1.bf16.msra.mxu0 %v3591
        %3609 = vmatprep.subr.bf16.mxu0 0
        %3610 = vmatpush1.bf16.msra.mxu0 %v3592
        %3611 = vmatprep.subr.bf16.mxu0 0
        %3612 = vmatpush1.bf16.msra.mxu0 %v3593
        %3613 = vmatprep.subr.bf16.mxu0 0
        %3614 = vmatpush1.bf16.msra.mxu0 %v3594
        %3615 = vmatprep.subr.bf16.mxu0 0
        %3616 = vmatpush1.bf16.msra.mxu0 %v3595
        %3617 = vmatprep.subr.bf16.mxu0 0
        %3618 = vmatpush1.bf16.msra.mxu0 %v3596
        %3619 = vmatprep.subr.bf16.mxu0 0
        %3620 = vmatpush1.bf16.msra.mxu0 %v3597
        %3621 = vmatprep.subr.bf16.mxu0 0
        %3622 = vmatpush1.bf16.msra.mxu0 %v3598
        %3623 = vmatprep.subr.bf16.mxu0 0
        %3624 = vmatpush1.bf16.msra.mxu0 0
        %3625 = vmatprep.subr.bf16.mxu0 0
        %3626 = vmatpush1.bf16.msra.mxu0 0
        %3627 = vmatprep.subr.bf16.mxu0 0
        %3628 = vmatpush1.bf16.msra.mxu0 0
        %3629 = vmatprep.subr.bf16.mxu0 0
        %3630 = vmatpush1.bf16.msra.mxu0 0
        %3631 = vmatprep.subr.bf16.mxu0 0
        %3632 = vmatpush1.bf16.msra.mxu0 0
        %3633 = vmatprep.subr.bf16.mxu0 0
        %3634 = vmatpush1.bf16.msra.mxu0 0
        %3635 = vmatprep.subr.bf16.mxu0 0
        %3636 = vmatpush1.bf16.msra.mxu0 0
        %3637 = vmatprep.subr.bf16.mxu0 0
        %3638 = vmatpush1.bf16.msra.mxu0 0
        %3639 = vmatprep.mubr.bf16.mxu0 0
        %3640 = vmatmul.mubr.bf16.gmra.mrb[0].mxu0 %v3541
        %v3641 = vpop.f32.mrb[0].mxu0
        %v3642 = vadd.f32 0.0, %v3641
        %v3643 = vpop.f32.mrb[0].mxu0
        %v3644 = vpop.f32.mrb[0].mxu0
        %v3645 = vadd.f32 0.0, %v3644
        %v3646 = vpop.f32.mrb[0].mxu0
        %3647 = vdwg.mxu0
        %v3648 = vadd.f32 %v3487, %v3642
        %v3649 = vadd.f32 %v3488, %v3645
        %s3650 = scalar_lea.vmem %s4, 32
        %v3651 = vld [vmem:[%s3650] sm:$0xf]
        %v3652 = vld [vmem:[%s3650 + $0x4] sm:$0xf]
        %v3655 = vunpack.c.l.b16 %v3651
        %v3656 = vunpack.c.l.b16 %v3652
        %v3657 = vpack.c.b16 %v3656, %v3655
        %v3659 = vsel %vm3018, %v3657, 0
        %3661 = vmatprep.subr.bf16.mxu0 0
        %3662 = vmatpush1.bf16.msra.mxu0 %v3007
        %3663 = vmatprep.subr.bf16.mxu0 0
        %3664 = vmatpush1.bf16.msra.mxu0 %v3008
        %3665 = vmatprep.subr.bf16.mxu0 0
        %3666 = vmatpush1.bf16.msra.mxu0 %v3009
        %3667 = vmatprep.subr.bf16.mxu0 0
        %3668 = vmatpush1.bf16.msra.mxu0 %v3010
        %3669 = vmatprep.subr.bf16.mxu0 0
        %3670 = vmatpush1.bf16.msra.mxu0 0
        %3671 = vmatprep.subr.bf16.mxu0 0
        %3672 = vmatpush1.bf16.msra.mxu0 0
        %3673 = vmatprep.subr.bf16.mxu0 0
        %3674 = vmatpush1.bf16.msra.mxu0 0
        %3675 = vmatprep.subr.bf16.mxu0 0
        %3676 = vmatpush1.bf16.msra.mxu0 0
        %3677 = vmatprep.subr.bf16.mxu0 0
        %3678 = vmatpush1.bf16.msra.mxu0 0
        %3679 = vmatprep.subr.bf16.mxu0 0
        %3680 = vmatpush1.bf16.msra.mxu0 0
        %3681 = vmatprep.subr.bf16.mxu0 0
        %3682 = vmatpush1.bf16.msra.mxu0 0
        %3683 = vmatprep.subr.bf16.mxu0 0
        %3684 = vmatpush1.bf16.msra.mxu0 0
        %3685 = vmatprep.subr.bf16.mxu0 0
        %3686 = vmatpush1.bf16.msra.mxu0 0
        %3687 = vmatprep.subr.bf16.mxu0 0
        %3688 = vmatpush1.bf16.msra.mxu0 0
        %3689 = vmatprep.subr.bf16.mxu0 0
        %3690 = vmatpush1.bf16.msra.mxu0 0
        %3691 = vmatprep.subr.bf16.mxu0 0
        %3692 = vmatpush1.bf16.msra.mxu0 0
        %3693 = vmatprep.mubr.bf16.mxu0 0
        %3694 = vmatmul.mubr.bf16.gmra.mrb[0].mxu0 %v3659
        %v3695 = vpop.f32.mrb[0].mxu0
        %v3696 = vadd.f32 0.0, %v3695
        %v3697 = vpop.f32.mrb[0].mxu0
        %v3698 = vpop.f32.mrb[0].mxu0
        %v3699 = vadd.f32 0.0, %v3698
        %v3700 = vpop.f32.mrb[0].mxu0
        %3701 = vdwg.mxu0
        %v3702 = vpack.c.bf16 %v3699, %v3696
        %s3703 = scalar_lea.vmem [#allocation5], 256
        %v3704 = vld [vmem:[%s3703] sm:$0xf]
        %v3705 = vld [vmem:[%s3703 + $0x4] sm:$0xf]
        %v3706 = vld [vmem:[%s3703 + $0x8] sm:$0xf]
        %v3707 = vld [vmem:[%s3703 + $0xc] sm:$0xf]
        %v3708 = vld [vmem:[%s3703 + $0x10] sm:$0xf]
        %v3709 = vld [vmem:[%s3703 + $0x14] sm:$0xf]
        %v3710 = vld [vmem:[%s3703 + $0x18] sm:$0xf]
        %v3711 = vld [vmem:[%s3703 + $0x1c] sm:$0xf]
        %v3712 = vld [vmem:[%s3703 + $0x20] sm:$0xf]
        %v3713 = vld [vmem:[%s3703 + $0x24] sm:$0xf]
        %v3714 = vld [vmem:[%s3703 + $0x28] sm:$0xf]
        %v3715 = vld [vmem:[%s3703 + $0x2c] sm:$0xf]
        %v3716 = vld [vmem:[%s3703 + $0x30] sm:$0xf]
        %v3717 = vld [vmem:[%s3703 + $0x34] sm:$0xf]
        %v3718 = vld [vmem:[%s3703 + $0x38] sm:$0xf]
        %v3719 = vld [vmem:[%s3703 + $0x3c] sm:$0xf]
        %v3736 = vunpack.c.l.b16 %v3704
        %v3737 = vunpack.c.l.b16 %v3705
        %v3738 = vunpack.c.l.b16 %v3706
        %v3739 = vunpack.c.l.b16 %v3707
        %v3740 = vunpack.c.l.b16 %v3708
        %v3741 = vunpack.c.l.b16 %v3709
        %v3742 = vunpack.c.l.b16 %v3710
        %v3743 = vunpack.c.l.b16 %v3711
        %v3744 = vunpack.c.l.b16 %v3712
        %v3745 = vunpack.c.l.b16 %v3713
        %v3746 = vunpack.c.l.b16 %v3714
        %v3747 = vunpack.c.l.b16 %v3715
        %v3748 = vunpack.c.l.b16 %v3716
        %v3749 = vunpack.c.l.b16 %v3717
        %v3750 = vunpack.c.l.b16 %v3718
        %v3751 = vunpack.c.l.b16 %v3719
        %v3752 = vpack.c.b16 %v3737, %v3736
        %v3753 = vpack.c.b16 %v3739, %v3738
        %v3754 = vpack.c.b16 %v3741, %v3740
        %v3755 = vpack.c.b16 %v3743, %v3742
        %v3756 = vpack.c.b16 %v3745, %v3744
        %v3757 = vpack.c.b16 %v3747, %v3746
        %v3758 = vpack.c.b16 %v3749, %v3748
        %v3759 = vpack.c.b16 %v3751, %v3750
        %3768 = vmatprep.subr.bf16.mxu0 0
        %3769 = vmatpush1.bf16.msra.mxu0 %v3752
        %3770 = vmatprep.subr.bf16.mxu0 0
        %3771 = vmatpush1.bf16.msra.mxu0 %v3753
        %3772 = vmatprep.subr.bf16.mxu0 0
        %3773 = vmatpush1.bf16.msra.mxu0 %v3754
        %3774 = vmatprep.subr.bf16.mxu0 0
        %3775 = vmatpush1.bf16.msra.mxu0 %v3755
        %3776 = vmatprep.subr.bf16.mxu0 0
        %3777 = vmatpush1.bf16.msra.mxu0 %v3756
        %3778 = vmatprep.subr.bf16.mxu0 0
        %3779 = vmatpush1.bf16.msra.mxu0 %v3757
        %3780 = vmatprep.subr.bf16.mxu0 0
        %3781 = vmatpush1.bf16.msra.mxu0 %v3758
        %3782 = vmatprep.subr.bf16.mxu0 0
        %3783 = vmatpush1.bf16.msra.mxu0 %v3759
        %3784 = vmatprep.subr.bf16.mxu0 0
        %3785 = vmatpush1.bf16.msra.mxu0 0
        %3786 = vmatprep.subr.bf16.mxu0 0
        %3787 = vmatpush1.bf16.msra.mxu0 0
        %3788 = vmatprep.subr.bf16.mxu0 0
        %3789 = vmatpush1.bf16.msra.mxu0 0
        %3790 = vmatprep.subr.bf16.mxu0 0
        %3791 = vmatpush1.bf16.msra.mxu0 0
        %3792 = vmatprep.subr.bf16.mxu0 0
        %3793 = vmatpush1.bf16.msra.mxu0 0
        %3794 = vmatprep.subr.bf16.mxu0 0
        %3795 = vmatpush1.bf16.msra.mxu0 0
        %3796 = vmatprep.subr.bf16.mxu0 0
        %3797 = vmatpush1.bf16.msra.mxu0 0
        %3798 = vmatprep.subr.bf16.mxu0 0
        %3799 = vmatpush1.bf16.msra.mxu0 0
        %3800 = vmatprep.mubr.bf16.mxu0 0
        %3801 = vmatmul.mubr.bf16.gmra.mrb[0].mxu0 %v3702
        %v3802 = vpop.f32.mrb[0].mxu0
        %v3803 = vadd.f32 0.0, %v3802
        %v3804 = vpop.f32.mrb[0].mxu0
        %v3805 = vpop.f32.mrb[0].mxu0
        %v3806 = vadd.f32 0.0, %v3805
        %v3807 = vpop.f32.mrb[0].mxu0
        %3808 = vdwg.mxu0
        %v3809 = vadd.f32 %v3648, %v3803
        %v3810 = vadd.f32 %v3649, %v3806
        %s3811 = scalar_lea.vmem %s4, 40
        %v3812 = vld [vmem:[%s3811] sm:$0xf]
        %v3813 = vld [vmem:[%s3811 + $0x4] sm:$0xf]
        %v3816 = vunpack.c.l.b16 %v3812
        %v3817 = vunpack.c.l.b16 %v3813
        %v3818 = vpack.c.b16 %v3817, %v3816
        %v3820 = vsel %vm3018, %v3818, 0
        %3822 = vmatprep.subr.bf16.mxu0 0
        %3823 = vmatpush1.bf16.msra.mxu0 %v3007
        %3824 = vmatprep.subr.bf16.mxu0 0
        %3825 = vmatpush1.bf16.msra.mxu0 %v3008
        %3826 = vmatprep.subr.bf16.mxu0 0
        %3827 = vmatpush1.bf16.msra.mxu0 %v3009
        %3828 = vmatprep.subr.bf16.mxu0 0
        %3829 = vmatpush1.bf16.msra.mxu0 %v3010
        %3830 = vmatprep.subr.bf16.mxu0 0
        %3831 = vmatpush1.bf16.msra.mxu0 0
        %3832 = vmatprep.subr.bf16.mxu0 0
        %3833 = vmatpush1.bf16.msra.mxu0 0
        %3834 = vmatprep.subr.bf16.mxu0 0
        %3835 = vmatpush1.bf16.msra.mxu0 0
        %3836 = vmatprep.subr.bf16.mxu0 0
        %3837 = vmatpush1.bf16.msra.mxu0 0
        %3838 = vmatprep.subr.bf16.mxu0 0
        %3839 = vmatpush1.bf16.msra.mxu0 0
        %3840 = vmatprep.subr.bf16.mxu0 0
        %3841 = vmatpush1.bf16.msra.mxu0 0
        %3842 = vmatprep.subr.bf16.mxu0 0
        %3843 = vmatpush1.bf16.msra.mxu0 0
        %3844 = vmatprep.subr.bf16.mxu0 0
        %3845 = vmatpush1.bf16.msra.mxu0 0
        %3846 = vmatprep.subr.bf16.mxu0 0
        %3847 = vmatpush1.bf16.msra.mxu0 0
        %3848 = vmatprep.subr.bf16.mxu0 0
        %3849 = vmatpush1.bf16.msra.mxu0 0
        %3850 = vmatprep.subr.bf16.mxu0 0
        %3851 = vmatpush1.bf16.msra.mxu0 0
        %3852 = vmatprep.subr.bf16.mxu0 0
        %3853 = vmatpush1.bf16.msra.mxu0 0
        %3854 = vmatprep.mubr.bf16.mxu0 0
        %3855 = vmatmul.mubr.bf16.gmra.mrb[0].mxu0 %v3820
        %v3856 = vpop.f32.mrb[0].mxu0
        %v3857 = vadd.f32 0.0, %v3856
        %v3858 = vpop.f32.mrb[0].mxu0
        %v3859 = vpop.f32.mrb[0].mxu0
        %v3860 = vadd.f32 0.0, %v3859
        %v3861 = vpop.f32.mrb[0].mxu0
        %3862 = vdwg.mxu0
        %v3863 = vpack.c.bf16 %v3860, %v3857
        %s3864 = scalar_lea.vmem [#allocation5], 320
        %v3865 = vld [vmem:[%s3864] sm:$0xf]
        %v3866 = vld [vmem:[%s3864 + $0x4] sm:$0xf]
        %v3867 = vld [vmem:[%s3864 + $0x8] sm:$0xf]
        %v3868 = vld [vmem:[%s3864 + $0xc] sm:$0xf]
        %v3869 = vld [vmem:[%s3864 + $0x10] sm:$0xf]
        %v3870 = vld [vmem:[%s3864 + $0x14] sm:$0xf]
        %v3871 = vld [vmem:[%s3864 + $0x18] sm:$0xf]
        %v3872 = vld [vmem:[%s3864 + $0x1c] sm:$0xf]
        %v3873 = vld [vmem:[%s3864 + $0x20] sm:$0xf]
        %v3874 = vld [vmem:[%s3864 + $0x24] sm:$0xf]
        %v3875 = vld [vmem:[%s3864 + $0x28] sm:$0xf]
        %v3876 = vld [vmem:[%s3864 + $0x2c] sm:$0xf]
        %v3877 = vld [vmem:[%s3864 + $0x30] sm:$0xf]
        %v3878 = vld [vmem:[%s3864 + $0x34] sm:$0xf]
        %v3879 = vld [vmem:[%s3864 + $0x38] sm:$0xf]
        %v3880 = vld [vmem:[%s3864 + $0x3c] sm:$0xf]
        %v3897 = vunpack.c.l.b16 %v3865
        %v3898 = vunpack.c.l.b16 %v3866
        %v3899 = vunpack.c.l.b16 %v3867
        %v3900 = vunpack.c.l.b16 %v3868
        %v3901 = vunpack.c.l.b16 %v3869
        %v3902 = vunpack.c.l.b16 %v3870
        %v3903 = vunpack.c.l.b16 %v3871
        %v3904 = vunpack.c.l.b16 %v3872
        %v3905 = vunpack.c.l.b16 %v3873
        %v3906 = vunpack.c.l.b16 %v3874
        %v3907 = vunpack.c.l.b16 %v3875
        %v3908 = vunpack.c.l.b16 %v3876
        %v3909 = vunpack.c.l.b16 %v3877
        %v3910 = vunpack.c.l.b16 %v3878
        %v3911 = vunpack.c.l.b16 %v3879
        %v3912 = vunpack.c.l.b16 %v3880
        %v3913 = vpack.c.b16 %v3898, %v3897
        %v3914 = vpack.c.b16 %v3900, %v3899
        %v3915 = vpack.c.b16 %v3902, %v3901
        %v3916 = vpack.c.b16 %v3904, %v3903
        %v3917 = vpack.c.b16 %v3906, %v3905
        %v3918 = vpack.c.b16 %v3908, %v3907
        %v3919 = vpack.c.b16 %v3910, %v3909
        %v3920 = vpack.c.b16 %v3912, %v3911
        %3929 = vmatprep.subr.bf16.mxu0 0
        %3930 = vmatpush1.bf16.msra.mxu0 %v3913
        %3931 = vmatprep.subr.bf16.mxu0 0
        %3932 = vmatpush1.bf16.msra.mxu0 %v3914
        %3933 = vmatprep.subr.bf16.mxu0 0
        %3934 = vmatpush1.bf16.msra.mxu0 %v3915
        %3935 = vmatprep.subr.bf16.mxu0 0
        %3936 = vmatpush1.bf16.msra.mxu0 %v3916
        %3937 = vmatprep.subr.bf16.mxu0 0
        %3938 = vmatpush1.bf16.msra.mxu0 %v3917
        %3939 = vmatprep.subr.bf16.mxu0 0
        %3940 = vmatpush1.bf16.msra.mxu0 %v3918
        %3941 = vmatprep.subr.bf16.mxu0 0
        %3942 = vmatpush1.bf16.msra.mxu0 %v3919
        %3943 = vmatprep.subr.bf16.mxu0 0
        %3944 = vmatpush1.bf16.msra.mxu0 %v3920
        %3945 = vmatprep.subr.bf16.mxu0 0
        %3946 = vmatpush1.bf16.msra.mxu0 0
        %3947 = vmatprep.subr.bf16.mxu0 0
        %3948 = vmatpush1.bf16.msra.mxu0 0
        %3949 = vmatprep.subr.bf16.mxu0 0
        %3950 = vmatpush1.bf16.msra.mxu0 0
        %3951 = vmatprep.subr.bf16.mxu0 0
        %3952 = vmatpush1.bf16.msra.mxu0 0
        %3953 = vmatprep.subr.bf16.mxu0 0
        %3954 = vmatpush1.bf16.msra.mxu0 0
        %3955 = vmatprep.subr.bf16.mxu0 0
        %3956 = vmatpush1.bf16.msra.mxu0 0
        %3957 = vmatprep.subr.bf16.mxu0 0
        %3958 = vmatpush1.bf16.msra.mxu0 0
        %3959 = vmatprep.subr.bf16.mxu0 0
        %3960 = vmatpush1.bf16.msra.mxu0 0
        %3961 = vmatprep.mubr.bf16.mxu0 0
        %3962 = vmatmul.mubr.bf16.gmra.mrb[0].mxu0 %v3863
        %v3963 = vpop.f32.mrb[0].mxu0
        %v3964 = vadd.f32 0.0, %v3963
        %v3965 = vpop.f32.mrb[0].mxu0
        %v3966 = vpop.f32.mrb[0].mxu0
        %v3967 = vadd.f32 0.0, %v3966
        %v3968 = vpop.f32.mrb[0].mxu0
        %3969 = vdwg.mxu0
        %v3970 = vadd.f32 %v3809, %v3964
        %v3971 = vadd.f32 %v3810, %v3967
        %s3972 = scalar_lea.vmem %s4, 48
        %v3973 = vld [vmem:[%s3972] sm:$0xf]
        %v3974 = vld [vmem:[%s3972 + $0x4] sm:$0xf]
        %v3977 = vunpack.c.l.b16 %v3973
        %v3978 = vunpack.c.l.b16 %v3974
        %v3979 = vpack.c.b16 %v3978, %v3977
        %v3981 = vsel %vm3018, %v3979, 0
        %3983 = vmatprep.subr.bf16.mxu0 0
        %3984 = vmatpush1.bf16.msra.mxu0 %v3007
        %3985 = vmatprep.subr.bf16.mxu0 0
        %3986 = vmatpush1.bf16.msra.mxu0 %v3008
        %3987 = vmatprep.subr.bf16.mxu0 0
        %3988 = vmatpush1.bf16.msra.mxu0 %v3009
        %3989 = vmatprep.subr.bf16.mxu0 0
        %3990 = vmatpush1.bf16.msra.mxu0 %v3010
        %3991 = vmatprep.subr.bf16.mxu0 0
        %3992 = vmatpush1.bf16.msra.mxu0 0
        %3993 = vmatprep.subr.bf16.mxu0 0
        %3994 = vmatpush1.bf16.msra.mxu0 0
        %3995 = vmatprep.subr.bf16.mxu0 0
        %3996 = vmatpush1.bf16.msra.mxu0 0
        %3997 = vmatprep.subr.bf16.mxu0 0
        %3998 = vmatpush1.bf16.msra.mxu0 0
        %3999 = vmatprep.subr.bf16.mxu0 0
        %4000 = vmatpush1.bf16.msra.mxu0 0
        %4001 = vmatprep.subr.bf16.mxu0 0
        %4002 = vmatpush1.bf16.msra.mxu0 0
        %4003 = vmatprep.subr.bf16.mxu0 0
        %4004 = vmatpush1.bf16.msra.mxu0 0
        %4005 = vmatprep.subr.bf16.mxu0 0
        %4006 = vmatpush1.bf16.msra.mxu0 0
        %4007 = vmatprep.subr.bf16.mxu0 0
        %4008 = vmatpush1.bf16.msra.mxu0 0
        %4009 = vmatprep.subr.bf16.mxu0 0
        %4010 = vmatpush1.bf16.msra.mxu0 0
        %4011 = vmatprep.subr.bf16.mxu0 0
        %4012 = vmatpush1.bf16.msra.mxu0 0
        %4013 = vmatprep.subr.bf16.mxu0 0
        %4014 = vmatpush1.bf16.msra.mxu0 0
        %4015 = vmatprep.mubr.bf16.mxu0 0
        %4016 = vmatmul.mubr.bf16.gmra.mrb[0].mxu0 %v3981
        %v4017 = vpop.f32.mrb[0].mxu0
        %v4018 = vadd.f32 0.0, %v4017
        %v4019 = vpop.f32.mrb[0].mxu0
        %v4020 = vpop.f32.mrb[0].mxu0
        %v4021 = vadd.f32 0.0, %v4020
        %v4022 = vpop.f32.mrb[0].mxu0
        %4023 = vdwg.mxu0
        %v4024 = vpack.c.bf16 %v4021, %v4018
        %s4025 = scalar_lea.vmem [#allocation5], 384
        %v4026 = vld [vmem:[%s4025] sm:$0xf]
        %v4027 = vld [vmem:[%s4025 + $0x4] sm:$0xf]
        %v4028 = vld [vmem:[%s4025 + $0x8] sm:$0xf]
        %v4029 = vld [vmem:[%s4025 + $0xc] sm:$0xf]
        %v4030 = vld [vmem:[%s4025 + $0x10] sm:$0xf]
        %v4031 = vld [vmem:[%s4025 + $0x14] sm:$0xf]
        %v4032 = vld [vmem:[%s4025 + $0x18] sm:$0xf]
        %v4033 = vld [vmem:[%s4025 + $0x1c] sm:$0xf]
        %v4034 = vld [vmem:[%s4025 + $0x20] sm:$0xf]
        %v4035 = vld [vmem:[%s4025 + $0x24] sm:$0xf]
        %v4036 = vld [vmem:[%s4025 + $0x28] sm:$0xf]
        %v4037 = vld [vmem:[%s4025 + $0x2c] sm:$0xf]
        %v4038 = vld [vmem:[%s4025 + $0x30] sm:$0xf]
        %v4039 = vld [vmem:[%s4025 + $0x34] sm:$0xf]
        %v4040 = vld [vmem:[%s4025 + $0x38] sm:$0xf]
        %v4041 = vld [vmem:[%s4025 + $0x3c] sm:$0xf]
        %v4058 = vunpack.c.l.b16 %v4026
        %v4059 = vunpack.c.l.b16 %v4027
        %v4060 = vunpack.c.l.b16 %v4028
        %v4061 = vunpack.c.l.b16 %v4029
        %v4062 = vunpack.c.l.b16 %v4030
        %v4063 = vunpack.c.l.b16 %v4031
        %v4064 = vunpack.c.l.b16 %v4032
        %v4065 = vunpack.c.l.b16 %v4033
        %v4066 = vunpack.c.l.b16 %v4034
        %v4067 = vunpack.c.l.b16 %v4035
        %v4068 = vunpack.c.l.b16 %v4036
        %v4069 = vunpack.c.l.b16 %v4037
        %v4070 = vunpack.c.l.b16 %v4038
        %v4071 = vunpack.c.l.b16 %v4039
        %v4072 = vunpack.c.l.b16 %v4040
        %v4073 = vunpack.c.l.b16 %v4041
        %v4074 = vpack.c.b16 %v4059, %v4058
        %v4075 = vpack.c.b16 %v4061, %v4060
        %v4076 = vpack.c.b16 %v4063, %v4062
        %v4077 = vpack.c.b16 %v4065, %v4064
        %v4078 = vpack.c.b16 %v4067, %v4066
        %v4079 = vpack.c.b16 %v4069, %v4068
        %v4080 = vpack.c.b16 %v4071, %v4070
        %v4081 = vpack.c.b16 %v4073, %v4072
        %4090 = vmatprep.subr.bf16.mxu0 0
        %4091 = vmatpush1.bf16.msra.mxu0 %v4074
        %4092 = vmatprep.subr.bf16.mxu0 0
        %4093 = vmatpush1.bf16.msra.mxu0 %v4075
        %4094 = vmatprep.subr.bf16.mxu0 0
        %4095 = vmatpush1.bf16.msra.mxu0 %v4076
        %4096 = vmatprep.subr.bf16.mxu0 0
        %4097 = vmatpush1.bf16.msra.mxu0 %v4077
        %4098 = vmatprep.subr.bf16.mxu0 0
        %4099 = vmatpush1.bf16.msra.mxu0 %v4078
        %4100 = vmatprep.subr.bf16.mxu0 0
        %4101 = vmatpush1.bf16.msra.mxu0 %v4079
        %4102 = vmatprep.subr.bf16.mxu0 0
        %4103 = vmatpush1.bf16.msra.mxu0 %v4080
        %4104 = vmatprep.subr.bf16.mxu0 0
        %4105 = vmatpush1.bf16.msra.mxu0 %v4081
        %4106 = vmatprep.subr.bf16.mxu0 0
        %4107 = vmatpush1.bf16.msra.mxu0 0
        %4108 = vmatprep.subr.bf16.mxu0 0
        %4109 = vmatpush1.bf16.msra.mxu0 0
        %4110 = vmatprep.subr.bf16.mxu0 0
        %4111 = vmatpush1.bf16.msra.mxu0 0
        %4112 = vmatprep.subr.bf16.mxu0 0
        %4113 = vmatpush1.bf16.msra.mxu0 0
        %4114 = vmatprep.subr.bf16.mxu0 0
        %4115 = vmatpush1.bf16.msra.mxu0 0
        %4116 = vmatprep.subr.bf16.mxu0 0
        %4117 = vmatpush1.bf16.msra.mxu0 0
        %4118 = vmatprep.subr.bf16.mxu0 0
        %4119 = vmatpush1.bf16.msra.mxu0 0
        %4120 = vmatprep.subr.bf16.mxu0 0
        %4121 = vmatpush1.bf16.msra.mxu0 0
        %4122 = vmatprep.mubr.bf16.mxu0 0
        %4123 = vmatmul.mubr.bf16.gmra.mrb[0].mxu0 %v4024
        %v4124 = vpop.f32.mrb[0].mxu0
        %v4125 = vadd.f32 0.0, %v4124
        %v4126 = vpop.f32.mrb[0].mxu0
        %v4127 = vpop.f32.mrb[0].mxu0
        %v4128 = vadd.f32 0.0, %v4127
        %v4129 = vpop.f32.mrb[0].mxu0
        %4130 = vdwg.mxu0
        %v4131 = vadd.f32 %v3970, %v4125
        %v4132 = vadd.f32 %v3971, %v4128
        %s4133 = scalar_lea.vmem %s4, 56
        %v4134 = vld [vmem:[%s4133] sm:$0xf]
        %v4135 = vld [vmem:[%s4133 + $0x4] sm:$0xf]
        %v4138 = vunpack.c.l.b16 %v4134
        %v4139 = vunpack.c.l.b16 %v4135
        %v4140 = vpack.c.b16 %v4139, %v4138
        %v4142 = vsel %vm3018, %v4140, 0
        %4144 = vmatprep.subr.bf16.mxu0 0
        %4145 = vmatpush1.bf16.msra.mxu0 %v3007
        %4146 = vmatprep.subr.bf16.mxu0 0
        %4147 = vmatpush1.bf16.msra.mxu0 %v3008
        %4148 = vmatprep.subr.bf16.mxu0 0
        %4149 = vmatpush1.bf16.msra.mxu0 %v3009
        %4150 = vmatprep.subr.bf16.mxu0 0
        %4151 = vmatpush1.bf16.msra.mxu0 %v3010
        %4152 = vmatprep.subr.bf16.mxu0 0
        %4153 = vmatpush1.bf16.msra.mxu0 0
        %4154 = vmatprep.subr.bf16.mxu0 0
        %4155 = vmatpush1.bf16.msra.mxu0 0
        %4156 = vmatprep.subr.bf16.mxu0 0
        %4157 = vmatpush1.bf16.msra.mxu0 0
        %4158 = vmatprep.subr.bf16.mxu0 0
        %4159 = vmatpush1.bf16.msra.mxu0 0
        %4160 = vmatprep.subr.bf16.mxu0 0
        %4161 = vmatpush1.bf16.msra.mxu0 0
        %4162 = vmatprep.subr.bf16.mxu0 0
        %4163 = vmatpush1.bf16.msra.mxu0 0
        %4164 = vmatprep.subr.bf16.mxu0 0
        %4165 = vmatpush1.bf16.msra.mxu0 0
        %4166 = vmatprep.subr.bf16.mxu0 0
        %4167 = vmatpush1.bf16.msra.mxu0 0
        %4168 = vmatprep.subr.bf16.mxu0 0
        %4169 = vmatpush1.bf16.msra.mxu0 0
        %4170 = vmatprep.subr.bf16.mxu0 0
        %4171 = vmatpush1.bf16.msra.mxu0 0
        %4172 = vmatprep.subr.bf16.mxu0 0
        %4173 = vmatpush1.bf16.msra.mxu0 0
        %4174 = vmatprep.subr.bf16.mxu0 0
        %4175 = vmatpush1.bf16.msra.mxu0 0
        %4176 = vmatprep.mubr.bf16.mxu0 0
        %4177 = vmatmul.mubr.bf16.gmra.mrb[0].mxu0 %v4142
        %v4178 = vpop.f32.mrb[0].mxu0
        %v4179 = vadd.f32 0.0, %v4178
        %v4180 = vpop.f32.mrb[0].mxu0
        %v4181 = vpop.f32.mrb[0].mxu0
        %v4182 = vadd.f32 0.0, %v4181
        %v4183 = vpop.f32.mrb[0].mxu0
        %4184 = vdwg.mxu0
        %v4185 = vpack.c.bf16 %v4182, %v4179
        %s4186 = scalar_lea.vmem [#allocation5], 448
        %v4187 = vld [vmem:[%s4186] sm:$0xf]
        %v4188 = vld [vmem:[%s4186 + $0x4] sm:$0xf]
        %v4189 = vld [vmem:[%s4186 + $0x8] sm:$0xf]
        %v4190 = vld [vmem:[%s4186 + $0xc] sm:$0xf]
        %v4191 = vld [vmem:[%s4186 + $0x10] sm:$0xf]
        %v4192 = vld [vmem:[%s4186 + $0x14] sm:$0xf]
        %v4193 = vld [vmem:[%s4186 + $0x18] sm:$0xf]
        %v4194 = vld [vmem:[%s4186 + $0x1c] sm:$0xf]
        %v4195 = vld [vmem:[%s4186 + $0x20] sm:$0xf]
        %v4196 = vld [vmem:[%s4186 + $0x24] sm:$0xf]
        %v4197 = vld [vmem:[%s4186 + $0x28] sm:$0xf]
        %v4198 = vld [vmem:[%s4186 + $0x2c] sm:$0xf]
        %v4199 = vld [vmem:[%s4186 + $0x30] sm:$0xf]
        %v4200 = vld [vmem:[%s4186 + $0x34] sm:$0xf]
        %v4201 = vld [vmem:[%s4186 + $0x38] sm:$0xf]
        %v4202 = vld [vmem:[%s4186 + $0x3c] sm:$0xf]
        %v4219 = vunpack.c.l.b16 %v4187
        %v4220 = vunpack.c.l.b16 %v4188
        %v4221 = vunpack.c.l.b16 %v4189
        %v4222 = vunpack.c.l.b16 %v4190
        %v4223 = vunpack.c.l.b16 %v4191
        %v4224 = vunpack.c.l.b16 %v4192
        %v4225 = vunpack.c.l.b16 %v4193
        %v4226 = vunpack.c.l.b16 %v4194
        %v4227 = vunpack.c.l.b16 %v4195
        %v4228 = vunpack.c.l.b16 %v4196
        %v4229 = vunpack.c.l.b16 %v4197
        %v4230 = vunpack.c.l.b16 %v4198
        %v4231 = vunpack.c.l.b16 %v4199
        %v4232 = vunpack.c.l.b16 %v4200
        %v4233 = vunpack.c.l.b16 %v4201
        %v4234 = vunpack.c.l.b16 %v4202
        %v4235 = vpack.c.b16 %v4220, %v4219
        %v4236 = vpack.c.b16 %v4222, %v4221
        %v4237 = vpack.c.b16 %v4224, %v4223
        %v4238 = vpack.c.b16 %v4226, %v4225
        %v4239 = vpack.c.b16 %v4228, %v4227
        %v4240 = vpack.c.b16 %v4230, %v4229
        %v4241 = vpack.c.b16 %v4232, %v4231
        %v4242 = vpack.c.b16 %v4234, %v4233
        %4251 = vmatprep.subr.bf16.mxu0 0
        %4252 = vmatpush1.bf16.msra.mxu0 %v4235
        %4253 = vmatprep.subr.bf16.mxu0 0
        %4254 = vmatpush1.bf16.msra.mxu0 %v4236
        %4255 = vmatprep.subr.bf16.mxu0 0
        %4256 = vmatpush1.bf16.msra.mxu0 %v4237
        %4257 = vmatprep.subr.bf16.mxu0 0
        %4258 = vmatpush1.bf16.msra.mxu0 %v4238
        %4259 = vmatprep.subr.bf16.mxu0 0
        %4260 = vmatpush1.bf16.msra.mxu0 %v4239
        %4261 = vmatprep.subr.bf16.mxu0 0
        %4262 = vmatpush1.bf16.msra.mxu0 %v4240
        %4263 = vmatprep.subr.bf16.mxu0 0
        %4264 = vmatpush1.bf16.msra.mxu0 %v4241
        %4265 = vmatprep.subr.bf16.mxu0 0
        %4266 = vmatpush1.bf16.msra.mxu0 %v4242
        %4267 = vmatprep.subr.bf16.mxu0 0
        %4268 = vmatpush1.bf16.msra.mxu0 0
        %4269 = vmatprep.subr.bf16.mxu0 0
        %4270 = vmatpush1.bf16.msra.mxu0 0
        %4271 = vmatprep.subr.bf16.mxu0 0
        %4272 = vmatpush1.bf16.msra.mxu0 0
        %4273 = vmatprep.subr.bf16.mxu0 0
        %4274 = vmatpush1.bf16.msra.mxu0 0
        %4275 = vmatprep.subr.bf16.mxu0 0
        %4276 = vmatpush1.bf16.msra.mxu0 0
        %4277 = vmatprep.subr.bf16.mxu0 0
        %4278 = vmatpush1.bf16.msra.mxu0 0
        %4279 = vmatprep.subr.bf16.mxu0 0
        %4280 = vmatpush1.bf16.msra.mxu0 0
        %4281 = vmatprep.subr.bf16.mxu0 0
        %4282 = vmatpush1.bf16.msra.mxu0 0
        %4283 = vmatprep.mubr.bf16.mxu0 0
        %4284 = vmatmul.mubr.bf16.gmra.mrb[0].mxu0 %v4185
        %v4285 = vpop.f32.mrb[0].mxu0
        %v4286 = vadd.f32 0.0, %v4285
        %v4287 = vpop.f32.mrb[0].mxu0
        %v4288 = vpop.f32.mrb[0].mxu0
        %v4289 = vadd.f32 0.0, %v4288
        %v4290 = vpop.f32.mrb[0].mxu0
        %4291 = vdwg.mxu0
        %v4292 = vadd.f32 %v4131, %v4286
        %v4293 = vadd.f32 %v4132, %v4289
        %s4294 = scalar_lea.vmem %s4, 64
        %v4295 = vld [vmem:[%s4294] sm:$0xf]
        %v4296 = vld [vmem:[%s4294 + $0x4] sm:$0xf]
        %v4299 = vunpack.c.l.b16 %v4295
        %v4300 = vunpack.c.l.b16 %v4296
        %v4301 = vpack.c.b16 %v4300, %v4299
        %v4303 = vsel %vm3018, %v4301, 0
        %4305 = vmatprep.subr.bf16.mxu0 0
        %4306 = vmatpush1.bf16.msra.mxu0 %v3007
        %4307 = vmatprep.subr.bf16.mxu0 0
        %4308 = vmatpush1.bf16.msra.mxu0 %v3008
        %4309 = vmatprep.subr.bf16.mxu0 0
        %4310 = vmatpush1.bf16.msra.mxu0 %v3009
        %4311 = vmatprep.subr.bf16.mxu0 0
        %4312 = vmatpush1.bf16.msra.mxu0 %v3010
        %4313 = vmatprep.subr.bf16.mxu0 0
        %4314 = vmatpush1.bf16.msra.mxu0 0
        %4315 = vmatprep.subr.bf16.mxu0 0
        %4316 = vmatpush1.bf16.msra.mxu0 0
        %4317 = vmatprep.subr.bf16.mxu0 0
        %4318 = vmatpush1.bf16.msra.mxu0 0
        %4319 = vmatprep.subr.bf16.mxu0 0
        %4320 = vmatpush1.bf16.msra.mxu0 0
        %4321 = vmatprep.subr.bf16.mxu0 0
        %4322 = vmatpush1.bf16.msra.mxu0 0
        %4323 = vmatprep.subr.bf16.mxu0 0
        %4324 = vmatpush1.bf16.msra.mxu0 0
        %4325 = vmatprep.subr.bf16.mxu0 0
        %4326 = vmatpush1.bf16.msra.mxu0 0
        %4327 = vmatprep.subr.bf16.mxu0 0
        %4328 = vmatpush1.bf16.msra.mxu0 0
        %4329 = vmatprep.subr.bf16.mxu0 0
        %4330 = vmatpush1.bf16.msra.mxu0 0
        %4331 = vmatprep.subr.bf16.mxu0 0
        %4332 = vmatpush1.bf16.msra.mxu0 0
        %4333 = vmatprep.subr.bf16.mxu0 0
        %4334 = vmatpush1.bf16.msra.mxu0 0
        %4335 = vmatprep.subr.bf16.mxu0 0
        %4336 = vmatpush1.bf16.msra.mxu0 0
        %4337 = vmatprep.mubr.bf16.mxu0 0
        %4338 = vmatmul.mubr.bf16.gmra.mrb[0].mxu0 %v4303
        %v4339 = vpop.f32.mrb[0].mxu0
        %v4340 = vadd.f32 0.0, %v4339
        %v4341 = vpop.f32.mrb[0].mxu0
        %v4342 = vpop.f32.mrb[0].mxu0
        %v4343 = vadd.f32 0.0, %v4342
        %v4344 = vpop.f32.mrb[0].mxu0
        %4345 = vdwg.mxu0
        %v4346 = vpack.c.bf16 %v4343, %v4340
        %s4347 = scalar_lea.vmem [#allocation5], 512
        %v4348 = vld [vmem:[%s4347] sm:$0xf]
        %v4349 = vld [vmem:[%s4347 + $0x4] sm:$0xf]
        %v4350 = vld [vmem:[%s4347 + $0x8] sm:$0xf]
        %v4351 = vld [vmem:[%s4347 + $0xc] sm:$0xf]
        %v4352 = vld [vmem:[%s4347 + $0x10] sm:$0xf]
        %v4353 = vld [vmem:[%s4347 + $0x14] sm:$0xf]
        %v4354 = vld [vmem:[%s4347 + $0x18] sm:$0xf]
        %v4355 = vld [vmem:[%s4347 + $0x1c] sm:$0xf]
        %v4356 = vld [vmem:[%s4347 + $0x20] sm:$0xf]
        %v4357 = vld [vmem:[%s4347 + $0x24] sm:$0xf]
        %v4358 = vld [vmem:[%s4347 + $0x28] sm:$0xf]
        %v4359 = vld [vmem:[%s4347 + $0x2c] sm:$0xf]
        %v4360 = vld [vmem:[%s4347 + $0x30] sm:$0xf]
        %v4361 = vld [vmem:[%s4347 + $0x34] sm:$0xf]
        %v4362 = vld [vmem:[%s4347 + $0x38] sm:$0xf]
        %v4363 = vld [vmem:[%s4347 + $0x3c] sm:$0xf]
        %v4380 = vunpack.c.l.b16 %v4348
        %v4381 = vunpack.c.l.b16 %v4349
        %v4382 = vunpack.c.l.b16 %v4350
        %v4383 = vunpack.c.l.b16 %v4351
        %v4384 = vunpack.c.l.b16 %v4352
        %v4385 = vunpack.c.l.b16 %v4353
        %v4386 = vunpack.c.l.b16 %v4354
        %v4387 = vunpack.c.l.b16 %v4355
        %v4388 = vunpack.c.l.b16 %v4356
        %v4389 = vunpack.c.l.b16 %v4357
        %v4390 = vunpack.c.l.b16 %v4358
        %v4391 = vunpack.c.l.b16 %v4359
        %v4392 = vunpack.c.l.b16 %v4360
        %v4393 = vunpack.c.l.b16 %v4361
        %v4394 = vunpack.c.l.b16 %v4362
        %v4395 = vunpack.c.l.b16 %v4363
        %v4396 = vpack.c.b16 %v4381, %v4380
        %v4397 = vpack.c.b16 %v4383, %v4382
        %v4398 = vpack.c.b16 %v4385, %v4384
        %v4399 = vpack.c.b16 %v4387, %v4386
        %v4400 = vpack.c.b16 %v4389, %v4388
        %v4401 = vpack.c.b16 %v4391, %v4390
        %v4402 = vpack.c.b16 %v4393, %v4392
        %v4403 = vpack.c.b16 %v4395, %v4394
        %4412 = vmatprep.subr.bf16.mxu0 0
        %4413 = vmatpush1.bf16.msra.mxu0 %v4396
        %4414 = vmatprep.subr.bf16.mxu0 0
        %4415 = vmatpush1.bf16.msra.mxu0 %v4397
        %4416 = vmatprep.subr.bf16.mxu0 0
        %4417 = vmatpush1.bf16.msra.mxu0 %v4398
        %4418 = vmatprep.subr.bf16.mxu0 0
        %4419 = vmatpush1.bf16.msra.mxu0 %v4399
        %4420 = vmatprep.subr.bf16.mxu0 0
        %4421 = vmatpush1.bf16.msra.mxu0 %v4400
        %4422 = vmatprep.subr.bf16.mxu0 0
        %4423 = vmatpush1.bf16.msra.mxu0 %v4401
        %4424 = vmatprep.subr.bf16.mxu0 0
        %4425 = vmatpush1.bf16.msra.mxu0 %v4402
        %4426 = vmatprep.subr.bf16.mxu0 0
        %4427 = vmatpush1.bf16.msra.mxu0 %v4403
        %4428 = vmatprep.subr.bf16.mxu0 0
        %4429 = vmatpush1.bf16.msra.mxu0 0
        %4430 = vmatprep.subr.bf16.mxu0 0
        %4431 = vmatpush1.bf16.msra.mxu0 0
        %4432 = vmatprep.subr.bf16.mxu0 0
        %4433 = vmatpush1.bf16.msra.mxu0 0
        %4434 = vmatprep.subr.bf16.mxu0 0
        %4435 = vmatpush1.bf16.msra.mxu0 0
        %4436 = vmatprep.subr.bf16.mxu0 0
        %4437 = vmatpush1.bf16.msra.mxu0 0
        %4438 = vmatprep.subr.bf16.mxu0 0
        %4439 = vmatpush1.bf16.msra.mxu0 0
        %4440 = vmatprep.subr.bf16.mxu0 0
        %4441 = vmatpush1.bf16.msra.mxu0 0
        %4442 = vmatprep.subr.bf16.mxu0 0
        %4443 = vmatpush1.bf16.msra.mxu0 0
        %4444 = vmatprep.mubr.bf16.mxu0 0
        %4445 = vmatmul.mubr.bf16.gmra.mrb[0].mxu0 %v4346
        %v4446 = vpop.f32.mrb[0].mxu0
        %v4447 = vadd.f32 0.0, %v4446
        %v4448 = vpop.f32.mrb[0].mxu0
        %v4449 = vpop.f32.mrb[0].mxu0
        %v4450 = vadd.f32 0.0, %v4449
        %v4451 = vpop.f32.mrb[0].mxu0
        %4452 = vdwg.mxu0
        %v4453 = vadd.f32 %v4292, %v4447
        %v4454 = vadd.f32 %v4293, %v4450
        %v4455 = vld [vmem:[%s6] sm:$0x1]
        %v4457 = vlaneseq
        %v4458 = vshrl.u32 %v4457, 7
        %v4459 = vsub.s32 0, %v4458
        %v4460 = vrot.slane %v4455, %v4459
        %v4462 = vadd.f32 %v4453, %v4460
        %v4463 = vadd.f32 %v4454, %v4460
        %v4464 = vxor.u32 %v4462, 2147483648
        %v4465 = vxor.u32 %v4463, 2147483648
        %v4466 = vmul.f32 %v4464, 1.442695
        %v4467 = vpow.pop %v4466
        %v4468 = vmul.f32 %v4465, 1.442695
        %v4469 = vpow.pop %v4468
        %v4470 = vadd.f32 %v4467, 1.0
        %v4471 = vadd.f32 %v4469, 1.0
        %v4472 = vrcp.pop %v4470
        %v4473 = vmul.f32 1.0, %v4472
        %v4474 = vrcp.pop %v4471
        %v4475 = vmul.f32 1.0, %v4474
        %v4476 = vmul.f32 %v4462, %v4473
        %v4477 = vmul.f32 %v4463, %v4475
        %v4478 = vpack.c.bf16 %v4477, %v4476
        %v4479 = vld [vmem:[%s7] sm:$0xf]
        %v4480 = vld [vmem:[%s7 + $0x4] sm:$0xf]
        %v4483 = vunpack.c.l.b16 %v4479
        %v4484 = vunpack.c.l.b16 %v4480
        %v4485 = vpack.c.b16 %v4484, %v4483
        %vm4486 = vcmask 130048
        %v4488 = vsel %vm4486, %v4485, 0
        %4490 = vmatprep.subr.bf16.mxu0 0
        %4491 = vmatpush1.bf16.msra.mxu0 %v4478
        %4492 = vmatprep.subr.bf16.mxu0 0
        %4493 = vmatpush1.bf16.msra.mxu0 0
        %4494 = vmatprep.subr.bf16.mxu0 0
        %4495 = vmatpush1.bf16.msra.mxu0 0
        %4496 = vmatprep.subr.bf16.mxu0 0
        %4497 = vmatpush1.bf16.msra.mxu0 0
        %4498 = vmatprep.subr.bf16.mxu0 0
        %4499 = vmatpush1.bf16.msra.mxu0 0
        %4500 = vmatprep.subr.bf16.mxu0 0
        %4501 = vmatpush1.bf16.msra.mxu0 0
        %4502 = vmatprep.subr.bf16.mxu0 0
        %4503 = vmatpush1.bf16.msra.mxu0 0
        %4504 = vmatprep.subr.bf16.mxu0 0
        %4505 = vmatpush1.bf16.msra.mxu0 0
        %4506 = vmatprep.subr.bf16.mxu0 0
        %4507 = vmatpush1.bf16.msra.mxu0 0
        %4508 = vmatprep.subr.bf16.mxu0 0
        %4509 = vmatpush1.bf16.msra.mxu0 0
        %4510 = vmatprep.subr.bf16.mxu0 0
        %4511 = vmatpush1.bf16.msra.mxu0 0
        %4512 = vmatprep.subr.bf16.mxu0 0
        %4513 = vmatpush1.bf16.msra.mxu0 0
        %4514 = vmatprep.subr.bf16.mxu0 0
        %4515 = vmatpush1.bf16.msra.mxu0 0
        %4516 = vmatprep.subr.bf16.mxu0 0
        %4517 = vmatpush1.bf16.msra.mxu0 0
        %4518 = vmatprep.subr.bf16.mxu0 0
        %4519 = vmatpush1.bf16.msra.mxu0 0
        %4520 = vmatprep.subr.bf16.mxu0 0
        %4521 = vmatpush1.bf16.msra.mxu0 0
        %4522 = vmatprep.mubr.bf16.mxu0 0
        %4523 = vmatmul.mubr.bf16.gmra.mrb[0].mxu0 %v4488
        %v4524 = vpop.f32.mrb[0].mxu0
        %v4525 = vadd.f32 0.0, %v4524
        %v4526 = vpop.f32.mrb[0].mxu0
        %v4527 = vpop.f32.mrb[0].mxu0
        %v4528 = vadd.f32 0.0, %v4527
        %v4529 = vpop.f32.mrb[0].mxu0
        %4530 = vdwg.mxu0
        %v4531 = vpack.c.bf16 %v4528, %v4525
        %v4532 = vld [vmem:[#allocation7] sm:$0xf]
        %v4533 = vld [vmem:[#allocation7 + $0x4] sm:$0xf]
        %v4534 = vld [vmem:[#allocation7 + $0x8] sm:$0xf]
        %v4535 = vld [vmem:[#allocation7 + $0xc] sm:$0xf]
        %v4536 = vld [vmem:[#allocation7 + $0x10] sm:$0xf]
        %v4537 = vld [vmem:[#allocation7 + $0x14] sm:$0xf]
        %v4538 = vld [vmem:[#allocation7 + $0x18] sm:$0xf]
        %v4539 = vld [vmem:[#allocation7 + $0x1c] sm:$0xf]
        %v4540 = vld [vmem:[#allocation7 + $0x20] sm:$0xf]
        %v4541 = vld [vmem:[#allocation7 + $0x24] sm:$0xf]
        %v4542 = vld [vmem:[#allocation7 + $0x28] sm:$0xf]
        %v4543 = vld [vmem:[#allocation7 + $0x2c] sm:$0xf]
        %v4544 = vld [vmem:[#allocation7 + $0x30] sm:$0xf]
        %v4545 = vld [vmem:[#allocation7 + $0x34] sm:$0xf]
        %v4546 = vld [vmem:[#allocation7 + $0x38] sm:$0xf]
        %v4547 = vld [vmem:[#allocation7 + $0x3c] sm:$0xf]
        %s4548 = scalar_lea.vmem %s7, 8
        %v4549 = vld [vmem:[%s4548] sm:$0xf]
        %v4550 = vld [vmem:[%s4548 + $0x4] sm:$0xf]
        %v4553 = vunpack.c.l.b16 %v4549
        %v4554 = vunpack.c.l.b16 %v4550
        %v4555 = vpack.c.b16 %v4554, %v4553
        %v4557 = vsel %vm4486, %v4555, 0
        %4559 = vmatprep.subr.bf16.mxu0 0
        %4560 = vmatpush1.bf16.msra.mxu0 %v4478
        %4561 = vmatprep.subr.bf16.mxu0 0
        %4562 = vmatpush1.bf16.msra.mxu0 0
        %4563 = vmatprep.subr.bf16.mxu0 0
        %4564 = vmatpush1.bf16.msra.mxu0 0
        %4565 = vmatprep.subr.bf16.mxu0 0
        %4566 = vmatpush1.bf16.msra.mxu0 0
        %4567 = vmatprep.subr.bf16.mxu0 0
        %4568 = vmatpush1.bf16.msra.mxu0 0
        %4569 = vmatprep.subr.bf16.mxu0 0
        %4570 = vmatpush1.bf16.msra.mxu0 0
        %4571 = vmatprep.subr.bf16.mxu0 0
        %4572 = vmatpush1.bf16.msra.mxu0 0
        %4573 = vmatprep.subr.bf16.mxu0 0
        %4574 = vmatpush1.bf16.msra.mxu0 0
        %4575 = vmatprep.subr.bf16.mxu0 0
        %4576 = vmatpush1.bf16.msra.mxu0 0
        %4577 = vmatprep.subr.bf16.mxu0 0
        %4578 = vmatpush1.bf16.msra.mxu0 0
        %4579 = vmatprep.subr.bf16.mxu0 0
        %4580 = vmatpush1.bf16.msra.mxu0 0
        %4581 = vmatprep.subr.bf16.mxu0 0
        %4582 = vmatpush1.bf16.msra.mxu0 0
        %4583 = vmatprep.subr.bf16.mxu0 0
        %4584 = vmatpush1.bf16.msra.mxu0 0
        %4585 = vmatprep.subr.bf16.mxu0 0
        %4586 = vmatpush1.bf16.msra.mxu0 0
        %4587 = vmatprep.subr.bf16.mxu0 0
        %4588 = vmatpush1.bf16.msra.mxu0 0
        %4589 = vmatprep.subr.bf16.mxu0 0
        %4590 = vmatpush1.bf16.msra.mxu0 0
        %4591 = vmatprep.mubr.bf16.mxu0 0
        %4592 = vmatmul.mubr.bf16.gmra.mrb[0].mxu0 %v4557
        %v4593 = vpop.f32.mrb[0].mxu0
        %v4594 = vadd.f32 0.0, %v4593
        %v4595 = vpop.f32.mrb[0].mxu0
        %v4596 = vpop.f32.mrb[0].mxu0
        %v4597 = vadd.f32 0.0, %v4596
        %v4598 = vpop.f32.mrb[0].mxu0
        %4599 = vdwg.mxu0
        %v4600 = vpack.c.bf16 %v4597, %v4594
        %s4601 = scalar_lea.vmem [#allocation7], 64
        %v4602 = vld [vmem:[%s4601] sm:$0xf]
        %v4603 = vld [vmem:[%s4601 + $0x4] sm:$0xf]
        %v4604 = vld [vmem:[%s4601 + $0x8] sm:$0xf]
        %v4605 = vld [vmem:[%s4601 + $0xc] sm:$0xf]
        %v4606 = vld [vmem:[%s4601 + $0x10] sm:$0xf]
        %v4607 = vld [vmem:[%s4601 + $0x14] sm:$0xf]
        %v4608 = vld [vmem:[%s4601 + $0x18] sm:$0xf]
        %v4609 = vld [vmem:[%s4601 + $0x1c] sm:$0xf]
        %v4610 = vld [vmem:[%s4601 + $0x20] sm:$0xf]
        %v4611 = vld [vmem:[%s4601 + $0x24] sm:$0xf]
        %v4612 = vld [vmem:[%s4601 + $0x28] sm:$0xf]
        %v4613 = vld [vmem:[%s4601 + $0x2c] sm:$0xf]
        %v4614 = vld [vmem:[%s4601 + $0x30] sm:$0xf]
        %v4615 = vld [vmem:[%s4601 + $0x34] sm:$0xf]
        %v4616 = vld [vmem:[%s4601 + $0x38] sm:$0xf]
        %v4617 = vld [vmem:[%s4601 + $0x3c] sm:$0xf]
        %v4634 = vunpack.c.l.b16 %v4602
        %v4635 = vunpack.c.l.b16 %v4603
        %v4636 = vunpack.c.l.b16 %v4604
        %v4637 = vunpack.c.l.b16 %v4605
        %v4638 = vunpack.c.l.b16 %v4606
        %v4639 = vunpack.c.l.b16 %v4607
        %v4640 = vunpack.c.l.b16 %v4608
        %v4641 = vunpack.c.l.b16 %v4609
        %v4642 = vunpack.c.l.b16 %v4610
        %v4643 = vunpack.c.l.b16 %v4611
        %v4644 = vunpack.c.l.b16 %v4612
        %v4645 = vunpack.c.l.b16 %v4613
        %v4646 = vunpack.c.l.b16 %v4614
        %v4647 = vunpack.c.l.b16 %v4615
        %v4648 = vunpack.c.l.b16 %v4616
        %v4649 = vunpack.c.l.b16 %v4617
        %v4650 = vpack.c.b16 %v4635, %v4634
        %v4651 = vpack.c.b16 %v4637, %v4636
        %v4652 = vpack.c.b16 %v4639, %v4638
        %v4653 = vpack.c.b16 %v4641, %v4640
        %v4654 = vpack.c.b16 %v4643, %v4642
        %v4655 = vpack.c.b16 %v4645, %v4644
        %v4656 = vpack.c.b16 %v4647, %v4646
        %v4657 = vpack.c.b16 %v4649, %v4648
        %4666 = vmatprep.subr.bf16.mxu0 0
        %4667 = vmatpush1.bf16.msra.mxu0 %v4650
        %4668 = vmatprep.subr.bf16.mxu0 0
        %4669 = vmatpush1.bf16.msra.mxu0 %v4651
        %4670 = vmatprep.subr.bf16.mxu0 0
        %4671 = vmatpush1.bf16.msra.mxu0 %v4652
        %4672 = vmatprep.subr.bf16.mxu0 0
        %4673 = vmatpush1.bf16.msra.mxu0 %v4653
        %4674 = vmatprep.subr.bf16.mxu0 0
        %4675 = vmatpush1.bf16.msra.mxu0 %v4654
        %4676 = vmatprep.subr.bf16.mxu0 0
        %4677 = vmatpush1.bf16.msra.mxu0 %v4655
        %4678 = vmatprep.subr.bf16.mxu0 0
        %4679 = vmatpush1.bf16.msra.mxu0 %v4656
        %4680 = vmatprep.subr.bf16.mxu0 0
        %4681 = vmatpush1.bf16.msra.mxu0 %v4657
        %4682 = vmatprep.subr.bf16.mxu0 0
        %4683 = vmatpush1.bf16.msra.mxu0 0
        %4684 = vmatprep.subr.bf16.mxu0 0
        %4685 = vmatpush1.bf16.msra.mxu0 0
        %4686 = vmatprep.subr.bf16.mxu0 0
        %4687 = vmatpush1.bf16.msra.mxu0 0
        %4688 = vmatprep.subr.bf16.mxu0 0
        %4689 = vmatpush1.bf16.msra.mxu0 0
        %4690 = vmatprep.subr.bf16.mxu0 0
        %4691 = vmatpush1.bf16.msra.mxu0 0
        %4692 = vmatprep.subr.bf16.mxu0 0
        %4693 = vmatpush1.bf16.msra.mxu0 0
        %4694 = vmatprep.subr.bf16.mxu0 0
        %4695 = vmatpush1.bf16.msra.mxu0 0
        %4696 = vmatprep.subr.bf16.mxu0 0
        %4697 = vmatpush1.bf16.msra.mxu0 0
        %4698 = vmatprep.mubr.bf16.mxu0 0
        %4699 = vmatmul.mubr.bf16.gmra.mrb[0].mxu0 %v4600
        %v4700 = vpop.f32.mrb[0].mxu0
        %v4701 = vadd.f32 0.0, %v4700
        %v4702 = vpop.f32.mrb[0].mxu0
        %v4703 = vpop.f32.mrb[0].mxu0
        %v4704 = vadd.f32 0.0, %v4703
        %v4705 = vpop.f32.mrb[0].mxu0
        %4706 = vdwg.mxu0
        %v4723 = vunpack.c.l.b16 %v4532
        %v4724 = vunpack.c.l.b16 %v4533
        %v4725 = vunpack.c.l.b16 %v4534
        %v4726 = vunpack.c.l.b16 %v4535
        %v4727 = vunpack.c.l.b16 %v4536
        %v4728 = vunpack.c.l.b16 %v4537
        %v4729 = vunpack.c.l.b16 %v4538
        %v4730 = vunpack.c.l.b16 %v4539
        %v4731 = vunpack.c.l.b16 %v4540
        %v4732 = vunpack.c.l.b16 %v4541
        %v4733 = vunpack.c.l.b16 %v4542
        %v4734 = vunpack.c.l.b16 %v4543
        %v4735 = vunpack.c.l.b16 %v4544
        %v4736 = vunpack.c.l.b16 %v4545
        %v4737 = vunpack.c.l.b16 %v4546
        %v4738 = vunpack.c.l.b16 %v4547
        %v4739 = vpack.c.b16 %v4724, %v4723
        %v4740 = vpack.c.b16 %v4726, %v4725
        %v4741 = vpack.c.b16 %v4728, %v4727
        %v4742 = vpack.c.b16 %v4730, %v4729
        %v4743 = vpack.c.b16 %v4732, %v4731
        %v4744 = vpack.c.b16 %v4734, %v4733
        %v4745 = vpack.c.b16 %v4736, %v4735
        %v4746 = vpack.c.b16 %v4738, %v4737
        %4755 = vmatprep.subr.bf16.mxu0 0
        %4756 = vmatpush1.bf16.msra.mxu0 %v4739
        %4757 = vmatprep.subr.bf16.mxu0 0
        %4758 = vmatpush1.bf16.msra.mxu0 %v4740
        %4759 = vmatprep.subr.bf16.mxu0 0
        %4760 = vmatpush1.bf16.msra.mxu0 %v4741
        %4761 = vmatprep.subr.bf16.mxu0 0
        %4762 = vmatpush1.bf16.msra.mxu0 %v4742
        %4763 = vmatprep.subr.bf16.mxu0 0
        %4764 = vmatpush1.bf16.msra.mxu0 %v4743
        %4765 = vmatprep.subr.bf16.mxu0 0
        %4766 = vmatpush1.bf16.msra.mxu0 %v4744
        %4767 = vmatprep.subr.bf16.mxu0 0
        %4768 = vmatpush1.bf16.msra.mxu0 %v4745
        %4769 = vmatprep.subr.bf16.mxu0 0
        %4770 = vmatpush1.bf16.msra.mxu0 %v4746
        %4771 = vmatprep.subr.bf16.mxu0 0
        %4772 = vmatpush1.bf16.msra.mxu0 0
        %4773 = vmatprep.subr.bf16.mxu0 0
        %4774 = vmatpush1.bf16.msra.mxu0 0
        %4775 = vmatprep.subr.bf16.mxu0 0
        %4776 = vmatpush1.bf16.msra.mxu0 0
        %4777 = vmatprep.subr.bf16.mxu0 0
        %4778 = vmatpush1.bf16.msra.mxu0 0
        %4779 = vmatprep.subr.bf16.mxu0 0
        %4780 = vmatpush1.bf16.msra.mxu0 0
        %4781 = vmatprep.subr.bf16.mxu0 0
        %4782 = vmatpush1.bf16.msra.mxu0 0
        %4783 = vmatprep.subr.bf16.mxu0 0
        %4784 = vmatpush1.bf16.msra.mxu0 0
        %4785 = vmatprep.subr.bf16.mxu0 0
        %4786 = vmatpush1.bf16.msra.mxu0 0
        %4787 = vmatprep.mubr.bf16.mxu0 0
        %4788 = vmatmul.mubr.bf16.gmra.mrb[0].mxu0 %v4531
        %v4789 = vpop.f32.mrb[0].mxu0
        %v4790 = vadd.f32 %v4701, %v4789
        %v4791 = vpop.f32.mrb[0].mxu0
        %v4792 = vpop.f32.mrb[0].mxu0
        %v4793 = vadd.f32 %v4704, %v4792
        %v4794 = vpop.f32.mrb[0].mxu0
        %4795 = vdwg.mxu0
        %s4796 = scalar_lea.vmem %s7, 16
        %v4797 = vld [vmem:[%s4796] sm:$0xf]
        %v4798 = vld [vmem:[%s4796 + $0x4] sm:$0xf]
        %v4801 = vunpack.c.l.b16 %v4797
        %v4802 = vunpack.c.l.b16 %v4798
        %v4803 = vpack.c.b16 %v4802, %v4801
        %v4805 = vsel %vm4486, %v4803, 0
        %4807 = vmatprep.subr.bf16.mxu0 0
        %4808 = vmatpush1.bf16.msra.mxu0 %v4478
        %4809 = vmatprep.subr.bf16.mxu0 0
        %4810 = vmatpush1.bf16.msra.mxu0 0
        %4811 = vmatprep.subr.bf16.mxu0 0
        %4812 = vmatpush1.bf16.msra.mxu0 0
        %4813 = vmatprep.subr.bf16.mxu0 0
        %4814 = vmatpush1.bf16.msra.mxu0 0
        %4815 = vmatprep.subr.bf16.mxu0 0
        %4816 = vmatpush1.bf16.msra.mxu0 0
        %4817 = vmatprep.subr.bf16.mxu0 0
        %4818 = vmatpush1.bf16.msra.mxu0 0
        %4819 = vmatprep.subr.bf16.mxu0 0
        %4820 = vmatpush1.bf16.msra.mxu0 0
        %4821 = vmatprep.subr.bf16.mxu0 0
        %4822 = vmatpush1.bf16.msra.mxu0 0
        %4823 = vmatprep.subr.bf16.mxu0 0
        %4824 = vmatpush1.bf16.msra.mxu0 0
        %4825 = vmatprep.subr.bf16.mxu0 0
        %4826 = vmatpush1.bf16.msra.mxu0 0
        %4827 = vmatprep.subr.bf16.mxu0 0
        %4828 = vmatpush1.bf16.msra.mxu0 0
        %4829 = vmatprep.subr.bf16.mxu0 0
        %4830 = vmatpush1.bf16.msra.mxu0 0
        %4831 = vmatprep.subr.bf16.mxu0 0
        %4832 = vmatpush1.bf16.msra.mxu0 0
        %4833 = vmatprep.subr.bf16.mxu0 0
        %4834 = vmatpush1.bf16.msra.mxu0 0
        %4835 = vmatprep.subr.bf16.mxu0 0
        %4836 = vmatpush1.bf16.msra.mxu0 0
        %4837 = vmatprep.subr.bf16.mxu0 0
        %4838 = vmatpush1.bf16.msra.mxu0 0
        %4839 = vmatprep.mubr.bf16.mxu0 0
        %4840 = vmatmul.mubr.bf16.gmra.mrb[0].mxu0 %v4805
        %v4841 = vpop.f32.mrb[0].mxu0
        %v4842 = vadd.f32 0.0, %v4841
        %v4843 = vpop.f32.mrb[0].mxu0
        %v4844 = vpop.f32.mrb[0].mxu0
        %v4845 = vadd.f32 0.0, %v4844
        %v4846 = vpop.f32.mrb[0].mxu0
        %4847 = vdwg.mxu0
        %v4848 = vpack.c.bf16 %v4845, %v4842
        %s4849 = scalar_lea.vmem [#allocation7], 128
        %v4850 = vld [vmem:[%s4849] sm:$0xf]
        %v4851 = vld [vmem:[%s4849 + $0x4] sm:$0xf]
        %v4852 = vld [vmem:[%s4849 + $0x8] sm:$0xf]
        %v4853 = vld [vmem:[%s4849 + $0xc] sm:$0xf]
        %v4854 = vld [vmem:[%s4849 + $0x10] sm:$0xf]
        %v4855 = vld [vmem:[%s4849 + $0x14] sm:$0xf]
        %v4856 = vld [vmem:[%s4849 + $0x18] sm:$0xf]
        %v4857 = vld [vmem:[%s4849 + $0x1c] sm:$0xf]
        %v4858 = vld [vmem:[%s4849 + $0x20] sm:$0xf]
        %v4859 = vld [vmem:[%s4849 + $0x24] sm:$0xf]
        %v4860 = vld [vmem:[%s4849 + $0x28] sm:$0xf]
        %v4861 = vld [vmem:[%s4849 + $0x2c] sm:$0xf]
        %v4862 = vld [vmem:[%s4849 + $0x30] sm:$0xf]
        %v4863 = vld [vmem:[%s4849 + $0x34] sm:$0xf]
        %v4864 = vld [vmem:[%s4849 + $0x38] sm:$0xf]
        %v4865 = vld [vmem:[%s4849 + $0x3c] sm:$0xf]
        %v4882 = vunpack.c.l.b16 %v4850
        %v4883 = vunpack.c.l.b16 %v4851
        %v4884 = vunpack.c.l.b16 %v4852
        %v4885 = vunpack.c.l.b16 %v4853
        %v4886 = vunpack.c.l.b16 %v4854
        %v4887 = vunpack.c.l.b16 %v4855
        %v4888 = vunpack.c.l.b16 %v4856
        %v4889 = vunpack.c.l.b16 %v4857
        %v4890 = vunpack.c.l.b16 %v4858
        %v4891 = vunpack.c.l.b16 %v4859
        %v4892 = vunpack.c.l.b16 %v4860
        %v4893 = vunpack.c.l.b16 %v4861
        %v4894 = vunpack.c.l.b16 %v4862
        %v4895 = vunpack.c.l.b16 %v4863
        %v4896 = vunpack.c.l.b16 %v4864
        %v4897 = vunpack.c.l.b16 %v4865
        %v4898 = vpack.c.b16 %v4883, %v4882
        %v4899 = vpack.c.b16 %v4885, %v4884
        %v4900 = vpack.c.b16 %v4887, %v4886
        %v4901 = vpack.c.b16 %v4889, %v4888
        %v4902 = vpack.c.b16 %v4891, %v4890
        %v4903 = vpack.c.b16 %v4893, %v4892
        %v4904 = vpack.c.b16 %v4895, %v4894
        %v4905 = vpack.c.b16 %v4897, %v4896
        %4914 = vmatprep.subr.bf16.mxu0 0
        %4915 = vmatpush1.bf16.msra.mxu0 %v4898
        %4916 = vmatprep.subr.bf16.mxu0 0
        %4917 = vmatpush1.bf16.msra.mxu0 %v4899
        %4918 = vmatprep.subr.bf16.mxu0 0
        %4919 = vmatpush1.bf16.msra.mxu0 %v4900
        %4920 = vmatprep.subr.bf16.mxu0 0
        %4921 = vmatpush1.bf16.msra.mxu0 %v4901
        %4922 = vmatprep.subr.bf16.mxu0 0
        %4923 = vmatpush1.bf16.msra.mxu0 %v4902
        %4924 = vmatprep.subr.bf16.mxu0 0
        %4925 = vmatpush1.bf16.msra.mxu0 %v4903
        %4926 = vmatprep.subr.bf16.mxu0 0
        %4927 = vmatpush1.bf16.msra.mxu0 %v4904
        %4928 = vmatprep.subr.bf16.mxu0 0
        %4929 = vmatpush1.bf16.msra.mxu0 %v4905
        %4930 = vmatprep.subr.bf16.mxu0 0
        %4931 = vmatpush1.bf16.msra.mxu0 0
        %4932 = vmatprep.subr.bf16.mxu0 0
        %4933 = vmatpush1.bf16.msra.mxu0 0
        %4934 = vmatprep.subr.bf16.mxu0 0
        %4935 = vmatpush1.bf16.msra.mxu0 0
        %4936 = vmatprep.subr.bf16.mxu0 0
        %4937 = vmatpush1.bf16.msra.mxu0 0
        %4938 = vmatprep.subr.bf16.mxu0 0
        %4939 = vmatpush1.bf16.msra.mxu0 0
        %4940 = vmatprep.subr.bf16.mxu0 0
        %4941 = vmatpush1.bf16.msra.mxu0 0
        %4942 = vmatprep.subr.bf16.mxu0 0
        %4943 = vmatpush1.bf16.msra.mxu0 0
        %4944 = vmatprep.subr.bf16.mxu0 0
        %4945 = vmatpush1.bf16.msra.mxu0 0
        %4946 = vmatprep.mubr.bf16.mxu0 0
        %4947 = vmatmul.mubr.bf16.gmra.mrb[0].mxu0 %v4848
        %v4948 = vpop.f32.mrb[0].mxu0
        %v4949 = vadd.f32 0.0, %v4948
        %v4950 = vpop.f32.mrb[0].mxu0
        %v4951 = vpop.f32.mrb[0].mxu0
        %v4952 = vadd.f32 0.0, %v4951
        %v4953 = vpop.f32.mrb[0].mxu0
        %4954 = vdwg.mxu0
        %v4955 = vadd.f32 %v4790, %v4949
        %v4956 = vadd.f32 %v4793, %v4952
        %s4957 = scalar_lea.vmem %s7, 24
        %v4958 = vld [vmem:[%s4957] sm:$0xf]
        %v4959 = vld [vmem:[%s4957 + $0x4] sm:$0xf]
        %v4962 = vunpack.c.l.b16 %v4958
        %v4963 = vunpack.c.l.b16 %v4959
        %v4964 = vpack.c.b16 %v4963, %v4962
        %v4966 = vsel %vm4486, %v4964, 0
        %4968 = vmatprep.subr.bf16.mxu0 0
        %4969 = vmatpush1.bf16.msra.mxu0 %v4478
        %4970 = vmatprep.subr.bf16.mxu0 0
        %4971 = vmatpush1.bf16.msra.mxu0 0
        %4972 = vmatprep.subr.bf16.mxu0 0
        %4973 = vmatpush1.bf16.msra.mxu0 0
        %4974 = vmatprep.subr.bf16.mxu0 0
        %4975 = vmatpush1.bf16.msra.mxu0 0
        %4976 = vmatprep.subr.bf16.mxu0 0
        %4977 = vmatpush1.bf16.msra.mxu0 0
        %4978 = vmatprep.subr.bf16.mxu0 0
        %4979 = vmatpush1.bf16.msra.mxu0 0
        %4980 = vmatprep.subr.bf16.mxu0 0
        %4981 = vmatpush1.bf16.msra.mxu0 0
        %4982 = vmatprep.subr.bf16.mxu0 0
        %4983 = vmatpush1.bf16.msra.mxu0 0
        %4984 = vmatprep.subr.bf16.mxu0 0
        %4985 = vmatpush1.bf16.msra.mxu0 0
        %4986 = vmatprep.subr.bf16.mxu0 0
        %4987 = vmatpush1.bf16.msra.mxu0 0
        %4988 = vmatprep.subr.bf16.mxu0 0
        %4989 = vmatpush1.bf16.msra.mxu0 0
        %4990 = vmatprep.subr.bf16.mxu0 0
        %4991 = vmatpush1.bf16.msra.mxu0 0
        %4992 = vmatprep.subr.bf16.mxu0 0
        %4993 = vmatpush1.bf16.msra.mxu0 0
        %4994 = vmatprep.subr.bf16.mxu0 0
        %4995 = vmatpush1.bf16.msra.mxu0 0
        %4996 = vmatprep.subr.bf16.mxu0 0
        %4997 = vmatpush1.bf16.msra.mxu0 0
        %4998 = vmatprep.subr.bf16.mxu0 0
        %4999 = vmatpush1.bf16.msra.mxu0 0
        %5000 = vmatprep.mubr.bf16.mxu0 0
        %5001 = vmatmul.mubr.bf16.gmra.mrb[0].mxu0 %v4966
        %v5002 = vpop.f32.mrb[0].mxu0
        %v5003 = vadd.f32 0.0, %v5002
        %v5004 = vpop.f32.mrb[0].mxu0
        %v5005 = vpop.f32.mrb[0].mxu0
        %v5006 = vadd.f32 0.0, %v5005
        %v5007 = vpop.f32.mrb[0].mxu0
        %5008 = vdwg.mxu0
        %v5009 = vpack.c.bf16 %v5006, %v5003
        %s5010 = scalar_lea.vmem [#allocation7], 192
        %v5011 = vld [vmem:[%s5010] sm:$0xf]
        %v5012 = vld [vmem:[%s5010 + $0x4] sm:$0xf]
        %v5013 = vld [vmem:[%s5010 + $0x8] sm:$0xf]
        %v5014 = vld [vmem:[%s5010 + $0xc] sm:$0xf]
        %v5015 = vld [vmem:[%s5010 + $0x10] sm:$0xf]
        %v5016 = vld [vmem:[%s5010 + $0x14] sm:$0xf]
        %v5017 = vld [vmem:[%s5010 + $0x18] sm:$0xf]
        %v5018 = vld [vmem:[%s5010 + $0x1c] sm:$0xf]
        %v5019 = vld [vmem:[%s5010 + $0x20] sm:$0xf]
        %v5020 = vld [vmem:[%s5010 + $0x24] sm:$0xf]
        %v5021 = vld [vmem:[%s5010 + $0x28] sm:$0xf]
        %v5022 = vld [vmem:[%s5010 + $0x2c] sm:$0xf]
        %v5023 = vld [vmem:[%s5010 + $0x30] sm:$0xf]
        %v5024 = vld [vmem:[%s5010 + $0x34] sm:$0xf]
        %v5025 = vld [vmem:[%s5010 + $0x38] sm:$0xf]
        %v5026 = vld [vmem:[%s5010 + $0x3c] sm:$0xf]
        %v5043 = vunpack.c.l.b16 %v5011
        %v5044 = vunpack.c.l.b16 %v5012
        %v5045 = vunpack.c.l.b16 %v5013
        %v5046 = vunpack.c.l.b16 %v5014
        %v5047 = vunpack.c.l.b16 %v5015
        %v5048 = vunpack.c.l.b16 %v5016
        %v5049 = vunpack.c.l.b16 %v5017
        %v5050 = vunpack.c.l.b16 %v5018
        %v5051 = vunpack.c.l.b16 %v5019
        %v5052 = vunpack.c.l.b16 %v5020
        %v5053 = vunpack.c.l.b16 %v5021
        %v5054 = vunpack.c.l.b16 %v5022
        %v5055 = vunpack.c.l.b16 %v5023
        %v5056 = vunpack.c.l.b16 %v5024
        %v5057 = vunpack.c.l.b16 %v5025
        %v5058 = vunpack.c.l.b16 %v5026
        %v5059 = vpack.c.b16 %v5044, %v5043
        %v5060 = vpack.c.b16 %v5046, %v5045
        %v5061 = vpack.c.b16 %v5048, %v5047
        %v5062 = vpack.c.b16 %v5050, %v5049
        %v5063 = vpack.c.b16 %v5052, %v5051
        %v5064 = vpack.c.b16 %v5054, %v5053
        %v5065 = vpack.c.b16 %v5056, %v5055
        %v5066 = vpack.c.b16 %v5058, %v5057
        %5075 = vmatprep.subr.bf16.mxu0 0
        %5076 = vmatpush1.bf16.msra.mxu0 %v5059
        %5077 = vmatprep.subr.bf16.mxu0 0
        %5078 = vmatpush1.bf16.msra.mxu0 %v5060
        %5079 = vmatprep.subr.bf16.mxu0 0
        %5080 = vmatpush1.bf16.msra.mxu0 %v5061
        %5081 = vmatprep.subr.bf16.mxu0 0
        %5082 = vmatpush1.bf16.msra.mxu0 %v5062
        %5083 = vmatprep.subr.bf16.mxu0 0
        %5084 = vmatpush1.bf16.msra.mxu0 %v5063
        %5085 = vmatprep.subr.bf16.mxu0 0
        %5086 = vmatpush1.bf16.msra.mxu0 %v5064
        %5087 = vmatprep.subr.bf16.mxu0 0
        %5088 = vmatpush1.bf16.msra.mxu0 %v5065
        %5089 = vmatprep.subr.bf16.mxu0 0
        %5090 = vmatpush1.bf16.msra.mxu0 %v5066
        %5091 = vmatprep.subr.bf16.mxu0 0
        %5092 = vmatpush1.bf16.msra.mxu0 0
        %5093 = vmatprep.subr.bf16.mxu0 0
        %5094 = vmatpush1.bf16.msra.mxu0 0
        %5095 = vmatprep.subr.bf16.mxu0 0
        %5096 = vmatpush1.bf16.msra.mxu0 0
        %5097 = vmatprep.subr.bf16.mxu0 0
        %5098 = vmatpush1.bf16.msra.mxu0 0
        %5099 = vmatprep.subr.bf16.mxu0 0
        %5100 = vmatpush1.bf16.msra.mxu0 0
        %5101 = vmatprep.subr.bf16.mxu0 0
        %5102 = vmatpush1.bf16.msra.mxu0 0
        %5103 = vmatprep.subr.bf16.mxu0 0
        %5104 = vmatpush1.bf16.msra.mxu0 0
        %5105 = vmatprep.subr.bf16.mxu0 0
        %5106 = vmatpush1.bf16.msra.mxu0 0
        %5107 = vmatprep.mubr.bf16.mxu0 0
        %5108 = vmatmul.mubr.bf16.gmra.mrb[0].mxu0 %v5009
        %v5109 = vpop.f32.mrb[0].mxu0
        %v5110 = vadd.f32 0.0, %v5109
        %v5111 = vpop.f32.mrb[0].mxu0
        %v5112 = vpop.f32.mrb[0].mxu0
        %v5113 = vadd.f32 0.0, %v5112
        %v5114 = vpop.f32.mrb[0].mxu0
        %5115 = vdwg.mxu0
        %v5116 = vadd.f32 %v4955, %v5110
        %v5117 = vadd.f32 %v4956, %v5113
        %s5118 = scalar_lea.vmem %s7, 32
        %v5119 = vld [vmem:[%s5118] sm:$0xf]
        %v5120 = vld [vmem:[%s5118 + $0x4] sm:$0xf]
        %v5123 = vunpack.c.l.b16 %v5119
        %v5124 = vunpack.c.l.b16 %v5120
        %v5125 = vpack.c.b16 %v5124, %v5123
        %v5127 = vsel %vm4486, %v5125, 0
        %5129 = vmatprep.subr.bf16.mxu0 0
        %5130 = vmatpush1.bf16.msra.mxu0 %v4478
        %5131 = vmatprep.subr.bf16.mxu0 0
        %5132 = vmatpush1.bf16.msra.mxu0 0
        %5133 = vmatprep.subr.bf16.mxu0 0
        %5134 = vmatpush1.bf16.msra.mxu0 0
        %5135 = vmatprep.subr.bf16.mxu0 0
        %5136 = vmatpush1.bf16.msra.mxu0 0
        %5137 = vmatprep.subr.bf16.mxu0 0
        %5138 = vmatpush1.bf16.msra.mxu0 0
        %5139 = vmatprep.subr.bf16.mxu0 0
        %5140 = vmatpush1.bf16.msra.mxu0 0
        %5141 = vmatprep.subr.bf16.mxu0 0
        %5142 = vmatpush1.bf16.msra.mxu0 0
        %5143 = vmatprep.subr.bf16.mxu0 0
        %5144 = vmatpush1.bf16.msra.mxu0 0
        %5145 = vmatprep.subr.bf16.mxu0 0
        %5146 = vmatpush1.bf16.msra.mxu0 0
        %5147 = vmatprep.subr.bf16.mxu0 0
        %5148 = vmatpush1.bf16.msra.mxu0 0
        %5149 = vmatprep.subr.bf16.mxu0 0
        %5150 = vmatpush1.bf16.msra.mxu0 0
        %5151 = vmatprep.subr.bf16.mxu0 0
        %5152 = vmatpush1.bf16.msra.mxu0 0
        %5153 = vmatprep.subr.bf16.mxu0 0
        %5154 = vmatpush1.bf16.msra.mxu0 0
        %5155 = vmatprep.subr.bf16.mxu0 0
        %5156 = vmatpush1.bf16.msra.mxu0 0
        %5157 = vmatprep.subr.bf16.mxu0 0
        %5158 = vmatpush1.bf16.msra.mxu0 0
        %5159 = vmatprep.subr.bf16.mxu0 0
        %5160 = vmatpush1.bf16.msra.mxu0 0
        %5161 = vmatprep.mubr.bf16.mxu0 0
        %5162 = vmatmul.mubr.bf16.gmra.mrb[0].mxu0 %v5127
        %v5163 = vpop.f32.mrb[0].mxu0
        %v5164 = vadd.f32 0.0, %v5163
        %v5165 = vpop.f32.mrb[0].mxu0
        %v5166 = vpop.f32.mrb[0].mxu0
        %v5167 = vadd.f32 0.0, %v5166
        %v5168 = vpop.f32.mrb[0].mxu0
        %5169 = vdwg.mxu0
        %v5170 = vpack.c.bf16 %v5167, %v5164
        %s5171 = scalar_lea.vmem [#allocation7], 256
        %v5172 = vld [vmem:[%s5171] sm:$0xf]
        %v5173 = vld [vmem:[%s5171 + $0x4] sm:$0xf]
        %v5174 = vld [vmem:[%s5171 + $0x8] sm:$0xf]
        %v5175 = vld [vmem:[%s5171 + $0xc] sm:$0xf]
        %v5176 = vld [vmem:[%s5171 + $0x10] sm:$0xf]
        %v5177 = vld [vmem:[%s5171 + $0x14] sm:$0xf]
        %v5178 = vld [vmem:[%s5171 + $0x18] sm:$0xf]
        %v5179 = vld [vmem:[%s5171 + $0x1c] sm:$0xf]
        %v5180 = vld [vmem:[%s5171 + $0x20] sm:$0xf]
        %v5181 = vld [vmem:[%s5171 + $0x24] sm:$0xf]
        %v5182 = vld [vmem:[%s5171 + $0x28] sm:$0xf]
        %v5183 = vld [vmem:[%s5171 + $0x2c] sm:$0xf]
        %v5184 = vld [vmem:[%s5171 + $0x30] sm:$0xf]
        %v5185 = vld [vmem:[%s5171 + $0x34] sm:$0xf]
        %v5186 = vld [vmem:[%s5171 + $0x38] sm:$0xf]
        %v5187 = vld [vmem:[%s5171 + $0x3c] sm:$0xf]
        %v5204 = vunpack.c.l.b16 %v5172
        %v5205 = vunpack.c.l.b16 %v5173
        %v5206 = vunpack.c.l.b16 %v5174
        %v5207 = vunpack.c.l.b16 %v5175
        %v5208 = vunpack.c.l.b16 %v5176
        %v5209 = vunpack.c.l.b16 %v5177
        %v5210 = vunpack.c.l.b16 %v5178
        %v5211 = vunpack.c.l.b16 %v5179
        %v5212 = vunpack.c.l.b16 %v5180
        %v5213 = vunpack.c.l.b16 %v5181
        %v5214 = vunpack.c.l.b16 %v5182
        %v5215 = vunpack.c.l.b16 %v5183
        %v5216 = vunpack.c.l.b16 %v5184
        %v5217 = vunpack.c.l.b16 %v5185
        %v5218 = vunpack.c.l.b16 %v5186
        %v5219 = vunpack.c.l.b16 %v5187
        %v5220 = vpack.c.b16 %v5205, %v5204
        %v5221 = vpack.c.b16 %v5207, %v5206
        %v5222 = vpack.c.b16 %v5209, %v5208
        %v5223 = vpack.c.b16 %v5211, %v5210
        %v5224 = vpack.c.b16 %v5213, %v5212
        %v5225 = vpack.c.b16 %v5215, %v5214
        %v5226 = vpack.c.b16 %v5217, %v5216
        %v5227 = vpack.c.b16 %v5219, %v5218
        %5236 = vmatprep.subr.bf16.mxu0 0
        %5237 = vmatpush1.bf16.msra.mxu0 %v5220
        %5238 = vmatprep.subr.bf16.mxu0 0
        %5239 = vmatpush1.bf16.msra.mxu0 %v5221
        %5240 = vmatprep.subr.bf16.mxu0 0
        %5241 = vmatpush1.bf16.msra.mxu0 %v5222
        %5242 = vmatprep.subr.bf16.mxu0 0
        %5243 = vmatpush1.bf16.msra.mxu0 %v5223
        %5244 = vmatprep.subr.bf16.mxu0 0
        %5245 = vmatpush1.bf16.msra.mxu0 %v5224
        %5246 = vmatprep.subr.bf16.mxu0 0
        %5247 = vmatpush1.bf16.msra.mxu0 %v5225
        %5248 = vmatprep.subr.bf16.mxu0 0
        %5249 = vmatpush1.bf16.msra.mxu0 %v5226
        %5250 = vmatprep.subr.bf16.mxu0 0
        %5251 = vmatpush1.bf16.msra.mxu0 %v5227
        %5252 = vmatprep.subr.bf16.mxu0 0
        %5253 = vmatpush1.bf16.msra.mxu0 0
        %5254 = vmatprep.subr.bf16.mxu0 0
        %5255 = vmatpush1.bf16.msra.mxu0 0
        %5256 = vmatprep.subr.bf16.mxu0 0
        %5257 = vmatpush1.bf16.msra.mxu0 0
        %5258 = vmatprep.subr.bf16.mxu0 0
        %5259 = vmatpush1.bf16.msra.mxu0 0
        %5260 = vmatprep.subr.bf16.mxu0 0
        %5261 = vmatpush1.bf16.msra.mxu0 0
        %5262 = vmatprep.subr.bf16.mxu0 0
        %5263 = vmatpush1.bf16.msra.mxu0 0
        %5264 = vmatprep.subr.bf16.mxu0 0
        %5265 = vmatpush1.bf16.msra.mxu0 0
        %5266 = vmatprep.subr.bf16.mxu0 0
        %5267 = vmatpush1.bf16.msra.mxu0 0
        %5268 = vmatprep.mubr.bf16.mxu0 0
        %5269 = vmatmul.mubr.bf16.gmra.mrb[0].mxu0 %v5170
        %v5270 = vpop.f32.mrb[0].mxu0
        %v5271 = vadd.f32 0.0, %v5270
        %v5272 = vpop.f32.mrb[0].mxu0
        %v5273 = vpop.f32.mrb[0].mxu0
        %v5274 = vadd.f32 0.0, %v5273
        %v5275 = vpop.f32.mrb[0].mxu0
        %5276 = vdwg.mxu0
        %v5277 = vadd.f32 %v5116, %v5271
        %v5278 = vadd.f32 %v5117, %v5274
        %s5279 = scalar_lea.vmem %s7, 40
        %v5280 = vld [vmem:[%s5279] sm:$0xf]
        %v5281 = vld [vmem:[%s5279 + $0x4] sm:$0xf]
        %v5284 = vunpack.c.l.b16 %v5280
        %v5285 = vunpack.c.l.b16 %v5281
        %v5286 = vpack.c.b16 %v5285, %v5284
        %v5288 = vsel %vm4486, %v5286, 0
        %5290 = vmatprep.subr.bf16.mxu0 0
        %5291 = vmatpush1.bf16.msra.mxu0 %v4478
        %5292 = vmatprep.subr.bf16.mxu0 0
        %5293 = vmatpush1.bf16.msra.mxu0 0
        %5294 = vmatprep.subr.bf16.mxu0 0
        %5295 = vmatpush1.bf16.msra.mxu0 0
        %5296 = vmatprep.subr.bf16.mxu0 0
        %5297 = vmatpush1.bf16.msra.mxu0 0
        %5298 = vmatprep.subr.bf16.mxu0 0
        %5299 = vmatpush1.bf16.msra.mxu0 0
        %5300 = vmatprep.subr.bf16.mxu0 0
        %5301 = vmatpush1.bf16.msra.mxu0 0
        %5302 = vmatprep.subr.bf16.mxu0 0
        %5303 = vmatpush1.bf16.msra.mxu0 0
        %5304 = vmatprep.subr.bf16.mxu0 0
        %5305 = vmatpush1.bf16.msra.mxu0 0
        %5306 = vmatprep.subr.bf16.mxu0 0
        %5307 = vmatpush1.bf16.msra.mxu0 0
        %5308 = vmatprep.subr.bf16.mxu0 0
        %5309 = vmatpush1.bf16.msra.mxu0 0
        %5310 = vmatprep.subr.bf16.mxu0 0
        %5311 = vmatpush1.bf16.msra.mxu0 0
        %5312 = vmatprep.subr.bf16.mxu0 0
        %5313 = vmatpush1.bf16.msra.mxu0 0
        %5314 = vmatprep.subr.bf16.mxu0 0
        %5315 = vmatpush1.bf16.msra.mxu0 0
        %5316 = vmatprep.subr.bf16.mxu0 0
        %5317 = vmatpush1.bf16.msra.mxu0 0
        %5318 = vmatprep.subr.bf16.mxu0 0
        %5319 = vmatpush1.bf16.msra.mxu0 0
        %5320 = vmatprep.subr.bf16.mxu0 0
        %5321 = vmatpush1.bf16.msra.mxu0 0
        %5322 = vmatprep.mubr.bf16.mxu0 0
        %5323 = vmatmul.mubr.bf16.gmra.mrb[0].mxu0 %v5288
        %v5324 = vpop.f32.mrb[0].mxu0
        %v5325 = vadd.f32 0.0, %v5324
        %v5326 = vpop.f32.mrb[0].mxu0
        %v5327 = vpop.f32.mrb[0].mxu0
        %v5328 = vadd.f32 0.0, %v5327
        %v5329 = vpop.f32.mrb[0].mxu0
        %5330 = vdwg.mxu0
        %v5331 = vpack.c.bf16 %v5328, %v5325
        %s5332 = scalar_lea.vmem [#allocation7], 320
        %v5333 = vld [vmem:[%s5332] sm:$0xf]
        %v5334 = vld [vmem:[%s5332 + $0x4] sm:$0xf]
        %v5335 = vld [vmem:[%s5332 + $0x8] sm:$0xf]
        %v5336 = vld [vmem:[%s5332 + $0xc] sm:$0xf]
        %v5337 = vld [vmem:[%s5332 + $0x10] sm:$0xf]
        %v5338 = vld [vmem:[%s5332 + $0x14] sm:$0xf]
        %v5339 = vld [vmem:[%s5332 + $0x18] sm:$0xf]
        %v5340 = vld [vmem:[%s5332 + $0x1c] sm:$0xf]
        %v5341 = vld [vmem:[%s5332 + $0x20] sm:$0xf]
        %v5342 = vld [vmem:[%s5332 + $0x24] sm:$0xf]
        %v5343 = vld [vmem:[%s5332 + $0x28] sm:$0xf]
        %v5344 = vld [vmem:[%s5332 + $0x2c] sm:$0xf]
        %v5345 = vld [vmem:[%s5332 + $0x30] sm:$0xf]
        %v5346 = vld [vmem:[%s5332 + $0x34] sm:$0xf]
        %v5347 = vld [vmem:[%s5332 + $0x38] sm:$0xf]
        %v5348 = vld [vmem:[%s5332 + $0x3c] sm:$0xf]
        %v5365 = vunpack.c.l.b16 %v5333
        %v5366 = vunpack.c.l.b16 %v5334
        %v5367 = vunpack.c.l.b16 %v5335
        %v5368 = vunpack.c.l.b16 %v5336
        %v5369 = vunpack.c.l.b16 %v5337
        %v5370 = vunpack.c.l.b16 %v5338
        %v5371 = vunpack.c.l.b16 %v5339
        %v5372 = vunpack.c.l.b16 %v5340
        %v5373 = vunpack.c.l.b16 %v5341
        %v5374 = vunpack.c.l.b16 %v5342
        %v5375 = vunpack.c.l.b16 %v5343
        %v5376 = vunpack.c.l.b16 %v5344
        %v5377 = vunpack.c.l.b16 %v5345
        %v5378 = vunpack.c.l.b16 %v5346
        %v5379 = vunpack.c.l.b16 %v5347
        %v5380 = vunpack.c.l.b16 %v5348
        %v5381 = vpack.c.b16 %v5366, %v5365
        %v5382 = vpack.c.b16 %v5368, %v5367
        %v5383 = vpack.c.b16 %v5370, %v5369
        %v5384 = vpack.c.b16 %v5372, %v5371
        %v5385 = vpack.c.b16 %v5374, %v5373
        %v5386 = vpack.c.b16 %v5376, %v5375
        %v5387 = vpack.c.b16 %v5378, %v5377
        %v5388 = vpack.c.b16 %v5380, %v5379
        %5397 = vmatprep.subr.bf16.mxu0 0
        %5398 = vmatpush1.bf16.msra.mxu0 %v5381
        %5399 = vmatprep.subr.bf16.mxu0 0
        %5400 = vmatpush1.bf16.msra.mxu0 %v5382
        %5401 = vmatprep.subr.bf16.mxu0 0
        %5402 = vmatpush1.bf16.msra.mxu0 %v5383
        %5403 = vmatprep.subr.bf16.mxu0 0
        %5404 = vmatpush1.bf16.msra.mxu0 %v5384
        %5405 = vmatprep.subr.bf16.mxu0 0
        %5406 = vmatpush1.bf16.msra.mxu0 %v5385
        %5407 = vmatprep.subr.bf16.mxu0 0
        %5408 = vmatpush1.bf16.msra.mxu0 %v5386
        %5409 = vmatprep.subr.bf16.mxu0 0
        %5410 = vmatpush1.bf16.msra.mxu0 %v5387
        %5411 = vmatprep.subr.bf16.mxu0 0
        %5412 = vmatpush1.bf16.msra.mxu0 %v5388
        %5413 = vmatprep.subr.bf16.mxu0 0
        %5414 = vmatpush1.bf16.msra.mxu0 0
        %5415 = vmatprep.subr.bf16.mxu0 0
        %5416 = vmatpush1.bf16.msra.mxu0 0
        %5417 = vmatprep.subr.bf16.mxu0 0
        %5418 = vmatpush1.bf16.msra.mxu0 0
        %5419 = vmatprep.subr.bf16.mxu0 0
        %5420 = vmatpush1.bf16.msra.mxu0 0
        %5421 = vmatprep.subr.bf16.mxu0 0
        %5422 = vmatpush1.bf16.msra.mxu0 0
        %5423 = vmatprep.subr.bf16.mxu0 0
        %5424 = vmatpush1.bf16.msra.mxu0 0
        %5425 = vmatprep.subr.bf16.mxu0 0
        %5426 = vmatpush1.bf16.msra.mxu0 0
        %5427 = vmatprep.subr.bf16.mxu0 0
        %5428 = vmatpush1.bf16.msra.mxu0 0
        %5429 = vmatprep.mubr.bf16.mxu0 0
        %5430 = vmatmul.mubr.bf16.gmra.mrb[0].mxu0 %v5331
        %v5431 = vpop.f32.mrb[0].mxu0
        %v5432 = vadd.f32 0.0, %v5431
        %v5433 = vpop.f32.mrb[0].mxu0
        %v5434 = vpop.f32.mrb[0].mxu0
        %v5435 = vadd.f32 0.0, %v5434
        %v5436 = vpop.f32.mrb[0].mxu0
        %5437 = vdwg.mxu0
        %v5438 = vadd.f32 %v5277, %v5432
        %v5439 = vadd.f32 %v5278, %v5435
        %s5440 = scalar_lea.vmem %s7, 48
        %v5441 = vld [vmem:[%s5440] sm:$0xf]
        %v5442 = vld [vmem:[%s5440 + $0x4] sm:$0xf]
        %v5445 = vunpack.c.l.b16 %v5441
        %v5446 = vunpack.c.l.b16 %v5442
        %v5447 = vpack.c.b16 %v5446, %v5445
        %v5449 = vsel %vm4486, %v5447, 0
        %5451 = vmatprep.subr.bf16.mxu0 0
        %5452 = vmatpush1.bf16.msra.mxu0 %v4478
        %5453 = vmatprep.subr.bf16.mxu0 0
        %5454 = vmatpush1.bf16.msra.mxu0 0
        %5455 = vmatprep.subr.bf16.mxu0 0
        %5456 = vmatpush1.bf16.msra.mxu0 0
        %5457 = vmatprep.subr.bf16.mxu0 0
        %5458 = vmatpush1.bf16.msra.mxu0 0
        %5459 = vmatprep.subr.bf16.mxu0 0
        %5460 = vmatpush1.bf16.msra.mxu0 0
        %5461 = vmatprep.subr.bf16.mxu0 0
        %5462 = vmatpush1.bf16.msra.mxu0 0
        %5463 = vmatprep.subr.bf16.mxu0 0
        %5464 = vmatpush1.bf16.msra.mxu0 0
        %5465 = vmatprep.subr.bf16.mxu0 0
        %5466 = vmatpush1.bf16.msra.mxu0 0
        %5467 = vmatprep.subr.bf16.mxu0 0
        %5468 = vmatpush1.bf16.msra.mxu0 0
        %5469 = vmatprep.subr.bf16.mxu0 0
        %5470 = vmatpush1.bf16.msra.mxu0 0
        %5471 = vmatprep.subr.bf16.mxu0 0
        %5472 = vmatpush1.bf16.msra.mxu0 0
        %5473 = vmatprep.subr.bf16.mxu0 0
        %5474 = vmatpush1.bf16.msra.mxu0 0
        %5475 = vmatprep.subr.bf16.mxu0 0
        %5476 = vmatpush1.bf16.msra.mxu0 0
        %5477 = vmatprep.subr.bf16.mxu0 0
        %5478 = vmatpush1.bf16.msra.mxu0 0
        %5479 = vmatprep.subr.bf16.mxu0 0
        %5480 = vmatpush1.bf16.msra.mxu0 0
        %5481 = vmatprep.subr.bf16.mxu0 0
        %5482 = vmatpush1.bf16.msra.mxu0 0
        %5483 = vmatprep.mubr.bf16.mxu0 0
        %5484 = vmatmul.mubr.bf16.gmra.mrb[0].mxu0 %v5449
        %v5485 = vpop.f32.mrb[0].mxu0
        %v5486 = vadd.f32 0.0, %v5485
        %v5487 = vpop.f32.mrb[0].mxu0
        %v5488 = vpop.f32.mrb[0].mxu0
        %v5489 = vadd.f32 0.0, %v5488
        %v5490 = vpop.f32.mrb[0].mxu0
        %5491 = vdwg.mxu0
        %v5492 = vpack.c.bf16 %v5489, %v5486
        %s5493 = scalar_lea.vmem [#allocation7], 384
        %v5494 = vld [vmem:[%s5493] sm:$0xf]
        %v5495 = vld [vmem:[%s5493 + $0x4] sm:$0xf]
        %v5496 = vld [vmem:[%s5493 + $0x8] sm:$0xf]
        %v5497 = vld [vmem:[%s5493 + $0xc] sm:$0xf]
        %v5498 = vld [vmem:[%s5493 + $0x10] sm:$0xf]
        %v5499 = vld [vmem:[%s5493 + $0x14] sm:$0xf]
        %v5500 = vld [vmem:[%s5493 + $0x18] sm:$0xf]
        %v5501 = vld [vmem:[%s5493 + $0x1c] sm:$0xf]
        %v5502 = vld [vmem:[%s5493 + $0x20] sm:$0xf]
        %v5503 = vld [vmem:[%s5493 + $0x24] sm:$0xf]
        %v5504 = vld [vmem:[%s5493 + $0x28] sm:$0xf]
        %v5505 = vld [vmem:[%s5493 + $0x2c] sm:$0xf]
        %v5506 = vld [vmem:[%s5493 + $0x30] sm:$0xf]
        %v5507 = vld [vmem:[%s5493 + $0x34] sm:$0xf]
        %v5508 = vld [vmem:[%s5493 + $0x38] sm:$0xf]
        %v5509 = vld [vmem:[%s5493 + $0x3c] sm:$0xf]
        %v5526 = vunpack.c.l.b16 %v5494
        %v5527 = vunpack.c.l.b16 %v5495
        %v5528 = vunpack.c.l.b16 %v5496
        %v5529 = vunpack.c.l.b16 %v5497
        %v5530 = vunpack.c.l.b16 %v5498
        %v5531 = vunpack.c.l.b16 %v5499
        %v5532 = vunpack.c.l.b16 %v5500
        %v5533 = vunpack.c.l.b16 %v5501
        %v5534 = vunpack.c.l.b16 %v5502
        %v5535 = vunpack.c.l.b16 %v5503
        %v5536 = vunpack.c.l.b16 %v5504
        %v5537 = vunpack.c.l.b16 %v5505
        %v5538 = vunpack.c.l.b16 %v5506
        %v5539 = vunpack.c.l.b16 %v5507
        %v5540 = vunpack.c.l.b16 %v5508
        %v5541 = vunpack.c.l.b16 %v5509
        %v5542 = vpack.c.b16 %v5527, %v5526
        %v5543 = vpack.c.b16 %v5529, %v5528
        %v5544 = vpack.c.b16 %v5531, %v5530
        %v5545 = vpack.c.b16 %v5533, %v5532
        %v5546 = vpack.c.b16 %v5535, %v5534
        %v5547 = vpack.c.b16 %v5537, %v5536
        %v5548 = vpack.c.b16 %v5539, %v5538
        %v5549 = vpack.c.b16 %v5541, %v5540
        %5558 = vmatprep.subr.bf16.mxu0 0
        %5559 = vmatpush1.bf16.msra.mxu0 %v5542
        %5560 = vmatprep.subr.bf16.mxu0 0
        %5561 = vmatpush1.bf16.msra.mxu0 %v5543
        %5562 = vmatprep.subr.bf16.mxu0 0
        %5563 = vmatpush1.bf16.msra.mxu0 %v5544
        %5564 = vmatprep.subr.bf16.mxu0 0
        %5565 = vmatpush1.bf16.msra.mxu0 %v5545
        %5566 = vmatprep.subr.bf16.mxu0 0
        %5567 = vmatpush1.bf16.msra.mxu0 %v5546
        %5568 = vmatprep.subr.bf16.mxu0 0
        %5569 = vmatpush1.bf16.msra.mxu0 %v5547
        %5570 = vmatprep.subr.bf16.mxu0 0
        %5571 = vmatpush1.bf16.msra.mxu0 %v5548
        %5572 = vmatprep.subr.bf16.mxu0 0
        %5573 = vmatpush1.bf16.msra.mxu0 %v5549
        %5574 = vmatprep.subr.bf16.mxu0 0
        %5575 = vmatpush1.bf16.msra.mxu0 0
        %5576 = vmatprep.subr.bf16.mxu0 0
        %5577 = vmatpush1.bf16.msra.mxu0 0
        %5578 = vmatprep.subr.bf16.mxu0 0
        %5579 = vmatpush1.bf16.msra.mxu0 0
        %5580 = vmatprep.subr.bf16.mxu0 0
        %5581 = vmatpush1.bf16.msra.mxu0 0
        %5582 = vmatprep.subr.bf16.mxu0 0
        %5583 = vmatpush1.bf16.msra.mxu0 0
        %5584 = vmatprep.subr.bf16.mxu0 0
        %5585 = vmatpush1.bf16.msra.mxu0 0
        %5586 = vmatprep.subr.bf16.mxu0 0
        %5587 = vmatpush1.bf16.msra.mxu0 0
        %5588 = vmatprep.subr.bf16.mxu0 0
        %5589 = vmatpush1.bf16.msra.mxu0 0
        %5590 = vmatprep.mubr.bf16.mxu0 0
        %5591 = vmatmul.mubr.bf16.gmra.mrb[0].mxu0 %v5492
        %v5592 = vpop.f32.mrb[0].mxu0
        %v5593 = vadd.f32 0.0, %v5592
        %v5594 = vpop.f32.mrb[0].mxu0
        %v5595 = vpop.f32.mrb[0].mxu0
        %v5596 = vadd.f32 0.0, %v5595
        %v5597 = vpop.f32.mrb[0].mxu0
        %5598 = vdwg.mxu0
        %v5599 = vadd.f32 %v5438, %v5593
        %v5600 = vadd.f32 %v5439, %v5596
        %s5601 = scalar_lea.vmem %s7, 56
        %v5602 = vld [vmem:[%s5601] sm:$0xf]
        %v5603 = vld [vmem:[%s5601 + $0x4] sm:$0xf]
        %v5606 = vunpack.c.l.b16 %v5602
        %v5607 = vunpack.c.l.b16 %v5603
        %v5608 = vpack.c.b16 %v5607, %v5606
        %v5610 = vsel %vm4486, %v5608, 0
        %5612 = vmatprep.subr.bf16.mxu0 0
        %5613 = vmatpush1.bf16.msra.mxu0 %v4478
        %5614 = vmatprep.subr.bf16.mxu0 0
        %5615 = vmatpush1.bf16.msra.mxu0 0
        %5616 = vmatprep.subr.bf16.mxu0 0
        %5617 = vmatpush1.bf16.msra.mxu0 0
        %5618 = vmatprep.subr.bf16.mxu0 0
        %5619 = vmatpush1.bf16.msra.mxu0 0
        %5620 = vmatprep.subr.bf16.mxu0 0
        %5621 = vmatpush1.bf16.msra.mxu0 0
        %5622 = vmatprep.subr.bf16.mxu0 0
        %5623 = vmatpush1.bf16.msra.mxu0 0
        %5624 = vmatprep.subr.bf16.mxu0 0
        %5625 = vmatpush1.bf16.msra.mxu0 0
        %5626 = vmatprep.subr.bf16.mxu0 0
        %5627 = vmatpush1.bf16.msra.mxu0 0
        %5628 = vmatprep.subr.bf16.mxu0 0
        %5629 = vmatpush1.bf16.msra.mxu0 0
        %5630 = vmatprep.subr.bf16.mxu0 0
        %5631 = vmatpush1.bf16.msra.mxu0 0
        %5632 = vmatprep.subr.bf16.mxu0 0
        %5633 = vmatpush1.bf16.msra.mxu0 0
        %5634 = vmatprep.subr.bf16.mxu0 0
        %5635 = vmatpush1.bf16.msra.mxu0 0
        %5636 = vmatprep.subr.bf16.mxu0 0
        %5637 = vmatpush1.bf16.msra.mxu0 0
        %5638 = vmatprep.subr.bf16.mxu0 0
        %5639 = vmatpush1.bf16.msra.mxu0 0
        %5640 = vmatprep.subr.bf16.mxu0 0
        %5641 = vmatpush1.bf16.msra.mxu0 0
        %5642 = vmatprep.subr.bf16.mxu0 0
        %5643 = vmatpush1.bf16.msra.mxu0 0
        %5644 = vmatprep.mubr.bf16.mxu0 0
        %5645 = vmatmul.mubr.bf16.gmra.mrb[0].mxu0 %v5610
        %v5646 = vpop.f32.mrb[0].mxu0
        %v5647 = vadd.f32 0.0, %v5646
        %v5648 = vpop.f32.mrb[0].mxu0
        %v5649 = vpop.f32.mrb[0].mxu0
        %v5650 = vadd.f32 0.0, %v5649
        %v5651 = vpop.f32.mrb[0].mxu0
        %5652 = vdwg.mxu0
        %v5653 = vpack.c.bf16 %v5650, %v5647
        %s5654 = scalar_lea.vmem [#allocation7], 448
        %v5655 = vld [vmem:[%s5654] sm:$0xf]
        %v5656 = vld [vmem:[%s5654 + $0x4] sm:$0xf]
        %v5657 = vld [vmem:[%s5654 + $0x8] sm:$0xf]
        %v5658 = vld [vmem:[%s5654 + $0xc] sm:$0xf]
        %v5659 = vld [vmem:[%s5654 + $0x10] sm:$0xf]
        %v5660 = vld [vmem:[%s5654 + $0x14] sm:$0xf]
        %v5661 = vld [vmem:[%s5654 + $0x18] sm:$0xf]
        %v5662 = vld [vmem:[%s5654 + $0x1c] sm:$0xf]
        %v5663 = vld [vmem:[%s5654 + $0x20] sm:$0xf]
        %v5664 = vld [vmem:[%s5654 + $0x24] sm:$0xf]
        %v5665 = vld [vmem:[%s5654 + $0x28] sm:$0xf]
        %v5666 = vld [vmem:[%s5654 + $0x2c] sm:$0xf]
        %v5667 = vld [vmem:[%s5654 + $0x30] sm:$0xf]
        %v5668 = vld [vmem:[%s5654 + $0x34] sm:$0xf]
        %v5669 = vld [vmem:[%s5654 + $0x38] sm:$0xf]
        %v5670 = vld [vmem:[%s5654 + $0x3c] sm:$0xf]
        %v5687 = vunpack.c.l.b16 %v5655
        %v5688 = vunpack.c.l.b16 %v5656
        %v5689 = vunpack.c.l.b16 %v5657
        %v5690 = vunpack.c.l.b16 %v5658
        %v5691 = vunpack.c.l.b16 %v5659
        %v5692 = vunpack.c.l.b16 %v5660
        %v5693 = vunpack.c.l.b16 %v5661
        %v5694 = vunpack.c.l.b16 %v5662
        %v5695 = vunpack.c.l.b16 %v5663
        %v5696 = vunpack.c.l.b16 %v5664
        %v5697 = vunpack.c.l.b16 %v5665
        %v5698 = vunpack.c.l.b16 %v5666
        %v5699 = vunpack.c.l.b16 %v5667
        %v5700 = vunpack.c.l.b16 %v5668
        %v5701 = vunpack.c.l.b16 %v5669
        %v5702 = vunpack.c.l.b16 %v5670
        %v5703 = vpack.c.b16 %v5688, %v5687
        %v5704 = vpack.c.b16 %v5690, %v5689
        %v5705 = vpack.c.b16 %v5692, %v5691
        %v5706 = vpack.c.b16 %v5694, %v5693
        %v5707 = vpack.c.b16 %v5696, %v5695
        %v5708 = vpack.c.b16 %v5698, %v5697
        %v5709 = vpack.c.b16 %v5700, %v5699
        %v5710 = vpack.c.b16 %v5702, %v5701
        %5719 = vmatprep.subr.bf16.mxu0 0
        %5720 = vmatpush1.bf16.msra.mxu0 %v5703
        %5721 = vmatprep.subr.bf16.mxu0 0
        %5722 = vmatpush1.bf16.msra.mxu0 %v5704
        %5723 = vmatprep.subr.bf16.mxu0 0
        %5724 = vmatpush1.bf16.msra.mxu0 %v5705
        %5725 = vmatprep.subr.bf16.mxu0 0
        %5726 = vmatpush1.bf16.msra.mxu0 %v5706
        %5727 = vmatprep.subr.bf16.mxu0 0
        %5728 = vmatpush1.bf16.msra.mxu0 %v5707
        %5729 = vmatprep.subr.bf16.mxu0 0
        %5730 = vmatpush1.bf16.msra.mxu0 %v5708
        %5731 = vmatprep.subr.bf16.mxu0 0
        %5732 = vmatpush1.bf16.msra.mxu0 %v5709
        %5733 = vmatprep.subr.bf16.mxu0 0
        %5734 = vmatpush1.bf16.msra.mxu0 %v5710
        %5735 = vmatprep.subr.bf16.mxu0 0
        %5736 = vmatpush1.bf16.msra.mxu0 0
        %5737 = vmatprep.subr.bf16.mxu0 0
        %5738 = vmatpush1.bf16.msra.mxu0 0
        %5739 = vmatprep.subr.bf16.mxu0 0
        %5740 = vmatpush1.bf16.msra.mxu0 0
        %5741 = vmatprep.subr.bf16.mxu0 0
        %5742 = vmatpush1.bf16.msra.mxu0 0
        %5743 = vmatprep.subr.bf16.mxu0 0
        %5744 = vmatpush1.bf16.msra.mxu0 0
        %5745 = vmatprep.subr.bf16.mxu0 0
        %5746 = vmatpush1.bf16.msra.mxu0 0
        %5747 = vmatprep.subr.bf16.mxu0 0
        %5748 = vmatpush1.bf16.msra.mxu0 0
        %5749 = vmatprep.subr.bf16.mxu0 0
        %5750 = vmatpush1.bf16.msra.mxu0 0
        %5751 = vmatprep.mubr.bf16.mxu0 0
        %5752 = vmatmul.mubr.bf16.gmra.mrb[0].mxu0 %v5653
        %v5753 = vpop.f32.mrb[0].mxu0
        %v5754 = vadd.f32 0.0, %v5753
        %v5755 = vpop.f32.mrb[0].mxu0
        %v5756 = vpop.f32.mrb[0].mxu0
        %v5757 = vadd.f32 0.0, %v5756
        %v5758 = vpop.f32.mrb[0].mxu0
        %5759 = vdwg.mxu0
        %v5760 = vadd.f32 %v5599, %v5754
        %v5761 = vadd.f32 %v5600, %v5757
        %s5762 = scalar_lea.vmem %s7, 64
        %v5763 = vld [vmem:[%s5762] sm:$0xf]
        %v5764 = vld [vmem:[%s5762 + $0x4] sm:$0xf]
        %v5767 = vunpack.c.l.b16 %v5763
        %v5768 = vunpack.c.l.b16 %v5764
        %v5769 = vpack.c.b16 %v5768, %v5767
        %v5771 = vsel %vm4486, %v5769, 0
        %5773 = vmatprep.subr.bf16.mxu0 0
        %5774 = vmatpush1.bf16.msra.mxu0 %v4478
        %5775 = vmatprep.subr.bf16.mxu0 0
        %5776 = vmatpush1.bf16.msra.mxu0 0
        %5777 = vmatprep.subr.bf16.mxu0 0
        %5778 = vmatpush1.bf16.msra.mxu0 0
        %5779 = vmatprep.subr.bf16.mxu0 0
        %5780 = vmatpush1.bf16.msra.mxu0 0
        %5781 = vmatprep.subr.bf16.mxu0 0
        %5782 = vmatpush1.bf16.msra.mxu0 0
        %5783 = vmatprep.subr.bf16.mxu0 0
        %5784 = vmatpush1.bf16.msra.mxu0 0
        %5785 = vmatprep.subr.bf16.mxu0 0
        %5786 = vmatpush1.bf16.msra.mxu0 0
        %5787 = vmatprep.subr.bf16.mxu0 0
        %5788 = vmatpush1.bf16.msra.mxu0 0
        %5789 = vmatprep.subr.bf16.mxu0 0
        %5790 = vmatpush1.bf16.msra.mxu0 0
        %5791 = vmatprep.subr.bf16.mxu0 0
        %5792 = vmatpush1.bf16.msra.mxu0 0
        %5793 = vmatprep.subr.bf16.mxu0 0
        %5794 = vmatpush1.bf16.msra.mxu0 0
        %5795 = vmatprep.subr.bf16.mxu0 0
        %5796 = vmatpush1.bf16.msra.mxu0 0
        %5797 = vmatprep.subr.bf16.mxu0 0
        %5798 = vmatpush1.bf16.msra.mxu0 0
        %5799 = vmatprep.subr.bf16.mxu0 0
        %5800 = vmatpush1.bf16.msra.mxu0 0
        %5801 = vmatprep.subr.bf16.mxu0 0
        %5802 = vmatpush1.bf16.msra.mxu0 0
        %5803 = vmatprep.subr.bf16.mxu0 0
        %5804 = vmatpush1.bf16.msra.mxu0 0
        %5805 = vmatprep.mubr.bf16.mxu0 0
        %5806 = vmatmul.mubr.bf16.gmra.mrb[0].mxu0 %v5771
        %v5807 = vpop.f32.mrb[0].mxu0
        %v5808 = vadd.f32 0.0, %v5807
        %v5809 = vpop.f32.mrb[0].mxu0
        %v5810 = vpop.f32.mrb[0].mxu0
        %v5811 = vadd.f32 0.0, %v5810
        %v5812 = vpop.f32.mrb[0].mxu0
        %5813 = vdwg.mxu0
        %v5814 = vpack.c.bf16 %v5811, %v5808
        %s5815 = scalar_lea.vmem [#allocation7], 512
        %v5816 = vld [vmem:[%s5815] sm:$0xf]
        %v5817 = vld [vmem:[%s5815 + $0x4] sm:$0xf]
        %v5818 = vld [vmem:[%s5815 + $0x8] sm:$0xf]
        %v5819 = vld [vmem:[%s5815 + $0xc] sm:$0xf]
        %v5820 = vld [vmem:[%s5815 + $0x10] sm:$0xf]
        %v5821 = vld [vmem:[%s5815 + $0x14] sm:$0xf]
        %v5822 = vld [vmem:[%s5815 + $0x18] sm:$0xf]
        %v5823 = vld [vmem:[%s5815 + $0x1c] sm:$0xf]
        %v5824 = vld [vmem:[%s5815 + $0x20] sm:$0xf]
        %v5825 = vld [vmem:[%s5815 + $0x24] sm:$0xf]
        %v5826 = vld [vmem:[%s5815 + $0x28] sm:$0xf]
        %v5827 = vld [vmem:[%s5815 + $0x2c] sm:$0xf]
        %v5828 = vld [vmem:[%s5815 + $0x30] sm:$0xf]
        %v5829 = vld [vmem:[%s5815 + $0x34] sm:$0xf]
        %v5830 = vld [vmem:[%s5815 + $0x38] sm:$0xf]
        %v5831 = vld [vmem:[%s5815 + $0x3c] sm:$0xf]
        %v5848 = vunpack.c.l.b16 %v5816
        %v5849 = vunpack.c.l.b16 %v5817
        %v5850 = vunpack.c.l.b16 %v5818
        %v5851 = vunpack.c.l.b16 %v5819
        %v5852 = vunpack.c.l.b16 %v5820
        %v5853 = vunpack.c.l.b16 %v5821
        %v5854 = vunpack.c.l.b16 %v5822
        %v5855 = vunpack.c.l.b16 %v5823
        %v5856 = vunpack.c.l.b16 %v5824
        %v5857 = vunpack.c.l.b16 %v5825
        %v5858 = vunpack.c.l.b16 %v5826
        %v5859 = vunpack.c.l.b16 %v5827
        %v5860 = vunpack.c.l.b16 %v5828
        %v5861 = vunpack.c.l.b16 %v5829
        %v5862 = vunpack.c.l.b16 %v5830
        %v5863 = vunpack.c.l.b16 %v5831
        %v5864 = vpack.c.b16 %v5849, %v5848
        %v5865 = vpack.c.b16 %v5851, %v5850
        %v5866 = vpack.c.b16 %v5853, %v5852
        %v5867 = vpack.c.b16 %v5855, %v5854
        %v5868 = vpack.c.b16 %v5857, %v5856
        %v5869 = vpack.c.b16 %v5859, %v5858
        %v5870 = vpack.c.b16 %v5861, %v5860
        %v5871 = vpack.c.b16 %v5863, %v5862
        %5880 = vmatprep.subr.bf16.mxu0 0
        %5881 = vmatpush1.bf16.msra.mxu0 %v5864
        %5882 = vmatprep.subr.bf16.mxu0 0
        %5883 = vmatpush1.bf16.msra.mxu0 %v5865
        %5884 = vmatprep.subr.bf16.mxu0 0
        %5885 = vmatpush1.bf16.msra.mxu0 %v5866
        %5886 = vmatprep.subr.bf16.mxu0 0
        %5887 = vmatpush1.bf16.msra.mxu0 %v5867
        %5888 = vmatprep.subr.bf16.mxu0 0
        %5889 = vmatpush1.bf16.msra.mxu0 %v5868
        %5890 = vmatprep.subr.bf16.mxu0 0
        %5891 = vmatpush1.bf16.msra.mxu0 %v5869
        %5892 = vmatprep.subr.bf16.mxu0 0
        %5893 = vmatpush1.bf16.msra.mxu0 %v5870
        %5894 = vmatprep.subr.bf16.mxu0 0
        %5895 = vmatpush1.bf16.msra.mxu0 %v5871
        %5896 = vmatprep.subr.bf16.mxu0 0
        %5897 = vmatpush1.bf16.msra.mxu0 0
        %5898 = vmatprep.subr.bf16.mxu0 0
        %5899 = vmatpush1.bf16.msra.mxu0 0
        %5900 = vmatprep.subr.bf16.mxu0 0
        %5901 = vmatpush1.bf16.msra.mxu0 0
        %5902 = vmatprep.subr.bf16.mxu0 0
        %5903 = vmatpush1.bf16.msra.mxu0 0
        %5904 = vmatprep.subr.bf16.mxu0 0
        %5905 = vmatpush1.bf16.msra.mxu0 0
        %5906 = vmatprep.subr.bf16.mxu0 0
        %5907 = vmatpush1.bf16.msra.mxu0 0
        %5908 = vmatprep.subr.bf16.mxu0 0
        %5909 = vmatpush1.bf16.msra.mxu0 0
        %5910 = vmatprep.subr.bf16.mxu0 0
        %5911 = vmatpush1.bf16.msra.mxu0 0
        %5912 = vmatprep.mubr.bf16.mxu0 0
        %5913 = vmatmul.mubr.bf16.gmra.mrb[0].mxu0 %v5814
        %v5914 = vpop.f32.mrb[0].mxu0
        %v5915 = vadd.f32 0.0, %v5914
        %v5916 = vpop.f32.mrb[0].mxu0
        %v5917 = vpop.f32.mrb[0].mxu0
        %v5918 = vadd.f32 0.0, %v5917
        %v5919 = vpop.f32.mrb[0].mxu0
        %5920 = vdwg.mxu0
        %v5921 = vadd.f32 %v5760, %v5915
        %v5922 = vadd.f32 %v5761, %v5918
        %v5923 = vld [vmem:[%s9] sm:$0x1]
        %v5925 = vlaneseq
        %v5926 = vshrl.u32 %v5925, 7
        %v5927 = vsub.s32 0, %v5926
        %v5928 = vrot.slane %v5923, %v5927
        %v5930 = vadd.f32 %v5921, %v5928
        %v5931 = vadd.f32 %v5922, %v5928
        %v5932 = vxor.u32 %v5930, 2147483648
        %v5933 = vxor.u32 %v5931, 2147483648
        %v5934 = vmul.f32 %v5932, 1.442695
        %v5935 = vpow.pop %v5934
        %v5936 = vmul.f32 %v5933, 1.442695
        %v5937 = vpow.pop %v5936
        %v5938 = vadd.f32 %v5935, 1.0
        %v5939 = vadd.f32 %v5937, 1.0
        %v5940 = vrcp.pop %v5938
        %v5941 = vmul.f32 1.0, %v5940
        %v5942 = vrcp.pop %v5939
        %v5943 = vmul.f32 1.0, %v5942
        %v5944 = vmul.f32 %v5930, %v5941
        %v5945 = vmul.f32 %v5931, %v5943
        %v5946 = vpack.c.bf16 %v5945, %v5944
        %v5947 = vld [vmem:[%s10] sm:$0xf]
        %v5948 = vld [vmem:[%s10 + $0x4] sm:$0xf]
        %v5949 = vld [vmem:[%s10 + $0x8] sm:$0xf]
        %v5950 = vld [vmem:[%s10 + $0xc] sm:$0xf]
        %v5951 = vld [vmem:[%s10 + $0x10] sm:$0xf]
        %v5952 = vld [vmem:[%s10 + $0x14] sm:$0xf]
        %v5953 = vld [vmem:[%s10 + $0x18] sm:$0xf]
        %v5954 = vld [vmem:[%s10 + $0x1c] sm:$0xf]
        %v5955 = vld [vmem:[%s10 + $0x20] sm:$0xf]
        %v5956 = vld [vmem:[%s10 + $0x24] sm:$0xf]
        %v5957 = vld [vmem:[%s10 + $0x28] sm:$0xf]
        %v5958 = vld [vmem:[%s10 + $0x2c] sm:$0xf]
        %v5959 = vld [vmem:[%s10 + $0x30] sm:$0xf]
        %v5960 = vld [vmem:[%s10 + $0x34] sm:$0xf]
        %v5961 = vld [vmem:[%s10 + $0x38] sm:$0xf]
        %v5962 = vld [vmem:[%s10 + $0x3c] sm:$0xf]
        %v5963 = vld [vmem:[%s11] sm:$0xf]
        %v5964 = vld [vmem:[%s11 + $0x4] sm:$0xf]
        %v5965 = vld [vmem:[%s11 + $0x8] sm:$0xf]
        %v5966 = vld [vmem:[%s11 + $0xc] sm:$0xf]
        %v5967 = vld [vmem:[%s11 + $0x10] sm:$0xf]
        %v5968 = vld [vmem:[%s11 + $0x14] sm:$0xf]
        %v5969 = vld [vmem:[%s11 + $0x18] sm:$0xf]
        %v5970 = vld [vmem:[%s11 + $0x1c] sm:$0xf]
        %v5971 = vld [vmem:[%s11 + $0x20] sm:$0xf]
        %v5972 = vld [vmem:[%s11 + $0x24] sm:$0xf]
        %v5973 = vld [vmem:[%s11 + $0x28] sm:$0xf]
        %v5974 = vld [vmem:[%s11 + $0x2c] sm:$0xf]
        %v5975 = vld [vmem:[%s11 + $0x30] sm:$0xf]
        %v5976 = vld [vmem:[%s11 + $0x34] sm:$0xf]
        %v5977 = vld [vmem:[%s11 + $0x38] sm:$0xf]
        %v5978 = vld [vmem:[%s11 + $0x3c] sm:$0xf]
        %v5995 = vunpack.c.l.b16 %v5963
        %v5996 = vunpack.c.l.b16 %v5964
        %v5997 = vunpack.c.l.b16 %v5965
        %v5998 = vunpack.c.l.b16 %v5966
        %v5999 = vunpack.c.l.b16 %v5967
        %v6000 = vunpack.c.l.b16 %v5968
        %v6001 = vunpack.c.l.b16 %v5969
        %v6002 = vunpack.c.l.b16 %v5970
        %v6003 = vunpack.c.l.b16 %v5971
        %v6004 = vunpack.c.l.b16 %v5972
        %v6005 = vunpack.c.l.b16 %v5973
        %v6006 = vunpack.c.l.b16 %v5974
        %v6007 = vunpack.c.l.b16 %v5975
        %v6008 = vunpack.c.l.b16 %v5976
        %v6009 = vunpack.c.l.b16 %v5977
        %v6010 = vunpack.c.l.b16 %v5978
        %v6011 = vpack.c.b16 %v5996, %v5995
        %v6012 = vpack.c.b16 %v5998, %v5997
        %v6013 = vpack.c.b16 %v6000, %v5999
        %v6014 = vpack.c.b16 %v6002, %v6001
        %v6015 = vpack.c.b16 %v6004, %v6003
        %v6016 = vpack.c.b16 %v6006, %v6005
        %v6017 = vpack.c.b16 %v6008, %v6007
        %v6018 = vpack.c.b16 %v6010, %v6009
        %6027 = vmatprep.subr.bf16.mxu0 0
        %6028 = vmatpush1.bf16.msra.mxu0 %v6011
        %6029 = vmatprep.subr.bf16.mxu0 0
        %6030 = vmatpush1.bf16.msra.mxu0 %v6012
        %6031 = vmatprep.subr.bf16.mxu0 0
        %6032 = vmatpush1.bf16.msra.mxu0 %v6013
        %6033 = vmatprep.subr.bf16.mxu0 0
        %6034 = vmatpush1.bf16.msra.mxu0 %v6014
        %6035 = vmatprep.subr.bf16.mxu0 0
        %6036 = vmatpush1.bf16.msra.mxu0 %v6015
        %6037 = vmatprep.subr.bf16.mxu0 0
        %6038 = vmatpush1.bf16.msra.mxu0 %v6016
        %6039 = vmatprep.subr.bf16.mxu0 0
        %6040 = vmatpush1.bf16.msra.mxu0 %v6017
        %6041 = vmatprep.subr.bf16.mxu0 0
        %6042 = vmatpush1.bf16.msra.mxu0 %v6018
        %6043 = vmatprep.subr.bf16.mxu0 0
        %6044 = vmatpush1.bf16.msra.mxu0 0
        %6045 = vmatprep.subr.bf16.mxu0 0
        %6046 = vmatpush1.bf16.msra.mxu0 0
        %6047 = vmatprep.subr.bf16.mxu0 0
        %6048 = vmatpush1.bf16.msra.mxu0 0
        %6049 = vmatprep.subr.bf16.mxu0 0
        %6050 = vmatpush1.bf16.msra.mxu0 0
        %6051 = vmatprep.subr.bf16.mxu0 0
        %6052 = vmatpush1.bf16.msra.mxu0 0
        %6053 = vmatprep.subr.bf16.mxu0 0
        %6054 = vmatpush1.bf16.msra.mxu0 0
        %6055 = vmatprep.subr.bf16.mxu0 0
        %6056 = vmatpush1.bf16.msra.mxu0 0
        %6057 = vmatprep.subr.bf16.mxu0 0
        %6058 = vmatpush1.bf16.msra.mxu0 0
        %6059 = vmatprep.mubr.bf16.mxu0 0
        %6060 = vmatmul.mubr.bf16.gmra.mrb[0].mxu0 %v4478
        %v6061 = vpop.f32.mrb[0].mxu0
        %v6062 = vadd.f32 0.0, %v6061
        %v6063 = vpop.f32.mrb[0].mxu0
        %v6064 = vpop.f32.mrb[0].mxu0
        %v6065 = vadd.f32 0.0, %v6064
        %v6066 = vpop.f32.mrb[0].mxu0
        %6067 = vdwg.mxu0
        %v6084 = vunpack.c.l.b16 %v5947
        %v6085 = vunpack.c.l.b16 %v5948
        %v6086 = vunpack.c.l.b16 %v5949
        %v6087 = vunpack.c.l.b16 %v5950
        %v6088 = vunpack.c.l.b16 %v5951
        %v6089 = vunpack.c.l.b16 %v5952
        %v6090 = vunpack.c.l.b16 %v5953
        %v6091 = vunpack.c.l.b16 %v5954
        %v6092 = vunpack.c.l.b16 %v5955
        %v6093 = vunpack.c.l.b16 %v5956
        %v6094 = vunpack.c.l.b16 %v5957
        %v6095 = vunpack.c.l.b16 %v5958
        %v6096 = vunpack.c.l.b16 %v5959
        %v6097 = vunpack.c.l.b16 %v5960
        %v6098 = vunpack.c.l.b16 %v5961
        %v6099 = vunpack.c.l.b16 %v5962
        %v6100 = vpack.c.b16 %v6085, %v6084
        %v6101 = vpack.c.b16 %v6087, %v6086
        %v6102 = vpack.c.b16 %v6089, %v6088
        %v6103 = vpack.c.b16 %v6091, %v6090
        %v6104 = vpack.c.b16 %v6093, %v6092
        %v6105 = vpack.c.b16 %v6095, %v6094
        %v6106 = vpack.c.b16 %v6097, %v6096
        %v6107 = vpack.c.b16 %v6099, %v6098
        %6116 = vmatprep.subr.bf16.mxu0 0
        %6117 = vmatpush1.bf16.msra.mxu0 %v6100
        %6118 = vmatprep.subr.bf16.mxu0 0
        %6119 = vmatpush1.bf16.msra.mxu0 %v6101
        %6120 = vmatprep.subr.bf16.mxu0 0
        %6121 = vmatpush1.bf16.msra.mxu0 %v6102
        %6122 = vmatprep.subr.bf16.mxu0 0
        %6123 = vmatpush1.bf16.msra.mxu0 %v6103
        %6124 = vmatprep.subr.bf16.mxu0 0
        %6125 = vmatpush1.bf16.msra.mxu0 %v6104
        %6126 = vmatprep.subr.bf16.mxu0 0
        %6127 = vmatpush1.bf16.msra.mxu0 %v6105
        %6128 = vmatprep.subr.bf16.mxu0 0
        %6129 = vmatpush1.bf16.msra.mxu0 %v6106
        %6130 = vmatprep.subr.bf16.mxu0 0
        %6131 = vmatpush1.bf16.msra.mxu0 %v6107
        %6132 = vmatprep.subr.bf16.mxu0 0
        %6133 = vmatpush1.bf16.msra.mxu0 0
        %6134 = vmatprep.subr.bf16.mxu0 0
        %6135 = vmatpush1.bf16.msra.mxu0 0
        %6136 = vmatprep.subr.bf16.mxu0 0
        %6137 = vmatpush1.bf16.msra.mxu0 0
        %6138 = vmatprep.subr.bf16.mxu0 0
        %6139 = vmatpush1.bf16.msra.mxu0 0
        %6140 = vmatprep.subr.bf16.mxu0 0
        %6141 = vmatpush1.bf16.msra.mxu0 0
        %6142 = vmatprep.subr.bf16.mxu0 0
        %6143 = vmatpush1.bf16.msra.mxu0 0
        %6144 = vmatprep.subr.bf16.mxu0 0
        %6145 = vmatpush1.bf16.msra.mxu0 0
        %6146 = vmatprep.subr.bf16.mxu0 0
        %6147 = vmatpush1.bf16.msra.mxu0 0
        %6148 = vmatprep.mubr.bf16.mxu0 0
        %6149 = vmatmul.mubr.bf16.gmra.mrb[0].mxu0 %v5946
        %v6150 = vpop.f32.mrb[0].mxu0
        %v6151 = vadd.f32 %v6062, %v6150
        %v6152 = vpop.f32.mrb[0].mxu0
        %v6153 = vpop.f32.mrb[0].mxu0
        %v6154 = vadd.f32 %v6065, %v6153
        %v6155 = vpop.f32.mrb[0].mxu0
        %6156 = vdwg.mxu0
        %v6157 = vld [vmem:[%s12] sm:$0x1]
        %v6159 = vlaneseq
        %v6160 = vshrl.u32 %v6159, 7
        %v6161 = vsub.s32 0, %v6160
        %v6162 = vrot.slane %v6157, %v6161
        %v6164 = vadd.f32 %v6151, %v6162
        %v6165 = vadd.f32 %v6154, %v6162
        %v6166 = vxor.u32 %v6164, 2147483648
        %v6167 = vxor.u32 %v6165, 2147483648
        %v6168 = vmul.f32 %v6166, 1.442695
        %v6169 = vpow.pop %v6168
        %v6170 = vmul.f32 %v6167, 1.442695
        %v6171 = vpow.pop %v6170
        %v6172 = vadd.f32 %v6169, 1.0
        %v6173 = vadd.f32 %v6171, 1.0
        %v6174 = vrcp.pop %v6172
        %v6175 = vmul.f32 1.0, %v6174
        %v6176 = vrcp.pop %v6173
        %v6177 = vmul.f32 1.0, %v6176
        %v6178 = vmul.f32 %v6164, %v6175
        %v6179 = vmul.f32 %v6165, %v6177
        %6180 = vst [vmem:[%s508] sm:$0xff] %v5944
        %6181 = vst [vmem:[%s508 + $0x8] sm:$0xff] %v5945
        %6182 = vst [vmem:[%s515] sm:$0xff] %v6178
        %6183 = vst [vmem:[%s515 + $0x8] sm:$0xff] %v6179
        %s6184 = sand.u32 %s320, 1
        %s6185 = scalar_lea.sflag [#allocation4], %s6184
        %s6186 = sand.u32 %s320, 1
        %s6187 = smul.addr %s6186, 16
        %s6188 = scalar_lea.vmem [#allocation8], %s6187
        %s6189 = sand.u32 %s346, 1
        %s6190 = scalar_lea.sflag [#allocation10], %s6189
        %s6191 = sand.u32 %s346, 1
        %s6192 = smul.addr %s6191, 16
        %s6193 = scalar_lea.vmem [#allocation9], %s6192
        // Predicated region
        $region85: #{yolo_backbone_forward.1} parent=71 // pred_check
          %p6194 = pneg %p330
        $region86: #{yolo_backbone_forward.1} parent=71 // pred_check_branch
          %6196 = sbr.rel (%p6194) target = $region88
        $region87: #{yolo_backbone_forward.1} parent=71 // pred_region
          %s6198 = ssub.s32 256, 256
          %6199 = vsyncadd %s6185, %s6198
          %s6200 = smul.addr %s34, 2
          %s6201 = smul.addr %s6200, 128
          %s6202 = scalar_lea.hbm %s13, %s6201
          %s6203 = sshll.u32 %s6188, 4
          %s6204 = int_to_ptr.vmem [resolvable:$true] %s6203
          %6209 = dma.vmem_to_hbm [thread:$0]  %s6204, 256, %s6202, %s6185, 128, 128, 8
        $region88: #{yolo_backbone_forward.1} parent=71 // pred_fallthru
          _
        // Predicated region
        $region89: #{yolo_backbone_forward.1} parent=71 // pred_check
          %p6210 = pneg %p356
        $region90: #{yolo_backbone_forward.1} parent=71 // pred_check_branch
          %6212 = sbr.rel (%p6210) target = $region92
        $region91: #{yolo_backbone_forward.1} parent=71 // pred_region
          %s6214 = ssub.s32 256, 256
          %6215 = vsyncadd %s6190, %s6214
          %s6216 = smul.addr %s34, 2
          %s6217 = smul.addr %s6216, 128
          %s6218 = scalar_lea.hbm %s14, %s6217
          %s6219 = sshll.u32 %s6193, 4
          %s6220 = int_to_ptr.vmem [resolvable:$true] %s6219
          %6225 = dma.vmem_to_hbm [thread:$0]  %s6220, 256, %s6218, %s6190, 128, 128, 8
        $region92: #{yolo_backbone_forward.1} parent=71 // pred_fallthru
          _
      $region72: #{yolo_backbone_forward.1} parent=5 // pred_fallthru
        _
      %p6226 = scmp.le.s32.totalorder 2, %s29
      // Predicated region
      $region93: #{yolo_backbone_forward.1} parent=5 // pred_check
        %p6227 = pneg %p6226
      $region94: #{yolo_backbone_forward.1} parent=5 // pred_check_branch
        %6229 = sbr.rel (%p6227) target = $region96
      $region95: #{yolo_backbone_forward.1} parent=5 // pred_region
        %s6230 = ssub.s32 %s29, 2
        // Predicated region
        $region97: #{yolo_backbone_forward.1} parent=95 // pred_check
          %p6231 = pneg %p336
        $region98: #{yolo_backbone_forward.1} parent=95 // pred_check_branch
          %6233 = sbr.rel (%p6231) target = $region100
        $region99: #{yolo_backbone_forward.1} parent=95 // pred_region
          %s6234 = sand.u32 %s321, 1
          %s6235 = scalar_lea.sflag [#allocation4], %s6234
          %s6236 = sand.u32 %s321, 1
          %s6237 = smul.addr %s6236, 16
          %s6238 = scalar_lea.vmem [#allocation8], %s6237
          %6239 = dma.done %s6235, 256
        $region100: #{yolo_backbone_forward.1} parent=95 // pred_fallthru
          _
        // Predicated region
        $region101: #{yolo_backbone_forward.1} parent=95 // pred_check
          %p6240 = pneg %p362
        $region102: #{yolo_backbone_forward.1} parent=95 // pred_check_branch
          %6242 = sbr.rel (%p6240) target = $region104
        $region103: #{yolo_backbone_forward.1} parent=95 // pred_region
          %s6243 = sand.u32 %s347, 1
          %s6244 = scalar_lea.sflag [#allocation10], %s6243
          %s6245 = sand.u32 %s347, 1
          %s6246 = smul.addr %s6245, 16
          %s6247 = scalar_lea.vmem [#allocation9], %s6246
          %6248 = dma.done %s6244, 256
        $region104: #{yolo_backbone_forward.1} parent=95 // pred_fallthru
          _
      $region96: #{yolo_backbone_forward.1} parent=5 // pred_fallthru
        _
    $region6: #{yolo_backbone_forward.1} parent=1 // loop_footer
      %s33 = sadd.s32 1, %s29
    $region7: #{yolo_backbone_forward.1} parent=1 // loop_footer_branch
      %28 = sbr.rel target = $region3
    $region8: #{yolo_backbone_forward.1} parent=1 // loop_exit
      _
    %6249 = vsyncpa [#allocation3], 1
    %s6250 = scalar_lea.sflag [#allocation3], 1
    %6251 = vsyncpa %s6250, 1
    %6252 = vsyncpa [#allocation6], 1
    %6253 = vsyncpa [#allocation4], 1
    %s6254 = scalar_lea.sflag [#allocation4], 1
    %6255 = vsyncpa %s6254, 1
    %6256 = vsyncpa [#allocation10], 1
    %s6257 = scalar_lea.sflag [#allocation10], 1
    %6258 = vsyncpa %s6257, 1

</llo_original>
